<compile_context>
chip_gen: v5e
topology: v5e:2x2
jax: 0.10.0
libtpu: 0.0.40
codegen_flags: <defaults>
</compile_context>

<pallas_src>
import jax
import jax.numpy as jnp
from jax.experimental import pallas as pl
from jax.experimental.pallas import tpu as pltpu

NEG_SLOPE = 0.2   # GATv2Conv default negative_slope
XR_OFF = 128      # lane offset of the packed x_r block (128-aligned -> zero-cost slice)
PACK_W = 256      # padded lane width of the packed projection (2 full vregs)


def _full_spec(shape):
    # whole-array block (tiny shapes), single grid step
    return pl.BlockSpec(shape, lambda i: (0,) * len(shape))


# ---------------------------------------------------------------------------
# Fused forward kernel: encoder MLPs -> GATv2 stack -> decoder MLPs
# ---------------------------------------------------------------------------
def make_fused_kernel(n_enc, n_gat, n_dec, n_heads, hld):
    HD = n_heads * hld

    def kernel(*refs):
        idx = 0
        x_ref = refs[idx]; adj_ref = refs[idx + 1]; idx += 2
        enc = []
        for _ in range(n_enc):
            enc.append((refs[idx], refs[idx + 1])); idx += 2
        gat = []
        for _ in range(n_gat):
            gat.append(tuple(refs[idx:idx + 4])); idx += 4
        dec = []
        for _ in range(n_dec):
            dec.append((refs[idx], refs[idx + 1])); idx += 2
        o_ref = refs[idx]

        x = x_ref[...]                      # [N, iDim]
        adj = adj_ref[...]                  # [N, N], adj[i, j] = 1 iff edge j -> i
        # Hoisted masked-softmax additive bias, shared by every head of every GAT layer.
        neg_bias = jnp.where(adj > 0.0, 0.0, -1e30)   # [N, N] f32

        # ---- encoder MLPs (Linear + ReLU) ----
        for (w_ref, b_ref) in enc:
            x = jnp.maximum(
                jnp.dot(x, w_ref[...], preferred_element_type=jnp.float32) + b_ref[...],
                0.0)

        # ---- GATv2Conv(heads=H, concat=False, add_self_loops=False) + ReLU ----
        # TODO(synk): for large N / graph batches, add a real grid axis over dst tiles
        # (or graphs), mark it "parallel" (v7x 2-TC sharding), keep adj as an int8
        # VPU-side mask, cast matmul operands to bf16 (scores/softmax stay f32), and
        # budget block shapes for 64 MiB VMEM on v7x (vmem_limit_bytes set explicitly).
        for (wlr_ref, blr_ref, att_ref, bout_ref) in gat:
            # Single lane-dense MXU matmul for all heads' l/r projections.
            # Columns [0, H*D) = x_l per head, [XR_OFF, XR_OFF+H*D) = x_r per head.
            xlr = jnp.dot(x, wlr_ref[...], preferred_element_type=jnp.float32) \
                + blr_ref[...]                       # [N, PACK_W]
            xl_all = xlr[:, :HD]                     # [N, H*D], lane offset 0
            xr_all = xlr[:, XR_OFF:XR_OFF + HD]      # [N, H*D], 128-aligned slice
            att_all = att_ref[...]                   # [1, H*D] packed per-head att vecs

            # Heads packed on the lane axis: ONE pass of add / LeakyReLU / att-multiply.
            e = xr_all[:, None, :] + xl_all[None, :, :]   # [N, N, H*D]
            e = jnp.maximum(e, NEG_SLOPE * e)             # LeakyReLU (max+mul, no select)
            ea = e * att_all[None, :, :]                  # [N, N, H*D]

            acc = jnp.zeros_like(x)                       # [N, D] f32
            for h in range(n_heads):                      # static unroll over heads
                # per-head score: reduce the head's 32-lane segment
                s = jnp.sum(ea[:, :, h * hld:(h + 1) * hld], axis=-1)   # [N, N]
                s = s + neg_bias                          # masked softmax (additive)
                m = jnp.max(s, axis=-1, keepdims=True)
                p = jnp.exp(s - m) * adj                  # zero non-edges / isolated rows
                denom = jnp.sum(p, axis=-1, keepdims=True)
                # 1/H head-mean folded into the EUP reciprocal
                inv = pl.reciprocal(jnp.maximum(denom * n_heads, 1e-30), approx=True)
                alpha = p * inv                           # isolated nodes: p==0 -> 0
                xl = xl_all[:, h * hld:(h + 1) * hld]     # [N, D]
                acc = acc + jnp.dot(alpha, xl, preferred_element_type=jnp.float32)

            # concat=False mean is already folded into `inv`; add bias, apply ReLU (AF)
            x = jnp.maximum(acc + bout_ref[...], 0.0)

        # ---- decoder MLPs (Linear + ReLU, incl. after the last layer, per spec) ----
        for (w_ref, b_ref) in dec:
            x = jnp.maximum(
                jnp.dot(x, w_ref[...], preferred_element_type=jnp.float32) + b_ref[...],
                0.0)

        o_ref[...] = x.astype(o_ref.dtype)

    return kernel


def gat_forward(x, adj, enc_params, gat_params, dec_params):
    """enc/dec params: list of (W_t [Din,Dout], b [1,Dout]).
    gat params: list of (W_pack [HLD,PACK_W], b_pack [1,PACK_W],
                         att_pack [1,H*HLD], b_out [1,HLD])."""
    flat_inputs = [x, adj]
    for w, b in enc_params:
        flat_inputs += [w, b]
    for wlr, blr, att, bout in gat_params:
        flat_inputs += [wlr, blr, att, bout]
    for w, b in dec_params:
        flat_inputs += [w, b]

    N = x.shape[0]
    o_dim = dec_params[-1][0].shape[1]
    hld = gat_params[0][3].shape[1]
    n_heads = gat_params[0][2].shape[1] // hld

    kernel = make_fused_kernel(len(enc_params), len(gat_params), len(dec_params),
                               n_heads, hld)
    return pl.pallas_call(
        kernel,
        grid=(1,),
        in_specs=[_full_spec(a.shape) for a in flat_inputs],
        out_specs=_full_spec((N, o_dim)),
        out_shape=jax.ShapeDtypeStruct((N, o_dim), jnp.float32),
        # single-step grid today; becomes the "parallel" graph/dst-tile axis when batched
        compiler_params=pltpu.CompilerParams(dimension_semantics=("arbitrary",)),
    )(*flat_inputs)


# ---------------------------------------------------------------------------
# Pure-JAX reference (independent math, per-head params, exact division)
# ---------------------------------------------------------------------------
def gat_forward_ref(x, adj, enc_params, gat_params_raw, dec_params):
    def lin(x, w_t, b):
        return jnp.maximum(x @ w_t + b, 0.0)

    def gat(x, p):
        wl, bl, wr, br, att, bout = p
        H = wl.shape[0]
        acc = 0.0
        for h in range(H):
            xl = x @ wl[h] + bl[h]
            xr = x @ wr[h] + br[h]
            e = xr[:, None, :] + xl[None, :, :]
            e = jnp.where(e > 0, e, NEG_SLOPE * e)
            s = jnp.sum(e * att[h][None, :, :], axis=-1)
            s = jnp.where(adj > 0, s, -1e30)
            m = jnp.max(s, axis=-1, keepdims=True)
            pp = jnp.exp(s - m) * adj
            denom = jnp.sum(pp, axis=-1, keepdims=True)
            alpha = jnp.where(denom > 0, pp / jnp.maximum(denom, 1e-30), 0.0)
            acc = acc + alpha @ xl
        return jnp.maximum(acc / H + bout, 0.0)

    for w_t, b in enc_params:
        x = lin(x, w_t, b)
    for p in gat_params_raw:
        x = gat(x, p)
    for w_t, b in dec_params:
        x = lin(x, w_t, b)
    return x


if __name__ == "__main__":
    # modelPara: nMLP=2, nGAT=2, BN=False, AF='ReLU', HLD=32, iDim=8, oDim=4
    N, iDim, HLD, oDim, H = 16, 8, 32, 4, 3
    nMLP, nGAT = 2, 2

    keys = iter(jax.random.split(jax.random.PRNGKey(0), 64))

    def mk(shape, scale=0.1):
        return scale * jax.random.normal(next(keys), shape, dtype=jnp.float32)

    # encoder Linear params (stored pre-transposed: [Din, Dout]) + bias [1, Dout]
    enc_params = []
    for n in range(nMLP):
        d_in = iDim if n == 0 else HLD
        enc_params.append((mk((d_in, HLD)), mk((1, HLD))))

    # GATv2Conv raw params per layer: lin_l / lin_r weights+bias per head, att, out bias
    gat_params_raw = []
    for _ in range(nGAT):
        gat_params_raw.append((
            mk((H, HLD, HLD)),   # W_l (pre-transposed per head)
            mk((H, 1, HLD)),     # b_l
            mk((H, HLD, HLD)),   # W_r
            mk((H, 1, HLD)),     # b_r
            mk((H, 1, HLD)),     # attention vector a per head
            mk((1, HLD)),        # output bias (concat=False -> out_channels)
        ))

    # pack l/r head projections into one lane-dense matmul per GAT layer:
    #   columns [0, H*HLD)          = W_l heads  (x_l)
    #   columns [XR_OFF, XR_OFF+H*HLD) = W_r heads  (x_r)   -> 128-aligned slices
    #   padded to PACK_W=256 lanes (2 full vregs)
    gat_params_stacked = []
    for (wl, bl, wr, br, att, bout) in gat_params_raw:
        w_pack = jnp.zeros((HLD, PACK_W), jnp.float32)
        w_pack = w_pack.at[:, :H * HLD].set(
            jnp.concatenate([wl[h] for h in range(H)], axis=1))
        w_pack = w_pack.at[:, XR_OFF:XR_OFF + H * HLD].set(
            jnp.concatenate([wr[h] for h in range(H)], axis=1))
        b_pack = jnp.zeros((1, PACK_W), jnp.float32)
        b_pack = b_pack.at[:, :H * HLD].set(
            jnp.concatenate([bl[h] for h in range(H)], axis=1))
        b_pack = b_pack.at[:, XR_OFF:XR_OFF + H * HLD].set(
            jnp.concatenate([br[h] for h in range(H)], axis=1))
        att_pack = jnp.concatenate([att[h] for h in range(H)], axis=1)  # [1, H*HLD]
        gat_params_stacked.append((w_pack, b_pack, att_pack, bout))

    # decoder Linear params
    dec_params = []
    for n in range(nMLP):
        d_out = oDim if n == nMLP - 1 else HLD
        dec_params.append((mk((HLD, d_out)), mk((1, d_out))))

    # inputs: node features, bidirectional ring graph edges, dummy edge attrs
    x = jax.random.normal(next(keys), (N, iDim), dtype=jnp.float32)
    idx = jnp.arange(N)
    src = jnp.concatenate([idx, (idx + 1) % N])
    dst = jnp.concatenate([(idx + 1) % N, idx])
    edgeIdx = jnp.stack([src, dst])                          # [2, E]
    edgeAttr = jnp.ones((edgeIdx.shape[1], 1), jnp.float32)  # unused in forward
    # dense adjacency mask: adj[dst, src] = 1  (glue; gather/scatter densified)
    adj = jnp.zeros((N, N), jnp.float32).at[dst, src].set(1.0)

    out = gat_forward(x, adj, enc_params, gat_params_stacked, dec_params)
    out = jax.block_until_ready(out)

    ref = gat_forward_ref(x, adj, enc_params, gat_params_raw, dec_params)
    assert out.shape == (N, oDim)
    # slightly looser tolerance: kernel uses approx EUP reciprocal in the softmax
    assert jnp.allclose(out, ref, rtol=1e-2, atol=2e-3), "mismatch vs reference"

    print("KERNEL_OK")
</pallas_src>

<mosaic_0001>
module attributes {stable_mosaic.version = 11 : i64} {
  func.func @kernel(%arg0: i32, %arg1: memref<16x8xf32, #tpu.memory_space<vmem>>, %arg2: memref<16x16xf32, #tpu.memory_space<vmem>>, %arg3: memref<8x32xf32, #tpu.memory_space<vmem>>, %arg4: memref<1x32xf32, #tpu.memory_space<vmem>>, %arg5: memref<32x32xf32, #tpu.memory_space<vmem>>, %arg6: memref<1x32xf32, #tpu.memory_space<vmem>>, %arg7: memref<32x256xf32, #tpu.memory_space<vmem>>, %arg8: memref<1x256xf32, #tpu.memory_space<vmem>>, %arg9: memref<1x96xf32, #tpu.memory_space<vmem>>, %arg10: memref<1x32xf32, #tpu.memory_space<vmem>>, %arg11: memref<32x256xf32, #tpu.memory_space<vmem>>, %arg12: memref<1x256xf32, #tpu.memory_space<vmem>>, %arg13: memref<1x96xf32, #tpu.memory_space<vmem>>, %arg14: memref<1x32xf32, #tpu.memory_space<vmem>>, %arg15: memref<32x32xf32, #tpu.memory_space<vmem>>, %arg16: memref<1x32xf32, #tpu.memory_space<vmem>>, %arg17: memref<32x4xf32, #tpu.memory_space<vmem>>, %arg18: memref<1x4xf32, #tpu.memory_space<vmem>>, %arg19: memref<16x4xf32, #tpu.memory_space<vmem>>) attributes {dimension_semantics = [#tpu.dimension_semantics<arbitrary>], iteration_bounds = array<i64: 1>, scalar_prefetch = 0 : i64, scratch_operands = 0 : i64, tpu.core_type = #tpu.core_type<tc>, window_params = [{pipeline_mode = #tpu.pipeline_mode<synchronous>, transform_indices = @transform_0, window_bounds = array<i64: 16, 8>}, {pipeline_mode = #tpu.pipeline_mode<synchronous>, transform_indices = @transform_1, window_bounds = array<i64: 16, 16>}, {pipeline_mode = #tpu.pipeline_mode<synchronous>, transform_indices = @transform_2, window_bounds = array<i64: 8, 32>}, {pipeline_mode = #tpu.pipeline_mode<synchronous>, transform_indices = @transform_3, window_bounds = array<i64: 1, 32>}, {pipeline_mode = #tpu.pipeline_mode<synchronous>, transform_indices = @transform_4, window_bounds = array<i64: 32, 32>}, {pipeline_mode = #tpu.pipeline_mode<synchronous>, transform_indices = @transform_5, window_bounds = array<i64: 1, 32>}, {pipeline_mode = #tpu.pipeline_mode<synchronous>, transform_indices = @transform_6, window_bounds = array<i64: 32, 256>}, {pipeline_mode = #tpu.pipeline_mode<synchronous>, transform_indices = @transform_7, window_bounds = array<i64: 1, 256>}, {pipeline_mode = #tpu.pipeline_mode<synchronous>, transform_indices = @transform_8, window_bounds = array<i64: 1, 96>}, {pipeline_mode = #tpu.pipeline_mode<synchronous>, transform_indices = @transform_9, window_bounds = array<i64: 1, 32>}, {pipeline_mode = #tpu.pipeline_mode<synchronous>, transform_indices = @transform_10, window_bounds = array<i64: 32, 256>}, {pipeline_mode = #tpu.pipeline_mode<synchronous>, transform_indices = @transform_11, window_bounds = array<i64: 1, 256>}, {pipeline_mode = #tpu.pipeline_mode<synchronous>, transform_indices = @transform_12, window_bounds = array<i64: 1, 96>}, {pipeline_mode = #tpu.pipeline_mode<synchronous>, transform_indices = @transform_13, window_bounds = array<i64: 1, 32>}, {pipeline_mode = #tpu.pipeline_mode<synchronous>, transform_indices = @transform_14, window_bounds = array<i64: 32, 32>}, {pipeline_mode = #tpu.pipeline_mode<synchronous>, transform_indices = @transform_15, window_bounds = array<i64: 1, 32>}, {pipeline_mode = #tpu.pipeline_mode<synchronous>, transform_indices = @transform_16, window_bounds = array<i64: 32, 4>}, {pipeline_mode = #tpu.pipeline_mode<synchronous>, transform_indices = @transform_17, window_bounds = array<i64: 1, 4>}, {pipeline_mode = #tpu.pipeline_mode<synchronous>, transform_indices = @transform_18, window_bounds = array<i64: 16, 4>}]} {
    %c0 = arith.constant 0 : index
    %c0_0 = arith.constant 0 : index
    %0 = vector.load %arg1[%c0, %c0_0] : memref<16x8xf32, #tpu.memory_space<vmem>>, vector<16x8xf32>
    %c0_1 = arith.constant 0 : index
    %c0_2 = arith.constant 0 : index
    %1 = vector.load %arg2[%c0_1, %c0_2] : memref<16x16xf32, #tpu.memory_space<vmem>>, vector<16x16xf32>
    %cst = arith.constant 0.000000e+00 : f32
    %2 = vector.broadcast %cst : f32 to vector<16x16xf32>
    %3 = arith.cmpf ogt, %1, %2 : vector<16x16xf32>
    %cst_3 = arith.constant 0.000000e+00 : f32
    %cst_4 = arith.constant -1.000000e+30 : f32
    %4 = vector.broadcast %cst_3 : f32 to vector<16x16xf32>
    %5 = vector.broadcast %cst_4 : f32 to vector<16x16xf32>
    %6 = arith.select %3, %4, %5 : vector<16x16xi1>, vector<16x16xf32>
    %c0_5 = arith.constant 0 : index
    %c0_6 = arith.constant 0 : index
    %7 = vector.load %arg3[%c0_5, %c0_6] : memref<8x32xf32, #tpu.memory_space<vmem>>, vector<8x32xf32>
    %cst_7 = arith.constant dense<0.000000e+00> : vector<16x32xf32>
    %8 = tpu.matmul %0, %7, %cst_7 {dimension_numbers = #tpu.dot_dimension_numbers<[1], [0], [0], [1], [0, 0, 1, 1], [], []>} : vector<16x8xf32>, vector<8x32xf32>, vector<16x32xf32> -> vector<16x32xf32>
    %c0_8 = arith.constant 0 : index
    %c0_9 = arith.constant 0 : index
    %9 = vector.load %arg4[%c0_8, %c0_9] : memref<1x32xf32, #tpu.memory_space<vmem>>, vector<1x32xf32>
    %10 = vector.broadcast %9 : vector<1x32xf32> to vector<16x32xf32>
    %11 = arith.addf %8, %10 : vector<16x32xf32>
    %cst_10 = arith.constant 0.000000e+00 : f32
    %12 = vector.broadcast %cst_10 : f32 to vector<16x32xf32>
    %13 = arith.maximumf %11, %12 : vector<16x32xf32>
    %c0_11 = arith.constant 0 : index
    %c0_12 = arith.constant 0 : index
    %14 = vector.load %arg5[%c0_11, %c0_12] : memref<32x32xf32, #tpu.memory_space<vmem>>, vector<32x32xf32>
    %cst_13 = arith.constant dense<0.000000e+00> : vector<16x32xf32>
    %15 = tpu.matmul %13, %14, %cst_13 {dimension_numbers = #tpu.dot_dimension_numbers<[1], [0], [0], [1], [0, 0, 1, 1], [], []>} : vector<16x32xf32>, vector<32x32xf32>, vector<16x32xf32> -> vector<16x32xf32>
    %c0_14 = arith.constant 0 : index
    %c0_15 = arith.constant 0 : index
    %16 = vector.load %arg6[%c0_14, %c0_15] : memref<1x32xf32, #tpu.memory_space<vmem>>, vector<1x32xf32>
    %17 = vector.broadcast %16 : vector<1x32xf32> to vector<16x32xf32>
    %18 = arith.addf %15, %17 : vector<16x32xf32>
    %cst_16 = arith.constant 0.000000e+00 : f32
    %19 = vector.broadcast %cst_16 : f32 to vector<16x32xf32>
    %20 = arith.maximumf %18, %19 : vector<16x32xf32>
    %c0_17 = arith.constant 0 : index
    %c0_18 = arith.constant 0 : index
    %21 = vector.load %arg7[%c0_17, %c0_18] : memref<32x256xf32, #tpu.memory_space<vmem>>, vector<32x256xf32>
    %cst_19 = arith.constant dense<0.000000e+00> : vector<16x256xf32>
    %22 = tpu.matmul %20, %21, %cst_19 {dimension_numbers = #tpu.dot_dimension_numbers<[1], [0], [0], [1], [0, 0, 1, 1], [], []>} : vector<16x32xf32>, vector<32x256xf32>, vector<16x256xf32> -> vector<16x256xf32>
    %c0_20 = arith.constant 0 : index
    %c0_21 = arith.constant 0 : index
    %23 = vector.load %arg8[%c0_20, %c0_21] : memref<1x256xf32, #tpu.memory_space<vmem>>, vector<1x256xf32>
    %24 = vector.broadcast %23 : vector<1x256xf32> to vector<16x256xf32>
    %25 = arith.addf %22, %24 : vector<16x256xf32>
    %26 = vector.extract_strided_slice %25 {offsets = [0, 0], sizes = [16, 96], strides = [1, 1]} : vector<16x256xf32> to vector<16x96xf32>
    %27 = vector.extract_strided_slice %25 {offsets = [0, 128], sizes = [16, 96], strides = [1, 1]} : vector<16x256xf32> to vector<16x96xf32>
    %c0_22 = arith.constant 0 : index
    %c0_23 = arith.constant 0 : index
    %28 = vector.load %arg9[%c0_22, %c0_23] : memref<1x96xf32, #tpu.memory_space<vmem>>, vector<1x96xf32>
    %29 = vector.shape_cast %27 : vector<16x96xf32> to vector<16x1x96xf32>
    %30 = vector.shape_cast %26 : vector<16x96xf32> to vector<1x16x96xf32>
    %31 = vector.broadcast %29 : vector<16x1x96xf32> to vector<16x16x96xf32>
    %32 = vector.broadcast %30 : vector<1x16x96xf32> to vector<16x16x96xf32>
    %33 = arith.addf %31, %32 : vector<16x16x96xf32>
    %cst_24 = arith.constant 2.000000e-01 : f32
    %34 = vector.broadcast %cst_24 : f32 to vector<16x16x96xf32>
    %35 = arith.mulf %34, %33 : vector<16x16x96xf32>
    %36 = arith.maximumf %33, %35 : vector<16x16x96xf32>
    %37 = vector.shape_cast %28 : vector<1x96xf32> to vector<1x1x96xf32>
    %38 = vector.broadcast %37 : vector<1x1x96xf32> to vector<16x16x96xf32>
    %39 = arith.mulf %36, %38 : vector<16x16x96xf32>
    %cst_25 = arith.constant 0.000000e+00 : f32
    %40 = vector.broadcast %cst_25 : f32 to vector<16x32xf32>
    %41 = vector.extract_strided_slice %39 {offsets = [0, 0, 0], sizes = [16, 16, 32], strides = [1, 1, 1]} : vector<16x16x96xf32> to vector<16x16x32xf32>
    %cst_26 = arith.constant dense<0.000000e+00> : vector<16x16xf32>
    %42 = vector.multi_reduction <add>, %41, %cst_26 [2] : vector<16x16x32xf32> to vector<16x16xf32>
    %43 = arith.addf %42, %6 : vector<16x16xf32>
    %cst_27 = arith.constant dense<0xFF800000> : vector<16xf32>
    %44 = vector.multi_reduction <maximumf>, %43, %cst_27 [1] : vector<16x16xf32> to vector<16xf32>
    %45 = vector.shape_cast %44 : vector<16xf32> to vector<16x1xf32>
    %46 = vector.broadcast %45 : vector<16x1xf32> to vector<16x16xf32>
    %47 = arith.subf %43, %46 : vector<16x16xf32>
    %48 = math.exp %47 : vector<16x16xf32>
    %49 = arith.mulf %48, %1 : vector<16x16xf32>
    %cst_28 = arith.constant dense<0.000000e+00> : vector<16xf32>
    %50 = vector.multi_reduction <add>, %49, %cst_28 [1] : vector<16x16xf32> to vector<16xf32>
    %51 = vector.shape_cast %50 : vector<16xf32> to vector<16x1xf32>
    %cst_29 = arith.constant 3.000000e+00 : f32
    %52 = vector.broadcast %cst_29 : f32 to vector<16x1xf32>
    %53 = arith.mulf %51, %52 : vector<16x1xf32>
    %cst_30 = arith.constant 1.000000e-30 : f32
    %54 = vector.broadcast %cst_30 : f32 to vector<16x1xf32>
    %55 = arith.maximumf %53, %54 : vector<16x1xf32>
    %56 = tpu.reciprocal %55 {approx = true} : vector<16x1xf32> -> vector<16x1xf32>
    %57 = vector.broadcast %56 : vector<16x1xf32> to vector<16x16xf32>
    %58 = arith.mulf %49, %57 : vector<16x16xf32>
    %59 = vector.extract_strided_slice %26 {offsets = [0, 0], sizes = [16, 32], strides = [1, 1]} : vector<16x96xf32> to vector<16x32xf32>
    %cst_31 = arith.constant dense<0.000000e+00> : vector<16x32xf32>
    %60 = tpu.matmul %58, %59, %cst_31 {dimension_numbers = #tpu.dot_dimension_numbers<[1], [0], [0], [1], [0, 0, 1, 1], [], []>} : vector<16x16xf32>, vector<16x32xf32>, vector<16x32xf32> -> vector<16x32xf32>
    %61 = arith.addf %40, %60 : vector<16x32xf32>
    %62 = vector.extract_strided_slice %39 {offsets = [0, 0, 32], sizes = [16, 16, 32], strides = [1, 1, 1]} : vector<16x16x96xf32> to vector<16x16x32xf32>
    %cst_32 = arith.constant dense<0.000000e+00> : vector<16x16xf32>
    %63 = vector.multi_reduction <add>, %62, %cst_32 [2] : vector<16x16x32xf32> to vector<16x16xf32>
    %64 = arith.addf %63, %6 : vector<16x16xf32>
    %cst_33 = arith.constant dense<0xFF800000> : vector<16xf32>
    %65 = vector.multi_reduction <maximumf>, %64, %cst_33 [1] : vector<16x16xf32> to vector<16xf32>
    %66 = vector.shape_cast %65 : vector<16xf32> to vector<16x1xf32>
    %67 = vector.broadcast %66 : vector<16x1xf32> to vector<16x16xf32>
    %68 = arith.subf %64, %67 : vector<16x16xf32>
    %69 = math.exp %68 : vector<16x16xf32>
    %70 = arith.mulf %69, %1 : vector<16x16xf32>
    %cst_34 = arith.constant dense<0.000000e+00> : vector<16xf32>
    %71 = vector.multi_reduction <add>, %70, %cst_34 [1] : vector<16x16xf32> to vector<16xf32>
    %72 = vector.shape_cast %71 : vector<16xf32> to vector<16x1xf32>
    %cst_35 = arith.constant 3.000000e+00 : f32
    %73 = vector.broadcast %cst_35 : f32 to vector<16x1xf32>
    %74 = arith.mulf %72, %73 : vector<16x1xf32>
    %cst_36 = arith.constant 1.000000e-30 : f32
    %75 = vector.broadcast %cst_36 : f32 to vector<16x1xf32>
    %76 = arith.maximumf %74, %75 : vector<16x1xf32>
    %77 = tpu.reciprocal %76 {approx = true} : vector<16x1xf32> -> vector<16x1xf32>
    %78 = vector.broadcast %77 : vector<16x1xf32> to vector<16x16xf32>
    %79 = arith.mulf %70, %78 : vector<16x16xf32>
    %80 = vector.extract_strided_slice %26 {offsets = [0, 32], sizes = [16, 32], strides = [1, 1]} : vector<16x96xf32> to vector<16x32xf32>
    %cst_37 = arith.constant dense<0.000000e+00> : vector<16x32xf32>
    %81 = tpu.matmul %79, %80, %cst_37 {dimension_numbers = #tpu.dot_dimension_numbers<[1], [0], [0], [1], [0, 0, 1, 1], [], []>} : vector<16x16xf32>, vector<16x32xf32>, vector<16x32xf32> -> vector<16x32xf32>
    %82 = arith.addf %61, %81 : vector<16x32xf32>
    %83 = vector.extract_strided_slice %39 {offsets = [0, 0, 64], sizes = [16, 16, 32], strides = [1, 1, 1]} : vector<16x16x96xf32> to vector<16x16x32xf32>
    %cst_38 = arith.constant dense<0.000000e+00> : vector<16x16xf32>
    %84 = vector.multi_reduction <add>, %83, %cst_38 [2] : vector<16x16x32xf32> to vector<16x16xf32>
    %85 = arith.addf %84, %6 : vector<16x16xf32>
    %cst_39 = arith.constant dense<0xFF800000> : vector<16xf32>
    %86 = vector.multi_reduction <maximumf>, %85, %cst_39 [1] : vector<16x16xf32> to vector<16xf32>
    %87 = vector.shape_cast %86 : vector<16xf32> to vector<16x1xf32>
    %88 = vector.broadcast %87 : vector<16x1xf32> to vector<16x16xf32>
    %89 = arith.subf %85, %88 : vector<16x16xf32>
    %90 = math.exp %89 : vector<16x16xf32>
    %91 = arith.mulf %90, %1 : vector<16x16xf32>
    %cst_40 = arith.constant dense<0.000000e+00> : vector<16xf32>
    %92 = vector.multi_reduction <add>, %91, %cst_40 [1] : vector<16x16xf32> to vector<16xf32>
    %93 = vector.shape_cast %92 : vector<16xf32> to vector<16x1xf32>
    %cst_41 = arith.constant 3.000000e+00 : f32
    %94 = vector.broadcast %cst_41 : f32 to vector<16x1xf32>
    %95 = arith.mulf %93, %94 : vector<16x1xf32>
    %cst_42 = arith.constant 1.000000e-30 : f32
    %96 = vector.broadcast %cst_42 : f32 to vector<16x1xf32>
    %97 = arith.maximumf %95, %96 : vector<16x1xf32>
    %98 = tpu.reciprocal %97 {approx = true} : vector<16x1xf32> -> vector<16x1xf32>
    %99 = vector.broadcast %98 : vector<16x1xf32> to vector<16x16xf32>
    %100 = arith.mulf %91, %99 : vector<16x16xf32>
    %101 = vector.extract_strided_slice %26 {offsets = [0, 64], sizes = [16, 32], strides = [1, 1]} : vector<16x96xf32> to vector<16x32xf32>
    %cst_43 = arith.constant dense<0.000000e+00> : vector<16x32xf32>
    %102 = tpu.matmul %100, %101, %cst_43 {dimension_numbers = #tpu.dot_dimension_numbers<[1], [0], [0], [1], [0, 0, 1, 1], [], []>} : vector<16x16xf32>, vector<16x32xf32>, vector<16x32xf32> -> vector<16x32xf32>
    %103 = arith.addf %82, %102 : vector<16x32xf32>
    %c0_44 = arith.constant 0 : index
    %c0_45 = arith.constant 0 : index
    %104 = vector.load %arg10[%c0_44, %c0_45] : memref<1x32xf32, #tpu.memory_space<vmem>>, vector<1x32xf32>
    %105 = vector.broadcast %104 : vector<1x32xf32> to vector<16x32xf32>
    %106 = arith.addf %103, %105 : vector<16x32xf32>
    %cst_46 = arith.constant 0.000000e+00 : f32
    %107 = vector.broadcast %cst_46 : f32 to vector<16x32xf32>
    %108 = arith.maximumf %106, %107 : vector<16x32xf32>
    %c0_47 = arith.constant 0 : index
    %c0_48 = arith.constant 0 : index
    %109 = vector.load %arg11[%c0_47, %c0_48] : memref<32x256xf32, #tpu.memory_space<vmem>>, vector<32x256xf32>
    %cst_49 = arith.constant dense<0.000000e+00> : vector<16x256xf32>
    %110 = tpu.matmul %108, %109, %cst_49 {dimension_numbers = #tpu.dot_dimension_numbers<[1], [0], [0], [1], [0, 0, 1, 1], [], []>} : vector<16x32xf32>, vector<32x256xf32>, vector<16x256xf32> -> vector<16x256xf32>
    %c0_50 = arith.constant 0 : index
    %c0_51 = arith.constant 0 : index
    %111 = vector.load %arg12[%c0_50, %c0_51] : memref<1x256xf32, #tpu.memory_space<vmem>>, vector<1x256xf32>
    %112 = vector.broadcast %111 : vector<1x256xf32> to vector<16x256xf32>
    %113 = arith.addf %110, %112 : vector<16x256xf32>
    %114 = vector.extract_strided_slice %113 {offsets = [0, 0], sizes = [16, 96], strides = [1, 1]} : vector<16x256xf32> to vector<16x96xf32>
    %115 = vector.extract_strided_slice %113 {offsets = [0, 128], sizes = [16, 96], strides = [1, 1]} : vector<16x256xf32> to vector<16x96xf32>
    %c0_52 = arith.constant 0 : index
    %c0_53 = arith.constant 0 : index
    %116 = vector.load %arg13[%c0_52, %c0_53] : memref<1x96xf32, #tpu.memory_space<vmem>>, vector<1x96xf32>
    %117 = vector.shape_cast %115 : vector<16x96xf32> to vector<16x1x96xf32>
    %118 = vector.shape_cast %114 : vector<16x96xf32> to vector<1x16x96xf32>
    %119 = vector.broadcast %117 : vector<16x1x96xf32> to vector<16x16x96xf32>
    %120 = vector.broadcast %118 : vector<1x16x96xf32> to vector<16x16x96xf32>
    %121 = arith.addf %119, %120 : vector<16x16x96xf32>
    %cst_54 = arith.constant 2.000000e-01 : f32
    %122 = vector.broadcast %cst_54 : f32 to vector<16x16x96xf32>
    %123 = arith.mulf %122, %121 : vector<16x16x96xf32>
    %124 = arith.maximumf %121, %123 : vector<16x16x96xf32>
    %125 = vector.shape_cast %116 : vector<1x96xf32> to vector<1x1x96xf32>
    %126 = vector.broadcast %125 : vector<1x1x96xf32> to vector<16x16x96xf32>
    %127 = arith.mulf %124, %126 : vector<16x16x96xf32>
    %cst_55 = arith.constant 0.000000e+00 : f32
    %128 = vector.broadcast %cst_55 : f32 to vector<16x32xf32>
    %129 = vector.extract_strided_slice %127 {offsets = [0, 0, 0], sizes = [16, 16, 32], strides = [1, 1, 1]} : vector<16x16x96xf32> to vector<16x16x32xf32>
    %cst_56 = arith.constant dense<0.000000e+00> : vector<16x16xf32>
    %130 = vector.multi_reduction <add>, %129, %cst_56 [2] : vector<16x16x32xf32> to vector<16x16xf32>
    %131 = arith.addf %130, %6 : vector<16x16xf32>
    %cst_57 = arith.constant dense<0xFF800000> : vector<16xf32>
    %132 = vector.multi_reduction <maximumf>, %131, %cst_57 [1] : vector<16x16xf32> to vector<16xf32>
    %133 = vector.shape_cast %132 : vector<16xf32> to vector<16x1xf32>
    %134 = vector.broadcast %133 : vector<16x1xf32> to vector<16x16xf32>
    %135 = arith.subf %131, %134 : vector<16x16xf32>
    %136 = math.exp %135 : vector<16x16xf32>
    %137 = arith.mulf %136, %1 : vector<16x16xf32>
    %cst_58 = arith.constant dense<0.000000e+00> : vector<16xf32>
    %138 = vector.multi_reduction <add>, %137, %cst_58 [1] : vector<16x16xf32> to vector<16xf32>
    %139 = vector.shape_cast %138 : vector<16xf32> to vector<16x1xf32>
    %cst_59 = arith.constant 3.000000e+00 : f32
    %140 = vector.broadcast %cst_59 : f32 to vector<16x1xf32>
    %141 = arith.mulf %139, %140 : vector<16x1xf32>
    %cst_60 = arith.constant 1.000000e-30 : f32
    %142 = vector.broadcast %cst_60 : f32 to vector<16x1xf32>
    %143 = arith.maximumf %141, %142 : vector<16x1xf32>
    %144 = tpu.reciprocal %143 {approx = true} : vector<16x1xf32> -> vector<16x1xf32>
    %145 = vector.broadcast %144 : vector<16x1xf32> to vector<16x16xf32>
    %146 = arith.mulf %137, %145 : vector<16x16xf32>
    %147 = vector.extract_strided_slice %114 {offsets = [0, 0], sizes = [16, 32], strides = [1, 1]} : vector<16x96xf32> to vector<16x32xf32>
    %cst_61 = arith.constant dense<0.000000e+00> : vector<16x32xf32>
    %148 = tpu.matmul %146, %147, %cst_61 {dimension_numbers = #tpu.dot_dimension_numbers<[1], [0], [0], [1], [0, 0, 1, 1], [], []>} : vector<16x16xf32>, vector<16x32xf32>, vector<16x32xf32> -> vector<16x32xf32>
    %149 = arith.addf %128, %148 : vector<16x32xf32>
    %150 = vector.extract_strided_slice %127 {offsets = [0, 0, 32], sizes = [16, 16, 32], strides = [1, 1, 1]} : vector<16x16x96xf32> to vector<16x16x32xf32>
    %cst_62 = arith.constant dense<0.000000e+00> : vector<16x16xf32>
    %151 = vector.multi_reduction <add>, %150, %cst_62 [2] : vector<16x16x32xf32> to vector<16x16xf32>
    %152 = arith.addf %151, %6 : vector<16x16xf32>
    %cst_63 = arith.constant dense<0xFF800000> : vector<16xf32>
    %153 = vector.multi_reduction <maximumf>, %152, %cst_63 [1] : vector<16x16xf32> to vector<16xf32>
    %154 = vector.shape_cast %153 : vector<16xf32> to vector<16x1xf32>
    %155 = vector.broadcast %154 : vector<16x1xf32> to vector<16x16xf32>
    %156 = arith.subf %152, %155 : vector<16x16xf32>
    %157 = math.exp %156 : vector<16x16xf32>
    %158 = arith.mulf %157, %1 : vector<16x16xf32>
    %cst_64 = arith.constant dense<0.000000e+00> : vector<16xf32>
    %159 = vector.multi_reduction <add>, %158, %cst_64 [1] : vector<16x16xf32> to vector<16xf32>
    %160 = vector.shape_cast %159 : vector<16xf32> to vector<16x1xf32>
    %cst_65 = arith.constant 3.000000e+00 : f32
    %161 = vector.broadcast %cst_65 : f32 to vector<16x1xf32>
    %162 = arith.mulf %160, %161 : vector<16x1xf32>
    %cst_66 = arith.constant 1.000000e-30 : f32
    %163 = vector.broadcast %cst_66 : f32 to vector<16x1xf32>
    %164 = arith.maximumf %162, %163 : vector<16x1xf32>
    %165 = tpu.reciprocal %164 {approx = true} : vector<16x1xf32> -> vector<16x1xf32>
    %166 = vector.broadcast %165 : vector<16x1xf32> to vector<16x16xf32>
    %167 = arith.mulf %158, %166 : vector<16x16xf32>
    %168 = vector.extract_strided_slice %114 {offsets = [0, 32], sizes = [16, 32], strides = [1, 1]} : vector<16x96xf32> to vector<16x32xf32>
    %cst_67 = arith.constant dense<0.000000e+00> : vector<16x32xf32>
    %169 = tpu.matmul %167, %168, %cst_67 {dimension_numbers = #tpu.dot_dimension_numbers<[1], [0], [0], [1], [0, 0, 1, 1], [], []>} : vector<16x16xf32>, vector<16x32xf32>, vector<16x32xf32> -> vector<16x32xf32>
    %170 = arith.addf %149, %169 : vector<16x32xf32>
    %171 = vector.extract_strided_slice %127 {offsets = [0, 0, 64], sizes = [16, 16, 32], strides = [1, 1, 1]} : vector<16x16x96xf32> to vector<16x16x32xf32>
    %cst_68 = arith.constant dense<0.000000e+00> : vector<16x16xf32>
    %172 = vector.multi_reduction <add>, %171, %cst_68 [2] : vector<16x16x32xf32> to vector<16x16xf32>
    %173 = arith.addf %172, %6 : vector<16x16xf32>
    %cst_69 = arith.constant dense<0xFF800000> : vector<16xf32>
    %174 = vector.multi_reduction <maximumf>, %173, %cst_69 [1] : vector<16x16xf32> to vector<16xf32>
    %175 = vector.shape_cast %174 : vector<16xf32> to vector<16x1xf32>
    %176 = vector.broadcast %175 : vector<16x1xf32> to vector<16x16xf32>
    %177 = arith.subf %173, %176 : vector<16x16xf32>
    %178 = math.exp %177 : vector<16x16xf32>
    %179 = arith.mulf %178, %1 : vector<16x16xf32>
    %cst_70 = arith.constant dense<0.000000e+00> : vector<16xf32>
    %180 = vector.multi_reduction <add>, %179, %cst_70 [1] : vector<16x16xf32> to vector<16xf32>
    %181 = vector.shape_cast %180 : vector<16xf32> to vector<16x1xf32>
    %cst_71 = arith.constant 3.000000e+00 : f32
    %182 = vector.broadcast %cst_71 : f32 to vector<16x1xf32>
    %183 = arith.mulf %181, %182 : vector<16x1xf32>
    %cst_72 = arith.constant 1.000000e-30 : f32
    %184 = vector.broadcast %cst_72 : f32 to vector<16x1xf32>
    %185 = arith.maximumf %183, %184 : vector<16x1xf32>
    %186 = tpu.reciprocal %185 {approx = true} : vector<16x1xf32> -> vector<16x1xf32>
    %187 = vector.broadcast %186 : vector<16x1xf32> to vector<16x16xf32>
    %188 = arith.mulf %179, %187 : vector<16x16xf32>
    %189 = vector.extract_strided_slice %114 {offsets = [0, 64], sizes = [16, 32], strides = [1, 1]} : vector<16x96xf32> to vector<16x32xf32>
    %cst_73 = arith.constant dense<0.000000e+00> : vector<16x32xf32>
    %190 = tpu.matmul %188, %189, %cst_73 {dimension_numbers = #tpu.dot_dimension_numbers<[1], [0], [0], [1], [0, 0, 1, 1], [], []>} : vector<16x16xf32>, vector<16x32xf32>, vector<16x32xf32> -> vector<16x32xf32>
    %191 = arith.addf %170, %190 : vector<16x32xf32>
    %c0_74 = arith.constant 0 : index
    %c0_75 = arith.constant 0 : index
    %192 = vector.load %arg14[%c0_74, %c0_75] : memref<1x32xf32, #tpu.memory_space<vmem>>, vector<1x32xf32>
    %193 = vector.broadcast %192 : vector<1x32xf32> to vector<16x32xf32>
    %194 = arith.addf %191, %193 : vector<16x32xf32>
    %cst_76 = arith.constant 0.000000e+00 : f32
    %195 = vector.broadcast %cst_76 : f32 to vector<16x32xf32>
    %196 = arith.maximumf %194, %195 : vector<16x32xf32>
    %c0_77 = arith.constant 0 : index
    %c0_78 = arith.constant 0 : index
    %197 = vector.load %arg15[%c0_77, %c0_78] : memref<32x32xf32, #tpu.memory_space<vmem>>, vector<32x32xf32>
    %cst_79 = arith.constant dense<0.000000e+00> : vector<16x32xf32>
    %198 = tpu.matmul %196, %197, %cst_79 {dimension_numbers = #tpu.dot_dimension_numbers<[1], [0], [0], [1], [0, 0, 1, 1], [], []>} : vector<16x32xf32>, vector<32x32xf32>, vector<16x32xf32> -> vector<16x32xf32>
    %c0_80 = arith.constant 0 : index
    %c0_81 = arith.constant 0 : index
    %199 = vector.load %arg16[%c0_80, %c0_81] : memref<1x32xf32, #tpu.memory_space<vmem>>, vector<1x32xf32>
    %200 = vector.broadcast %199 : vector<1x32xf32> to vector<16x32xf32>
    %201 = arith.addf %198, %200 : vector<16x32xf32>
    %cst_82 = arith.constant 0.000000e+00 : f32
    %202 = vector.broadcast %cst_82 : f32 to vector<16x32xf32>
    %203 = arith.maximumf %201, %202 : vector<16x32xf32>
    %c0_83 = arith.constant 0 : index
    %c0_84 = arith.constant 0 : index
    %204 = vector.load %arg17[%c0_83, %c0_84] : memref<32x4xf32, #tpu.memory_space<vmem>>, vector<32x4xf32>
    %cst_85 = arith.constant dense<0.000000e+00> : vector<16x4xf32>
    %205 = tpu.matmul %203, %204, %cst_85 {dimension_numbers = #tpu.dot_dimension_numbers<[1], [0], [0], [1], [0, 0, 1, 1], [], []>} : vector<16x32xf32>, vector<32x4xf32>, vector<16x4xf32> -> vector<16x4xf32>
    %c0_86 = arith.constant 0 : index
    %c0_87 = arith.constant 0 : index
    %206 = vector.load %arg18[%c0_86, %c0_87] : memref<1x4xf32, #tpu.memory_space<vmem>>, vector<1x4xf32>
    %207 = vector.broadcast %206 : vector<1x4xf32> to vector<16x4xf32>
    %208 = arith.addf %205, %207 : vector<16x4xf32>
    %cst_88 = arith.constant 0.000000e+00 : f32
    %209 = vector.broadcast %cst_88 : f32 to vector<16x4xf32>
    %210 = arith.maximumf %208, %209 : vector<16x4xf32>
    %c0_89 = arith.constant 0 : index
    %c0_90 = arith.constant 0 : index
    %211 = vector.load %arg19[%c0_89, %c0_90] : memref<16x4xf32, #tpu.memory_space<vmem>>, vector<16x4xf32>
    tpu.vector_store %arg19[%c0_89, %c0_90], %210 {strides = array<i32>} : memref<16x4xf32, #tpu.memory_space<vmem>>, vector<16x4xf32>,
    return
  }
  func.func @transform_0(%arg0: i32) -> (i32, i32) {
    %c0_i32 = arith.constant 0 : i32
    %c0_i32_0 = arith.constant 0 : i32
    %c0_i32_1 = arith.constant 0 : i32
    return %c0_i32, %c0_i32_0 : i32, i32
  }
  func.func @transform_1(%arg0: i32) -> (i32, i32) {
    %c0_i32 = arith.constant 0 : i32
    %c0_i32_0 = arith.constant 0 : i32
    %c0_i32_1 = arith.constant 0 : i32
    return %c0_i32, %c0_i32_0 : i32, i32
  }
  func.func @transform_2(%arg0: i32) -> (i32, i32) {
    %c0_i32 = arith.constant 0 : i32
    %c0_i32_0 = arith.constant 0 : i32
    %c0_i32_1 = arith.constant 0 : i32
    return %c0_i32, %c0_i32_0 : i32, i32
  }
  func.func @transform_3(%arg0: i32) -> (i32, i32) {
    %c0_i32 = arith.constant 0 : i32
    %c0_i32_0 = arith.constant 0 : i32
    %c0_i32_1 = arith.constant 0 : i32
    return %c0_i32, %c0_i32_0 : i32, i32
  }
  func.func @transform_4(%arg0: i32) -> (i32, i32) {
    %c0_i32 = arith.constant 0 : i32
    %c0_i32_0 = arith.constant 0 : i32
    %c0_i32_1 = arith.constant 0 : i32
    return %c0_i32, %c0_i32_0 : i32, i32
  }
  func.func @transform_5(%arg0: i32) -> (i32, i32) {
    %c0_i32 = arith.constant 0 : i32
    %c0_i32_0 = arith.constant 0 : i32
    %c0_i32_1 = arith.constant 0 : i32
    return %c0_i32, %c0_i32_0 : i32, i32
  }
  func.func @transform_6(%arg0: i32) -> (i32, i32) {
    %c0_i32 = arith.constant 0 : i32
    %c0_i32_0 = arith.constant 0 : i32
    %c0_i32_1 = arith.constant 0 : i32
    return %c0_i32, %c0_i32_0 : i32, i32
  }
  func.func @transform_7(%arg0: i32) -> (i32, i32) {
    %c0_i32 = arith.constant 0 : i32
    %c0_i32_0 = arith.constant 0 : i32
    %c0_i32_1 = arith.constant 0 : i32
    return %c0_i32, %c0_i32_0 : i32, i32
  }
  func.func @transform_8(%arg0: i32) -> (i32, i32) {
    %c0_i32 = arith.constant 0 : i32
    %c0_i32_0 = arith.constant 0 : i32
    %c0_i32_1 = arith.constant 0 : i32
    return %c0_i32, %c0_i32_0 : i32, i32
  }
  func.func @transform_9(%arg0: i32) -> (i32, i32) {
    %c0_i32 = arith.constant 0 : i32
    %c0_i32_0 = arith.constant 0 : i32
    %c0_i32_1 = arith.constant 0 : i32
    return %c0_i32, %c0_i32_0 : i32, i32
  }
  func.func @transform_10(%arg0: i32) -> (i32, i32) {
    %c0_i32 = arith.constant 0 : i32
    %c0_i32_0 = arith.constant 0 : i32
    %c0_i32_1 = arith.constant 0 : i32
    return %c0_i32, %c0_i32_0 : i32, i32
  }
  func.func @transform_11(%arg0: i32) -> (i32, i32) {
    %c0_i32 = arith.constant 0 : i32
    %c0_i32_0 = arith.constant 0 : i32
    %c0_i32_1 = arith.constant 0 : i32
    return %c0_i32, %c0_i32_0 : i32, i32
  }
  func.func @transform_12(%arg0: i32) -> (i32, i32) {
    %c0_i32 = arith.constant 0 : i32
    %c0_i32_0 = arith.constant 0 : i32
    %c0_i32_1 = arith.constant 0 : i32
    return %c0_i32, %c0_i32_0 : i32, i32
  }
  func.func @transform_13(%arg0: i32) -> (i32, i32) {
    %c0_i32 = arith.constant 0 : i32
    %c0_i32_0 = arith.constant 0 : i32
    %c0_i32_1 = arith.constant 0 : i32
    return %c0_i32, %c0_i32_0 : i32, i32
  }
  func.func @transform_14(%arg0: i32) -> (i32, i32) {
    %c0_i32 = arith.constant 0 : i32
    %c0_i32_0 = arith.constant 0 : i32
    %c0_i32_1 = arith.constant 0 : i32
    return %c0_i32, %c0_i32_0 : i32, i32
  }
  func.func @transform_15(%arg0: i32) -> (i32, i32) {
    %c0_i32 = arith.constant 0 : i32
    %c0_i32_0 = arith.constant 0 : i32
    %c0_i32_1 = arith.constant 0 : i32
    return %c0_i32, %c0_i32_0 : i32, i32
  }
  func.func @transform_16(%arg0: i32) -> (i32, i32) {
    %c0_i32 = arith.constant 0 : i32
    %c0_i32_0 = arith.constant 0 : i32
    %c0_i32_1 = arith.constant 0 : i32
    return %c0_i32, %c0_i32_0 : i32, i32
  }
  func.func @transform_17(%arg0: i32) -> (i32, i32) {
    %c0_i32 = arith.constant 0 : i32
    %c0_i32_0 = arith.constant 0 : i32
    %c0_i32_1 = arith.constant 0 : i32
    return %c0_i32, %c0_i32_0 : i32, i32
  }
  func.func @transform_18(%arg0: i32) -> (i32, i32) {
    %c0_i32 = arith.constant 0 : i32
    %c0_i32_0 = arith.constant 0 : i32
    %c0_i32_1 = arith.constant 0 : i32
    return %c0_i32, %c0_i32_0 : i32, i32
  }
}

</mosaic_0001>

<llo_original>
// kernel: tpu_custom_call.1
$region0: #{tpu_custom_call.1}
  #allocation0 [shape = 'u32[]', space=smem, size = 0x4, offset = 0x4, fixed_abs, tag = 'smem constant byte address 0x4 - core index']
  #allocation1 [shape = 'u32[72,128]{1,0:T(1,128)}', space=vmem, size = 0x9000, scoped, tag = 'internal scratch']
  %s0 = inlined_call_operand.vmem [shape: f32[16,8], index: 0, kind: input, shape index: {}]
  %s1 = inlined_call_operand.hbm [shape: f32[16,16], index: 1, kind: input, shape index: {}]
  %s2 = inlined_call_operand.hbm [shape: f32[8,32], index: 2, kind: input, shape index: {}]
  %s3 = inlined_call_operand.hbm [shape: f32[1,32], index: 3, kind: input, shape index: {}]
  %s4 = inlined_call_operand.vmem [shape: f32[32,32], index: 4, kind: input, shape index: {}]
  %s5 = inlined_call_operand.hbm [shape: f32[1,32], index: 5, kind: input, shape index: {}]
  %s6 = inlined_call_operand.hbm [shape: f32[32,256], index: 6, kind: input, shape index: {}]
  %s7 = inlined_call_operand.vmem [shape: f32[1,256], index: 7, kind: input, shape index: {}]
  %s8 = inlined_call_operand.hbm [shape: f32[1,96], index: 8, kind: input, shape index: {}]
  %s9 = inlined_call_operand.hbm [shape: f32[1,32], index: 9, kind: input, shape index: {}]
  %s10 = inlined_call_operand.hbm [shape: f32[32,256], index: 10, kind: input, shape index: {}]
  %s11 = inlined_call_operand.vmem [shape: f32[1,256], index: 11, kind: input, shape index: {}]
  %s12 = inlined_call_operand.hbm [shape: f32[1,96], index: 12, kind: input, shape index: {}]
  %s13 = inlined_call_operand.hbm [shape: f32[1,32], index: 13, kind: input, shape index: {}]
  %s14 = inlined_call_operand.vmem [shape: f32[32,32], index: 14, kind: input, shape index: {}]
  %s15 = inlined_call_operand.vmem [shape: f32[1,32], index: 15, kind: input, shape index: {}]
  %s16 = inlined_call_operand.vmem [shape: f32[32,4], index: 16, kind: input, shape index: {}]
  %s17 = inlined_call_operand.vmem [shape: f32[1,4], index: 17, kind: input, shape index: {}]
  %s18 = inlined_call_operand.vmem [shape: f32[16,4], index: 18, kind: output, shape index: {}]
  %s19 = sld [smem:[#allocation0]]
  $region122: #{tpu_custom_call.1} parent=0
    _
  %s21 = ssub.s32 1, %s19
  %s22 = scalar_select 0, %s21, %s19
  $region1: #{tpu_custom_call.1} parent=0
    #allocation2 [shape = 'u8[8192]{0}', space=vmem, size = 0x2000, scoped, tag = 'input window, operand 1, single buffered']
    #allocation3 [shape = 's32[1]{0}', space=sflag, size = 0x4, scoped, tag = 'scoped memory for tpu_custom_call.1']
    #allocation4 [shape = 'u8[4096]{0}', space=vmem, size = 0x1000, scoped, tag = 'input window, operand 2, single buffered']
    #allocation5 [shape = 's32[1]{0}', space=sflag, size = 0x4, scoped, tag = 'scoped memory for tpu_custom_call.1']
    #allocation6 [shape = 'u8[512]{0}', space=vmem, size = 0x400, scoped, tag = 'input window, operand 3, single buffered']
    #allocation7 [shape = 'u8[512]{0}', space=vmem, size = 0x400, scoped, tag = 'input window, operand 5, single buffered']
    #allocation8 [shape = 's32[1]{0}', space=sflag, size = 0x4, scoped, tag = 'scoped memory for tpu_custom_call.1']
    #allocation9 [shape = 'u8[32768]{0}', space=vmem, size = 0x8000, scoped, tag = 'input window, operand 6, single buffered']
    #allocation10 [shape = 'u8[512]{0}', space=vmem, size = 0x400, scoped, tag = 'input window, operand 8, single buffered']
    #allocation11 [shape = 's32[1]{0}', space=sflag, size = 0x4, scoped, tag = 'scoped memory for tpu_custom_call.1']
    #allocation12 [shape = 'u8[512]{0}', space=vmem, size = 0x400, scoped, tag = 'input window, operand 9, single buffered']
    #allocation13 [shape = 'u8[32768]{0}', space=vmem, size = 0x8000, scoped, tag = 'input window, operand 10, single buffered']
    #allocation14 [shape = 's32[1]{0}', space=sflag, size = 0x4, scoped, tag = 'scoped memory for tpu_custom_call.1']
    #allocation15 [shape = 'u8[512]{0}', space=vmem, size = 0x400, scoped, tag = 'input window, operand 12, single buffered']
    #allocation16 [shape = 'u8[512]{0}', space=vmem, size = 0x400, scoped, tag = 'input window, operand 13, single buffered']
    #allocation17 [shape = 's32[1]{0}', space=sflag, size = 0x4, scoped, tag = 'scoped memory for tpu_custom_call.1']
    %23 = vsyncpa [#allocation3], 0
    %24 = vsyncpa [#allocation5], 0
    %25 = vsyncpa [#allocation8], 0
    %26 = vsyncpa [#allocation11], 0
    %27 = vsyncpa [#allocation14], 0
    %28 = vsyncpa [#allocation17], 0
    // Predicated region
    $region2: #{tpu_custom_call.1} parent=1 // pred_check
      _
    $region3: #{tpu_custom_call.1} parent=1 // pred_check_branch
      %30 = sbr.rel (0) target = $region5
    $region4: #{tpu_custom_call.1} parent=1 // pred_region
      _
    $region5: #{tpu_custom_call.1} parent=1 // pred_fallthru
      _
    // Predicated region
    $region6: #{tpu_custom_call.1} parent=1 // pred_check
      _
    $region7: #{tpu_custom_call.1} parent=1 // pred_check_branch
      %32 = sbr.rel (0) target = $region9
    $region8: #{tpu_custom_call.1} parent=1 // pred_region
      %34 = vsyncadd [#allocation3], 0
      %s35 = sshll.u32 %s1, 4
      %s36 = int_to_ptr.hbm [resolvable:$true] %s35
      %s37 = sshll.u32 [#allocation2], 4
      %s38 = int_to_ptr.vmem [resolvable:$true] %s37
      %43 = dma.hbm_to_vmem [thread:$0]  %s36, 256, %s38, [#allocation3], 128, 128, 8
    $region9: #{tpu_custom_call.1} parent=1 // pred_fallthru
      _
    // Predicated region
    $region10: #{tpu_custom_call.1} parent=1 // pred_check
      _
    $region11: #{tpu_custom_call.1} parent=1 // pred_check_branch
      %45 = sbr.rel (0) target = $region13
    $region12: #{tpu_custom_call.1} parent=1 // pred_region
      %47 = vsyncadd [#allocation5], 0
      %s49 = sshll.u32 %s2, 4
      %s50 = int_to_ptr.hbm [resolvable:$true] %s49
      %s51 = sshll.u32 [#allocation4], 4
      %s52 = int_to_ptr.vmem [resolvable:$true] %s51
      %54 = dma.hbm_to_vmem [thread:$0]  %s50, 128, %s52, [#allocation5]
    $region13: #{tpu_custom_call.1} parent=1 // pred_fallthru
      _
    // Predicated region
    $region14: #{tpu_custom_call.1} parent=1 // pred_check
      _
    $region15: #{tpu_custom_call.1} parent=1 // pred_check_branch
      %56 = sbr.rel (0) target = $region17
    $region16: #{tpu_custom_call.1} parent=1 // pred_region
      %58 = vsyncadd [#allocation5], 0
      %s60 = sshll.u32 %s3, 4
      %s61 = int_to_ptr.hbm [resolvable:$true] %s60
      %s62 = sshll.u32 [#allocation6], 4
      %s63 = int_to_ptr.vmem [resolvable:$true] %s62
      %65 = dma.hbm_to_vmem [thread:$0]  %s61, 16, %s63, [#allocation5]
    $region17: #{tpu_custom_call.1} parent=1 // pred_fallthru
      _
    // Predicated region
    $region18: #{tpu_custom_call.1} parent=1 // pred_check
      _
    $region19: #{tpu_custom_call.1} parent=1 // pred_check_branch
      %67 = sbr.rel (0) target = $region21
    $region20: #{tpu_custom_call.1} parent=1 // pred_region
      _
    $region21: #{tpu_custom_call.1} parent=1 // pred_fallthru
      _
    // Predicated region
    $region22: #{tpu_custom_call.1} parent=1 // pred_check
      _
    $region23: #{tpu_custom_call.1} parent=1 // pred_check_branch
      %69 = sbr.rel (0) target = $region25
    $region24: #{tpu_custom_call.1} parent=1 // pred_region
      %71 = vsyncadd [#allocation8], 0
      %s73 = sshll.u32 %s5, 4
      %s74 = int_to_ptr.hbm [resolvable:$true] %s73
      %s75 = sshll.u32 [#allocation7], 4
      %s76 = int_to_ptr.vmem [resolvable:$true] %s75
      %78 = dma.hbm_to_vmem [thread:$0]  %s74, 16, %s76, [#allocation8]
    $region25: #{tpu_custom_call.1} parent=1 // pred_fallthru
      _
    // Predicated region
    $region26: #{tpu_custom_call.1} parent=1 // pred_check
      _
    $region27: #{tpu_custom_call.1} parent=1 // pred_check_branch
      %80 = sbr.rel (0) target = $region29
    $region28: #{tpu_custom_call.1} parent=1 // pred_region
      %82 = vsyncadd [#allocation8], 0
      %s83 = sshll.u32 %s6, 4
      %s84 = int_to_ptr.hbm [resolvable:$true] %s83
      %s85 = sshll.u32 [#allocation9], 4
      %s86 = int_to_ptr.vmem [resolvable:$true] %s85
      %91 = dma.hbm_to_vmem [thread:$0]  %s84, 1024, %s86, [#allocation8], 256, 256, 16
    $region29: #{tpu_custom_call.1} parent=1 // pred_fallthru
      _
    // Predicated region
    $region30: #{tpu_custom_call.1} parent=1 // pred_check
      _
    $region31: #{tpu_custom_call.1} parent=1 // pred_check_branch
      %93 = sbr.rel (0) target = $region33
    $region32: #{tpu_custom_call.1} parent=1 // pred_region
      _
    $region33: #{tpu_custom_call.1} parent=1 // pred_fallthru
      _
    // Predicated region
    $region34: #{tpu_custom_call.1} parent=1 // pred_check
      _
    $region35: #{tpu_custom_call.1} parent=1 // pred_check_branch
      %95 = sbr.rel (0) target = $region37
    $region36: #{tpu_custom_call.1} parent=1 // pred_region
      %97 = vsyncadd [#allocation11], 0
      %s99 = sshll.u32 %s8, 4
      %s100 = int_to_ptr.hbm [resolvable:$true] %s99
      %s101 = sshll.u32 [#allocation10], 4
      %s102 = int_to_ptr.vmem [resolvable:$true] %s101
      %104 = dma.hbm_to_vmem [thread:$0]  %s100, 16, %s102, [#allocation11]
    $region37: #{tpu_custom_call.1} parent=1 // pred_fallthru
      _
    // Predicated region
    $region38: #{tpu_custom_call.1} parent=1 // pred_check
      _
    $region39: #{tpu_custom_call.1} parent=1 // pred_check_branch
      %106 = sbr.rel (0) target = $region41
    $region40: #{tpu_custom_call.1} parent=1 // pred_region
      %108 = vsyncadd [#allocation11], 0
      %s110 = sshll.u32 %s9, 4
      %s111 = int_to_ptr.hbm [resolvable:$true] %s110
      %s112 = sshll.u32 [#allocation12], 4
      %s113 = int_to_ptr.vmem [resolvable:$true] %s112
      %115 = dma.hbm_to_vmem [thread:$0]  %s111, 16, %s113, [#allocation11]
    $region41: #{tpu_custom_call.1} parent=1 // pred_fallthru
      _
    // Predicated region
    $region42: #{tpu_custom_call.1} parent=1 // pred_check
      _
    $region43: #{tpu_custom_call.1} parent=1 // pred_check_branch
      %117 = sbr.rel (0) target = $region45
    $region44: #{tpu_custom_call.1} parent=1 // pred_region
      %119 = vsyncadd [#allocation14], 0
      %s120 = sshll.u32 %s10, 4
      %s121 = int_to_ptr.hbm [resolvable:$true] %s120
      %s122 = sshll.u32 [#allocation13], 4
      %s123 = int_to_ptr.vmem [resolvable:$true] %s122
      %128 = dma.hbm_to_vmem [thread:$0]  %s121, 1024, %s123, [#allocation14], 256, 256, 16
    $region45: #{tpu_custom_call.1} parent=1 // pred_fallthru
      _
    // Predicated region
    $region46: #{tpu_custom_call.1} parent=1 // pred_check
      _
    $region47: #{tpu_custom_call.1} parent=1 // pred_check_branch
      %130 = sbr.rel (0) target = $region49
    $region48: #{tpu_custom_call.1} parent=1 // pred_region
      _
    $region49: #{tpu_custom_call.1} parent=1 // pred_fallthru
      _
    // Predicated region
    $region50: #{tpu_custom_call.1} parent=1 // pred_check
      _
    $region51: #{tpu_custom_call.1} parent=1 // pred_check_branch
      %132 = sbr.rel (0) target = $region53
    $region52: #{tpu_custom_call.1} parent=1 // pred_region
      %134 = vsyncadd [#allocation14], 0
      %s136 = sshll.u32 %s12, 4
      %s137 = int_to_ptr.hbm [resolvable:$true] %s136
      %s138 = sshll.u32 [#allocation15], 4
      %s139 = int_to_ptr.vmem [resolvable:$true] %s138
      %141 = dma.hbm_to_vmem [thread:$0]  %s137, 16, %s139, [#allocation14]
    $region53: #{tpu_custom_call.1} parent=1 // pred_fallthru
      _
    // Predicated region
    $region54: #{tpu_custom_call.1} parent=1 // pred_check
      _
    $region55: #{tpu_custom_call.1} parent=1 // pred_check_branch
      %143 = sbr.rel (0) target = $region57
    $region56: #{tpu_custom_call.1} parent=1 // pred_region
      %145 = vsyncadd [#allocation17], 0
      %s147 = sshll.u32 %s13, 4
      %s148 = int_to_ptr.hbm [resolvable:$true] %s147
      %s149 = sshll.u32 [#allocation16], 4
      %s150 = int_to_ptr.vmem [resolvable:$true] %s149
      %152 = dma.hbm_to_vmem [thread:$0]  %s148, 16, %s150, [#allocation17]
    $region57: #{tpu_custom_call.1} parent=1 // pred_fallthru
      _
    // Predicated region
    $region58: #{tpu_custom_call.1} parent=1 // pred_check
      _
    $region59: #{tpu_custom_call.1} parent=1 // pred_check_branch
      %154 = sbr.rel (0) target = $region61
    $region60: #{tpu_custom_call.1} parent=1 // pred_region
      _
    $region61: #{tpu_custom_call.1} parent=1 // pred_fallthru
      _
    // Predicated region
    $region62: #{tpu_custom_call.1} parent=1 // pred_check
      _
    $region63: #{tpu_custom_call.1} parent=1 // pred_check_branch
      %156 = sbr.rel (0) target = $region65
    $region64: #{tpu_custom_call.1} parent=1 // pred_region
      _
    $region65: #{tpu_custom_call.1} parent=1 // pred_fallthru
      _
    // Predicated region
    $region66: #{tpu_custom_call.1} parent=1 // pred_check
      _
    $region67: #{tpu_custom_call.1} parent=1 // pred_check_branch
      %158 = sbr.rel (0) target = $region69
    $region68: #{tpu_custom_call.1} parent=1 // pred_region
      _
    $region69: #{tpu_custom_call.1} parent=1 // pred_fallthru
      _
    // Predicated region
    $region70: #{tpu_custom_call.1} parent=1 // pred_check
      _
    $region71: #{tpu_custom_call.1} parent=1 // pred_check_branch
      %160 = sbr.rel (0) target = $region73
    $region72: #{tpu_custom_call.1} parent=1 // pred_region
      _
    $region73: #{tpu_custom_call.1} parent=1 // pred_fallthru
      _
    // Predicated region
    $region74: #{tpu_custom_call.1} parent=1 // pred_check
      _
    $region75: #{tpu_custom_call.1} parent=1 // pred_check_branch
      %162 = sbr.rel (0) target = $region77
    $region76: #{tpu_custom_call.1} parent=1 // pred_region
      %164 = dma.done [#allocation3], 256
    $region77: #{tpu_custom_call.1} parent=1 // pred_fallthru
      _
    // Predicated region
    $region78: #{tpu_custom_call.1} parent=1 // pred_check
      _
    $region79: #{tpu_custom_call.1} parent=1 // pred_check_branch
      %166 = sbr.rel (0) target = $region81
    $region80: #{tpu_custom_call.1} parent=1 // pred_region
      %168 = dma.done [#allocation5], 128
    $region81: #{tpu_custom_call.1} parent=1 // pred_fallthru
      _
    // Predicated region
    $region82: #{tpu_custom_call.1} parent=1 // pred_check
      _
    $region83: #{tpu_custom_call.1} parent=1 // pred_check_branch
      %170 = sbr.rel (0) target = $region85
    $region84: #{tpu_custom_call.1} parent=1 // pred_region
      %172 = dma.done [#allocation5], 16
    $region85: #{tpu_custom_call.1} parent=1 // pred_fallthru
      _
    // Predicated region
    $region86: #{tpu_custom_call.1} parent=1 // pred_check
      _
    $region87: #{tpu_custom_call.1} parent=1 // pred_check_branch
      %174 = sbr.rel (0) target = $region89
    $region88: #{tpu_custom_call.1} parent=1 // pred_region
      %176 = dma.done [#allocation8], 16
    $region89: #{tpu_custom_call.1} parent=1 // pred_fallthru
      _
    // Predicated region
    $region90: #{tpu_custom_call.1} parent=1 // pred_check
      _
    $region91: #{tpu_custom_call.1} parent=1 // pred_check_branch
      %178 = sbr.rel (0) target = $region93
    $region92: #{tpu_custom_call.1} parent=1 // pred_region
      %180 = dma.done [#allocation8], 1024
    $region93: #{tpu_custom_call.1} parent=1 // pred_fallthru
      _
    // Predicated region
    $region94: #{tpu_custom_call.1} parent=1 // pred_check
      _
    $region95: #{tpu_custom_call.1} parent=1 // pred_check_branch
      %182 = sbr.rel (0) target = $region97
    $region96: #{tpu_custom_call.1} parent=1 // pred_region
      %184 = dma.done [#allocation11], 16
    $region97: #{tpu_custom_call.1} parent=1 // pred_fallthru
      _
    // Predicated region
    $region98: #{tpu_custom_call.1} parent=1 // pred_check
      _
    $region99: #{tpu_custom_call.1} parent=1 // pred_check_branch
      %186 = sbr.rel (0) target = $region101
    $region100: #{tpu_custom_call.1} parent=1 // pred_region
      %188 = dma.done [#allocation11], 16
    $region101: #{tpu_custom_call.1} parent=1 // pred_fallthru
      _
    // Predicated region
    $region102: #{tpu_custom_call.1} parent=1 // pred_check
      _
    $region103: #{tpu_custom_call.1} parent=1 // pred_check_branch
      %190 = sbr.rel (0) target = $region105
    $region104: #{tpu_custom_call.1} parent=1 // pred_region
      %192 = dma.done [#allocation14], 1024
    $region105: #{tpu_custom_call.1} parent=1 // pred_fallthru
      _
    // Predicated region
    $region106: #{tpu_custom_call.1} parent=1 // pred_check
      _
    $region107: #{tpu_custom_call.1} parent=1 // pred_check_branch
      %194 = sbr.rel (0) target = $region109
    $region108: #{tpu_custom_call.1} parent=1 // pred_region
      %196 = dma.done [#allocation14], 16
    $region109: #{tpu_custom_call.1} parent=1 // pred_fallthru
      _
    // Predicated region
    $region110: #{tpu_custom_call.1} parent=1 // pred_check
      _
    $region111: #{tpu_custom_call.1} parent=1 // pred_check_branch
      %198 = sbr.rel (0) target = $region113
    $region112: #{tpu_custom_call.1} parent=1 // pred_region
      %200 = dma.done [#allocation17], 16
    $region113: #{tpu_custom_call.1} parent=1 // pred_fallthru
      _
    %v201 = vld [vmem:[%s0] sm:$0xff]
    %v202 = vld [vmem:[%s0 + $0x8] sm:$0xff]
    %v203 = vld [vmem:[#allocation2] sm:$0xff]
    %v204 = vld [vmem:[#allocation2 + $0x8] sm:$0xff]
    %vm205 = vcmp.gt.f32.partialorder %v203, 0.0
    %vm206 = vcmp.gt.f32.partialorder %v204, 0.0
    %v207 = vsel %vm205, 0.0, -1e+30
    %v208 = vsel %vm206, 0.0, -1e+30
    %v209 = vld [vmem:[#allocation4] sm:$0xff]
    %v210 = vld [vmem:[#allocation6] sm:$0x1]
    %v212 = vperm.slane %v210, 0
    %vm214 = vcmask 64512
    %v216 = vsel %vm214, %v201, 0
    %v219 = vsel %vm214, %v202, 0
    %221 = vmatpush.msra.mxu0 0.0
    %222 = vmatpush.msra.mxu0 0.0
    %223 = vmatpush.msra.mxu0 0.0
    %224 = vmatpush.msra.mxu0 0.0
    %225 = vmatpush.msra.mxu0 0.0
    %226 = vmatpush.msra.mxu0 0.0
    %227 = vmatpush.msra.mxu0 0.0
    %228 = vmatpush.msra.mxu0 0.0
    %229 = vmatpush.msra.mxu0 0.0
    %230 = vmatpush.msra.mxu0 0.0
    %231 = vmatpush.msra.mxu0 0.0
    %232 = vmatpush.msra.mxu0 0.0
    %233 = vmatpush.msra.mxu0 0.0
    %234 = vmatpush.msra.mxu0 0.0
    %235 = vmatpush.msra.mxu0 0.0
    %236 = vmatpush.msra.mxu0 %v209
    %237 = vmatmul.f32.gmra.mxu0 %v216
    %v238 = vpop.f32.mrf.mxu0
    %v239 = vadd.f32 %v212, %v238
    %240 = vmatmul.f32.gmra.mxu0 %v219
    %v241 = vpop.f32.mrf.mxu0
    %v242 = vadd.f32 %v212, %v241
    %243 = vdwg.mxu0
    %v244 = vmax.f32 %v239, 0.0
    %v245 = vmax.f32 %v242, 0.0
    %v246 = vld [vmem:[%s4] sm:$0xff]
    %v247 = vld [vmem:[%s4 + $0x8] sm:$0xff]
    %v248 = vld [vmem:[%s4 + $0x10] sm:$0xff]
    %v249 = vld [vmem:[%s4 + $0x18] sm:$0xff]
    %v250 = vld [vmem:[#allocation7] sm:$0x1]
    %v252 = vperm.slane %v250, 0
    %vm254 = vcmask 261120
    %v256 = vsel %vm254, %v244, 0
    %v259 = vsel %vm254, %v245, 0
    %261 = vmatpush.msra.mxu0 0.0
    %262 = vmatpush.msra.mxu0 0.0
    %263 = vmatpush.msra.mxu0 0.0
    %264 = vmatpush.msra.mxu0 0.0
    %265 = vmatpush.msra.mxu0 0.0
    %266 = vmatpush.msra.mxu0 0.0
    %267 = vmatpush.msra.mxu0 0.0
    %268 = vmatpush.msra.mxu0 0.0
    %269 = vmatpush.msra.mxu0 0.0
    %270 = vmatpush.msra.mxu0 0.0
    %271 = vmatpush.msra.mxu0 0.0
    %272 = vmatpush.msra.mxu0 0.0
    %273 = vmatpush.msra.mxu0 %v249
    %274 = vmatpush.msra.mxu0 %v248
    %275 = vmatpush.msra.mxu0 %v247
    %276 = vmatpush.msra.mxu0 %v246
    %277 = vmatmul.f32.gmra.mxu0 %v256
    %v278 = vpop.f32.mrf.mxu0
    %v279 = vadd.f32 %v252, %v278
    %280 = vmatmul.f32.gmra.mxu0 %v259
    %v281 = vpop.f32.mrf.mxu0
    %v282 = vadd.f32 %v252, %v281
    %283 = vdwg.mxu0
    %v284 = vmax.f32 %v279, 0.0
    %v285 = vmax.f32 %v282, 0.0
    %v286 = vld [vmem:[#allocation9] sm:$0xff]
    %v287 = vld [vmem:[#allocation9 + $0x8] sm:$0xff]
    %v288 = vld [vmem:[#allocation9 + $0x10] sm:$0xff]
    %v289 = vld [vmem:[#allocation9 + $0x18] sm:$0xff]
    %v290 = vld [vmem:[#allocation9 + $0x20] sm:$0xff]
    %v291 = vld [vmem:[#allocation9 + $0x28] sm:$0xff]
    %v292 = vld [vmem:[#allocation9 + $0x30] sm:$0xff]
    %v293 = vld [vmem:[#allocation9 + $0x38] sm:$0xff]
    %v294 = vld [vmem:[%s7] sm:$0x3]
    %v296 = vperm.slane %v294, 0
    %v297 = vperm.slane %v294, 1
    %v301 = vsel %vm254, %v284, 0
    %v304 = vsel %vm254, %v285, 0
    %306 = vmatpush.msra.mxu0 0.0
    %307 = vmatpush.msra.mxu0 0.0
    %308 = vmatpush.msra.mxu0 0.0
    %309 = vmatpush.msra.mxu0 0.0
    %310 = vmatpush.msra.mxu0 0.0
    %311 = vmatpush.msra.mxu0 0.0
    %312 = vmatpush.msra.mxu0 0.0
    %313 = vmatpush.msra.mxu0 0.0
    %314 = vmatpush.msra.mxu0 0.0
    %315 = vmatpush.msra.mxu0 0.0
    %316 = vmatpush.msra.mxu0 0.0
    %317 = vmatpush.msra.mxu0 0.0
    %318 = vmatpush.msra.mxu0 %v292
    %319 = vmatpush.msra.mxu0 %v290
    %320 = vmatpush.msra.mxu0 %v288
    %321 = vmatpush.msra.mxu0 %v286
    %322 = vmatmul.f32.gmra.mxu0 %v301
    %v323 = vpop.f32.mrf.mxu0
    %v324 = vadd.f32 %v296, %v323
    %325 = vmatmul.f32.gmra.mxu0 %v304
    %v326 = vpop.f32.mrf.mxu0
    %v327 = vadd.f32 %v296, %v326
    %328 = vdwg.mxu0
    %329 = vmatpush.msra.mxu0 0.0
    %330 = vmatpush.msra.mxu0 0.0
    %331 = vmatpush.msra.mxu0 0.0
    %332 = vmatpush.msra.mxu0 0.0
    %333 = vmatpush.msra.mxu0 0.0
    %334 = vmatpush.msra.mxu0 0.0
    %335 = vmatpush.msra.mxu0 0.0
    %336 = vmatpush.msra.mxu0 0.0
    %337 = vmatpush.msra.mxu0 0.0
    %338 = vmatpush.msra.mxu0 0.0
    %339 = vmatpush.msra.mxu0 0.0
    %340 = vmatpush.msra.mxu0 0.0
    %341 = vmatpush.msra.mxu0 %v293
    %342 = vmatpush.msra.mxu0 %v291
    %343 = vmatpush.msra.mxu0 %v289
    %344 = vmatpush.msra.mxu0 %v287
    %345 = vmatmul.f32.gmra.mxu0 %v301
    %v346 = vpop.f32.mrf.mxu0
    %v347 = vadd.f32 %v297, %v346
    %348 = vmatmul.f32.gmra.mxu0 %v304
    %v349 = vpop.f32.mrf.mxu0
    %v350 = vadd.f32 %v297, %v349
    %351 = vdwg.mxu0
    %v352 = vld [vmem:[#allocation10] sm:$0x1]
    %v355 = vrot.slane %v347, 1
    %v356 = vrot.slane %v347, 2
    %v357 = vrot.slane %v347, 3
    %v358 = vrot.slane %v347, 4
    %v359 = vrot.slane %v347, 5
    %v360 = vrot.slane %v347, 6
    %v361 = vrot.slane %v347, 7
    %v362 = vrot.slane %v350, 1
    %v363 = vrot.slane %v350, 2
    %v364 = vrot.slane %v350, 3
    %v365 = vrot.slane %v350, 4
    %v366 = vrot.slane %v350, 5
    %v367 = vrot.slane %v350, 6
    %v368 = vrot.slane %v350, 7
    %v369 = vperm.slane %v347, 0
    %v370 = vperm.slane %v355, 0
    %v371 = vperm.slane %v356, 0
    %v372 = vperm.slane %v357, 0
    %v373 = vperm.slane %v358, 0
    %v374 = vperm.slane %v359, 0
    %v375 = vperm.slane %v360, 0
    %v376 = vperm.slane %v361, 0
    %v377 = vperm.slane %v350, 0
    %v378 = vperm.slane %v362, 0
    %v379 = vperm.slane %v363, 0
    %v380 = vperm.slane %v364, 0
    %v381 = vperm.slane %v365, 0
    %v382 = vperm.slane %v366, 0
    %v383 = vperm.slane %v367, 0
    %v384 = vperm.slane %v368, 0
    %v401 = vadd.f32 %v369, %v324
    %v402 = vadd.f32 %v369, %v327
    %v403 = vadd.f32 %v370, %v324
    %v404 = vadd.f32 %v370, %v327
    %v405 = vadd.f32 %v371, %v324
    %v406 = vadd.f32 %v371, %v327
    %v407 = vadd.f32 %v372, %v324
    %v408 = vadd.f32 %v372, %v327
    %v409 = vadd.f32 %v373, %v324
    %v410 = vadd.f32 %v373, %v327
    %v411 = vadd.f32 %v374, %v324
    %v412 = vadd.f32 %v374, %v327
    %v413 = vadd.f32 %v375, %v324
    %v414 = vadd.f32 %v375, %v327
    %v415 = vadd.f32 %v376, %v324
    %v416 = vadd.f32 %v376, %v327
    %v417 = vadd.f32 %v377, %v324
    %v418 = vadd.f32 %v377, %v327
    %v419 = vadd.f32 %v378, %v324
    %v420 = vadd.f32 %v378, %v327
    %v421 = vadd.f32 %v379, %v324
    %v422 = vadd.f32 %v379, %v327
    %v423 = vadd.f32 %v380, %v324
    %v424 = vadd.f32 %v380, %v327
    %v425 = vadd.f32 %v381, %v324
    %v426 = vadd.f32 %v381, %v327
    %v427 = vadd.f32 %v382, %v324
    %v428 = vadd.f32 %v382, %v327
    %v429 = vadd.f32 %v383, %v324
    %v430 = vadd.f32 %v383, %v327
    %v431 = vadd.f32 %v384, %v324
    %v432 = vadd.f32 %v384, %v327
    %v433 = vmul.f32 %v401, 0.2
    %v434 = vmul.f32 %v402, 0.2
    %v435 = vmul.f32 %v403, 0.2
    %v436 = vmul.f32 %v404, 0.2
    %v437 = vmul.f32 %v405, 0.2
    %v438 = vmul.f32 %v406, 0.2
    %v439 = vmul.f32 %v407, 0.2
    %v440 = vmul.f32 %v408, 0.2
    %v441 = vmul.f32 %v409, 0.2
    %v442 = vmul.f32 %v410, 0.2
    %v443 = vmul.f32 %v411, 0.2
    %v444 = vmul.f32 %v412, 0.2
    %v445 = vmul.f32 %v413, 0.2
    %v446 = vmul.f32 %v414, 0.2
    %v447 = vmul.f32 %v415, 0.2
    %v448 = vmul.f32 %v416, 0.2
    %v449 = vmul.f32 %v417, 0.2
    %v450 = vmul.f32 %v418, 0.2
    %v451 = vmul.f32 %v419, 0.2
    %v452 = vmul.f32 %v420, 0.2
    %v453 = vmul.f32 %v421, 0.2
    %v454 = vmul.f32 %v422, 0.2
    %v455 = vmul.f32 %v423, 0.2
    %v456 = vmul.f32 %v424, 0.2
    %v457 = vmul.f32 %v425, 0.2
    %v458 = vmul.f32 %v426, 0.2
    %v459 = vmul.f32 %v427, 0.2
    %v460 = vmul.f32 %v428, 0.2
    %v461 = vmul.f32 %v429, 0.2
    %v462 = vmul.f32 %v430, 0.2
    %v463 = vmul.f32 %v431, 0.2
    %v464 = vmul.f32 %v432, 0.2
    %v465 = vmax.f32 %v401, %v433
    %v466 = vmax.f32 %v402, %v434
    %v467 = vmax.f32 %v403, %v435
    %v468 = vmax.f32 %v404, %v436
    %v469 = vmax.f32 %v405, %v437
    %v470 = vmax.f32 %v406, %v438
    %v471 = vmax.f32 %v407, %v439
    %v472 = vmax.f32 %v408, %v440
    %v473 = vmax.f32 %v409, %v441
    %v474 = vmax.f32 %v410, %v442
    %v475 = vmax.f32 %v411, %v443
    %v476 = vmax.f32 %v412, %v444
    %v477 = vmax.f32 %v413, %v445
    %v478 = vmax.f32 %v414, %v446
    %v479 = vmax.f32 %v415, %v447
    %v480 = vmax.f32 %v416, %v448
    %v481 = vmax.f32 %v417, %v449
    %v482 = vmax.f32 %v418, %v450
    %v483 = vmax.f32 %v419, %v451
    %v484 = vmax.f32 %v420, %v452
    %v485 = vmax.f32 %v421, %v453
    %v486 = vmax.f32 %v422, %v454
    %v487 = vmax.f32 %v423, %v455
    %v488 = vmax.f32 %v424, %v456
    %v489 = vmax.f32 %v425, %v457
    %v490 = vmax.f32 %v426, %v458
    %v491 = vmax.f32 %v427, %v459
    %v492 = vmax.f32 %v428, %v460
    %v493 = vmax.f32 %v429, %v461
    %v494 = vmax.f32 %v430, %v462
    %v495 = vmax.f32 %v431, %v463
    %v496 = vmax.f32 %v432, %v464
    %v498 = vperm.slane %v352, 0
    %v500 = vmul.f32 %v465, %v498
    %v501 = vmul.f32 %v466, %v498
    %v502 = vmul.f32 %v467, %v498
    %v503 = vmul.f32 %v468, %v498
    %v504 = vmul.f32 %v469, %v498
    %v505 = vmul.f32 %v470, %v498
    %v506 = vmul.f32 %v471, %v498
    %v507 = vmul.f32 %v472, %v498
    %v508 = vmul.f32 %v473, %v498
    %v509 = vmul.f32 %v474, %v498
    %v510 = vmul.f32 %v475, %v498
    %v511 = vmul.f32 %v476, %v498
    %v512 = vmul.f32 %v477, %v498
    %v513 = vmul.f32 %v478, %v498
    %v514 = vmul.f32 %v479, %v498
    %v515 = vmul.f32 %v480, %v498
    %v516 = vmul.f32 %v481, %v498
    %v517 = vmul.f32 %v482, %v498
    %v518 = vmul.f32 %v483, %v498
    %v519 = vmul.f32 %v484, %v498
    %v520 = vmul.f32 %v485, %v498
    %v521 = vmul.f32 %v486, %v498
    %v522 = vmul.f32 %v487, %v498
    %v523 = vmul.f32 %v488, %v498
    %v524 = vmul.f32 %v489, %v498
    %v525 = vmul.f32 %v490, %v498
    %v526 = vmul.f32 %v491, %v498
    %v527 = vmul.f32 %v492, %v498
    %v528 = vmul.f32 %v493, %v498
    %v529 = vmul.f32 %v494, %v498
    %v530 = vmul.f32 %v495, %v498
    %v531 = vmul.f32 %v496, %v498
    %v532 = vsel %vm254, %v500, 0.0
    %533 = vadd.xlane.f32.xlu0 %v532
    %v534 = vpop.xlane.xlu0 %533
    %v535 = vsel %vm254, %v501, 0.0
    %536 = vadd.xlane.f32.xlu0 %v535
    %v537 = vpop.xlane.xlu0 %536
    %v538 = vsel %vm254, %v502, 0.0
    %539 = vadd.xlane.f32.xlu0 %v538
    %v540 = vpop.xlane.xlu0 %539
    %v541 = vsel %vm254, %v503, 0.0
    %542 = vadd.xlane.f32.xlu0 %v541
    %v543 = vpop.xlane.xlu0 %542
    %v544 = vsel %vm254, %v504, 0.0
    %545 = vadd.xlane.f32.xlu0 %v544
    %v546 = vpop.xlane.xlu0 %545
    %v547 = vsel %vm254, %v505, 0.0
    %548 = vadd.xlane.f32.xlu0 %v547
    %v549 = vpop.xlane.xlu0 %548
    %v550 = vsel %vm254, %v506, 0.0
    %551 = vadd.xlane.f32.xlu0 %v550
    %v552 = vpop.xlane.xlu0 %551
    %v553 = vsel %vm254, %v507, 0.0
    %554 = vadd.xlane.f32.xlu0 %v553
    %v555 = vpop.xlane.xlu0 %554
    %v556 = vsel %vm254, %v508, 0.0
    %557 = vadd.xlane.f32.xlu0 %v556
    %v558 = vpop.xlane.xlu0 %557
    %v559 = vsel %vm254, %v509, 0.0
    %560 = vadd.xlane.f32.xlu0 %v559
    %v561 = vpop.xlane.xlu0 %560
    %v562 = vsel %vm254, %v510, 0.0
    %563 = vadd.xlane.f32.xlu0 %v562
    %v564 = vpop.xlane.xlu0 %563
    %v565 = vsel %vm254, %v511, 0.0
    %566 = vadd.xlane.f32.xlu0 %v565
    %v567 = vpop.xlane.xlu0 %566
    %v568 = vsel %vm254, %v512, 0.0
    %569 = vadd.xlane.f32.xlu0 %v568
    %v570 = vpop.xlane.xlu0 %569
    %v571 = vsel %vm254, %v513, 0.0
    %572 = vadd.xlane.f32.xlu0 %v571
    %v573 = vpop.xlane.xlu0 %572
    %v574 = vsel %vm254, %v514, 0.0
    %575 = vadd.xlane.f32.xlu0 %v574
    %v576 = vpop.xlane.xlu0 %575
    %v577 = vsel %vm254, %v515, 0.0
    %578 = vadd.xlane.f32.xlu0 %v577
    %v579 = vpop.xlane.xlu0 %578
    %v580 = vsel %vm254, %v516, 0.0
    %581 = vadd.xlane.f32.xlu0 %v580
    %v582 = vpop.xlane.xlu0 %581
    %v583 = vsel %vm254, %v517, 0.0
    %584 = vadd.xlane.f32.xlu0 %v583
    %v585 = vpop.xlane.xlu0 %584
    %v586 = vsel %vm254, %v518, 0.0
    %587 = vadd.xlane.f32.xlu0 %v586
    %v588 = vpop.xlane.xlu0 %587
    %v589 = vsel %vm254, %v519, 0.0
    %590 = vadd.xlane.f32.xlu0 %v589
    %v591 = vpop.xlane.xlu0 %590
    %v592 = vsel %vm254, %v520, 0.0
    %593 = vadd.xlane.f32.xlu0 %v592
    %v594 = vpop.xlane.xlu0 %593
    %v595 = vsel %vm254, %v521, 0.0
    %596 = vadd.xlane.f32.xlu0 %v595
    %v597 = vpop.xlane.xlu0 %596
    %v598 = vsel %vm254, %v522, 0.0
    %599 = vadd.xlane.f32.xlu0 %v598
    %v600 = vpop.xlane.xlu0 %599
    %v601 = vsel %vm254, %v523, 0.0
    %602 = vadd.xlane.f32.xlu0 %v601
    %v603 = vpop.xlane.xlu0 %602
    %v604 = vsel %vm254, %v524, 0.0
    %605 = vadd.xlane.f32.xlu0 %v604
    %v606 = vpop.xlane.xlu0 %605
    %v607 = vsel %vm254, %v525, 0.0
    %608 = vadd.xlane.f32.xlu0 %v607
    %v609 = vpop.xlane.xlu0 %608
    %v610 = vsel %vm254, %v526, 0.0
    %611 = vadd.xlane.f32.xlu0 %v610
    %v612 = vpop.xlane.xlu0 %611
    %v613 = vsel %vm254, %v527, 0.0
    %614 = vadd.xlane.f32.xlu0 %v613
    %v615 = vpop.xlane.xlu0 %614
    %v616 = vsel %vm254, %v528, 0.0
    %617 = vadd.xlane.f32.xlu0 %v616
    %v618 = vpop.xlane.xlu0 %617
    %v619 = vsel %vm254, %v529, 0.0
    %620 = vadd.xlane.f32.xlu0 %v619
    %v621 = vpop.xlane.xlu0 %620
    %v622 = vsel %vm254, %v530, 0.0
    %623 = vadd.xlane.f32.xlu0 %v622
    %v624 = vpop.xlane.xlu0 %623
    %v625 = vsel %vm254, %v531, 0.0
    %626 = vadd.xlane.f32.xlu0 %v625
    %v627 = vpop.xlane.xlu0 %626
    %v630 = vperm.slane %v207, 0
    %v631 = vlaneseq
    %v632 = vshrl.u32 %v631, 7
    %634 = vset.pattern.permute.xlu0 %v632
    %635 = vperm.xlu0 %634, %v630
    %v636 = vpop.permute.xlu0 %635
    %v637 = vlaneseq
    %v638 = vshrl.u32 %v637, 7
    %v639 = vadd.s32 %v638, 8
    %640 = vset.pattern.permute.xlu0 %v639
    %641 = vperm.xlu0 %640, %v630
    %v642 = vpop.permute.xlu0 %641
    %v643 = vperm.slane %v207, 1
    %v644 = vlaneseq
    %v645 = vshrl.u32 %v644, 7
    %647 = vset.pattern.permute.xlu0 %v645
    %648 = vperm.xlu0 %647, %v643
    %v649 = vpop.permute.xlu0 %648
    %v650 = vlaneseq
    %v651 = vshrl.u32 %v650, 7
    %v652 = vadd.s32 %v651, 8
    %653 = vset.pattern.permute.xlu0 %v652
    %654 = vperm.xlu0 %653, %v643
    %v655 = vpop.permute.xlu0 %654
    %v656 = vperm.slane %v207, 2
    %v657 = vlaneseq
    %v658 = vshrl.u32 %v657, 7
    %660 = vset.pattern.permute.xlu0 %v658
    %661 = vperm.xlu0 %660, %v656
    %v662 = vpop.permute.xlu0 %661
    %v663 = vlaneseq
    %v664 = vshrl.u32 %v663, 7
    %v665 = vadd.s32 %v664, 8
    %666 = vset.pattern.permute.xlu0 %v665
    %667 = vperm.xlu0 %666, %v656
    %v668 = vpop.permute.xlu0 %667
    %v669 = vperm.slane %v207, 3
    %v670 = vlaneseq
    %v671 = vshrl.u32 %v670, 7
    %673 = vset.pattern.permute.xlu0 %v671
    %674 = vperm.xlu0 %673, %v669
    %v675 = vpop.permute.xlu0 %674
    %v676 = vlaneseq
    %v677 = vshrl.u32 %v676, 7
    %v678 = vadd.s32 %v677, 8
    %679 = vset.pattern.permute.xlu0 %v678
    %680 = vperm.xlu0 %679, %v669
    %v681 = vpop.permute.xlu0 %680
    %v682 = vperm.slane %v207, 4
    %v683 = vlaneseq
    %v684 = vshrl.u32 %v683, 7
    %686 = vset.pattern.permute.xlu0 %v684
    %687 = vperm.xlu0 %686, %v682
    %v688 = vpop.permute.xlu0 %687
    %v689 = vlaneseq
    %v690 = vshrl.u32 %v689, 7
    %v691 = vadd.s32 %v690, 8
    %692 = vset.pattern.permute.xlu0 %v691
    %693 = vperm.xlu0 %692, %v682
    %v694 = vpop.permute.xlu0 %693
    %v695 = vperm.slane %v207, 5
    %v696 = vlaneseq
    %v697 = vshrl.u32 %v696, 7
    %699 = vset.pattern.permute.xlu0 %v697
    %700 = vperm.xlu0 %699, %v695
    %v701 = vpop.permute.xlu0 %700
    %v702 = vlaneseq
    %v703 = vshrl.u32 %v702, 7
    %v704 = vadd.s32 %v703, 8
    %705 = vset.pattern.permute.xlu0 %v704
    %706 = vperm.xlu0 %705, %v695
    %v707 = vpop.permute.xlu0 %706
    %v708 = vperm.slane %v207, 6
    %v709 = vlaneseq
    %v710 = vshrl.u32 %v709, 7
    %712 = vset.pattern.permute.xlu0 %v710
    %713 = vperm.xlu0 %712, %v708
    %v714 = vpop.permute.xlu0 %713
    %v715 = vlaneseq
    %v716 = vshrl.u32 %v715, 7
    %v717 = vadd.s32 %v716, 8
    %718 = vset.pattern.permute.xlu0 %v717
    %719 = vperm.xlu0 %718, %v708
    %v720 = vpop.permute.xlu0 %719
    %v721 = vperm.slane %v207, 7
    %v722 = vlaneseq
    %v723 = vshrl.u32 %v722, 7
    %725 = vset.pattern.permute.xlu0 %v723
    %726 = vperm.xlu0 %725, %v721
    %v727 = vpop.permute.xlu0 %726
    %v728 = vlaneseq
    %v729 = vshrl.u32 %v728, 7
    %v730 = vadd.s32 %v729, 8
    %731 = vset.pattern.permute.xlu0 %v730
    %732 = vperm.xlu0 %731, %v721
    %v733 = vpop.permute.xlu0 %732
    %v734 = vperm.slane %v208, 0
    %v735 = vlaneseq
    %v736 = vshrl.u32 %v735, 7
    %738 = vset.pattern.permute.xlu0 %v736
    %739 = vperm.xlu0 %738, %v734
    %v740 = vpop.permute.xlu0 %739
    %v741 = vlaneseq
    %v742 = vshrl.u32 %v741, 7
    %v743 = vadd.s32 %v742, 8
    %744 = vset.pattern.permute.xlu0 %v743
    %745 = vperm.xlu0 %744, %v734
    %v746 = vpop.permute.xlu0 %745
    %v747 = vperm.slane %v208, 1
    %v748 = vlaneseq
    %v749 = vshrl.u32 %v748, 7
    %751 = vset.pattern.permute.xlu0 %v749
    %752 = vperm.xlu0 %751, %v747
    %v753 = vpop.permute.xlu0 %752
    %v754 = vlaneseq
    %v755 = vshrl.u32 %v754, 7
    %v756 = vadd.s32 %v755, 8
    %757 = vset.pattern.permute.xlu0 %v756
    %758 = vperm.xlu0 %757, %v747
    %v759 = vpop.permute.xlu0 %758
    %v760 = vperm.slane %v208, 2
    %v761 = vlaneseq
    %v762 = vshrl.u32 %v761, 7
    %764 = vset.pattern.permute.xlu0 %v762
    %765 = vperm.xlu0 %764, %v760
    %v766 = vpop.permute.xlu0 %765
    %v767 = vlaneseq
    %v768 = vshrl.u32 %v767, 7
    %v769 = vadd.s32 %v768, 8
    %770 = vset.pattern.permute.xlu0 %v769
    %771 = vperm.xlu0 %770, %v760
    %v772 = vpop.permute.xlu0 %771
    %v773 = vperm.slane %v208, 3
    %v774 = vlaneseq
    %v775 = vshrl.u32 %v774, 7
    %777 = vset.pattern.permute.xlu0 %v775
    %778 = vperm.xlu0 %777, %v773
    %v779 = vpop.permute.xlu0 %778
    %v780 = vlaneseq
    %v781 = vshrl.u32 %v780, 7
    %v782 = vadd.s32 %v781, 8
    %783 = vset.pattern.permute.xlu0 %v782
    %784 = vperm.xlu0 %783, %v773
    %v785 = vpop.permute.xlu0 %784
    %v786 = vperm.slane %v208, 4
    %v787 = vlaneseq
    %v788 = vshrl.u32 %v787, 7
    %790 = vset.pattern.permute.xlu0 %v788
    %791 = vperm.xlu0 %790, %v786
    %v792 = vpop.permute.xlu0 %791
    %v793 = vlaneseq
    %v794 = vshrl.u32 %v793, 7
    %v795 = vadd.s32 %v794, 8
    %796 = vset.pattern.permute.xlu0 %v795
    %797 = vperm.xlu0 %796, %v786
    %v798 = vpop.permute.xlu0 %797
    %v799 = vperm.slane %v208, 5
    %v800 = vlaneseq
    %v801 = vshrl.u32 %v800, 7
    %803 = vset.pattern.permute.xlu0 %v801
    %804 = vperm.xlu0 %803, %v799
    %v805 = vpop.permute.xlu0 %804
    %v806 = vlaneseq
    %v807 = vshrl.u32 %v806, 7
    %v808 = vadd.s32 %v807, 8
    %809 = vset.pattern.permute.xlu0 %v808
    %810 = vperm.xlu0 %809, %v799
    %v811 = vpop.permute.xlu0 %810
    %v812 = vperm.slane %v208, 6
    %v813 = vlaneseq
    %v814 = vshrl.u32 %v813, 7
    %816 = vset.pattern.permute.xlu0 %v814
    %817 = vperm.xlu0 %816, %v812
    %v818 = vpop.permute.xlu0 %817
    %v819 = vlaneseq
    %v820 = vshrl.u32 %v819, 7
    %v821 = vadd.s32 %v820, 8
    %822 = vset.pattern.permute.xlu0 %v821
    %823 = vperm.xlu0 %822, %v812
    %v824 = vpop.permute.xlu0 %823
    %v825 = vperm.slane %v208, 7
    %v826 = vlaneseq
    %v827 = vshrl.u32 %v826, 7
    %829 = vset.pattern.permute.xlu0 %v827
    %830 = vperm.xlu0 %829, %v825
    %v831 = vpop.permute.xlu0 %830
    %v832 = vlaneseq
    %v833 = vshrl.u32 %v832, 7
    %v834 = vadd.s32 %v833, 8
    %835 = vset.pattern.permute.xlu0 %v834
    %836 = vperm.xlu0 %835, %v825
    %v837 = vpop.permute.xlu0 %836
    %v870 = vadd.f32 %v534, %v636
    %v871 = vadd.f32 %v537, %v642
    %v872 = vadd.f32 %v540, %v649
    %v873 = vadd.f32 %v543, %v655
    %v874 = vadd.f32 %v546, %v662
    %v875 = vadd.f32 %v549, %v668
    %v876 = vadd.f32 %v552, %v675
    %v877 = vadd.f32 %v555, %v681
    %v878 = vadd.f32 %v558, %v688
    %v879 = vadd.f32 %v561, %v694
    %v880 = vadd.f32 %v564, %v701
    %v881 = vadd.f32 %v567, %v707
    %v882 = vadd.f32 %v570, %v714
    %v883 = vadd.f32 %v573, %v720
    %v884 = vadd.f32 %v576, %v727
    %v885 = vadd.f32 %v579, %v733
    %v886 = vadd.f32 %v582, %v740
    %v887 = vadd.f32 %v585, %v746
    %v888 = vadd.f32 %v588, %v753
    %v889 = vadd.f32 %v591, %v759
    %v890 = vadd.f32 %v594, %v766
    %v891 = vadd.f32 %v597, %v772
    %v892 = vadd.f32 %v600, %v779
    %v893 = vadd.f32 %v603, %v785
    %v894 = vadd.f32 %v606, %v792
    %v895 = vadd.f32 %v609, %v798
    %v896 = vadd.f32 %v612, %v805
    %v897 = vadd.f32 %v615, %v811
    %v898 = vadd.f32 %v618, %v818
    %v899 = vadd.f32 %v621, %v824
    %v900 = vadd.f32 %v624, %v831
    %v901 = vadd.f32 %v627, %v837
    %934 = vset.pattern.permute.xlu0 0
    %935 = vperm.xlu0 %934, %v870
    %v936 = vpop.permute.xlu0 %935
    %937 = vset.pattern.permute.xlu0 0
    %938 = vperm.xlu0 %937, %v871
    %v939 = vpop.permute.xlu0 %938
    %940 = vset.pattern.permute.xlu0 0
    %941 = vperm.xlu0 %940, %v872
    %v942 = vpop.permute.xlu0 %941
    %943 = vset.pattern.permute.xlu0 0
    %944 = vperm.xlu0 %943, %v873
    %v945 = vpop.permute.xlu0 %944
    %946 = vset.pattern.permute.xlu0 0
    %947 = vperm.xlu0 %946, %v874
    %v948 = vpop.permute.xlu0 %947
    %949 = vset.pattern.permute.xlu0 0
    %950 = vperm.xlu0 %949, %v875
    %v951 = vpop.permute.xlu0 %950
    %952 = vset.pattern.permute.xlu0 0
    %953 = vperm.xlu0 %952, %v876
    %v954 = vpop.permute.xlu0 %953
    %955 = vset.pattern.permute.xlu0 0
    %956 = vperm.xlu0 %955, %v877
    %v957 = vpop.permute.xlu0 %956
    %958 = vset.pattern.permute.xlu0 0
    %959 = vperm.xlu0 %958, %v878
    %v960 = vpop.permute.xlu0 %959
    %961 = vset.pattern.permute.xlu0 0
    %962 = vperm.xlu0 %961, %v879
    %v963 = vpop.permute.xlu0 %962
    %964 = vset.pattern.permute.xlu0 0
    %965 = vperm.xlu0 %964, %v880
    %v966 = vpop.permute.xlu0 %965
    %967 = vset.pattern.permute.xlu0 0
    %968 = vperm.xlu0 %967, %v881
    %v969 = vpop.permute.xlu0 %968
    %970 = vset.pattern.permute.xlu0 0
    %971 = vperm.xlu0 %970, %v882
    %v972 = vpop.permute.xlu0 %971
    %973 = vset.pattern.permute.xlu0 0
    %974 = vperm.xlu0 %973, %v883
    %v975 = vpop.permute.xlu0 %974
    %976 = vset.pattern.permute.xlu0 0
    %977 = vperm.xlu0 %976, %v884
    %v978 = vpop.permute.xlu0 %977
    %979 = vset.pattern.permute.xlu0 0
    %980 = vperm.xlu0 %979, %v885
    %v981 = vpop.permute.xlu0 %980
    %982 = vset.pattern.permute.xlu0 0
    %983 = vperm.xlu0 %982, %v886
    %v984 = vpop.permute.xlu0 %983
    %985 = vset.pattern.permute.xlu0 0
    %986 = vperm.xlu0 %985, %v887
    %v987 = vpop.permute.xlu0 %986
    %988 = vset.pattern.permute.xlu0 0
    %989 = vperm.xlu0 %988, %v888
    %v990 = vpop.permute.xlu0 %989
    %991 = vset.pattern.permute.xlu0 0
    %992 = vperm.xlu0 %991, %v889
    %v993 = vpop.permute.xlu0 %992
    %994 = vset.pattern.permute.xlu0 0
    %995 = vperm.xlu0 %994, %v890
    %v996 = vpop.permute.xlu0 %995
    %997 = vset.pattern.permute.xlu0 0
    %998 = vperm.xlu0 %997, %v891
    %v999 = vpop.permute.xlu0 %998
    %1000 = vset.pattern.permute.xlu0 0
    %1001 = vperm.xlu0 %1000, %v892
    %v1002 = vpop.permute.xlu0 %1001
    %1003 = vset.pattern.permute.xlu0 0
    %1004 = vperm.xlu0 %1003, %v893
    %v1005 = vpop.permute.xlu0 %1004
    %1006 = vset.pattern.permute.xlu0 0
    %1007 = vperm.xlu0 %1006, %v894
    %v1008 = vpop.permute.xlu0 %1007
    %1009 = vset.pattern.permute.xlu0 0
    %1010 = vperm.xlu0 %1009, %v895
    %v1011 = vpop.permute.xlu0 %1010
    %1012 = vset.pattern.permute.xlu0 0
    %1013 = vperm.xlu0 %1012, %v896
    %v1014 = vpop.permute.xlu0 %1013
    %1015 = vset.pattern.permute.xlu0 0
    %1016 = vperm.xlu0 %1015, %v897
    %v1017 = vpop.permute.xlu0 %1016
    %1018 = vset.pattern.permute.xlu0 0
    %1019 = vperm.xlu0 %1018, %v898
    %v1020 = vpop.permute.xlu0 %1019
    %1021 = vset.pattern.permute.xlu0 0
    %1022 = vperm.xlu0 %1021, %v899
    %v1023 = vpop.permute.xlu0 %1022
    %1024 = vset.pattern.permute.xlu0 0
    %1025 = vperm.xlu0 %1024, %v900
    %v1026 = vpop.permute.xlu0 %1025
    %1027 = vset.pattern.permute.xlu0 0
    %1028 = vperm.xlu0 %1027, %v901
    %v1029 = vpop.permute.xlu0 %1028
    %v1030 = vlaneseq
    %v1031 = vand.u32 %v1030, 127
    %v1032 = vperm.slane %v936, %v1031
    %v1033 = vadd.s32 %v1031, 4294967288
    %v1034 = vperm.slane %v939, %v1033
    %vm1035 = vcmask 130112
    %v1036 = vsel %vm1035, %v1034, %v1032
    %v1037 = vperm.slane %v942, %v1031
    %v1038 = vperm.slane %v945, %v1033
    %v1039 = vsel %vm1035, %v1038, %v1037
    %v1040 = vperm.slane %v948, %v1031
    %v1041 = vperm.slane %v951, %v1033
    %v1042 = vsel %vm1035, %v1041, %v1040
    %v1043 = vperm.slane %v954, %v1031
    %v1044 = vperm.slane %v957, %v1033
    %v1045 = vsel %vm1035, %v1044, %v1043
    %v1046 = vperm.slane %v960, %v1031
    %v1047 = vperm.slane %v963, %v1033
    %v1048 = vsel %vm1035, %v1047, %v1046
    %v1049 = vperm.slane %v966, %v1031
    %v1050 = vperm.slane %v969, %v1033
    %v1051 = vsel %vm1035, %v1050, %v1049
    %v1052 = vperm.slane %v972, %v1031
    %v1053 = vperm.slane %v975, %v1033
    %v1054 = vsel %vm1035, %v1053, %v1052
    %v1055 = vperm.slane %v978, %v1031
    %v1056 = vperm.slane %v981, %v1033
    %v1057 = vsel %vm1035, %v1056, %v1055
    %v1058 = vperm.slane %v984, %v1031
    %v1059 = vperm.slane %v987, %v1033
    %v1060 = vsel %vm1035, %v1059, %v1058
    %v1061 = vperm.slane %v990, %v1031
    %v1062 = vperm.slane %v993, %v1033
    %v1063 = vsel %vm1035, %v1062, %v1061
    %v1064 = vperm.slane %v996, %v1031
    %v1065 = vperm.slane %v999, %v1033
    %v1066 = vsel %vm1035, %v1065, %v1064
    %v1067 = vperm.slane %v1002, %v1031
    %v1068 = vperm.slane %v1005, %v1033
    %v1069 = vsel %vm1035, %v1068, %v1067
    %v1070 = vperm.slane %v1008, %v1031
    %v1071 = vperm.slane %v1011, %v1033
    %v1072 = vsel %vm1035, %v1071, %v1070
    %v1073 = vperm.slane %v1014, %v1031
    %v1074 = vperm.slane %v1017, %v1033
    %v1075 = vsel %vm1035, %v1074, %v1073
    %v1076 = vperm.slane %v1020, %v1031
    %v1077 = vperm.slane %v1023, %v1033
    %v1078 = vsel %vm1035, %v1077, %v1076
    %v1079 = vperm.slane %v1026, %v1031
    %v1080 = vperm.slane %v1029, %v1033
    %v1081 = vsel %vm1035, %v1080, %v1079
    %vm1082 = vcmask 1041409
    %v1083 = vsel %vm1082, %v1039, %v1036
    %vm1084 = vcmask 1042434
    %v1085 = vsel %vm1084, %v1042, %v1083
    %vm1086 = vcmask 1043459
    %v1087 = vsel %vm1086, %v1045, %v1085
    %vm1088 = vcmask 1044484
    %v1089 = vsel %vm1088, %v1048, %v1087
    %vm1090 = vcmask 1045509
    %v1091 = vsel %vm1090, %v1051, %v1089
    %vm1092 = vcmask 1046534
    %v1093 = vsel %vm1092, %v1054, %v1091
    %vm1094 = vcmask 1047559
    %v1095 = vsel %vm1094, %v1057, %v1093
    %v1096 = vsel %vm1082, %v1063, %v1060
    %v1097 = vsel %vm1084, %v1066, %v1096
    %v1098 = vsel %vm1086, %v1069, %v1097
    %v1099 = vsel %vm1088, %v1072, %v1098
    %v1100 = vsel %vm1090, %v1075, %v1099
    %v1101 = vsel %vm1092, %v1078, %v1100
    %v1102 = vsel %vm1094, %v1081, %v1101
    %vm1105 = vcmask 130048
    %v1106 = vsel %vm1105, %v1095, -inf
    %1107 = vmax.xlane.f32.xlu0 %v1106
    %v1108 = vpop.xlane.xlu0 %1107
    %v1109 = vsel %vm1105, %v1102, -inf
    %1110 = vmax.xlane.f32.xlu0 %v1109
    %v1111 = vpop.xlane.xlu0 %1110
    %v1114 = vperm.slane %v1108, 0
    %v1115 = vperm.slane %v1108, 1
    %v1116 = vperm.slane %v1108, 2
    %v1117 = vperm.slane %v1108, 3
    %v1118 = vperm.slane %v1108, 4
    %v1119 = vperm.slane %v1108, 5
    %v1120 = vperm.slane %v1108, 6
    %v1121 = vperm.slane %v1108, 7
    %v1122 = vperm.slane %v1111, 0
    %v1123 = vperm.slane %v1111, 1
    %v1124 = vperm.slane %v1111, 2
    %v1125 = vperm.slane %v1111, 3
    %v1126 = vperm.slane %v1111, 4
    %v1127 = vperm.slane %v1111, 5
    %v1128 = vperm.slane %v1111, 6
    %v1129 = vperm.slane %v1111, 7
    %v1146 = vsub.f32 %v870, %v1114
    %v1147 = vsub.f32 %v871, %v1114
    %v1148 = vsub.f32 %v872, %v1115
    %v1149 = vsub.f32 %v873, %v1115
    %v1150 = vsub.f32 %v874, %v1116
    %v1151 = vsub.f32 %v875, %v1116
    %v1152 = vsub.f32 %v876, %v1117
    %v1153 = vsub.f32 %v877, %v1117
    %v1154 = vsub.f32 %v878, %v1118
    %v1155 = vsub.f32 %v879, %v1118
    %v1156 = vsub.f32 %v880, %v1119
    %v1157 = vsub.f32 %v881, %v1119
    %v1158 = vsub.f32 %v882, %v1120
    %v1159 = vsub.f32 %v883, %v1120
    %v1160 = vsub.f32 %v884, %v1121
    %v1161 = vsub.f32 %v885, %v1121
    %v1162 = vsub.f32 %v886, %v1122
    %v1163 = vsub.f32 %v887, %v1122
    %v1164 = vsub.f32 %v888, %v1123
    %v1165 = vsub.f32 %v889, %v1123
    %v1166 = vsub.f32 %v890, %v1124
    %v1167 = vsub.f32 %v891, %v1124
    %v1168 = vsub.f32 %v892, %v1125
    %v1169 = vsub.f32 %v893, %v1125
    %v1170 = vsub.f32 %v894, %v1126
    %v1171 = vsub.f32 %v895, %v1126
    %v1172 = vsub.f32 %v896, %v1127
    %v1173 = vsub.f32 %v897, %v1127
    %v1174 = vsub.f32 %v898, %v1128
    %v1175 = vsub.f32 %v899, %v1128
    %v1176 = vsub.f32 %v900, %v1129
    %v1177 = vsub.f32 %v901, %v1129
    %v1178 = vmul.f32 %v1146, 1.442695
    %v1179 = vpow.pop %v1178
    %v1180 = vmul.f32 %v1147, 1.442695
    %v1181 = vpow.pop %v1180
    %v1182 = vmul.f32 %v1148, 1.442695
    %v1183 = vpow.pop %v1182
    %v1184 = vmul.f32 %v1149, 1.442695
    %v1185 = vpow.pop %v1184
    %v1186 = vmul.f32 %v1150, 1.442695
    %v1187 = vpow.pop %v1186
    %v1188 = vmul.f32 %v1151, 1.442695
    %v1189 = vpow.pop %v1188
    %v1190 = vmul.f32 %v1152, 1.442695
    %v1191 = vpow.pop %v1190
    %v1192 = vmul.f32 %v1153, 1.442695
    %v1193 = vpow.pop %v1192
    %v1194 = vmul.f32 %v1154, 1.442695
    %v1195 = vpow.pop %v1194
    %v1196 = vmul.f32 %v1155, 1.442695
    %v1197 = vpow.pop %v1196
    %v1198 = vmul.f32 %v1156, 1.442695
    %v1199 = vpow.pop %v1198
    %v1200 = vmul.f32 %v1157, 1.442695
    %v1201 = vpow.pop %v1200
    %v1202 = vmul.f32 %v1158, 1.442695
    %v1203 = vpow.pop %v1202
    %v1204 = vmul.f32 %v1159, 1.442695
    %v1205 = vpow.pop %v1204
    %v1206 = vmul.f32 %v1160, 1.442695
    %v1207 = vpow.pop %v1206
    %v1208 = vmul.f32 %v1161, 1.442695
    %v1209 = vpow.pop %v1208
    %v1210 = vmul.f32 %v1162, 1.442695
    %v1211 = vpow.pop %v1210
    %v1212 = vmul.f32 %v1163, 1.442695
    %v1213 = vpow.pop %v1212
    %v1214 = vmul.f32 %v1164, 1.442695
    %v1215 = vpow.pop %v1214
    %v1216 = vmul.f32 %v1165, 1.442695
    %v1217 = vpow.pop %v1216
    %v1218 = vmul.f32 %v1166, 1.442695
    %v1219 = vpow.pop %v1218
    %v1220 = vmul.f32 %v1167, 1.442695
    %v1221 = vpow.pop %v1220
    %v1222 = vmul.f32 %v1168, 1.442695
    %v1223 = vpow.pop %v1222
    %v1224 = vmul.f32 %v1169, 1.442695
    %v1225 = vpow.pop %v1224
    %v1226 = vmul.f32 %v1170, 1.442695
    %v1227 = vpow.pop %v1226
    %v1228 = vmul.f32 %v1171, 1.442695
    %v1229 = vpow.pop %v1228
    %v1230 = vmul.f32 %v1172, 1.442695
    %v1231 = vpow.pop %v1230
    %v1232 = vmul.f32 %v1173, 1.442695
    %v1233 = vpow.pop %v1232
    %v1234 = vmul.f32 %v1174, 1.442695
    %v1235 = vpow.pop %v1234
    %v1236 = vmul.f32 %v1175, 1.442695
    %v1237 = vpow.pop %v1236
    %v1238 = vmul.f32 %v1176, 1.442695
    %v1239 = vpow.pop %v1238
    %v1240 = vmul.f32 %v1177, 1.442695
    %v1241 = vpow.pop %v1240
    %v1244 = vperm.slane %v203, 0
    %v1245 = vlaneseq
    %v1246 = vshrl.u32 %v1245, 7
    %1248 = vset.pattern.permute.xlu0 %v1246
    %1249 = vperm.xlu0 %1248, %v1244
    %v1250 = vpop.permute.xlu0 %1249
    %v1251 = vlaneseq
    %v1252 = vshrl.u32 %v1251, 7
    %v1253 = vadd.s32 %v1252, 8
    %1254 = vset.pattern.permute.xlu0 %v1253
    %1255 = vperm.xlu0 %1254, %v1244
    %v1256 = vpop.permute.xlu0 %1255
    %v1257 = vperm.slane %v203, 1
    %v1258 = vlaneseq
    %v1259 = vshrl.u32 %v1258, 7
    %1261 = vset.pattern.permute.xlu0 %v1259
    %1262 = vperm.xlu0 %1261, %v1257
    %v1263 = vpop.permute.xlu0 %1262
    %v1264 = vlaneseq
    %v1265 = vshrl.u32 %v1264, 7
    %v1266 = vadd.s32 %v1265, 8
    %1267 = vset.pattern.permute.xlu0 %v1266
    %1268 = vperm.xlu0 %1267, %v1257
    %v1269 = vpop.permute.xlu0 %1268
    %v1270 = vperm.slane %v203, 2
    %v1271 = vlaneseq
    %v1272 = vshrl.u32 %v1271, 7
    %1274 = vset.pattern.permute.xlu0 %v1272
    %1275 = vperm.xlu0 %1274, %v1270
    %v1276 = vpop.permute.xlu0 %1275
    %v1277 = vlaneseq
    %v1278 = vshrl.u32 %v1277, 7
    %v1279 = vadd.s32 %v1278, 8
    %1280 = vset.pattern.permute.xlu0 %v1279
    %1281 = vperm.xlu0 %1280, %v1270
    %v1282 = vpop.permute.xlu0 %1281
    %v1283 = vperm.slane %v203, 3
    %v1284 = vlaneseq
    %v1285 = vshrl.u32 %v1284, 7
    %1287 = vset.pattern.permute.xlu0 %v1285
    %1288 = vperm.xlu0 %1287, %v1283
    %v1289 = vpop.permute.xlu0 %1288
    %v1290 = vlaneseq
    %v1291 = vshrl.u32 %v1290, 7
    %v1292 = vadd.s32 %v1291, 8
    %1293 = vset.pattern.permute.xlu0 %v1292
    %1294 = vperm.xlu0 %1293, %v1283
    %v1295 = vpop.permute.xlu0 %1294
    %v1296 = vperm.slane %v203, 4
    %v1297 = vlaneseq
    %v1298 = vshrl.u32 %v1297, 7
    %1300 = vset.pattern.permute.xlu0 %v1298
    %1301 = vperm.xlu0 %1300, %v1296
    %v1302 = vpop.permute.xlu0 %1301
    %v1303 = vlaneseq
    %v1304 = vshrl.u32 %v1303, 7
    %v1305 = vadd.s32 %v1304, 8
    %1306 = vset.pattern.permute.xlu0 %v1305
    %1307 = vperm.xlu0 %1306, %v1296
    %v1308 = vpop.permute.xlu0 %1307
    %v1309 = vperm.slane %v203, 5
    %v1310 = vlaneseq
    %v1311 = vshrl.u32 %v1310, 7
    %1313 = vset.pattern.permute.xlu0 %v1311
    %1314 = vperm.xlu0 %1313, %v1309
    %v1315 = vpop.permute.xlu0 %1314
    %v1316 = vlaneseq
    %v1317 = vshrl.u32 %v1316, 7
    %v1318 = vadd.s32 %v1317, 8
    %1319 = vset.pattern.permute.xlu0 %v1318
    %1320 = vperm.xlu0 %1319, %v1309
    %v1321 = vpop.permute.xlu0 %1320
    %v1322 = vperm.slane %v203, 6
    %v1323 = vlaneseq
    %v1324 = vshrl.u32 %v1323, 7
    %1326 = vset.pattern.permute.xlu0 %v1324
    %1327 = vperm.xlu0 %1326, %v1322
    %v1328 = vpop.permute.xlu0 %1327
    %v1329 = vlaneseq
    %v1330 = vshrl.u32 %v1329, 7
    %v1331 = vadd.s32 %v1330, 8
    %1332 = vset.pattern.permute.xlu0 %v1331
    %1333 = vperm.xlu0 %1332, %v1322
    %v1334 = vpop.permute.xlu0 %1333
    %v1335 = vperm.slane %v203, 7
    %v1336 = vlaneseq
    %v1337 = vshrl.u32 %v1336, 7
    %1339 = vset.pattern.permute.xlu0 %v1337
    %1340 = vperm.xlu0 %1339, %v1335
    %v1341 = vpop.permute.xlu0 %1340
    %v1342 = vlaneseq
    %v1343 = vshrl.u32 %v1342, 7
    %v1344 = vadd.s32 %v1343, 8
    %1345 = vset.pattern.permute.xlu0 %v1344
    %1346 = vperm.xlu0 %1345, %v1335
    %v1347 = vpop.permute.xlu0 %1346
    %v1348 = vperm.slane %v204, 0
    %v1349 = vlaneseq
    %v1350 = vshrl.u32 %v1349, 7
    %1352 = vset.pattern.permute.xlu0 %v1350
    %1353 = vperm.xlu0 %1352, %v1348
    %v1354 = vpop.permute.xlu0 %1353
    %v1355 = vlaneseq
    %v1356 = vshrl.u32 %v1355, 7
    %v1357 = vadd.s32 %v1356, 8
    %1358 = vset.pattern.permute.xlu0 %v1357
    %1359 = vperm.xlu0 %1358, %v1348
    %v1360 = vpop.permute.xlu0 %1359
    %v1361 = vperm.slane %v204, 1
    %v1362 = vlaneseq
    %v1363 = vshrl.u32 %v1362, 7
    %1365 = vset.pattern.permute.xlu0 %v1363
    %1366 = vperm.xlu0 %1365, %v1361
    %v1367 = vpop.permute.xlu0 %1366
    %v1368 = vlaneseq
    %v1369 = vshrl.u32 %v1368, 7
    %v1370 = vadd.s32 %v1369, 8
    %1371 = vset.pattern.permute.xlu0 %v1370
    %1372 = vperm.xlu0 %1371, %v1361
    %v1373 = vpop.permute.xlu0 %1372
    %v1374 = vperm.slane %v204, 2
    %v1375 = vlaneseq
    %v1376 = vshrl.u32 %v1375, 7
    %1378 = vset.pattern.permute.xlu0 %v1376
    %1379 = vperm.xlu0 %1378, %v1374
    %v1380 = vpop.permute.xlu0 %1379
    %v1381 = vlaneseq
    %v1382 = vshrl.u32 %v1381, 7
    %v1383 = vadd.s32 %v1382, 8
    %1384 = vset.pattern.permute.xlu0 %v1383
    %1385 = vperm.xlu0 %1384, %v1374
    %v1386 = vpop.permute.xlu0 %1385
    %v1387 = vperm.slane %v204, 3
    %v1388 = vlaneseq
    %v1389 = vshrl.u32 %v1388, 7
    %1391 = vset.pattern.permute.xlu0 %v1389
    %1392 = vperm.xlu0 %1391, %v1387
    %v1393 = vpop.permute.xlu0 %1392
    %v1394 = vlaneseq
    %v1395 = vshrl.u32 %v1394, 7
    %v1396 = vadd.s32 %v1395, 8
    %1397 = vset.pattern.permute.xlu0 %v1396
    %1398 = vperm.xlu0 %1397, %v1387
    %v1399 = vpop.permute.xlu0 %1398
    %v1400 = vperm.slane %v204, 4
    %v1401 = vlaneseq
    %v1402 = vshrl.u32 %v1401, 7
    %1404 = vset.pattern.permute.xlu0 %v1402
    %1405 = vperm.xlu0 %1404, %v1400
    %v1406 = vpop.permute.xlu0 %1405
    %v1407 = vlaneseq
    %v1408 = vshrl.u32 %v1407, 7
    %v1409 = vadd.s32 %v1408, 8
    %1410 = vset.pattern.permute.xlu0 %v1409
    %1411 = vperm.xlu0 %1410, %v1400
    %v1412 = vpop.permute.xlu0 %1411
    %v1413 = vperm.slane %v204, 5
    %v1414 = vlaneseq
    %v1415 = vshrl.u32 %v1414, 7
    %1417 = vset.pattern.permute.xlu0 %v1415
    %1418 = vperm.xlu0 %1417, %v1413
    %v1419 = vpop.permute.xlu0 %1418
    %v1420 = vlaneseq
    %v1421 = vshrl.u32 %v1420, 7
    %v1422 = vadd.s32 %v1421, 8
    %1423 = vset.pattern.permute.xlu0 %v1422
    %1424 = vperm.xlu0 %1423, %v1413
    %v1425 = vpop.permute.xlu0 %1424
    %v1426 = vperm.slane %v204, 6
    %v1427 = vlaneseq
    %v1428 = vshrl.u32 %v1427, 7
    %1430 = vset.pattern.permute.xlu0 %v1428
    %1431 = vperm.xlu0 %1430, %v1426
    %v1432 = vpop.permute.xlu0 %1431
    %v1433 = vlaneseq
    %v1434 = vshrl.u32 %v1433, 7
    %v1435 = vadd.s32 %v1434, 8
    %1436 = vset.pattern.permute.xlu0 %v1435
    %1437 = vperm.xlu0 %1436, %v1426
    %v1438 = vpop.permute.xlu0 %1437
    %v1439 = vperm.slane %v204, 7
    %v1440 = vlaneseq
    %v1441 = vshrl.u32 %v1440, 7
    %1443 = vset.pattern.permute.xlu0 %v1441
    %1444 = vperm.xlu0 %1443, %v1439
    %v1445 = vpop.permute.xlu0 %1444
    %v1446 = vlaneseq
    %v1447 = vshrl.u32 %v1446, 7
    %v1448 = vadd.s32 %v1447, 8
    %1449 = vset.pattern.permute.xlu0 %v1448
    %1450 = vperm.xlu0 %1449, %v1439
    %v1451 = vpop.permute.xlu0 %1450
    %v1484 = vmul.f32 %v1179, %v1250
    %v1485 = vmul.f32 %v1181, %v1256
    %v1486 = vmul.f32 %v1183, %v1263
    %v1487 = vmul.f32 %v1185, %v1269
    %v1488 = vmul.f32 %v1187, %v1276
    %v1489 = vmul.f32 %v1189, %v1282
    %v1490 = vmul.f32 %v1191, %v1289
    %v1491 = vmul.f32 %v1193, %v1295
    %v1492 = vmul.f32 %v1195, %v1302
    %v1493 = vmul.f32 %v1197, %v1308
    %v1494 = vmul.f32 %v1199, %v1315
    %v1495 = vmul.f32 %v1201, %v1321
    %v1496 = vmul.f32 %v1203, %v1328
    %v1497 = vmul.f32 %v1205, %v1334
    %v1498 = vmul.f32 %v1207, %v1341
    %v1499 = vmul.f32 %v1209, %v1347
    %v1500 = vmul.f32 %v1211, %v1354
    %v1501 = vmul.f32 %v1213, %v1360
    %v1502 = vmul.f32 %v1215, %v1367
    %v1503 = vmul.f32 %v1217, %v1373
    %v1504 = vmul.f32 %v1219, %v1380
    %v1505 = vmul.f32 %v1221, %v1386
    %v1506 = vmul.f32 %v1223, %v1393
    %v1507 = vmul.f32 %v1225, %v1399
    %v1508 = vmul.f32 %v1227, %v1406
    %v1509 = vmul.f32 %v1229, %v1412
    %v1510 = vmul.f32 %v1231, %v1419
    %v1511 = vmul.f32 %v1233, %v1425
    %v1512 = vmul.f32 %v1235, %v1432
    %v1513 = vmul.f32 %v1237, %v1438
    %v1514 = vmul.f32 %v1239, %v1445
    %v1515 = vmul.f32 %v1241, %v1451
    %1548 = vset.pattern.permute.xlu0 0
    %1549 = vperm.xlu0 %1548, %v1484
    %v1550 = vpop.permute.xlu0 %1549
    %1551 = vset.pattern.permute.xlu0 0
    %1552 = vperm.xlu0 %1551, %v1485
    %v1553 = vpop.permute.xlu0 %1552
    %1554 = vset.pattern.permute.xlu0 0
    %1555 = vperm.xlu0 %1554, %v1486
    %v1556 = vpop.permute.xlu0 %1555
    %1557 = vset.pattern.permute.xlu0 0
    %1558 = vperm.xlu0 %1557, %v1487
    %v1559 = vpop.permute.xlu0 %1558
    %1560 = vset.pattern.permute.xlu0 0
    %1561 = vperm.xlu0 %1560, %v1488
    %v1562 = vpop.permute.xlu0 %1561
    %1563 = vset.pattern.permute.xlu0 0
    %1564 = vperm.xlu0 %1563, %v1489
    %v1565 = vpop.permute.xlu0 %1564
    %1566 = vset.pattern.permute.xlu0 0
    %1567 = vperm.xlu0 %1566, %v1490
    %v1568 = vpop.permute.xlu0 %1567
    %1569 = vset.pattern.permute.xlu0 0
    %1570 = vperm.xlu0 %1569, %v1491
    %v1571 = vpop.permute.xlu0 %1570
    %1572 = vset.pattern.permute.xlu0 0
    %1573 = vperm.xlu0 %1572, %v1492
    %v1574 = vpop.permute.xlu0 %1573
    %1575 = vset.pattern.permute.xlu0 0
    %1576 = vperm.xlu0 %1575, %v1493
    %v1577 = vpop.permute.xlu0 %1576
    %1578 = vset.pattern.permute.xlu0 0
    %1579 = vperm.xlu0 %1578, %v1494
    %v1580 = vpop.permute.xlu0 %1579
    %1581 = vset.pattern.permute.xlu0 0
    %1582 = vperm.xlu0 %1581, %v1495
    %v1583 = vpop.permute.xlu0 %1582
    %1584 = vset.pattern.permute.xlu0 0
    %1585 = vperm.xlu0 %1584, %v1496
    %v1586 = vpop.permute.xlu0 %1585
    %1587 = vset.pattern.permute.xlu0 0
    %1588 = vperm.xlu0 %1587, %v1497
    %v1589 = vpop.permute.xlu0 %1588
    %1590 = vset.pattern.permute.xlu0 0
    %1591 = vperm.xlu0 %1590, %v1498
    %v1592 = vpop.permute.xlu0 %1591
    %1593 = vset.pattern.permute.xlu0 0
    %1594 = vperm.xlu0 %1593, %v1499
    %v1595 = vpop.permute.xlu0 %1594
    %1596 = vset.pattern.permute.xlu0 0
    %1597 = vperm.xlu0 %1596, %v1500
    %v1598 = vpop.permute.xlu0 %1597
    %1599 = vset.pattern.permute.xlu0 0
    %1600 = vperm.xlu0 %1599, %v1501
    %v1601 = vpop.permute.xlu0 %1600
    %1602 = vset.pattern.permute.xlu0 0
    %1603 = vperm.xlu0 %1602, %v1502
    %v1604 = vpop.permute.xlu0 %1603
    %1605 = vset.pattern.permute.xlu0 0
    %1606 = vperm.xlu0 %1605, %v1503
    %v1607 = vpop.permute.xlu0 %1606
    %1608 = vset.pattern.permute.xlu0 0
    %1609 = vperm.xlu0 %1608, %v1504
    %v1610 = vpop.permute.xlu0 %1609
    %1611 = vset.pattern.permute.xlu0 0
    %1612 = vperm.xlu0 %1611, %v1505
    %v1613 = vpop.permute.xlu0 %1612
    %1614 = vset.pattern.permute.xlu0 0
    %1615 = vperm.xlu0 %1614, %v1506
    %v1616 = vpop.permute.xlu0 %1615
    %1617 = vset.pattern.permute.xlu0 0
    %1618 = vperm.xlu0 %1617, %v1507
    %v1619 = vpop.permute.xlu0 %1618
    %1620 = vset.pattern.permute.xlu0 0
    %1621 = vperm.xlu0 %1620, %v1508
    %v1622 = vpop.permute.xlu0 %1621
    %1623 = vset.pattern.permute.xlu0 0
    %1624 = vperm.xlu0 %1623, %v1509
    %v1625 = vpop.permute.xlu0 %1624
    %1626 = vset.pattern.permute.xlu0 0
    %1627 = vperm.xlu0 %1626, %v1510
    %v1628 = vpop.permute.xlu0 %1627
    %1629 = vset.pattern.permute.xlu0 0
    %1630 = vperm.xlu0 %1629, %v1511
    %v1631 = vpop.permute.xlu0 %1630
    %1632 = vset.pattern.permute.xlu0 0
    %1633 = vperm.xlu0 %1632, %v1512
    %v1634 = vpop.permute.xlu0 %1633
    %1635 = vset.pattern.permute.xlu0 0
    %1636 = vperm.xlu0 %1635, %v1513
    %v1637 = vpop.permute.xlu0 %1636
    %1638 = vset.pattern.permute.xlu0 0
    %1639 = vperm.xlu0 %1638, %v1514
    %v1640 = vpop.permute.xlu0 %1639
    %1641 = vset.pattern.permute.xlu0 0
    %1642 = vperm.xlu0 %1641, %v1515
    %v1643 = vpop.permute.xlu0 %1642
    %v1644 = vperm.slane %v1550, %v1031
    %v1645 = vperm.slane %v1553, %v1033
    %v1646 = vsel %vm1035, %v1645, %v1644
    %v1647 = vperm.slane %v1556, %v1031
    %v1648 = vperm.slane %v1559, %v1033
    %v1649 = vsel %vm1035, %v1648, %v1647
    %v1650 = vperm.slane %v1562, %v1031
    %v1651 = vperm.slane %v1565, %v1033
    %v1652 = vsel %vm1035, %v1651, %v1650
    %v1653 = vperm.slane %v1568, %v1031
    %v1654 = vperm.slane %v1571, %v1033
    %v1655 = vsel %vm1035, %v1654, %v1653
    %v1656 = vperm.slane %v1574, %v1031
    %v1657 = vperm.slane %v1577, %v1033
    %v1658 = vsel %vm1035, %v1657, %v1656
    %v1659 = vperm.slane %v1580, %v1031
    %v1660 = vperm.slane %v1583, %v1033
    %v1661 = vsel %vm1035, %v1660, %v1659
    %v1662 = vperm.slane %v1586, %v1031
    %v1663 = vperm.slane %v1589, %v1033
    %v1664 = vsel %vm1035, %v1663, %v1662
    %v1665 = vperm.slane %v1592, %v1031
    %v1666 = vperm.slane %v1595, %v1033
    %v1667 = vsel %vm1035, %v1666, %v1665
    %v1668 = vperm.slane %v1598, %v1031
    %v1669 = vperm.slane %v1601, %v1033
    %v1670 = vsel %vm1035, %v1669, %v1668
    %v1671 = vperm.slane %v1604, %v1031
    %v1672 = vperm.slane %v1607, %v1033
    %v1673 = vsel %vm1035, %v1672, %v1671
    %v1674 = vperm.slane %v1610, %v1031
    %v1675 = vperm.slane %v1613, %v1033
    %v1676 = vsel %vm1035, %v1675, %v1674
    %v1677 = vperm.slane %v1616, %v1031
    %v1678 = vperm.slane %v1619, %v1033
    %v1679 = vsel %vm1035, %v1678, %v1677
    %v1680 = vperm.slane %v1622, %v1031
    %v1681 = vperm.slane %v1625, %v1033
    %v1682 = vsel %vm1035, %v1681, %v1680
    %v1683 = vperm.slane %v1628, %v1031
    %v1684 = vperm.slane %v1631, %v1033
    %v1685 = vsel %vm1035, %v1684, %v1683
    %v1686 = vperm.slane %v1634, %v1031
    %v1687 = vperm.slane %v1637, %v1033
    %v1688 = vsel %vm1035, %v1687, %v1686
    %v1689 = vperm.slane %v1640, %v1031
    %v1690 = vperm.slane %v1643, %v1033
    %v1691 = vsel %vm1035, %v1690, %v1689
    %v1692 = vsel %vm1082, %v1649, %v1646
    %v1693 = vsel %vm1084, %v1652, %v1692
    %v1694 = vsel %vm1086, %v1655, %v1693
    %v1695 = vsel %vm1088, %v1658, %v1694
    %v1696 = vsel %vm1090, %v1661, %v1695
    %v1697 = vsel %vm1092, %v1664, %v1696
    %v1698 = vsel %vm1094, %v1667, %v1697
    %v1699 = vsel %vm1082, %v1673, %v1670
    %v1700 = vsel %vm1084, %v1676, %v1699
    %v1701 = vsel %vm1086, %v1679, %v1700
    %v1702 = vsel %vm1088, %v1682, %v1701
    %v1703 = vsel %vm1090, %v1685, %v1702
    %v1704 = vsel %vm1092, %v1688, %v1703
    %v1705 = vsel %vm1094, %v1691, %v1704
    %v1708 = vsel %vm1105, %v1698, 0.0
    %1709 = vadd.xlane.f32.xlu0 %v1708
    %v1710 = vpop.xlane.xlu0 %1709
    %v1711 = vsel %vm1105, %v1705, 0.0
    %1712 = vadd.xlane.f32.xlu0 %v1711
    %v1713 = vpop.xlane.xlu0 %1712
    %v1714 = vmul.f32 %v1710, 3.0
    %v1715 = vmul.f32 %v1713, 3.0
    %v1716 = vmax.f32 %v1714, 1e-30
    %v1717 = vmax.f32 %v1715, 1e-30
    %v1718 = vrcp.pop %v1716
    %v1719 = vrcp.pop %v1717
    %v1722 = vperm.slane %v1718, 0
    %v1723 = vperm.slane %v1718, 1
    %v1724 = vperm.slane %v1718, 2
    %v1725 = vperm.slane %v1718, 3
    %v1726 = vperm.slane %v1718, 4
    %v1727 = vperm.slane %v1718, 5
    %v1728 = vperm.slane %v1718, 6
    %v1729 = vperm.slane %v1718, 7
    %v1730 = vperm.slane %v1719, 0
    %v1731 = vperm.slane %v1719, 1
    %v1732 = vperm.slane %v1719, 2
    %v1733 = vperm.slane %v1719, 3
    %v1734 = vperm.slane %v1719, 4
    %v1735 = vperm.slane %v1719, 5
    %v1736 = vperm.slane %v1719, 6
    %v1737 = vperm.slane %v1719, 7
    %v1754 = vmul.f32 %v1484, %v1722
    %v1755 = vmul.f32 %v1485, %v1722
    %v1756 = vmul.f32 %v1486, %v1723
    %v1757 = vmul.f32 %v1487, %v1723
    %v1758 = vmul.f32 %v1488, %v1724
    %v1759 = vmul.f32 %v1489, %v1724
    %v1760 = vmul.f32 %v1490, %v1725
    %v1761 = vmul.f32 %v1491, %v1725
    %v1762 = vmul.f32 %v1492, %v1726
    %v1763 = vmul.f32 %v1493, %v1726
    %v1764 = vmul.f32 %v1494, %v1727
    %v1765 = vmul.f32 %v1495, %v1727
    %v1766 = vmul.f32 %v1496, %v1728
    %v1767 = vmul.f32 %v1497, %v1728
    %v1768 = vmul.f32 %v1498, %v1729
    %v1769 = vmul.f32 %v1499, %v1729
    %v1770 = vmul.f32 %v1500, %v1730
    %v1771 = vmul.f32 %v1501, %v1730
    %v1772 = vmul.f32 %v1502, %v1731
    %v1773 = vmul.f32 %v1503, %v1731
    %v1774 = vmul.f32 %v1504, %v1732
    %v1775 = vmul.f32 %v1505, %v1732
    %v1776 = vmul.f32 %v1506, %v1733
    %v1777 = vmul.f32 %v1507, %v1733
    %v1778 = vmul.f32 %v1508, %v1734
    %v1779 = vmul.f32 %v1509, %v1734
    %v1780 = vmul.f32 %v1510, %v1735
    %v1781 = vmul.f32 %v1511, %v1735
    %v1782 = vmul.f32 %v1512, %v1736
    %v1783 = vmul.f32 %v1513, %v1736
    %v1784 = vmul.f32 %v1514, %v1737
    %v1785 = vmul.f32 %v1515, %v1737
    %1818 = vrot.lane.b32.xlu0 %v500, 96
    %v1819 = vpop.permute.xlu0 %1818
    %1820 = vrot.lane.b32.xlu0 %v501, 96
    %v1821 = vpop.permute.xlu0 %1820
    %1822 = vrot.lane.b32.xlu0 %v502, 96
    %v1823 = vpop.permute.xlu0 %1822
    %1824 = vrot.lane.b32.xlu0 %v503, 96
    %v1825 = vpop.permute.xlu0 %1824
    %1826 = vrot.lane.b32.xlu0 %v504, 96
    %v1827 = vpop.permute.xlu0 %1826
    %1828 = vrot.lane.b32.xlu0 %v505, 96
    %v1829 = vpop.permute.xlu0 %1828
    %1830 = vrot.lane.b32.xlu0 %v506, 96
    %v1831 = vpop.permute.xlu0 %1830
    %1832 = vrot.lane.b32.xlu0 %v507, 96
    %v1833 = vpop.permute.xlu0 %1832
    %1834 = vrot.lane.b32.xlu0 %v508, 96
    %v1835 = vpop.permute.xlu0 %1834
    %1836 = vrot.lane.b32.xlu0 %v509, 96
    %v1837 = vpop.permute.xlu0 %1836
    %1838 = vrot.lane.b32.xlu0 %v510, 96
    %v1839 = vpop.permute.xlu0 %1838
    %1840 = vrot.lane.b32.xlu0 %v511, 96
    %v1841 = vpop.permute.xlu0 %1840
    %1842 = vrot.lane.b32.xlu0 %v512, 96
    %v1843 = vpop.permute.xlu0 %1842
    %1844 = vrot.lane.b32.xlu0 %v513, 96
    %v1845 = vpop.permute.xlu0 %1844
    %1846 = vrot.lane.b32.xlu0 %v514, 96
    %v1847 = vpop.permute.xlu0 %1846
    %1848 = vrot.lane.b32.xlu0 %v515, 96
    %v1849 = vpop.permute.xlu0 %1848
    %1850 = vrot.lane.b32.xlu0 %v516, 96
    %v1851 = vpop.permute.xlu0 %1850
    %1852 = vrot.lane.b32.xlu0 %v517, 96
    %v1853 = vpop.permute.xlu0 %1852
    %1854 = vrot.lane.b32.xlu0 %v518, 96
    %v1855 = vpop.permute.xlu0 %1854
    %1856 = vrot.lane.b32.xlu0 %v519, 96
    %v1857 = vpop.permute.xlu0 %1856
    %1858 = vrot.lane.b32.xlu0 %v520, 96
    %v1859 = vpop.permute.xlu0 %1858
    %1860 = vrot.lane.b32.xlu0 %v521, 96
    %v1861 = vpop.permute.xlu0 %1860
    %1862 = vrot.lane.b32.xlu0 %v522, 96
    %v1863 = vpop.permute.xlu0 %1862
    %1864 = vrot.lane.b32.xlu0 %v523, 96
    %v1865 = vpop.permute.xlu0 %1864
    %1866 = vrot.lane.b32.xlu0 %v524, 96
    %v1867 = vpop.permute.xlu0 %1866
    %1868 = vrot.lane.b32.xlu0 %v525, 96
    %v1869 = vpop.permute.xlu0 %1868
    %1870 = vrot.lane.b32.xlu0 %v526, 96
    %v1871 = vpop.permute.xlu0 %1870
    %1872 = vrot.lane.b32.xlu0 %v527, 96
    %v1873 = vpop.permute.xlu0 %1872
    %1874 = vrot.lane.b32.xlu0 %v528, 96
    %v1875 = vpop.permute.xlu0 %1874
    %1876 = vrot.lane.b32.xlu0 %v529, 96
    %v1877 = vpop.permute.xlu0 %1876
    %1878 = vrot.lane.b32.xlu0 %v530, 96
    %v1879 = vpop.permute.xlu0 %1878
    %1880 = vrot.lane.b32.xlu0 %v531, 96
    %v1881 = vpop.permute.xlu0 %1880
    %v1914 = vsel %vm254, %v1819, 0.0
    %1915 = vadd.xlane.f32.xlu0 %v1914
    %v1916 = vpop.xlane.xlu0 %1915
    %v1917 = vsel %vm254, %v1821, 0.0
    %1918 = vadd.xlane.f32.xlu0 %v1917
    %v1919 = vpop.xlane.xlu0 %1918
    %v1920 = vsel %vm254, %v1823, 0.0
    %1921 = vadd.xlane.f32.xlu0 %v1920
    %v1922 = vpop.xlane.xlu0 %1921
    %v1923 = vsel %vm254, %v1825, 0.0
    %1924 = vadd.xlane.f32.xlu0 %v1923
    %v1925 = vpop.xlane.xlu0 %1924
    %v1926 = vsel %vm254, %v1827, 0.0
    %1927 = vadd.xlane.f32.xlu0 %v1926
    %v1928 = vpop.xlane.xlu0 %1927
    %v1929 = vsel %vm254, %v1829, 0.0
    %1930 = vadd.xlane.f32.xlu0 %v1929
    %v1931 = vpop.xlane.xlu0 %1930
    %v1932 = vsel %vm254, %v1831, 0.0
    %1933 = vadd.xlane.f32.xlu0 %v1932
    %v1934 = vpop.xlane.xlu0 %1933
    %v1935 = vsel %vm254, %v1833, 0.0
    %1936 = vadd.xlane.f32.xlu0 %v1935
    %v1937 = vpop.xlane.xlu0 %1936
    %v1938 = vsel %vm254, %v1835, 0.0
    %1939 = vadd.xlane.f32.xlu0 %v1938
    %v1940 = vpop.xlane.xlu0 %1939
    %v1941 = vsel %vm254, %v1837, 0.0
    %1942 = vadd.xlane.f32.xlu0 %v1941
    %v1943 = vpop.xlane.xlu0 %1942
    %v1944 = vsel %vm254, %v1839, 0.0
    %1945 = vadd.xlane.f32.xlu0 %v1944
    %v1946 = vpop.xlane.xlu0 %1945
    %v1947 = vsel %vm254, %v1841, 0.0
    %1948 = vadd.xlane.f32.xlu0 %v1947
    %v1949 = vpop.xlane.xlu0 %1948
    %v1950 = vsel %vm254, %v1843, 0.0
    %1951 = vadd.xlane.f32.xlu0 %v1950
    %v1952 = vpop.xlane.xlu0 %1951
    %v1953 = vsel %vm254, %v1845, 0.0
    %1954 = vadd.xlane.f32.xlu0 %v1953
    %v1955 = vpop.xlane.xlu0 %1954
    %v1956 = vsel %vm254, %v1847, 0.0
    %1957 = vadd.xlane.f32.xlu0 %v1956
    %v1958 = vpop.xlane.xlu0 %1957
    %v1959 = vsel %vm254, %v1849, 0.0
    %1960 = vadd.xlane.f32.xlu0 %v1959
    %v1961 = vpop.xlane.xlu0 %1960
    %v1962 = vsel %vm254, %v1851, 0.0
    %1963 = vadd.xlane.f32.xlu0 %v1962
    %v1964 = vpop.xlane.xlu0 %1963
    %v1965 = vsel %vm254, %v1853, 0.0
    %1966 = vadd.xlane.f32.xlu0 %v1965
    %v1967 = vpop.xlane.xlu0 %1966
    %v1968 = vsel %vm254, %v1855, 0.0
    %1969 = vadd.xlane.f32.xlu0 %v1968
    %v1970 = vpop.xlane.xlu0 %1969
    %v1971 = vsel %vm254, %v1857, 0.0
    %1972 = vadd.xlane.f32.xlu0 %v1971
    %v1973 = vpop.xlane.xlu0 %1972
    %v1974 = vsel %vm254, %v1859, 0.0
    %1975 = vadd.xlane.f32.xlu0 %v1974
    %v1976 = vpop.xlane.xlu0 %1975
    %v1977 = vsel %vm254, %v1861, 0.0
    %1978 = vadd.xlane.f32.xlu0 %v1977
    %v1979 = vpop.xlane.xlu0 %1978
    %v1980 = vsel %vm254, %v1863, 0.0
    %1981 = vadd.xlane.f32.xlu0 %v1980
    %v1982 = vpop.xlane.xlu0 %1981
    %v1983 = vsel %vm254, %v1865, 0.0
    %1984 = vadd.xlane.f32.xlu0 %v1983
    %v1985 = vpop.xlane.xlu0 %1984
    %v1986 = vsel %vm254, %v1867, 0.0
    %1987 = vadd.xlane.f32.xlu0 %v1986
    %v1988 = vpop.xlane.xlu0 %1987
    %v1989 = vsel %vm254, %v1869, 0.0
    %1990 = vadd.xlane.f32.xlu0 %v1989
    %v1991 = vpop.xlane.xlu0 %1990
    %v1992 = vsel %vm254, %v1871, 0.0
    %1993 = vadd.xlane.f32.xlu0 %v1992
    %v1994 = vpop.xlane.xlu0 %1993
    %v1995 = vsel %vm254, %v1873, 0.0
    %1996 = vadd.xlane.f32.xlu0 %v1995
    %v1997 = vpop.xlane.xlu0 %1996
    %v1998 = vsel %vm254, %v1875, 0.0
    %1999 = vadd.xlane.f32.xlu0 %v1998
    %v2000 = vpop.xlane.xlu0 %1999
    %v2001 = vsel %vm254, %v1877, 0.0
    %2002 = vadd.xlane.f32.xlu0 %v2001
    %v2003 = vpop.xlane.xlu0 %2002
    %v2004 = vsel %vm254, %v1879, 0.0
    %2005 = vadd.xlane.f32.xlu0 %v2004
    %v2006 = vpop.xlane.xlu0 %2005
    %v2007 = vsel %vm254, %v1881, 0.0
    %2008 = vadd.xlane.f32.xlu0 %v2007
    %v2009 = vpop.xlane.xlu0 %2008
    %v2010 = vadd.f32 %v1916, %v636
    %v2011 = vadd.f32 %v1919, %v642
    %v2012 = vadd.f32 %v1922, %v649
    %v2013 = vadd.f32 %v1925, %v655
    %v2014 = vadd.f32 %v1928, %v662
    %v2015 = vadd.f32 %v1931, %v668
    %v2016 = vadd.f32 %v1934, %v675
    %v2017 = vadd.f32 %v1937, %v681
    %v2018 = vadd.f32 %v1940, %v688
    %v2019 = vadd.f32 %v1943, %v694
    %v2020 = vadd.f32 %v1946, %v701
    %v2021 = vadd.f32 %v1949, %v707
    %v2022 = vadd.f32 %v1952, %v714
    %v2023 = vadd.f32 %v1955, %v720
    %v2024 = vadd.f32 %v1958, %v727
    %v2025 = vadd.f32 %v1961, %v733
    %v2026 = vadd.f32 %v1964, %v740
    %v2027 = vadd.f32 %v1967, %v746
    %v2028 = vadd.f32 %v1970, %v753
    %v2029 = vadd.f32 %v1973, %v759
    %v2030 = vadd.f32 %v1976, %v766
    %v2031 = vadd.f32 %v1979, %v772
    %v2032 = vadd.f32 %v1982, %v779
    %v2033 = vadd.f32 %v1985, %v785
    %v2034 = vadd.f32 %v1988, %v792
    %v2035 = vadd.f32 %v1991, %v798
    %v2036 = vadd.f32 %v1994, %v805
    %v2037 = vadd.f32 %v1997, %v811
    %v2038 = vadd.f32 %v2000, %v818
    %v2039 = vadd.f32 %v2003, %v824
    %v2040 = vadd.f32 %v2006, %v831
    %v2041 = vadd.f32 %v2009, %v837
    %2074 = vset.pattern.permute.xlu0 0
    %2075 = vperm.xlu0 %2074, %v2010
    %v2076 = vpop.permute.xlu0 %2075
    %2077 = vset.pattern.permute.xlu0 0
    %2078 = vperm.xlu0 %2077, %v2011
    %v2079 = vpop.permute.xlu0 %2078
    %2080 = vset.pattern.permute.xlu0 0
    %2081 = vperm.xlu0 %2080, %v2012
    %v2082 = vpop.permute.xlu0 %2081
    %2083 = vset.pattern.permute.xlu0 0
    %2084 = vperm.xlu0 %2083, %v2013
    %v2085 = vpop.permute.xlu0 %2084
    %2086 = vset.pattern.permute.xlu0 0
    %2087 = vperm.xlu0 %2086, %v2014
    %v2088 = vpop.permute.xlu0 %2087
    %2089 = vset.pattern.permute.xlu0 0
    %2090 = vperm.xlu0 %2089, %v2015
    %v2091 = vpop.permute.xlu0 %2090
    %2092 = vset.pattern.permute.xlu0 0
    %2093 = vperm.xlu0 %2092, %v2016
    %v2094 = vpop.permute.xlu0 %2093
    %2095 = vset.pattern.permute.xlu0 0
    %2096 = vperm.xlu0 %2095, %v2017
    %v2097 = vpop.permute.xlu0 %2096
    %2098 = vset.pattern.permute.xlu0 0
    %2099 = vperm.xlu0 %2098, %v2018
    %v2100 = vpop.permute.xlu0 %2099
    %2101 = vset.pattern.permute.xlu0 0
    %2102 = vperm.xlu0 %2101, %v2019
    %v2103 = vpop.permute.xlu0 %2102
    %2104 = vset.pattern.permute.xlu0 0
    %2105 = vperm.xlu0 %2104, %v2020
    %v2106 = vpop.permute.xlu0 %2105
    %2107 = vset.pattern.permute.xlu0 0
    %2108 = vperm.xlu0 %2107, %v2021
    %v2109 = vpop.permute.xlu0 %2108
    %2110 = vset.pattern.permute.xlu0 0
    %2111 = vperm.xlu0 %2110, %v2022
    %v2112 = vpop.permute.xlu0 %2111
    %2113 = vset.pattern.permute.xlu0 0
    %2114 = vperm.xlu0 %2113, %v2023
    %v2115 = vpop.permute.xlu0 %2114
    %2116 = vset.pattern.permute.xlu0 0
    %2117 = vperm.xlu0 %2116, %v2024
    %v2118 = vpop.permute.xlu0 %2117
    %2119 = vset.pattern.permute.xlu0 0
    %2120 = vperm.xlu0 %2119, %v2025
    %v2121 = vpop.permute.xlu0 %2120
    %2122 = vset.pattern.permute.xlu0 0
    %2123 = vperm.xlu0 %2122, %v2026
    %v2124 = vpop.permute.xlu0 %2123
    %2125 = vset.pattern.permute.xlu0 0
    %2126 = vperm.xlu0 %2125, %v2027
    %v2127 = vpop.permute.xlu0 %2126
    %2128 = vset.pattern.permute.xlu0 0
    %2129 = vperm.xlu0 %2128, %v2028
    %v2130 = vpop.permute.xlu0 %2129
    %2131 = vset.pattern.permute.xlu0 0
    %2132 = vperm.xlu0 %2131, %v2029
    %v2133 = vpop.permute.xlu0 %2132
    %2134 = vset.pattern.permute.xlu0 0
    %2135 = vperm.xlu0 %2134, %v2030
    %v2136 = vpop.permute.xlu0 %2135
    %2137 = vset.pattern.permute.xlu0 0
    %2138 = vperm.xlu0 %2137, %v2031
    %v2139 = vpop.permute.xlu0 %2138
    %2140 = vset.pattern.permute.xlu0 0
    %2141 = vperm.xlu0 %2140, %v2032
    %v2142 = vpop.permute.xlu0 %2141
    %2143 = vset.pattern.permute.xlu0 0
    %2144 = vperm.xlu0 %2143, %v2033
    %v2145 = vpop.permute.xlu0 %2144
    %2146 = vset.pattern.permute.xlu0 0
    %2147 = vperm.xlu0 %2146, %v2034
    %v2148 = vpop.permute.xlu0 %2147
    %2149 = vset.pattern.permute.xlu0 0
    %2150 = vperm.xlu0 %2149, %v2035
    %v2151 = vpop.permute.xlu0 %2150
    %2152 = vset.pattern.permute.xlu0 0
    %2153 = vperm.xlu0 %2152, %v2036
    %v2154 = vpop.permute.xlu0 %2153
    %2155 = vset.pattern.permute.xlu0 0
    %2156 = vperm.xlu0 %2155, %v2037
    %v2157 = vpop.permute.xlu0 %2156
    %2158 = vset.pattern.permute.xlu0 0
    %2159 = vperm.xlu0 %2158, %v2038
    %v2160 = vpop.permute.xlu0 %2159
    %2161 = vset.pattern.permute.xlu0 0
    %2162 = vperm.xlu0 %2161, %v2039
    %v2163 = vpop.permute.xlu0 %2162
    %2164 = vset.pattern.permute.xlu0 0
    %2165 = vperm.xlu0 %2164, %v2040
    %v2166 = vpop.permute.xlu0 %2165
    %2167 = vset.pattern.permute.xlu0 0
    %2168 = vperm.xlu0 %2167, %v2041
    %v2169 = vpop.permute.xlu0 %2168
    %v2170 = vperm.slane %v2076, %v1031
    %v2171 = vperm.slane %v2079, %v1033
    %v2172 = vsel %vm1035, %v2171, %v2170
    %v2173 = vperm.slane %v2082, %v1031
    %v2174 = vperm.slane %v2085, %v1033
    %v2175 = vsel %vm1035, %v2174, %v2173
    %v2176 = vperm.slane %v2088, %v1031
    %v2177 = vperm.slane %v2091, %v1033
    %v2178 = vsel %vm1035, %v2177, %v2176
    %v2179 = vperm.slane %v2094, %v1031
    %v2180 = vperm.slane %v2097, %v1033
    %v2181 = vsel %vm1035, %v2180, %v2179
    %v2182 = vperm.slane %v2100, %v1031
    %v2183 = vperm.slane %v2103, %v1033
    %v2184 = vsel %vm1035, %v2183, %v2182
    %v2185 = vperm.slane %v2106, %v1031
    %v2186 = vperm.slane %v2109, %v1033
    %v2187 = vsel %vm1035, %v2186, %v2185
    %v2188 = vperm.slane %v2112, %v1031
    %v2189 = vperm.slane %v2115, %v1033
    %v2190 = vsel %vm1035, %v2189, %v2188
    %v2191 = vperm.slane %v2118, %v1031
    %v2192 = vperm.slane %v2121, %v1033
    %v2193 = vsel %vm1035, %v2192, %v2191
    %v2194 = vperm.slane %v2124, %v1031
    %v2195 = vperm.slane %v2127, %v1033
    %v2196 = vsel %vm1035, %v2195, %v2194
    %v2197 = vperm.slane %v2130, %v1031
    %v2198 = vperm.slane %v2133, %v1033
    %v2199 = vsel %vm1035, %v2198, %v2197
    %v2200 = vperm.slane %v2136, %v1031
    %v2201 = vperm.slane %v2139, %v1033
    %v2202 = vsel %vm1035, %v2201, %v2200
    %v2203 = vperm.slane %v2142, %v1031
    %v2204 = vperm.slane %v2145, %v1033
    %v2205 = vsel %vm1035, %v2204, %v2203
    %v2206 = vperm.slane %v2148, %v1031
    %v2207 = vperm.slane %v2151, %v1033
    %v2208 = vsel %vm1035, %v2207, %v2206
    %v2209 = vperm.slane %v2154, %v1031
    %v2210 = vperm.slane %v2157, %v1033
    %v2211 = vsel %vm1035, %v2210, %v2209
    %v2212 = vperm.slane %v2160, %v1031
    %v2213 = vperm.slane %v2163, %v1033
    %v2214 = vsel %vm1035, %v2213, %v2212
    %v2215 = vperm.slane %v2166, %v1031
    %v2216 = vperm.slane %v2169, %v1033
    %v2217 = vsel %vm1035, %v2216, %v2215
    %v2218 = vsel %vm1082, %v2175, %v2172
    %v2219 = vsel %vm1084, %v2178, %v2218
    %v2220 = vsel %vm1086, %v2181, %v2219
    %v2221 = vsel %vm1088, %v2184, %v2220
    %v2222 = vsel %vm1090, %v2187, %v2221
    %v2223 = vsel %vm1092, %v2190, %v2222
    %v2224 = vsel %vm1094, %v2193, %v2223
    %v2225 = vsel %vm1082, %v2199, %v2196
    %v2226 = vsel %vm1084, %v2202, %v2225
    %v2227 = vsel %vm1086, %v2205, %v2226
    %v2228 = vsel %vm1088, %v2208, %v2227
    %v2229 = vsel %vm1090, %v2211, %v2228
    %v2230 = vsel %vm1092, %v2214, %v2229
    %v2231 = vsel %vm1094, %v2217, %v2230
    %v2234 = vsel %vm1105, %v2224, -inf
    %2235 = vmax.xlane.f32.xlu0 %v2234
    %v2236 = vpop.xlane.xlu0 %2235
    %v2237 = vsel %vm1105, %v2231, -inf
    %2238 = vmax.xlane.f32.xlu0 %v2237
    %v2239 = vpop.xlane.xlu0 %2238
    %v2242 = vperm.slane %v2236, 0
    %v2243 = vperm.slane %v2236, 1
    %v2244 = vperm.slane %v2236, 2
    %v2245 = vperm.slane %v2236, 3
    %v2246 = vperm.slane %v2236, 4
    %v2247 = vperm.slane %v2236, 5
    %v2248 = vperm.slane %v2236, 6
    %v2249 = vperm.slane %v2236, 7
    %v2250 = vperm.slane %v2239, 0
    %v2251 = vperm.slane %v2239, 1
    %v2252 = vperm.slane %v2239, 2
    %v2253 = vperm.slane %v2239, 3
    %v2254 = vperm.slane %v2239, 4
    %v2255 = vperm.slane %v2239, 5
    %v2256 = vperm.slane %v2239, 6
    %v2257 = vperm.slane %v2239, 7
    %v2274 = vsub.f32 %v2010, %v2242
    %v2275 = vsub.f32 %v2011, %v2242
    %v2276 = vsub.f32 %v2012, %v2243
    %v2277 = vsub.f32 %v2013, %v2243
    %v2278 = vsub.f32 %v2014, %v2244
    %v2279 = vsub.f32 %v2015, %v2244
    %v2280 = vsub.f32 %v2016, %v2245
    %v2281 = vsub.f32 %v2017, %v2245
    %v2282 = vsub.f32 %v2018, %v2246
    %v2283 = vsub.f32 %v2019, %v2246
    %v2284 = vsub.f32 %v2020, %v2247
    %v2285 = vsub.f32 %v2021, %v2247
    %v2286 = vsub.f32 %v2022, %v2248
    %v2287 = vsub.f32 %v2023, %v2248
    %v2288 = vsub.f32 %v2024, %v2249
    %v2289 = vsub.f32 %v2025, %v2249
    %v2290 = vsub.f32 %v2026, %v2250
    %v2291 = vsub.f32 %v2027, %v2250
    %v2292 = vsub.f32 %v2028, %v2251
    %v2293 = vsub.f32 %v2029, %v2251
    %v2294 = vsub.f32 %v2030, %v2252
    %v2295 = vsub.f32 %v2031, %v2252
    %v2296 = vsub.f32 %v2032, %v2253
    %v2297 = vsub.f32 %v2033, %v2253
    %v2298 = vsub.f32 %v2034, %v2254
    %v2299 = vsub.f32 %v2035, %v2254
    %v2300 = vsub.f32 %v2036, %v2255
    %v2301 = vsub.f32 %v2037, %v2255
    %v2302 = vsub.f32 %v2038, %v2256
    %v2303 = vsub.f32 %v2039, %v2256
    %v2304 = vsub.f32 %v2040, %v2257
    %v2305 = vsub.f32 %v2041, %v2257
    %v2306 = vmul.f32 %v2274, 1.442695
    %v2307 = vpow.pop %v2306
    %v2308 = vmul.f32 %v2275, 1.442695
    %v2309 = vpow.pop %v2308
    %v2310 = vmul.f32 %v2276, 1.442695
    %v2311 = vpow.pop %v2310
    %v2312 = vmul.f32 %v2277, 1.442695
    %v2313 = vpow.pop %v2312
    %v2314 = vmul.f32 %v2278, 1.442695
    %v2315 = vpow.pop %v2314
    %v2316 = vmul.f32 %v2279, 1.442695
    %v2317 = vpow.pop %v2316
    %v2318 = vmul.f32 %v2280, 1.442695
    %v2319 = vpow.pop %v2318
    %v2320 = vmul.f32 %v2281, 1.442695
    %v2321 = vpow.pop %v2320
    %v2322 = vmul.f32 %v2282, 1.442695
    %v2323 = vpow.pop %v2322
    %v2324 = vmul.f32 %v2283, 1.442695
    %v2325 = vpow.pop %v2324
    %v2326 = vmul.f32 %v2284, 1.442695
    %v2327 = vpow.pop %v2326
    %v2328 = vmul.f32 %v2285, 1.442695
    %v2329 = vpow.pop %v2328
    %v2330 = vmul.f32 %v2286, 1.442695
    %v2331 = vpow.pop %v2330
    %v2332 = vmul.f32 %v2287, 1.442695
    %v2333 = vpow.pop %v2332
    %v2334 = vmul.f32 %v2288, 1.442695
    %v2335 = vpow.pop %v2334
    %v2336 = vmul.f32 %v2289, 1.442695
    %v2337 = vpow.pop %v2336
    %v2338 = vmul.f32 %v2290, 1.442695
    %v2339 = vpow.pop %v2338
    %v2340 = vmul.f32 %v2291, 1.442695
    %v2341 = vpow.pop %v2340
    %v2342 = vmul.f32 %v2292, 1.442695
    %v2343 = vpow.pop %v2342
    %v2344 = vmul.f32 %v2293, 1.442695
    %v2345 = vpow.pop %v2344
    %v2346 = vmul.f32 %v2294, 1.442695
    %v2347 = vpow.pop %v2346
    %v2348 = vmul.f32 %v2295, 1.442695
    %v2349 = vpow.pop %v2348
    %v2350 = vmul.f32 %v2296, 1.442695
    %v2351 = vpow.pop %v2350
    %v2352 = vmul.f32 %v2297, 1.442695
    %v2353 = vpow.pop %v2352
    %v2354 = vmul.f32 %v2298, 1.442695
    %v2355 = vpow.pop %v2354
    %v2356 = vmul.f32 %v2299, 1.442695
    %v2357 = vpow.pop %v2356
    %v2358 = vmul.f32 %v2300, 1.442695
    %v2359 = vpow.pop %v2358
    %v2360 = vmul.f32 %v2301, 1.442695
    %v2361 = vpow.pop %v2360
    %v2362 = vmul.f32 %v2302, 1.442695
    %v2363 = vpow.pop %v2362
    %v2364 = vmul.f32 %v2303, 1.442695
    %v2365 = vpow.pop %v2364
    %v2366 = vmul.f32 %v2304, 1.442695
    %v2367 = vpow.pop %v2366
    %v2368 = vmul.f32 %v2305, 1.442695
    %v2369 = vpow.pop %v2368
    %v2370 = vmul.f32 %v2307, %v1250
    %v2371 = vmul.f32 %v2309, %v1256
    %v2372 = vmul.f32 %v2311, %v1263
    %v2373 = vmul.f32 %v2313, %v1269
    %v2374 = vmul.f32 %v2315, %v1276
    %v2375 = vmul.f32 %v2317, %v1282
    %v2376 = vmul.f32 %v2319, %v1289
    %v2377 = vmul.f32 %v2321, %v1295
    %v2378 = vmul.f32 %v2323, %v1302
    %v2379 = vmul.f32 %v2325, %v1308
    %v2380 = vmul.f32 %v2327, %v1315
    %v2381 = vmul.f32 %v2329, %v1321
    %v2382 = vmul.f32 %v2331, %v1328
    %v2383 = vmul.f32 %v2333, %v1334
    %v2384 = vmul.f32 %v2335, %v1341
    %v2385 = vmul.f32 %v2337, %v1347
    %v2386 = vmul.f32 %v2339, %v1354
    %v2387 = vmul.f32 %v2341, %v1360
    %v2388 = vmul.f32 %v2343, %v1367
    %v2389 = vmul.f32 %v2345, %v1373
    %v2390 = vmul.f32 %v2347, %v1380
    %v2391 = vmul.f32 %v2349, %v1386
    %v2392 = vmul.f32 %v2351, %v1393
    %v2393 = vmul.f32 %v2353, %v1399
    %v2394 = vmul.f32 %v2355, %v1406
    %v2395 = vmul.f32 %v2357, %v1412
    %v2396 = vmul.f32 %v2359, %v1419
    %v2397 = vmul.f32 %v2361, %v1425
    %v2398 = vmul.f32 %v2363, %v1432
    %v2399 = vmul.f32 %v2365, %v1438
    %v2400 = vmul.f32 %v2367, %v1445
    %v2401 = vmul.f32 %v2369, %v1451
    %2434 = vset.pattern.permute.xlu0 0
    %2435 = vperm.xlu0 %2434, %v2370
    %v2436 = vpop.permute.xlu0 %2435
    %2437 = vset.pattern.permute.xlu0 0
    %2438 = vperm.xlu0 %2437, %v2371
    %v2439 = vpop.permute.xlu0 %2438
    %2440 = vset.pattern.permute.xlu0 0
    %2441 = vperm.xlu0 %2440, %v2372
    %v2442 = vpop.permute.xlu0 %2441
    %2443 = vset.pattern.permute.xlu0 0
    %2444 = vperm.xlu0 %2443, %v2373
    %v2445 = vpop.permute.xlu0 %2444
    %2446 = vset.pattern.permute.xlu0 0
    %2447 = vperm.xlu0 %2446, %v2374
    %v2448 = vpop.permute.xlu0 %2447
    %2449 = vset.pattern.permute.xlu0 0
    %2450 = vperm.xlu0 %2449, %v2375
    %v2451 = vpop.permute.xlu0 %2450
    %2452 = vset.pattern.permute.xlu0 0
    %2453 = vperm.xlu0 %2452, %v2376
    %v2454 = vpop.permute.xlu0 %2453
    %2455 = vset.pattern.permute.xlu0 0
    %2456 = vperm.xlu0 %2455, %v2377
    %v2457 = vpop.permute.xlu0 %2456
    %2458 = vset.pattern.permute.xlu0 0
    %2459 = vperm.xlu0 %2458, %v2378
    %v2460 = vpop.permute.xlu0 %2459
    %2461 = vset.pattern.permute.xlu0 0
    %2462 = vperm.xlu0 %2461, %v2379
    %v2463 = vpop.permute.xlu0 %2462
    %2464 = vset.pattern.permute.xlu0 0
    %2465 = vperm.xlu0 %2464, %v2380
    %v2466 = vpop.permute.xlu0 %2465
    %2467 = vset.pattern.permute.xlu0 0
    %2468 = vperm.xlu0 %2467, %v2381
    %v2469 = vpop.permute.xlu0 %2468
    %2470 = vset.pattern.permute.xlu0 0
    %2471 = vperm.xlu0 %2470, %v2382
    %v2472 = vpop.permute.xlu0 %2471
    %2473 = vset.pattern.permute.xlu0 0
    %2474 = vperm.xlu0 %2473, %v2383
    %v2475 = vpop.permute.xlu0 %2474
    %2476 = vset.pattern.permute.xlu0 0
    %2477 = vperm.xlu0 %2476, %v2384
    %v2478 = vpop.permute.xlu0 %2477
    %2479 = vset.pattern.permute.xlu0 0
    %2480 = vperm.xlu0 %2479, %v2385
    %v2481 = vpop.permute.xlu0 %2480
    %2482 = vset.pattern.permute.xlu0 0
    %2483 = vperm.xlu0 %2482, %v2386
    %v2484 = vpop.permute.xlu0 %2483
    %2485 = vset.pattern.permute.xlu0 0
    %2486 = vperm.xlu0 %2485, %v2387
    %v2487 = vpop.permute.xlu0 %2486
    %2488 = vset.pattern.permute.xlu0 0
    %2489 = vperm.xlu0 %2488, %v2388
    %v2490 = vpop.permute.xlu0 %2489
    %2491 = vset.pattern.permute.xlu0 0
    %2492 = vperm.xlu0 %2491, %v2389
    %v2493 = vpop.permute.xlu0 %2492
    %2494 = vset.pattern.permute.xlu0 0
    %2495 = vperm.xlu0 %2494, %v2390
    %v2496 = vpop.permute.xlu0 %2495
    %2497 = vset.pattern.permute.xlu0 0
    %2498 = vperm.xlu0 %2497, %v2391
    %v2499 = vpop.permute.xlu0 %2498
    %2500 = vset.pattern.permute.xlu0 0
    %2501 = vperm.xlu0 %2500, %v2392
    %v2502 = vpop.permute.xlu0 %2501
    %2503 = vset.pattern.permute.xlu0 0
    %2504 = vperm.xlu0 %2503, %v2393
    %v2505 = vpop.permute.xlu0 %2504
    %2506 = vset.pattern.permute.xlu0 0
    %2507 = vperm.xlu0 %2506, %v2394
    %v2508 = vpop.permute.xlu0 %2507
    %2509 = vset.pattern.permute.xlu0 0
    %2510 = vperm.xlu0 %2509, %v2395
    %v2511 = vpop.permute.xlu0 %2510
    %2512 = vset.pattern.permute.xlu0 0
    %2513 = vperm.xlu0 %2512, %v2396
    %v2514 = vpop.permute.xlu0 %2513
    %2515 = vset.pattern.permute.xlu0 0
    %2516 = vperm.xlu0 %2515, %v2397
    %v2517 = vpop.permute.xlu0 %2516
    %2518 = vset.pattern.permute.xlu0 0
    %2519 = vperm.xlu0 %2518, %v2398
    %v2520 = vpop.permute.xlu0 %2519
    %2521 = vset.pattern.permute.xlu0 0
    %2522 = vperm.xlu0 %2521, %v2399
    %v2523 = vpop.permute.xlu0 %2522
    %2524 = vset.pattern.permute.xlu0 0
    %2525 = vperm.xlu0 %2524, %v2400
    %v2526 = vpop.permute.xlu0 %2525
    %2527 = vset.pattern.permute.xlu0 0
    %2528 = vperm.xlu0 %2527, %v2401
    %v2529 = vpop.permute.xlu0 %2528
    %v2530 = vperm.slane %v2436, %v1031
    %v2531 = vperm.slane %v2439, %v1033
    %v2532 = vsel %vm1035, %v2531, %v2530
    %v2533 = vperm.slane %v2442, %v1031
    %v2534 = vperm.slane %v2445, %v1033
    %v2535 = vsel %vm1035, %v2534, %v2533
    %v2536 = vperm.slane %v2448, %v1031
    %v2537 = vperm.slane %v2451, %v1033
    %v2538 = vsel %vm1035, %v2537, %v2536
    %v2539 = vperm.slane %v2454, %v1031
    %v2540 = vperm.slane %v2457, %v1033
    %v2541 = vsel %vm1035, %v2540, %v2539
    %v2542 = vperm.slane %v2460, %v1031
    %v2543 = vperm.slane %v2463, %v1033
    %v2544 = vsel %vm1035, %v2543, %v2542
    %v2545 = vperm.slane %v2466, %v1031
    %v2546 = vperm.slane %v2469, %v1033
    %v2547 = vsel %vm1035, %v2546, %v2545
    %v2548 = vperm.slane %v2472, %v1031
    %v2549 = vperm.slane %v2475, %v1033
    %v2550 = vsel %vm1035, %v2549, %v2548
    %v2551 = vperm.slane %v2478, %v1031
    %v2552 = vperm.slane %v2481, %v1033
    %v2553 = vsel %vm1035, %v2552, %v2551
    %v2554 = vperm.slane %v2484, %v1031
    %v2555 = vperm.slane %v2487, %v1033
    %v2556 = vsel %vm1035, %v2555, %v2554
    %v2557 = vperm.slane %v2490, %v1031
    %v2558 = vperm.slane %v2493, %v1033
    %v2559 = vsel %vm1035, %v2558, %v2557
    %v2560 = vperm.slane %v2496, %v1031
    %v2561 = vperm.slane %v2499, %v1033
    %v2562 = vsel %vm1035, %v2561, %v2560
    %v2563 = vperm.slane %v2502, %v1031
    %v2564 = vperm.slane %v2505, %v1033
    %v2565 = vsel %vm1035, %v2564, %v2563
    %v2566 = vperm.slane %v2508, %v1031
    %v2567 = vperm.slane %v2511, %v1033
    %v2568 = vsel %vm1035, %v2567, %v2566
    %v2569 = vperm.slane %v2514, %v1031
    %v2570 = vperm.slane %v2517, %v1033
    %v2571 = vsel %vm1035, %v2570, %v2569
    %v2572 = vperm.slane %v2520, %v1031
    %v2573 = vperm.slane %v2523, %v1033
    %v2574 = vsel %vm1035, %v2573, %v2572
    %v2575 = vperm.slane %v2526, %v1031
    %v2576 = vperm.slane %v2529, %v1033
    %v2577 = vsel %vm1035, %v2576, %v2575
    %v2578 = vsel %vm1082, %v2535, %v2532
    %v2579 = vsel %vm1084, %v2538, %v2578
    %v2580 = vsel %vm1086, %v2541, %v2579
    %v2581 = vsel %vm1088, %v2544, %v2580
    %v2582 = vsel %vm1090, %v2547, %v2581
    %v2583 = vsel %vm1092, %v2550, %v2582
    %v2584 = vsel %vm1094, %v2553, %v2583
    %v2585 = vsel %vm1082, %v2559, %v2556
    %v2586 = vsel %vm1084, %v2562, %v2585
    %v2587 = vsel %vm1086, %v2565, %v2586
    %v2588 = vsel %vm1088, %v2568, %v2587
    %v2589 = vsel %vm1090, %v2571, %v2588
    %v2590 = vsel %vm1092, %v2574, %v2589
    %v2591 = vsel %vm1094, %v2577, %v2590
    %v2594 = vsel %vm1105, %v2584, 0.0
    %2595 = vadd.xlane.f32.xlu0 %v2594
    %v2596 = vpop.xlane.xlu0 %2595
    %v2597 = vsel %vm1105, %v2591, 0.0
    %2598 = vadd.xlane.f32.xlu0 %v2597
    %v2599 = vpop.xlane.xlu0 %2598
    %v2600 = vmul.f32 %v2596, 3.0
    %v2601 = vmul.f32 %v2599, 3.0
    %v2602 = vmax.f32 %v2600, 1e-30
    %v2603 = vmax.f32 %v2601, 1e-30
    %v2604 = vrcp.pop %v2602
    %v2605 = vrcp.pop %v2603
    %v2608 = vperm.slane %v2604, 0
    %v2609 = vperm.slane %v2604, 1
    %v2610 = vperm.slane %v2604, 2
    %v2611 = vperm.slane %v2604, 3
    %v2612 = vperm.slane %v2604, 4
    %v2613 = vperm.slane %v2604, 5
    %v2614 = vperm.slane %v2604, 6
    %v2615 = vperm.slane %v2604, 7
    %v2616 = vperm.slane %v2605, 0
    %v2617 = vperm.slane %v2605, 1
    %v2618 = vperm.slane %v2605, 2
    %v2619 = vperm.slane %v2605, 3
    %v2620 = vperm.slane %v2605, 4
    %v2621 = vperm.slane %v2605, 5
    %v2622 = vperm.slane %v2605, 6
    %v2623 = vperm.slane %v2605, 7
    %v2640 = vmul.f32 %v2370, %v2608
    %v2641 = vmul.f32 %v2371, %v2608
    %v2642 = vmul.f32 %v2372, %v2609
    %v2643 = vmul.f32 %v2373, %v2609
    %v2644 = vmul.f32 %v2374, %v2610
    %v2645 = vmul.f32 %v2375, %v2610
    %v2646 = vmul.f32 %v2376, %v2611
    %v2647 = vmul.f32 %v2377, %v2611
    %v2648 = vmul.f32 %v2378, %v2612
    %v2649 = vmul.f32 %v2379, %v2612
    %v2650 = vmul.f32 %v2380, %v2613
    %v2651 = vmul.f32 %v2381, %v2613
    %v2652 = vmul.f32 %v2382, %v2614
    %v2653 = vmul.f32 %v2383, %v2614
    %v2654 = vmul.f32 %v2384, %v2615
    %v2655 = vmul.f32 %v2385, %v2615
    %v2656 = vmul.f32 %v2386, %v2616
    %v2657 = vmul.f32 %v2387, %v2616
    %v2658 = vmul.f32 %v2388, %v2617
    %v2659 = vmul.f32 %v2389, %v2617
    %v2660 = vmul.f32 %v2390, %v2618
    %v2661 = vmul.f32 %v2391, %v2618
    %v2662 = vmul.f32 %v2392, %v2619
    %v2663 = vmul.f32 %v2393, %v2619
    %v2664 = vmul.f32 %v2394, %v2620
    %v2665 = vmul.f32 %v2395, %v2620
    %v2666 = vmul.f32 %v2396, %v2621
    %v2667 = vmul.f32 %v2397, %v2621
    %v2668 = vmul.f32 %v2398, %v2622
    %v2669 = vmul.f32 %v2399, %v2622
    %v2670 = vmul.f32 %v2400, %v2623
    %v2671 = vmul.f32 %v2401, %v2623
    %2704 = vset.pattern.permute.xlu0 0
    %2705 = vperm.xlu0 %2704, %v2640
    %v2706 = vpop.permute.xlu0 %2705
    %2707 = vset.pattern.permute.xlu0 0
    %2708 = vperm.xlu0 %2707, %v2641
    %v2709 = vpop.permute.xlu0 %2708
    %2710 = vset.pattern.permute.xlu0 0
    %2711 = vperm.xlu0 %2710, %v2642
    %v2712 = vpop.permute.xlu0 %2711
    %2713 = vset.pattern.permute.xlu0 0
    %2714 = vperm.xlu0 %2713, %v2643
    %v2715 = vpop.permute.xlu0 %2714
    %2716 = vset.pattern.permute.xlu0 0
    %2717 = vperm.xlu0 %2716, %v2644
    %v2718 = vpop.permute.xlu0 %2717
    %2719 = vset.pattern.permute.xlu0 0
    %2720 = vperm.xlu0 %2719, %v2645
    %v2721 = vpop.permute.xlu0 %2720
    %2722 = vset.pattern.permute.xlu0 0
    %2723 = vperm.xlu0 %2722, %v2646
    %v2724 = vpop.permute.xlu0 %2723
    %2725 = vset.pattern.permute.xlu0 0
    %2726 = vperm.xlu0 %2725, %v2647
    %v2727 = vpop.permute.xlu0 %2726
    %2728 = vset.pattern.permute.xlu0 0
    %2729 = vperm.xlu0 %2728, %v2648
    %v2730 = vpop.permute.xlu0 %2729
    %2731 = vset.pattern.permute.xlu0 0
    %2732 = vperm.xlu0 %2731, %v2649
    %v2733 = vpop.permute.xlu0 %2732
    %2734 = vset.pattern.permute.xlu0 0
    %2735 = vperm.xlu0 %2734, %v2650
    %v2736 = vpop.permute.xlu0 %2735
    %2737 = vset.pattern.permute.xlu0 0
    %2738 = vperm.xlu0 %2737, %v2651
    %v2739 = vpop.permute.xlu0 %2738
    %2740 = vset.pattern.permute.xlu0 0
    %2741 = vperm.xlu0 %2740, %v2652
    %v2742 = vpop.permute.xlu0 %2741
    %2743 = vset.pattern.permute.xlu0 0
    %2744 = vperm.xlu0 %2743, %v2653
    %v2745 = vpop.permute.xlu0 %2744
    %2746 = vset.pattern.permute.xlu0 0
    %2747 = vperm.xlu0 %2746, %v2654
    %v2748 = vpop.permute.xlu0 %2747
    %2749 = vset.pattern.permute.xlu0 0
    %2750 = vperm.xlu0 %2749, %v2655
    %v2751 = vpop.permute.xlu0 %2750
    %2752 = vset.pattern.permute.xlu0 0
    %2753 = vperm.xlu0 %2752, %v2656
    %v2754 = vpop.permute.xlu0 %2753
    %2755 = vset.pattern.permute.xlu0 0
    %2756 = vperm.xlu0 %2755, %v2657
    %v2757 = vpop.permute.xlu0 %2756
    %2758 = vset.pattern.permute.xlu0 0
    %2759 = vperm.xlu0 %2758, %v2658
    %v2760 = vpop.permute.xlu0 %2759
    %2761 = vset.pattern.permute.xlu0 0
    %2762 = vperm.xlu0 %2761, %v2659
    %v2763 = vpop.permute.xlu0 %2762
    %2764 = vset.pattern.permute.xlu0 0
    %2765 = vperm.xlu0 %2764, %v2660
    %v2766 = vpop.permute.xlu0 %2765
    %2767 = vset.pattern.permute.xlu0 0
    %2768 = vperm.xlu0 %2767, %v2661
    %v2769 = vpop.permute.xlu0 %2768
    %2770 = vset.pattern.permute.xlu0 0
    %2771 = vperm.xlu0 %2770, %v2662
    %v2772 = vpop.permute.xlu0 %2771
    %2773 = vset.pattern.permute.xlu0 0
    %2774 = vperm.xlu0 %2773, %v2663
    %v2775 = vpop.permute.xlu0 %2774
    %2776 = vset.pattern.permute.xlu0 0
    %2777 = vperm.xlu0 %2776, %v2664
    %v2778 = vpop.permute.xlu0 %2777
    %2779 = vset.pattern.permute.xlu0 0
    %2780 = vperm.xlu0 %2779, %v2665
    %v2781 = vpop.permute.xlu0 %2780
    %2782 = vset.pattern.permute.xlu0 0
    %2783 = vperm.xlu0 %2782, %v2666
    %v2784 = vpop.permute.xlu0 %2783
    %2785 = vset.pattern.permute.xlu0 0
    %2786 = vperm.xlu0 %2785, %v2667
    %v2787 = vpop.permute.xlu0 %2786
    %2788 = vset.pattern.permute.xlu0 0
    %2789 = vperm.xlu0 %2788, %v2668
    %v2790 = vpop.permute.xlu0 %2789
    %2791 = vset.pattern.permute.xlu0 0
    %2792 = vperm.xlu0 %2791, %v2669
    %v2793 = vpop.permute.xlu0 %2792
    %2794 = vset.pattern.permute.xlu0 0
    %2795 = vperm.xlu0 %2794, %v2670
    %v2796 = vpop.permute.xlu0 %2795
    %2797 = vset.pattern.permute.xlu0 0
    %2798 = vperm.xlu0 %2797, %v2671
    %v2799 = vpop.permute.xlu0 %2798
    %v2800 = vperm.slane %v2706, %v1031
    %v2801 = vperm.slane %v2709, %v1033
    %v2802 = vsel %vm1035, %v2801, %v2800
    %v2803 = vperm.slane %v2712, %v1031
    %v2804 = vperm.slane %v2715, %v1033
    %v2805 = vsel %vm1035, %v2804, %v2803
    %v2806 = vperm.slane %v2718, %v1031
    %v2807 = vperm.slane %v2721, %v1033
    %v2808 = vsel %vm1035, %v2807, %v2806
    %v2809 = vperm.slane %v2724, %v1031
    %v2810 = vperm.slane %v2727, %v1033
    %v2811 = vsel %vm1035, %v2810, %v2809
    %v2812 = vperm.slane %v2730, %v1031
    %v2813 = vperm.slane %v2733, %v1033
    %v2814 = vsel %vm1035, %v2813, %v2812
    %v2815 = vperm.slane %v2736, %v1031
    %v2816 = vperm.slane %v2739, %v1033
    %v2817 = vsel %vm1035, %v2816, %v2815
    %v2818 = vperm.slane %v2742, %v1031
    %v2819 = vperm.slane %v2745, %v1033
    %v2820 = vsel %vm1035, %v2819, %v2818
    %v2821 = vperm.slane %v2748, %v1031
    %v2822 = vperm.slane %v2751, %v1033
    %v2823 = vsel %vm1035, %v2822, %v2821
    %v2824 = vperm.slane %v2754, %v1031
    %v2825 = vperm.slane %v2757, %v1033
    %v2826 = vsel %vm1035, %v2825, %v2824
    %v2827 = vperm.slane %v2760, %v1031
    %v2828 = vperm.slane %v2763, %v1033
    %v2829 = vsel %vm1035, %v2828, %v2827
    %v2830 = vperm.slane %v2766, %v1031
    %v2831 = vperm.slane %v2769, %v1033
    %v2832 = vsel %vm1035, %v2831, %v2830
    %v2833 = vperm.slane %v2772, %v1031
    %v2834 = vperm.slane %v2775, %v1033
    %v2835 = vsel %vm1035, %v2834, %v2833
    %v2836 = vperm.slane %v2778, %v1031
    %v2837 = vperm.slane %v2781, %v1033
    %v2838 = vsel %vm1035, %v2837, %v2836
    %v2839 = vperm.slane %v2784, %v1031
    %v2840 = vperm.slane %v2787, %v1033
    %v2841 = vsel %vm1035, %v2840, %v2839
    %v2842 = vperm.slane %v2790, %v1031
    %v2843 = vperm.slane %v2793, %v1033
    %v2844 = vsel %vm1035, %v2843, %v2842
    %v2845 = vperm.slane %v2796, %v1031
    %v2846 = vperm.slane %v2799, %v1033
    %v2847 = vsel %vm1035, %v2846, %v2845
    %v2848 = vsel %vm1082, %v2805, %v2802
    %v2849 = vsel %vm1084, %v2808, %v2848
    %v2850 = vsel %vm1086, %v2811, %v2849
    %v2851 = vsel %vm1088, %v2814, %v2850
    %v2852 = vsel %vm1090, %v2817, %v2851
    %v2853 = vsel %vm1092, %v2820, %v2852
    %v2854 = vsel %vm1094, %v2823, %v2853
    %v2855 = vsel %vm1082, %v2829, %v2826
    %v2856 = vsel %vm1084, %v2832, %v2855
    %v2857 = vsel %vm1086, %v2835, %v2856
    %v2858 = vsel %vm1088, %v2838, %v2857
    %v2859 = vsel %vm1090, %v2841, %v2858
    %v2860 = vsel %vm1092, %v2844, %v2859
    %v2861 = vsel %vm1094, %v2847, %v2860
    %2864 = vrot.lane.b32.xlu0 %v324, 96
    %v2865 = vpop.permute.xlu0 %2864
    %2866 = vrot.lane.b32.xlu0 %v327, 96
    %v2867 = vpop.permute.xlu0 %2866
    %v2870 = vsel %vm1105, %v2854, 0
    %v2872 = vsel %vm1105, %v2861, 0
    %2874 = vmatpush.msra.mxu0 0.0
    %2875 = vmatpush.msra.mxu0 0.0
    %2876 = vmatpush.msra.mxu0 0.0
    %2877 = vmatpush.msra.mxu0 0.0
    %2878 = vmatpush.msra.mxu0 0.0
    %2879 = vmatpush.msra.mxu0 0.0
    %2880 = vmatpush.msra.mxu0 0.0
    %2881 = vmatpush.msra.mxu0 0.0
    %2882 = vmatpush.msra.mxu0 0.0
    %2883 = vmatpush.msra.mxu0 0.0
    %2884 = vmatpush.msra.mxu0 0.0
    %2885 = vmatpush.msra.mxu0 0.0
    %2886 = vmatpush.msra.mxu0 0.0
    %2887 = vmatpush.msra.mxu0 0.0
    %2888 = vmatpush.msra.mxu0 %v2867
    %2889 = vmatpush.msra.mxu0 %v2865
    %2890 = vmatmul.f32.gmra.mxu0 %v2870
    %v2891 = vpop.f32.mrf.mxu0
    %v2892 = vadd.f32 0.0, %v2891
    %2893 = vmatmul.f32.gmra.mxu0 %v2872
    %v2894 = vpop.f32.mrf.mxu0
    %v2895 = vadd.f32 0.0, %v2894
    %2896 = vdwg.mxu0
    %2929 = vset.pattern.permute.xlu0 0
    %2930 = vperm.xlu0 %2929, %v1754
    %v2931 = vpop.permute.xlu0 %2930
    %2932 = vset.pattern.permute.xlu0 0
    %2933 = vperm.xlu0 %2932, %v1755
    %v2934 = vpop.permute.xlu0 %2933
    %2935 = vset.pattern.permute.xlu0 0
    %2936 = vperm.xlu0 %2935, %v1756
    %v2937 = vpop.permute.xlu0 %2936
    %2938 = vset.pattern.permute.xlu0 0
    %2939 = vperm.xlu0 %2938, %v1757
    %v2940 = vpop.permute.xlu0 %2939
    %2941 = vset.pattern.permute.xlu0 0
    %2942 = vperm.xlu0 %2941, %v1758
    %v2943 = vpop.permute.xlu0 %2942
    %2944 = vset.pattern.permute.xlu0 0
    %2945 = vperm.xlu0 %2944, %v1759
    %v2946 = vpop.permute.xlu0 %2945
    %2947 = vset.pattern.permute.xlu0 0
    %2948 = vperm.xlu0 %2947, %v1760
    %v2949 = vpop.permute.xlu0 %2948
    %2950 = vset.pattern.permute.xlu0 0
    %2951 = vperm.xlu0 %2950, %v1761
    %v2952 = vpop.permute.xlu0 %2951
    %2953 = vset.pattern.permute.xlu0 0
    %2954 = vperm.xlu0 %2953, %v1762
    %v2955 = vpop.permute.xlu0 %2954
    %2956 = vset.pattern.permute.xlu0 0
    %2957 = vperm.xlu0 %2956, %v1763
    %v2958 = vpop.permute.xlu0 %2957
    %2959 = vset.pattern.permute.xlu0 0
    %2960 = vperm.xlu0 %2959, %v1764
    %v2961 = vpop.permute.xlu0 %2960
    %2962 = vset.pattern.permute.xlu0 0
    %2963 = vperm.xlu0 %2962, %v1765
    %v2964 = vpop.permute.xlu0 %2963
    %2965 = vset.pattern.permute.xlu0 0
    %2966 = vperm.xlu0 %2965, %v1766
    %v2967 = vpop.permute.xlu0 %2966
    %2968 = vset.pattern.permute.xlu0 0
    %2969 = vperm.xlu0 %2968, %v1767
    %v2970 = vpop.permute.xlu0 %2969
    %2971 = vset.pattern.permute.xlu0 0
    %2972 = vperm.xlu0 %2971, %v1768
    %v2973 = vpop.permute.xlu0 %2972
    %2974 = vset.pattern.permute.xlu0 0
    %2975 = vperm.xlu0 %2974, %v1769
    %v2976 = vpop.permute.xlu0 %2975
    %2977 = vset.pattern.permute.xlu0 0
    %2978 = vperm.xlu0 %2977, %v1770
    %v2979 = vpop.permute.xlu0 %2978
    %2980 = vset.pattern.permute.xlu0 0
    %2981 = vperm.xlu0 %2980, %v1771
    %v2982 = vpop.permute.xlu0 %2981
    %2983 = vset.pattern.permute.xlu0 0
    %2984 = vperm.xlu0 %2983, %v1772
    %v2985 = vpop.permute.xlu0 %2984
    %2986 = vset.pattern.permute.xlu0 0
    %2987 = vperm.xlu0 %2986, %v1773
    %v2988 = vpop.permute.xlu0 %2987
    %2989 = vset.pattern.permute.xlu0 0
    %2990 = vperm.xlu0 %2989, %v1774
    %v2991 = vpop.permute.xlu0 %2990
    %2992 = vset.pattern.permute.xlu0 0
    %2993 = vperm.xlu0 %2992, %v1775
    %v2994 = vpop.permute.xlu0 %2993
    %2995 = vset.pattern.permute.xlu0 0
    %2996 = vperm.xlu0 %2995, %v1776
    %v2997 = vpop.permute.xlu0 %2996
    %2998 = vset.pattern.permute.xlu0 0
    %2999 = vperm.xlu0 %2998, %v1777
    %v3000 = vpop.permute.xlu0 %2999
    %3001 = vset.pattern.permute.xlu0 0
    %3002 = vperm.xlu0 %3001, %v1778
    %v3003 = vpop.permute.xlu0 %3002
    %3004 = vset.pattern.permute.xlu0 0
    %3005 = vperm.xlu0 %3004, %v1779
    %v3006 = vpop.permute.xlu0 %3005
    %3007 = vset.pattern.permute.xlu0 0
    %3008 = vperm.xlu0 %3007, %v1780
    %v3009 = vpop.permute.xlu0 %3008
    %3010 = vset.pattern.permute.xlu0 0
    %3011 = vperm.xlu0 %3010, %v1781
    %v3012 = vpop.permute.xlu0 %3011
    %3013 = vset.pattern.permute.xlu0 0
    %3014 = vperm.xlu0 %3013, %v1782
    %v3015 = vpop.permute.xlu0 %3014
    %3016 = vset.pattern.permute.xlu0 0
    %3017 = vperm.xlu0 %3016, %v1783
    %v3018 = vpop.permute.xlu0 %3017
    %3019 = vset.pattern.permute.xlu0 0
    %3020 = vperm.xlu0 %3019, %v1784
    %v3021 = vpop.permute.xlu0 %3020
    %3022 = vset.pattern.permute.xlu0 0
    %3023 = vperm.xlu0 %3022, %v1785
    %v3024 = vpop.permute.xlu0 %3023
    %v3025 = vperm.slane %v2931, %v1031
    %v3026 = vperm.slane %v2934, %v1033
    %v3027 = vsel %vm1035, %v3026, %v3025
    %v3028 = vperm.slane %v2937, %v1031
    %v3029 = vperm.slane %v2940, %v1033
    %v3030 = vsel %vm1035, %v3029, %v3028
    %v3031 = vperm.slane %v2943, %v1031
    %v3032 = vperm.slane %v2946, %v1033
    %v3033 = vsel %vm1035, %v3032, %v3031
    %v3034 = vperm.slane %v2949, %v1031
    %v3035 = vperm.slane %v2952, %v1033
    %v3036 = vsel %vm1035, %v3035, %v3034
    %v3037 = vperm.slane %v2955, %v1031
    %v3038 = vperm.slane %v2958, %v1033
    %v3039 = vsel %vm1035, %v3038, %v3037
    %v3040 = vperm.slane %v2961, %v1031
    %v3041 = vperm.slane %v2964, %v1033
    %v3042 = vsel %vm1035, %v3041, %v3040
    %v3043 = vperm.slane %v2967, %v1031
    %v3044 = vperm.slane %v2970, %v1033
    %v3045 = vsel %vm1035, %v3044, %v3043
    %v3046 = vperm.slane %v2973, %v1031
    %v3047 = vperm.slane %v2976, %v1033
    %v3048 = vsel %vm1035, %v3047, %v3046
    %v3049 = vperm.slane %v2979, %v1031
    %v3050 = vperm.slane %v2982, %v1033
    %v3051 = vsel %vm1035, %v3050, %v3049
    %v3052 = vperm.slane %v2985, %v1031
    %v3053 = vperm.slane %v2988, %v1033
    %v3054 = vsel %vm1035, %v3053, %v3052
    %v3055 = vperm.slane %v2991, %v1031
    %v3056 = vperm.slane %v2994, %v1033
    %v3057 = vsel %vm1035, %v3056, %v3055
    %v3058 = vperm.slane %v2997, %v1031
    %v3059 = vperm.slane %v3000, %v1033
    %v3060 = vsel %vm1035, %v3059, %v3058
    %v3061 = vperm.slane %v3003, %v1031
    %v3062 = vperm.slane %v3006, %v1033
    %v3063 = vsel %vm1035, %v3062, %v3061
    %v3064 = vperm.slane %v3009, %v1031
    %v3065 = vperm.slane %v3012, %v1033
    %v3066 = vsel %vm1035, %v3065, %v3064
    %v3067 = vperm.slane %v3015, %v1031
    %v3068 = vperm.slane %v3018, %v1033
    %v3069 = vsel %vm1035, %v3068, %v3067
    %v3070 = vperm.slane %v3021, %v1031
    %v3071 = vperm.slane %v3024, %v1033
    %v3072 = vsel %vm1035, %v3071, %v3070
    %v3073 = vsel %vm1082, %v3030, %v3027
    %v3074 = vsel %vm1084, %v3033, %v3073
    %v3075 = vsel %vm1086, %v3036, %v3074
    %v3076 = vsel %vm1088, %v3039, %v3075
    %v3077 = vsel %vm1090, %v3042, %v3076
    %v3078 = vsel %vm1092, %v3045, %v3077
    %v3079 = vsel %vm1094, %v3048, %v3078
    %v3080 = vsel %vm1082, %v3054, %v3051
    %v3081 = vsel %vm1084, %v3057, %v3080
    %v3082 = vsel %vm1086, %v3060, %v3081
    %v3083 = vsel %vm1088, %v3063, %v3082
    %v3084 = vsel %vm1090, %v3066, %v3083
    %v3085 = vsel %vm1092, %v3069, %v3084
    %v3086 = vsel %vm1094, %v3072, %v3085
    %v3087 = vsel %vm1105, %v3079, 0
    %v3089 = vsel %vm1105, %v3086, 0
    %3091 = vmatpush.msra.mxu0 0.0
    %3092 = vmatpush.msra.mxu0 0.0
    %3093 = vmatpush.msra.mxu0 0.0
    %3094 = vmatpush.msra.mxu0 0.0
    %3095 = vmatpush.msra.mxu0 0.0
    %3096 = vmatpush.msra.mxu0 0.0
    %3097 = vmatpush.msra.mxu0 0.0
    %3098 = vmatpush.msra.mxu0 0.0
    %3099 = vmatpush.msra.mxu0 0.0
    %3100 = vmatpush.msra.mxu0 0.0
    %3101 = vmatpush.msra.mxu0 0.0
    %3102 = vmatpush.msra.mxu0 0.0
    %3103 = vmatpush.msra.mxu0 0.0
    %3104 = vmatpush.msra.mxu0 0.0
    %3105 = vmatpush.msra.mxu0 %v327
    %3106 = vmatpush.msra.mxu0 %v324
    %3107 = vmatmul.f32.gmra.mxu0 %v3087
    %v3108 = vpop.f32.mrf.mxu0
    %v3109 = vadd.f32 %v2892, %v3108
    %3110 = vmatmul.f32.gmra.mxu0 %v3089
    %v3111 = vpop.f32.mrf.mxu0
    %v3112 = vadd.f32 %v2895, %v3111
    %3113 = vdwg.mxu0
    %3114 = vrot.lane.b32.xlu0 %v500, 64
    %v3115 = vpop.permute.xlu0 %3114
    %3116 = vrot.lane.b32.xlu0 %v501, 64
    %v3117 = vpop.permute.xlu0 %3116
    %3118 = vrot.lane.b32.xlu0 %v502, 64
    %v3119 = vpop.permute.xlu0 %3118
    %3120 = vrot.lane.b32.xlu0 %v503, 64
    %v3121 = vpop.permute.xlu0 %3120
    %3122 = vrot.lane.b32.xlu0 %v504, 64
    %v3123 = vpop.permute.xlu0 %3122
    %3124 = vrot.lane.b32.xlu0 %v505, 64
    %v3125 = vpop.permute.xlu0 %3124
    %3126 = vrot.lane.b32.xlu0 %v506, 64
    %v3127 = vpop.permute.xlu0 %3126
    %3128 = vrot.lane.b32.xlu0 %v507, 64
    %v3129 = vpop.permute.xlu0 %3128
    %3130 = vrot.lane.b32.xlu0 %v508, 64
    %v3131 = vpop.permute.xlu0 %3130
    %3132 = vrot.lane.b32.xlu0 %v509, 64
    %v3133 = vpop.permute.xlu0 %3132
    %3134 = vrot.lane.b32.xlu0 %v510, 64
    %v3135 = vpop.permute.xlu0 %3134
    %3136 = vrot.lane.b32.xlu0 %v511, 64
    %v3137 = vpop.permute.xlu0 %3136
    %3138 = vrot.lane.b32.xlu0 %v512, 64
    %v3139 = vpop.permute.xlu0 %3138
    %3140 = vrot.lane.b32.xlu0 %v513, 64
    %v3141 = vpop.permute.xlu0 %3140
    %3142 = vrot.lane.b32.xlu0 %v514, 64
    %v3143 = vpop.permute.xlu0 %3142
    %3144 = vrot.lane.b32.xlu0 %v515, 64
    %v3145 = vpop.permute.xlu0 %3144
    %3146 = vrot.lane.b32.xlu0 %v516, 64
    %v3147 = vpop.permute.xlu0 %3146
    %3148 = vrot.lane.b32.xlu0 %v517, 64
    %v3149 = vpop.permute.xlu0 %3148
    %3150 = vrot.lane.b32.xlu0 %v518, 64
    %v3151 = vpop.permute.xlu0 %3150
    %3152 = vrot.lane.b32.xlu0 %v519, 64
    %v3153 = vpop.permute.xlu0 %3152
    %3154 = vrot.lane.b32.xlu0 %v520, 64
    %v3155 = vpop.permute.xlu0 %3154
    %3156 = vrot.lane.b32.xlu0 %v521, 64
    %v3157 = vpop.permute.xlu0 %3156
    %3158 = vrot.lane.b32.xlu0 %v522, 64
    %v3159 = vpop.permute.xlu0 %3158
    %3160 = vrot.lane.b32.xlu0 %v523, 64
    %v3161 = vpop.permute.xlu0 %3160
    %3162 = vrot.lane.b32.xlu0 %v524, 64
    %v3163 = vpop.permute.xlu0 %3162
    %3164 = vrot.lane.b32.xlu0 %v525, 64
    %v3165 = vpop.permute.xlu0 %3164
    %3166 = vrot.lane.b32.xlu0 %v526, 64
    %v3167 = vpop.permute.xlu0 %3166
    %3168 = vrot.lane.b32.xlu0 %v527, 64
    %v3169 = vpop.permute.xlu0 %3168
    %3170 = vrot.lane.b32.xlu0 %v528, 64
    %v3171 = vpop.permute.xlu0 %3170
    %3172 = vrot.lane.b32.xlu0 %v529, 64
    %v3173 = vpop.permute.xlu0 %3172
    %3174 = vrot.lane.b32.xlu0 %v530, 64
    %v3175 = vpop.permute.xlu0 %3174
    %3176 = vrot.lane.b32.xlu0 %v531, 64
    %v3177 = vpop.permute.xlu0 %3176
    %v3210 = vsel %vm254, %v3115, 0.0
    %3211 = vadd.xlane.f32.xlu0 %v3210
    %v3212 = vpop.xlane.xlu0 %3211
    %v3213 = vsel %vm254, %v3117, 0.0
    %3214 = vadd.xlane.f32.xlu0 %v3213
    %v3215 = vpop.xlane.xlu0 %3214
    %v3216 = vsel %vm254, %v3119, 0.0
    %3217 = vadd.xlane.f32.xlu0 %v3216
    %v3218 = vpop.xlane.xlu0 %3217
    %v3219 = vsel %vm254, %v3121, 0.0
    %3220 = vadd.xlane.f32.xlu0 %v3219
    %v3221 = vpop.xlane.xlu0 %3220
    %v3222 = vsel %vm254, %v3123, 0.0
    %3223 = vadd.xlane.f32.xlu0 %v3222
    %v3224 = vpop.xlane.xlu0 %3223
    %v3225 = vsel %vm254, %v3125, 0.0
    %3226 = vadd.xlane.f32.xlu0 %v3225
    %v3227 = vpop.xlane.xlu0 %3226
    %v3228 = vsel %vm254, %v3127, 0.0
    %3229 = vadd.xlane.f32.xlu0 %v3228
    %v3230 = vpop.xlane.xlu0 %3229
    %v3231 = vsel %vm254, %v3129, 0.0
    %3232 = vadd.xlane.f32.xlu0 %v3231
    %v3233 = vpop.xlane.xlu0 %3232
    %v3234 = vsel %vm254, %v3131, 0.0
    %3235 = vadd.xlane.f32.xlu0 %v3234
    %v3236 = vpop.xlane.xlu0 %3235
    %v3237 = vsel %vm254, %v3133, 0.0
    %3238 = vadd.xlane.f32.xlu0 %v3237
    %v3239 = vpop.xlane.xlu0 %3238
    %v3240 = vsel %vm254, %v3135, 0.0
    %3241 = vadd.xlane.f32.xlu0 %v3240
    %v3242 = vpop.xlane.xlu0 %3241
    %v3243 = vsel %vm254, %v3137, 0.0
    %3244 = vadd.xlane.f32.xlu0 %v3243
    %v3245 = vpop.xlane.xlu0 %3244
    %v3246 = vsel %vm254, %v3139, 0.0
    %3247 = vadd.xlane.f32.xlu0 %v3246
    %v3248 = vpop.xlane.xlu0 %3247
    %v3249 = vsel %vm254, %v3141, 0.0
    %3250 = vadd.xlane.f32.xlu0 %v3249
    %v3251 = vpop.xlane.xlu0 %3250
    %v3252 = vsel %vm254, %v3143, 0.0
    %3253 = vadd.xlane.f32.xlu0 %v3252
    %v3254 = vpop.xlane.xlu0 %3253
    %v3255 = vsel %vm254, %v3145, 0.0
    %3256 = vadd.xlane.f32.xlu0 %v3255
    %v3257 = vpop.xlane.xlu0 %3256
    %v3258 = vsel %vm254, %v3147, 0.0
    %3259 = vadd.xlane.f32.xlu0 %v3258
    %v3260 = vpop.xlane.xlu0 %3259
    %v3261 = vsel %vm254, %v3149, 0.0
    %3262 = vadd.xlane.f32.xlu0 %v3261
    %v3263 = vpop.xlane.xlu0 %3262
    %v3264 = vsel %vm254, %v3151, 0.0
    %3265 = vadd.xlane.f32.xlu0 %v3264
    %v3266 = vpop.xlane.xlu0 %3265
    %v3267 = vsel %vm254, %v3153, 0.0
    %3268 = vadd.xlane.f32.xlu0 %v3267
    %v3269 = vpop.xlane.xlu0 %3268
    %v3270 = vsel %vm254, %v3155, 0.0
    %3271 = vadd.xlane.f32.xlu0 %v3270
    %v3272 = vpop.xlane.xlu0 %3271
    %v3273 = vsel %vm254, %v3157, 0.0
    %3274 = vadd.xlane.f32.xlu0 %v3273
    %v3275 = vpop.xlane.xlu0 %3274
    %v3276 = vsel %vm254, %v3159, 0.0
    %3277 = vadd.xlane.f32.xlu0 %v3276
    %v3278 = vpop.xlane.xlu0 %3277
    %v3279 = vsel %vm254, %v3161, 0.0
    %3280 = vadd.xlane.f32.xlu0 %v3279
    %v3281 = vpop.xlane.xlu0 %3280
    %v3282 = vsel %vm254, %v3163, 0.0
    %3283 = vadd.xlane.f32.xlu0 %v3282
    %v3284 = vpop.xlane.xlu0 %3283
    %v3285 = vsel %vm254, %v3165, 0.0
    %3286 = vadd.xlane.f32.xlu0 %v3285
    %v3287 = vpop.xlane.xlu0 %3286
    %v3288 = vsel %vm254, %v3167, 0.0
    %3289 = vadd.xlane.f32.xlu0 %v3288
    %v3290 = vpop.xlane.xlu0 %3289
    %v3291 = vsel %vm254, %v3169, 0.0
    %3292 = vadd.xlane.f32.xlu0 %v3291
    %v3293 = vpop.xlane.xlu0 %3292
    %v3294 = vsel %vm254, %v3171, 0.0
    %3295 = vadd.xlane.f32.xlu0 %v3294
    %v3296 = vpop.xlane.xlu0 %3295
    %v3297 = vsel %vm254, %v3173, 0.0
    %3298 = vadd.xlane.f32.xlu0 %v3297
    %v3299 = vpop.xlane.xlu0 %3298
    %v3300 = vsel %vm254, %v3175, 0.0
    %3301 = vadd.xlane.f32.xlu0 %v3300
    %v3302 = vpop.xlane.xlu0 %3301
    %v3303 = vsel %vm254, %v3177, 0.0
    %3304 = vadd.xlane.f32.xlu0 %v3303
    %v3305 = vpop.xlane.xlu0 %3304
    %v3306 = vadd.f32 %v3212, %v636
    %v3307 = vadd.f32 %v3215, %v642
    %v3308 = vadd.f32 %v3218, %v649
    %v3309 = vadd.f32 %v3221, %v655
    %v3310 = vadd.f32 %v3224, %v662
    %v3311 = vadd.f32 %v3227, %v668
    %v3312 = vadd.f32 %v3230, %v675
    %v3313 = vadd.f32 %v3233, %v681
    %v3314 = vadd.f32 %v3236, %v688
    %v3315 = vadd.f32 %v3239, %v694
    %v3316 = vadd.f32 %v3242, %v701
    %v3317 = vadd.f32 %v3245, %v707
    %v3318 = vadd.f32 %v3248, %v714
    %v3319 = vadd.f32 %v3251, %v720
    %v3320 = vadd.f32 %v3254, %v727
    %v3321 = vadd.f32 %v3257, %v733
    %v3322 = vadd.f32 %v3260, %v740
    %v3323 = vadd.f32 %v3263, %v746
    %v3324 = vadd.f32 %v3266, %v753
    %v3325 = vadd.f32 %v3269, %v759
    %v3326 = vadd.f32 %v3272, %v766
    %v3327 = vadd.f32 %v3275, %v772
    %v3328 = vadd.f32 %v3278, %v779
    %v3329 = vadd.f32 %v3281, %v785
    %v3330 = vadd.f32 %v3284, %v792
    %v3331 = vadd.f32 %v3287, %v798
    %v3332 = vadd.f32 %v3290, %v805
    %v3333 = vadd.f32 %v3293, %v811
    %v3334 = vadd.f32 %v3296, %v818
    %v3335 = vadd.f32 %v3299, %v824
    %v3336 = vadd.f32 %v3302, %v831
    %v3337 = vadd.f32 %v3305, %v837
    %3370 = vset.pattern.permute.xlu0 0
    %3371 = vperm.xlu0 %3370, %v3306
    %v3372 = vpop.permute.xlu0 %3371
    %3373 = vset.pattern.permute.xlu0 0
    %3374 = vperm.xlu0 %3373, %v3307
    %v3375 = vpop.permute.xlu0 %3374
    %3376 = vset.pattern.permute.xlu0 0
    %3377 = vperm.xlu0 %3376, %v3308
    %v3378 = vpop.permute.xlu0 %3377
    %3379 = vset.pattern.permute.xlu0 0
    %3380 = vperm.xlu0 %3379, %v3309
    %v3381 = vpop.permute.xlu0 %3380
    %3382 = vset.pattern.permute.xlu0 0
    %3383 = vperm.xlu0 %3382, %v3310
    %v3384 = vpop.permute.xlu0 %3383
    %3385 = vset.pattern.permute.xlu0 0
    %3386 = vperm.xlu0 %3385, %v3311
    %v3387 = vpop.permute.xlu0 %3386
    %3388 = vset.pattern.permute.xlu0 0
    %3389 = vperm.xlu0 %3388, %v3312
    %v3390 = vpop.permute.xlu0 %3389
    %3391 = vset.pattern.permute.xlu0 0
    %3392 = vperm.xlu0 %3391, %v3313
    %v3393 = vpop.permute.xlu0 %3392
    %3394 = vset.pattern.permute.xlu0 0
    %3395 = vperm.xlu0 %3394, %v3314
    %v3396 = vpop.permute.xlu0 %3395
    %3397 = vset.pattern.permute.xlu0 0
    %3398 = vperm.xlu0 %3397, %v3315
    %v3399 = vpop.permute.xlu0 %3398
    %3400 = vset.pattern.permute.xlu0 0
    %3401 = vperm.xlu0 %3400, %v3316
    %v3402 = vpop.permute.xlu0 %3401
    %3403 = vset.pattern.permute.xlu0 0
    %3404 = vperm.xlu0 %3403, %v3317
    %v3405 = vpop.permute.xlu0 %3404
    %3406 = vset.pattern.permute.xlu0 0
    %3407 = vperm.xlu0 %3406, %v3318
    %v3408 = vpop.permute.xlu0 %3407
    %3409 = vset.pattern.permute.xlu0 0
    %3410 = vperm.xlu0 %3409, %v3319
    %v3411 = vpop.permute.xlu0 %3410
    %3412 = vset.pattern.permute.xlu0 0
    %3413 = vperm.xlu0 %3412, %v3320
    %v3414 = vpop.permute.xlu0 %3413
    %3415 = vset.pattern.permute.xlu0 0
    %3416 = vperm.xlu0 %3415, %v3321
    %v3417 = vpop.permute.xlu0 %3416
    %3418 = vset.pattern.permute.xlu0 0
    %3419 = vperm.xlu0 %3418, %v3322
    %v3420 = vpop.permute.xlu0 %3419
    %3421 = vset.pattern.permute.xlu0 0
    %3422 = vperm.xlu0 %3421, %v3323
    %v3423 = vpop.permute.xlu0 %3422
    %3424 = vset.pattern.permute.xlu0 0
    %3425 = vperm.xlu0 %3424, %v3324
    %v3426 = vpop.permute.xlu0 %3425
    %3427 = vset.pattern.permute.xlu0 0
    %3428 = vperm.xlu0 %3427, %v3325
    %v3429 = vpop.permute.xlu0 %3428
    %3430 = vset.pattern.permute.xlu0 0
    %3431 = vperm.xlu0 %3430, %v3326
    %v3432 = vpop.permute.xlu0 %3431
    %3433 = vset.pattern.permute.xlu0 0
    %3434 = vperm.xlu0 %3433, %v3327
    %v3435 = vpop.permute.xlu0 %3434
    %3436 = vset.pattern.permute.xlu0 0
    %3437 = vperm.xlu0 %3436, %v3328
    %v3438 = vpop.permute.xlu0 %3437
    %3439 = vset.pattern.permute.xlu0 0
    %3440 = vperm.xlu0 %3439, %v3329
    %v3441 = vpop.permute.xlu0 %3440
    %3442 = vset.pattern.permute.xlu0 0
    %3443 = vperm.xlu0 %3442, %v3330
    %v3444 = vpop.permute.xlu0 %3443
    %3445 = vset.pattern.permute.xlu0 0
    %3446 = vperm.xlu0 %3445, %v3331
    %v3447 = vpop.permute.xlu0 %3446
    %3448 = vset.pattern.permute.xlu0 0
    %3449 = vperm.xlu0 %3448, %v3332
    %v3450 = vpop.permute.xlu0 %3449
    %3451 = vset.pattern.permute.xlu0 0
    %3452 = vperm.xlu0 %3451, %v3333
    %v3453 = vpop.permute.xlu0 %3452
    %3454 = vset.pattern.permute.xlu0 0
    %3455 = vperm.xlu0 %3454, %v3334
    %v3456 = vpop.permute.xlu0 %3455
    %3457 = vset.pattern.permute.xlu0 0
    %3458 = vperm.xlu0 %3457, %v3335
    %v3459 = vpop.permute.xlu0 %3458
    %3460 = vset.pattern.permute.xlu0 0
    %3461 = vperm.xlu0 %3460, %v3336
    %v3462 = vpop.permute.xlu0 %3461
    %3463 = vset.pattern.permute.xlu0 0
    %3464 = vperm.xlu0 %3463, %v3337
    %v3465 = vpop.permute.xlu0 %3464
    %v3466 = vperm.slane %v3372, %v1031
    %v3467 = vperm.slane %v3375, %v1033
    %v3468 = vsel %vm1035, %v3467, %v3466
    %v3469 = vperm.slane %v3378, %v1031
    %v3470 = vperm.slane %v3381, %v1033
    %v3471 = vsel %vm1035, %v3470, %v3469
    %v3472 = vperm.slane %v3384, %v1031
    %v3473 = vperm.slane %v3387, %v1033
    %v3474 = vsel %vm1035, %v3473, %v3472
    %v3475 = vperm.slane %v3390, %v1031
    %v3476 = vperm.slane %v3393, %v1033
    %v3477 = vsel %vm1035, %v3476, %v3475
    %v3478 = vperm.slane %v3396, %v1031
    %v3479 = vperm.slane %v3399, %v1033
    %v3480 = vsel %vm1035, %v3479, %v3478
    %v3481 = vperm.slane %v3402, %v1031
    %v3482 = vperm.slane %v3405, %v1033
    %v3483 = vsel %vm1035, %v3482, %v3481
    %v3484 = vperm.slane %v3408, %v1031
    %v3485 = vperm.slane %v3411, %v1033
    %v3486 = vsel %vm1035, %v3485, %v3484
    %v3487 = vperm.slane %v3414, %v1031
    %v3488 = vperm.slane %v3417, %v1033
    %v3489 = vsel %vm1035, %v3488, %v3487
    %v3490 = vperm.slane %v3420, %v1031
    %v3491 = vperm.slane %v3423, %v1033
    %v3492 = vsel %vm1035, %v3491, %v3490
    %v3493 = vperm.slane %v3426, %v1031
    %v3494 = vperm.slane %v3429, %v1033
    %v3495 = vsel %vm1035, %v3494, %v3493
    %v3496 = vperm.slane %v3432, %v1031
    %v3497 = vperm.slane %v3435, %v1033
    %v3498 = vsel %vm1035, %v3497, %v3496
    %v3499 = vperm.slane %v3438, %v1031
    %v3500 = vperm.slane %v3441, %v1033
    %v3501 = vsel %vm1035, %v3500, %v3499
    %v3502 = vperm.slane %v3444, %v1031
    %v3503 = vperm.slane %v3447, %v1033
    %v3504 = vsel %vm1035, %v3503, %v3502
    %v3505 = vperm.slane %v3450, %v1031
    %v3506 = vperm.slane %v3453, %v1033
    %v3507 = vsel %vm1035, %v3506, %v3505
    %v3508 = vperm.slane %v3456, %v1031
    %v3509 = vperm.slane %v3459, %v1033
    %v3510 = vsel %vm1035, %v3509, %v3508
    %v3511 = vperm.slane %v3462, %v1031
    %v3512 = vperm.slane %v3465, %v1033
    %v3513 = vsel %vm1035, %v3512, %v3511
    %v3514 = vsel %vm1082, %v3471, %v3468
    %v3515 = vsel %vm1084, %v3474, %v3514
    %v3516 = vsel %vm1086, %v3477, %v3515
    %v3517 = vsel %vm1088, %v3480, %v3516
    %v3518 = vsel %vm1090, %v3483, %v3517
    %v3519 = vsel %vm1092, %v3486, %v3518
    %v3520 = vsel %vm1094, %v3489, %v3519
    %v3521 = vsel %vm1082, %v3495, %v3492
    %v3522 = vsel %vm1084, %v3498, %v3521
    %v3523 = vsel %vm1086, %v3501, %v3522
    %v3524 = vsel %vm1088, %v3504, %v3523
    %v3525 = vsel %vm1090, %v3507, %v3524
    %v3526 = vsel %vm1092, %v3510, %v3525
    %v3527 = vsel %vm1094, %v3513, %v3526
    %v3530 = vsel %vm1105, %v3520, -inf
    %3531 = vmax.xlane.f32.xlu0 %v3530
    %v3532 = vpop.xlane.xlu0 %3531
    %v3533 = vsel %vm1105, %v3527, -inf
    %3534 = vmax.xlane.f32.xlu0 %v3533
    %v3535 = vpop.xlane.xlu0 %3534
    %v3538 = vperm.slane %v3532, 0
    %v3539 = vperm.slane %v3532, 1
    %v3540 = vperm.slane %v3532, 2
    %v3541 = vperm.slane %v3532, 3
    %v3542 = vperm.slane %v3532, 4
    %v3543 = vperm.slane %v3532, 5
    %v3544 = vperm.slane %v3532, 6
    %v3545 = vperm.slane %v3532, 7
    %v3546 = vperm.slane %v3535, 0
    %v3547 = vperm.slane %v3535, 1
    %v3548 = vperm.slane %v3535, 2
    %v3549 = vperm.slane %v3535, 3
    %v3550 = vperm.slane %v3535, 4
    %v3551 = vperm.slane %v3535, 5
    %v3552 = vperm.slane %v3535, 6
    %v3553 = vperm.slane %v3535, 7
    %v3570 = vsub.f32 %v3306, %v3538
    %v3571 = vsub.f32 %v3307, %v3538
    %v3572 = vsub.f32 %v3308, %v3539
    %v3573 = vsub.f32 %v3309, %v3539
    %v3574 = vsub.f32 %v3310, %v3540
    %v3575 = vsub.f32 %v3311, %v3540
    %v3576 = vsub.f32 %v3312, %v3541
    %v3577 = vsub.f32 %v3313, %v3541
    %v3578 = vsub.f32 %v3314, %v3542
    %v3579 = vsub.f32 %v3315, %v3542
    %v3580 = vsub.f32 %v3316, %v3543
    %v3581 = vsub.f32 %v3317, %v3543
    %v3582 = vsub.f32 %v3318, %v3544
    %v3583 = vsub.f32 %v3319, %v3544
    %v3584 = vsub.f32 %v3320, %v3545
    %v3585 = vsub.f32 %v3321, %v3545
    %v3586 = vsub.f32 %v3322, %v3546
    %v3587 = vsub.f32 %v3323, %v3546
    %v3588 = vsub.f32 %v3324, %v3547
    %v3589 = vsub.f32 %v3325, %v3547
    %v3590 = vsub.f32 %v3326, %v3548
    %v3591 = vsub.f32 %v3327, %v3548
    %v3592 = vsub.f32 %v3328, %v3549
    %v3593 = vsub.f32 %v3329, %v3549
    %v3594 = vsub.f32 %v3330, %v3550
    %v3595 = vsub.f32 %v3331, %v3550
    %v3596 = vsub.f32 %v3332, %v3551
    %v3597 = vsub.f32 %v3333, %v3551
    %v3598 = vsub.f32 %v3334, %v3552
    %v3599 = vsub.f32 %v3335, %v3552
    %v3600 = vsub.f32 %v3336, %v3553
    %v3601 = vsub.f32 %v3337, %v3553
    %v3602 = vmul.f32 %v3570, 1.442695
    %v3603 = vpow.pop %v3602
    %v3604 = vmul.f32 %v3571, 1.442695
    %v3605 = vpow.pop %v3604
    %v3606 = vmul.f32 %v3572, 1.442695
    %v3607 = vpow.pop %v3606
    %v3608 = vmul.f32 %v3573, 1.442695
    %v3609 = vpow.pop %v3608
    %v3610 = vmul.f32 %v3574, 1.442695
    %v3611 = vpow.pop %v3610
    %v3612 = vmul.f32 %v3575, 1.442695
    %v3613 = vpow.pop %v3612
    %v3614 = vmul.f32 %v3576, 1.442695
    %v3615 = vpow.pop %v3614
    %v3616 = vmul.f32 %v3577, 1.442695
    %v3617 = vpow.pop %v3616
    %v3618 = vmul.f32 %v3578, 1.442695
    %v3619 = vpow.pop %v3618
    %v3620 = vmul.f32 %v3579, 1.442695
    %v3621 = vpow.pop %v3620
    %v3622 = vmul.f32 %v3580, 1.442695
    %v3623 = vpow.pop %v3622
    %v3624 = vmul.f32 %v3581, 1.442695
    %v3625 = vpow.pop %v3624
    %v3626 = vmul.f32 %v3582, 1.442695
    %v3627 = vpow.pop %v3626
    %v3628 = vmul.f32 %v3583, 1.442695
    %v3629 = vpow.pop %v3628
    %v3630 = vmul.f32 %v3584, 1.442695
    %v3631 = vpow.pop %v3630
    %v3632 = vmul.f32 %v3585, 1.442695
    %v3633 = vpow.pop %v3632
    %v3634 = vmul.f32 %v3586, 1.442695
    %v3635 = vpow.pop %v3634
    %v3636 = vmul.f32 %v3587, 1.442695
    %v3637 = vpow.pop %v3636
    %v3638 = vmul.f32 %v3588, 1.442695
    %v3639 = vpow.pop %v3638
    %v3640 = vmul.f32 %v3589, 1.442695
    %v3641 = vpow.pop %v3640
    %v3642 = vmul.f32 %v3590, 1.442695
    %v3643 = vpow.pop %v3642
    %v3644 = vmul.f32 %v3591, 1.442695
    %v3645 = vpow.pop %v3644
    %v3646 = vmul.f32 %v3592, 1.442695
    %v3647 = vpow.pop %v3646
    %v3648 = vmul.f32 %v3593, 1.442695
    %v3649 = vpow.pop %v3648
    %v3650 = vmul.f32 %v3594, 1.442695
    %v3651 = vpow.pop %v3650
    %v3652 = vmul.f32 %v3595, 1.442695
    %v3653 = vpow.pop %v3652
    %v3654 = vmul.f32 %v3596, 1.442695
    %v3655 = vpow.pop %v3654
    %v3656 = vmul.f32 %v3597, 1.442695
    %v3657 = vpow.pop %v3656
    %v3658 = vmul.f32 %v3598, 1.442695
    %v3659 = vpow.pop %v3658
    %v3660 = vmul.f32 %v3599, 1.442695
    %v3661 = vpow.pop %v3660
    %v3662 = vmul.f32 %v3600, 1.442695
    %v3663 = vpow.pop %v3662
    %v3664 = vmul.f32 %v3601, 1.442695
    %v3665 = vpow.pop %v3664
    %v3666 = vmul.f32 %v3603, %v1250
    %v3667 = vmul.f32 %v3605, %v1256
    %v3668 = vmul.f32 %v3607, %v1263
    %v3669 = vmul.f32 %v3609, %v1269
    %v3670 = vmul.f32 %v3611, %v1276
    %v3671 = vmul.f32 %v3613, %v1282
    %v3672 = vmul.f32 %v3615, %v1289
    %v3673 = vmul.f32 %v3617, %v1295
    %v3674 = vmul.f32 %v3619, %v1302
    %v3675 = vmul.f32 %v3621, %v1308
    %v3676 = vmul.f32 %v3623, %v1315
    %v3677 = vmul.f32 %v3625, %v1321
    %v3678 = vmul.f32 %v3627, %v1328
    %v3679 = vmul.f32 %v3629, %v1334
    %v3680 = vmul.f32 %v3631, %v1341
    %v3681 = vmul.f32 %v3633, %v1347
    %v3682 = vmul.f32 %v3635, %v1354
    %v3683 = vmul.f32 %v3637, %v1360
    %v3684 = vmul.f32 %v3639, %v1367
    %v3685 = vmul.f32 %v3641, %v1373
    %v3686 = vmul.f32 %v3643, %v1380
    %v3687 = vmul.f32 %v3645, %v1386
    %v3688 = vmul.f32 %v3647, %v1393
    %v3689 = vmul.f32 %v3649, %v1399
    %v3690 = vmul.f32 %v3651, %v1406
    %v3691 = vmul.f32 %v3653, %v1412
    %v3692 = vmul.f32 %v3655, %v1419
    %v3693 = vmul.f32 %v3657, %v1425
    %v3694 = vmul.f32 %v3659, %v1432
    %v3695 = vmul.f32 %v3661, %v1438
    %v3696 = vmul.f32 %v3663, %v1445
    %v3697 = vmul.f32 %v3665, %v1451
    %3730 = vset.pattern.permute.xlu0 0
    %3731 = vperm.xlu0 %3730, %v3666
    %v3732 = vpop.permute.xlu0 %3731
    %3733 = vset.pattern.permute.xlu0 0
    %3734 = vperm.xlu0 %3733, %v3667
    %v3735 = vpop.permute.xlu0 %3734
    %3736 = vset.pattern.permute.xlu0 0
    %3737 = vperm.xlu0 %3736, %v3668
    %v3738 = vpop.permute.xlu0 %3737
    %3739 = vset.pattern.permute.xlu0 0
    %3740 = vperm.xlu0 %3739, %v3669
    %v3741 = vpop.permute.xlu0 %3740
    %3742 = vset.pattern.permute.xlu0 0
    %3743 = vperm.xlu0 %3742, %v3670
    %v3744 = vpop.permute.xlu0 %3743
    %3745 = vset.pattern.permute.xlu0 0
    %3746 = vperm.xlu0 %3745, %v3671
    %v3747 = vpop.permute.xlu0 %3746
    %3748 = vset.pattern.permute.xlu0 0
    %3749 = vperm.xlu0 %3748, %v3672
    %v3750 = vpop.permute.xlu0 %3749
    %3751 = vset.pattern.permute.xlu0 0
    %3752 = vperm.xlu0 %3751, %v3673
    %v3753 = vpop.permute.xlu0 %3752
    %3754 = vset.pattern.permute.xlu0 0
    %3755 = vperm.xlu0 %3754, %v3674
    %v3756 = vpop.permute.xlu0 %3755
    %3757 = vset.pattern.permute.xlu0 0
    %3758 = vperm.xlu0 %3757, %v3675
    %v3759 = vpop.permute.xlu0 %3758
    %3760 = vset.pattern.permute.xlu0 0
    %3761 = vperm.xlu0 %3760, %v3676
    %v3762 = vpop.permute.xlu0 %3761
    %3763 = vset.pattern.permute.xlu0 0
    %3764 = vperm.xlu0 %3763, %v3677
    %v3765 = vpop.permute.xlu0 %3764
    %3766 = vset.pattern.permute.xlu0 0
    %3767 = vperm.xlu0 %3766, %v3678
    %v3768 = vpop.permute.xlu0 %3767
    %3769 = vset.pattern.permute.xlu0 0
    %3770 = vperm.xlu0 %3769, %v3679
    %v3771 = vpop.permute.xlu0 %3770
    %3772 = vset.pattern.permute.xlu0 0
    %3773 = vperm.xlu0 %3772, %v3680
    %v3774 = vpop.permute.xlu0 %3773
    %3775 = vset.pattern.permute.xlu0 0
    %3776 = vperm.xlu0 %3775, %v3681
    %v3777 = vpop.permute.xlu0 %3776
    %3778 = vset.pattern.permute.xlu0 0
    %3779 = vperm.xlu0 %3778, %v3682
    %v3780 = vpop.permute.xlu0 %3779
    %3781 = vset.pattern.permute.xlu0 0
    %3782 = vperm.xlu0 %3781, %v3683
    %v3783 = vpop.permute.xlu0 %3782
    %3784 = vset.pattern.permute.xlu0 0
    %3785 = vperm.xlu0 %3784, %v3684
    %v3786 = vpop.permute.xlu0 %3785
    %3787 = vset.pattern.permute.xlu0 0
    %3788 = vperm.xlu0 %3787, %v3685
    %v3789 = vpop.permute.xlu0 %3788
    %3790 = vset.pattern.permute.xlu0 0
    %3791 = vperm.xlu0 %3790, %v3686
    %v3792 = vpop.permute.xlu0 %3791
    %3793 = vset.pattern.permute.xlu0 0
    %3794 = vperm.xlu0 %3793, %v3687
    %v3795 = vpop.permute.xlu0 %3794
    %3796 = vset.pattern.permute.xlu0 0
    %3797 = vperm.xlu0 %3796, %v3688
    %v3798 = vpop.permute.xlu0 %3797
    %3799 = vset.pattern.permute.xlu0 0
    %3800 = vperm.xlu0 %3799, %v3689
    %v3801 = vpop.permute.xlu0 %3800
    %3802 = vset.pattern.permute.xlu0 0
    %3803 = vperm.xlu0 %3802, %v3690
    %v3804 = vpop.permute.xlu0 %3803
    %3805 = vset.pattern.permute.xlu0 0
    %3806 = vperm.xlu0 %3805, %v3691
    %v3807 = vpop.permute.xlu0 %3806
    %3808 = vset.pattern.permute.xlu0 0
    %3809 = vperm.xlu0 %3808, %v3692
    %v3810 = vpop.permute.xlu0 %3809
    %3811 = vset.pattern.permute.xlu0 0
    %3812 = vperm.xlu0 %3811, %v3693
    %v3813 = vpop.permute.xlu0 %3812
    %3814 = vset.pattern.permute.xlu0 0
    %3815 = vperm.xlu0 %3814, %v3694
    %v3816 = vpop.permute.xlu0 %3815
    %3817 = vset.pattern.permute.xlu0 0
    %3818 = vperm.xlu0 %3817, %v3695
    %v3819 = vpop.permute.xlu0 %3818
    %3820 = vset.pattern.permute.xlu0 0
    %3821 = vperm.xlu0 %3820, %v3696
    %v3822 = vpop.permute.xlu0 %3821
    %3823 = vset.pattern.permute.xlu0 0
    %3824 = vperm.xlu0 %3823, %v3697
    %v3825 = vpop.permute.xlu0 %3824
    %v3826 = vperm.slane %v3732, %v1031
    %v3827 = vperm.slane %v3735, %v1033
    %v3828 = vsel %vm1035, %v3827, %v3826
    %v3829 = vperm.slane %v3738, %v1031
    %v3830 = vperm.slane %v3741, %v1033
    %v3831 = vsel %vm1035, %v3830, %v3829
    %v3832 = vperm.slane %v3744, %v1031
    %v3833 = vperm.slane %v3747, %v1033
    %v3834 = vsel %vm1035, %v3833, %v3832
    %v3835 = vperm.slane %v3750, %v1031
    %v3836 = vperm.slane %v3753, %v1033
    %v3837 = vsel %vm1035, %v3836, %v3835
    %v3838 = vperm.slane %v3756, %v1031
    %v3839 = vperm.slane %v3759, %v1033
    %v3840 = vsel %vm1035, %v3839, %v3838
    %v3841 = vperm.slane %v3762, %v1031
    %v3842 = vperm.slane %v3765, %v1033
    %v3843 = vsel %vm1035, %v3842, %v3841
    %v3844 = vperm.slane %v3768, %v1031
    %v3845 = vperm.slane %v3771, %v1033
    %v3846 = vsel %vm1035, %v3845, %v3844
    %v3847 = vperm.slane %v3774, %v1031
    %v3848 = vperm.slane %v3777, %v1033
    %v3849 = vsel %vm1035, %v3848, %v3847
    %v3850 = vperm.slane %v3780, %v1031
    %v3851 = vperm.slane %v3783, %v1033
    %v3852 = vsel %vm1035, %v3851, %v3850
    %v3853 = vperm.slane %v3786, %v1031
    %v3854 = vperm.slane %v3789, %v1033
    %v3855 = vsel %vm1035, %v3854, %v3853
    %v3856 = vperm.slane %v3792, %v1031
    %v3857 = vperm.slane %v3795, %v1033
    %v3858 = vsel %vm1035, %v3857, %v3856
    %v3859 = vperm.slane %v3798, %v1031
    %v3860 = vperm.slane %v3801, %v1033
    %v3861 = vsel %vm1035, %v3860, %v3859
    %v3862 = vperm.slane %v3804, %v1031
    %v3863 = vperm.slane %v3807, %v1033
    %v3864 = vsel %vm1035, %v3863, %v3862
    %v3865 = vperm.slane %v3810, %v1031
    %v3866 = vperm.slane %v3813, %v1033
    %v3867 = vsel %vm1035, %v3866, %v3865
    %v3868 = vperm.slane %v3816, %v1031
    %v3869 = vperm.slane %v3819, %v1033
    %v3870 = vsel %vm1035, %v3869, %v3868
    %v3871 = vperm.slane %v3822, %v1031
    %v3872 = vperm.slane %v3825, %v1033
    %v3873 = vsel %vm1035, %v3872, %v3871
    %v3874 = vsel %vm1082, %v3831, %v3828
    %v3875 = vsel %vm1084, %v3834, %v3874
    %v3876 = vsel %vm1086, %v3837, %v3875
    %v3877 = vsel %vm1088, %v3840, %v3876
    %v3878 = vsel %vm1090, %v3843, %v3877
    %v3879 = vsel %vm1092, %v3846, %v3878
    %v3880 = vsel %vm1094, %v3849, %v3879
    %v3881 = vsel %vm1082, %v3855, %v3852
    %v3882 = vsel %vm1084, %v3858, %v3881
    %v3883 = vsel %vm1086, %v3861, %v3882
    %v3884 = vsel %vm1088, %v3864, %v3883
    %v3885 = vsel %vm1090, %v3867, %v3884
    %v3886 = vsel %vm1092, %v3870, %v3885
    %v3887 = vsel %vm1094, %v3873, %v3886
    %v3890 = vsel %vm1105, %v3880, 0.0
    %3891 = vadd.xlane.f32.xlu0 %v3890
    %v3892 = vpop.xlane.xlu0 %3891
    %v3893 = vsel %vm1105, %v3887, 0.0
    %3894 = vadd.xlane.f32.xlu0 %v3893
    %v3895 = vpop.xlane.xlu0 %3894
    %v3896 = vmul.f32 %v3892, 3.0
    %v3897 = vmul.f32 %v3895, 3.0
    %v3898 = vmax.f32 %v3896, 1e-30
    %v3899 = vmax.f32 %v3897, 1e-30
    %v3900 = vrcp.pop %v3898
    %v3901 = vrcp.pop %v3899
    %v3904 = vperm.slane %v3900, 0
    %v3905 = vperm.slane %v3900, 1
    %v3906 = vperm.slane %v3900, 2
    %v3907 = vperm.slane %v3900, 3
    %v3908 = vperm.slane %v3900, 4
    %v3909 = vperm.slane %v3900, 5
    %v3910 = vperm.slane %v3900, 6
    %v3911 = vperm.slane %v3900, 7
    %v3912 = vperm.slane %v3901, 0
    %v3913 = vperm.slane %v3901, 1
    %v3914 = vperm.slane %v3901, 2
    %v3915 = vperm.slane %v3901, 3
    %v3916 = vperm.slane %v3901, 4
    %v3917 = vperm.slane %v3901, 5
    %v3918 = vperm.slane %v3901, 6
    %v3919 = vperm.slane %v3901, 7
    %v3936 = vmul.f32 %v3666, %v3904
    %v3937 = vmul.f32 %v3667, %v3904
    %v3938 = vmul.f32 %v3668, %v3905
    %v3939 = vmul.f32 %v3669, %v3905
    %v3940 = vmul.f32 %v3670, %v3906
    %v3941 = vmul.f32 %v3671, %v3906
    %v3942 = vmul.f32 %v3672, %v3907
    %v3943 = vmul.f32 %v3673, %v3907
    %v3944 = vmul.f32 %v3674, %v3908
    %v3945 = vmul.f32 %v3675, %v3908
    %v3946 = vmul.f32 %v3676, %v3909
    %v3947 = vmul.f32 %v3677, %v3909
    %v3948 = vmul.f32 %v3678, %v3910
    %v3949 = vmul.f32 %v3679, %v3910
    %v3950 = vmul.f32 %v3680, %v3911
    %v3951 = vmul.f32 %v3681, %v3911
    %v3952 = vmul.f32 %v3682, %v3912
    %v3953 = vmul.f32 %v3683, %v3912
    %v3954 = vmul.f32 %v3684, %v3913
    %v3955 = vmul.f32 %v3685, %v3913
    %v3956 = vmul.f32 %v3686, %v3914
    %v3957 = vmul.f32 %v3687, %v3914
    %v3958 = vmul.f32 %v3688, %v3915
    %v3959 = vmul.f32 %v3689, %v3915
    %v3960 = vmul.f32 %v3690, %v3916
    %v3961 = vmul.f32 %v3691, %v3916
    %v3962 = vmul.f32 %v3692, %v3917
    %v3963 = vmul.f32 %v3693, %v3917
    %v3964 = vmul.f32 %v3694, %v3918
    %v3965 = vmul.f32 %v3695, %v3918
    %v3966 = vmul.f32 %v3696, %v3919
    %v3967 = vmul.f32 %v3697, %v3919
    %4000 = vset.pattern.permute.xlu0 0
    %4001 = vperm.xlu0 %4000, %v3936
    %v4002 = vpop.permute.xlu0 %4001
    %4003 = vset.pattern.permute.xlu0 0
    %4004 = vperm.xlu0 %4003, %v3937
    %v4005 = vpop.permute.xlu0 %4004
    %4006 = vset.pattern.permute.xlu0 0
    %4007 = vperm.xlu0 %4006, %v3938
    %v4008 = vpop.permute.xlu0 %4007
    %4009 = vset.pattern.permute.xlu0 0
    %4010 = vperm.xlu0 %4009, %v3939
    %v4011 = vpop.permute.xlu0 %4010
    %4012 = vset.pattern.permute.xlu0 0
    %4013 = vperm.xlu0 %4012, %v3940
    %v4014 = vpop.permute.xlu0 %4013
    %4015 = vset.pattern.permute.xlu0 0
    %4016 = vperm.xlu0 %4015, %v3941
    %v4017 = vpop.permute.xlu0 %4016
    %4018 = vset.pattern.permute.xlu0 0
    %4019 = vperm.xlu0 %4018, %v3942
    %v4020 = vpop.permute.xlu0 %4019
    %4021 = vset.pattern.permute.xlu0 0
    %4022 = vperm.xlu0 %4021, %v3943
    %v4023 = vpop.permute.xlu0 %4022
    %4024 = vset.pattern.permute.xlu0 0
    %4025 = vperm.xlu0 %4024, %v3944
    %v4026 = vpop.permute.xlu0 %4025
    %4027 = vset.pattern.permute.xlu0 0
    %4028 = vperm.xlu0 %4027, %v3945
    %v4029 = vpop.permute.xlu0 %4028
    %4030 = vset.pattern.permute.xlu0 0
    %4031 = vperm.xlu0 %4030, %v3946
    %v4032 = vpop.permute.xlu0 %4031
    %4033 = vset.pattern.permute.xlu0 0
    %4034 = vperm.xlu0 %4033, %v3947
    %v4035 = vpop.permute.xlu0 %4034
    %4036 = vset.pattern.permute.xlu0 0
    %4037 = vperm.xlu0 %4036, %v3948
    %v4038 = vpop.permute.xlu0 %4037
    %4039 = vset.pattern.permute.xlu0 0
    %4040 = vperm.xlu0 %4039, %v3949
    %v4041 = vpop.permute.xlu0 %4040
    %4042 = vset.pattern.permute.xlu0 0
    %4043 = vperm.xlu0 %4042, %v3950
    %v4044 = vpop.permute.xlu0 %4043
    %4045 = vset.pattern.permute.xlu0 0
    %4046 = vperm.xlu0 %4045, %v3951
    %v4047 = vpop.permute.xlu0 %4046
    %4048 = vset.pattern.permute.xlu0 0
    %4049 = vperm.xlu0 %4048, %v3952
    %v4050 = vpop.permute.xlu0 %4049
    %4051 = vset.pattern.permute.xlu0 0
    %4052 = vperm.xlu0 %4051, %v3953
    %v4053 = vpop.permute.xlu0 %4052
    %4054 = vset.pattern.permute.xlu0 0
    %4055 = vperm.xlu0 %4054, %v3954
    %v4056 = vpop.permute.xlu0 %4055
    %4057 = vset.pattern.permute.xlu0 0
    %4058 = vperm.xlu0 %4057, %v3955
    %v4059 = vpop.permute.xlu0 %4058
    %4060 = vset.pattern.permute.xlu0 0
    %4061 = vperm.xlu0 %4060, %v3956
    %v4062 = vpop.permute.xlu0 %4061
    %4063 = vset.pattern.permute.xlu0 0
    %4064 = vperm.xlu0 %4063, %v3957
    %v4065 = vpop.permute.xlu0 %4064
    %4066 = vset.pattern.permute.xlu0 0
    %4067 = vperm.xlu0 %4066, %v3958
    %v4068 = vpop.permute.xlu0 %4067
    %4069 = vset.pattern.permute.xlu0 0
    %4070 = vperm.xlu0 %4069, %v3959
    %v4071 = vpop.permute.xlu0 %4070
    %4072 = vset.pattern.permute.xlu0 0
    %4073 = vperm.xlu0 %4072, %v3960
    %v4074 = vpop.permute.xlu0 %4073
    %4075 = vset.pattern.permute.xlu0 0
    %4076 = vperm.xlu0 %4075, %v3961
    %v4077 = vpop.permute.xlu0 %4076
    %4078 = vset.pattern.permute.xlu0 0
    %4079 = vperm.xlu0 %4078, %v3962
    %v4080 = vpop.permute.xlu0 %4079
    %4081 = vset.pattern.permute.xlu0 0
    %4082 = vperm.xlu0 %4081, %v3963
    %v4083 = vpop.permute.xlu0 %4082
    %4084 = vset.pattern.permute.xlu0 0
    %4085 = vperm.xlu0 %4084, %v3964
    %v4086 = vpop.permute.xlu0 %4085
    %4087 = vset.pattern.permute.xlu0 0
    %4088 = vperm.xlu0 %4087, %v3965
    %v4089 = vpop.permute.xlu0 %4088
    %4090 = vset.pattern.permute.xlu0 0
    %4091 = vperm.xlu0 %4090, %v3966
    %v4092 = vpop.permute.xlu0 %4091
    %4093 = vset.pattern.permute.xlu0 0
    %4094 = vperm.xlu0 %4093, %v3967
    %v4095 = vpop.permute.xlu0 %4094
    %v4096 = vperm.slane %v4002, %v1031
    %v4097 = vperm.slane %v4005, %v1033
    %v4098 = vsel %vm1035, %v4097, %v4096
    %v4099 = vperm.slane %v4008, %v1031
    %v4100 = vperm.slane %v4011, %v1033
    %v4101 = vsel %vm1035, %v4100, %v4099
    %v4102 = vperm.slane %v4014, %v1031
    %v4103 = vperm.slane %v4017, %v1033
    %v4104 = vsel %vm1035, %v4103, %v4102
    %v4105 = vperm.slane %v4020, %v1031
    %v4106 = vperm.slane %v4023, %v1033
    %v4107 = vsel %vm1035, %v4106, %v4105
    %v4108 = vperm.slane %v4026, %v1031
    %v4109 = vperm.slane %v4029, %v1033
    %v4110 = vsel %vm1035, %v4109, %v4108
    %v4111 = vperm.slane %v4032, %v1031
    %v4112 = vperm.slane %v4035, %v1033
    %v4113 = vsel %vm1035, %v4112, %v4111
    %v4114 = vperm.slane %v4038, %v1031
    %v4115 = vperm.slane %v4041, %v1033
    %v4116 = vsel %vm1035, %v4115, %v4114
    %v4117 = vperm.slane %v4044, %v1031
    %v4118 = vperm.slane %v4047, %v1033
    %v4119 = vsel %vm1035, %v4118, %v4117
    %v4120 = vperm.slane %v4050, %v1031
    %v4121 = vperm.slane %v4053, %v1033
    %v4122 = vsel %vm1035, %v4121, %v4120
    %v4123 = vperm.slane %v4056, %v1031
    %v4124 = vperm.slane %v4059, %v1033
    %v4125 = vsel %vm1035, %v4124, %v4123
    %v4126 = vperm.slane %v4062, %v1031
    %v4127 = vperm.slane %v4065, %v1033
    %v4128 = vsel %vm1035, %v4127, %v4126
    %v4129 = vperm.slane %v4068, %v1031
    %v4130 = vperm.slane %v4071, %v1033
    %v4131 = vsel %vm1035, %v4130, %v4129
    %v4132 = vperm.slane %v4074, %v1031
    %v4133 = vperm.slane %v4077, %v1033
    %v4134 = vsel %vm1035, %v4133, %v4132
    %v4135 = vperm.slane %v4080, %v1031
    %v4136 = vperm.slane %v4083, %v1033
    %v4137 = vsel %vm1035, %v4136, %v4135
    %v4138 = vperm.slane %v4086, %v1031
    %v4139 = vperm.slane %v4089, %v1033
    %v4140 = vsel %vm1035, %v4139, %v4138
    %v4141 = vperm.slane %v4092, %v1031
    %v4142 = vperm.slane %v4095, %v1033
    %v4143 = vsel %vm1035, %v4142, %v4141
    %v4144 = vsel %vm1082, %v4101, %v4098
    %v4145 = vsel %vm1084, %v4104, %v4144
    %v4146 = vsel %vm1086, %v4107, %v4145
    %v4147 = vsel %vm1088, %v4110, %v4146
    %v4148 = vsel %vm1090, %v4113, %v4147
    %v4149 = vsel %vm1092, %v4116, %v4148
    %v4150 = vsel %vm1094, %v4119, %v4149
    %v4151 = vsel %vm1082, %v4125, %v4122
    %v4152 = vsel %vm1084, %v4128, %v4151
    %v4153 = vsel %vm1086, %v4131, %v4152
    %v4154 = vsel %vm1088, %v4134, %v4153
    %v4155 = vsel %vm1090, %v4137, %v4154
    %v4156 = vsel %vm1092, %v4140, %v4155
    %v4157 = vsel %vm1094, %v4143, %v4156
    %4158 = vrot.lane.b32.xlu0 %v324, 64
    %v4159 = vpop.permute.xlu0 %4158
    %4160 = vrot.lane.b32.xlu0 %v327, 64
    %v4161 = vpop.permute.xlu0 %4160
    %v4164 = vsel %vm1105, %v4150, 0
    %v4166 = vsel %vm1105, %v4157, 0
    %4168 = vmatpush.msra.mxu0 0.0
    %4169 = vmatpush.msra.mxu0 0.0
    %4170 = vmatpush.msra.mxu0 0.0
    %4171 = vmatpush.msra.mxu0 0.0
    %4172 = vmatpush.msra.mxu0 0.0
    %4173 = vmatpush.msra.mxu0 0.0
    %4174 = vmatpush.msra.mxu0 0.0
    %4175 = vmatpush.msra.mxu0 0.0
    %4176 = vmatpush.msra.mxu0 0.0
    %4177 = vmatpush.msra.mxu0 0.0
    %4178 = vmatpush.msra.mxu0 0.0
    %4179 = vmatpush.msra.mxu0 0.0
    %4180 = vmatpush.msra.mxu0 0.0
    %4181 = vmatpush.msra.mxu0 0.0
    %4182 = vmatpush.msra.mxu0 %v4161
    %4183 = vmatpush.msra.mxu0 %v4159
    %4184 = vmatmul.f32.gmra.mxu0 %v4164
    %v4185 = vpop.f32.mrf.mxu0
    %v4186 = vadd.f32 0.0, %v4185
    %4187 = vmatmul.f32.gmra.mxu0 %v4166
    %v4188 = vpop.f32.mrf.mxu0
    %v4189 = vadd.f32 0.0, %v4188
    %4190 = vdwg.mxu0
    %v4191 = vadd.f32 %v3109, %v4186
    %v4192 = vadd.f32 %v3112, %v4189
    %v4193 = vld [vmem:[#allocation12] sm:$0x1]
    %v4195 = vperm.slane %v4193, 0
    %v4197 = vadd.f32 %v4191, %v4195
    %v4198 = vadd.f32 %v4192, %v4195
    %v4199 = vmax.f32 %v4197, 0.0
    %v4200 = vmax.f32 %v4198, 0.0
    %v4201 = vld [vmem:[#allocation13] sm:$0xff]
    %v4202 = vld [vmem:[#allocation13 + $0x8] sm:$0xff]
    %v4203 = vld [vmem:[#allocation13 + $0x10] sm:$0xff]
    %v4204 = vld [vmem:[#allocation13 + $0x18] sm:$0xff]
    %v4205 = vld [vmem:[#allocation13 + $0x20] sm:$0xff]
    %v4206 = vld [vmem:[#allocation13 + $0x28] sm:$0xff]
    %v4207 = vld [vmem:[#allocation13 + $0x30] sm:$0xff]
    %v4208 = vld [vmem:[#allocation13 + $0x38] sm:$0xff]
    %v4209 = vld [vmem:[%s11] sm:$0x3]
    %v4211 = vperm.slane %v4209, 0
    %v4212 = vperm.slane %v4209, 1
    %v4216 = vsel %vm254, %v4199, 0
    %v4219 = vsel %vm254, %v4200, 0
    %4221 = vmatpush.msra.mxu0 0.0
    %4222 = vmatpush.msra.mxu0 0.0
    %4223 = vmatpush.msra.mxu0 0.0
    %4224 = vmatpush.msra.mxu0 0.0
    %4225 = vmatpush.msra.mxu0 0.0
    %4226 = vmatpush.msra.mxu0 0.0
    %4227 = vmatpush.msra.mxu0 0.0
    %4228 = vmatpush.msra.mxu0 0.0
    %4229 = vmatpush.msra.mxu0 0.0
    %4230 = vmatpush.msra.mxu0 0.0
    %4231 = vmatpush.msra.mxu0 0.0
    %4232 = vmatpush.msra.mxu0 0.0
    %4233 = vmatpush.msra.mxu0 %v4207
    %4234 = vmatpush.msra.mxu0 %v4205
    %4235 = vmatpush.msra.mxu0 %v4203
    %4236 = vmatpush.msra.mxu0 %v4201
    %4237 = vmatmul.f32.gmra.mxu0 %v4216
    %v4238 = vpop.f32.mrf.mxu0
    %v4239 = vadd.f32 %v4211, %v4238
    %4240 = vmatmul.f32.gmra.mxu0 %v4219
    %v4241 = vpop.f32.mrf.mxu0
    %v4242 = vadd.f32 %v4211, %v4241
    %4243 = vdwg.mxu0
    %4244 = vmatpush.msra.mxu0 0.0
    %4245 = vmatpush.msra.mxu0 0.0
    %4246 = vmatpush.msra.mxu0 0.0
    %4247 = vmatpush.msra.mxu0 0.0
    %4248 = vmatpush.msra.mxu0 0.0
    %4249 = vmatpush.msra.mxu0 0.0
    %4250 = vmatpush.msra.mxu0 0.0
    %4251 = vmatpush.msra.mxu0 0.0
    %4252 = vmatpush.msra.mxu0 0.0
    %4253 = vmatpush.msra.mxu0 0.0
    %4254 = vmatpush.msra.mxu0 0.0
    %4255 = vmatpush.msra.mxu0 0.0
    %4256 = vmatpush.msra.mxu0 %v4208
    %4257 = vmatpush.msra.mxu0 %v4206
    %4258 = vmatpush.msra.mxu0 %v4204
    %4259 = vmatpush.msra.mxu0 %v4202
    %4260 = vmatmul.f32.gmra.mxu0 %v4216
    %v4261 = vpop.f32.mrf.mxu0
    %v4262 = vadd.f32 %v4212, %v4261
    %4263 = vmatmul.f32.gmra.mxu0 %v4219
    %v4264 = vpop.f32.mrf.mxu0
    %v4265 = vadd.f32 %v4212, %v4264
    %4266 = vdwg.mxu0
    %v4267 = vld [vmem:[#allocation15] sm:$0x1]
    %v4270 = vrot.slane %v4262, 1
    %v4271 = vrot.slane %v4262, 2
    %v4272 = vrot.slane %v4262, 3
    %v4273 = vrot.slane %v4262, 4
    %v4274 = vrot.slane %v4262, 5
    %v4275 = vrot.slane %v4262, 6
    %v4276 = vrot.slane %v4262, 7
    %v4277 = vrot.slane %v4265, 1
    %v4278 = vrot.slane %v4265, 2
    %v4279 = vrot.slane %v4265, 3
    %v4280 = vrot.slane %v4265, 4
    %v4281 = vrot.slane %v4265, 5
    %v4282 = vrot.slane %v4265, 6
    %v4283 = vrot.slane %v4265, 7
    %v4284 = vperm.slane %v4262, 0
    %v4285 = vperm.slane %v4270, 0
    %v4286 = vperm.slane %v4271, 0
    %v4287 = vperm.slane %v4272, 0
    %v4288 = vperm.slane %v4273, 0
    %v4289 = vperm.slane %v4274, 0
    %v4290 = vperm.slane %v4275, 0
    %v4291 = vperm.slane %v4276, 0
    %v4292 = vperm.slane %v4265, 0
    %v4293 = vperm.slane %v4277, 0
    %v4294 = vperm.slane %v4278, 0
    %v4295 = vperm.slane %v4279, 0
    %v4296 = vperm.slane %v4280, 0
    %v4297 = vperm.slane %v4281, 0
    %v4298 = vperm.slane %v4282, 0
    %v4299 = vperm.slane %v4283, 0
    %v4316 = vadd.f32 %v4284, %v4239
    %v4317 = vadd.f32 %v4284, %v4242
    %v4318 = vadd.f32 %v4285, %v4239
    %v4319 = vadd.f32 %v4285, %v4242
    %v4320 = vadd.f32 %v4286, %v4239
    %v4321 = vadd.f32 %v4286, %v4242
    %v4322 = vadd.f32 %v4287, %v4239
    %v4323 = vadd.f32 %v4287, %v4242
    %v4324 = vadd.f32 %v4288, %v4239
    %v4325 = vadd.f32 %v4288, %v4242
    %v4326 = vadd.f32 %v4289, %v4239
    %v4327 = vadd.f32 %v4289, %v4242
    %v4328 = vadd.f32 %v4290, %v4239
    %v4329 = vadd.f32 %v4290, %v4242
    %v4330 = vadd.f32 %v4291, %v4239
    %v4331 = vadd.f32 %v4291, %v4242
    %v4332 = vadd.f32 %v4292, %v4239
    %v4333 = vadd.f32 %v4292, %v4242
    %v4334 = vadd.f32 %v4293, %v4239
    %v4335 = vadd.f32 %v4293, %v4242
    %v4336 = vadd.f32 %v4294, %v4239
    %v4337 = vadd.f32 %v4294, %v4242
    %v4338 = vadd.f32 %v4295, %v4239
    %v4339 = vadd.f32 %v4295, %v4242
    %v4340 = vadd.f32 %v4296, %v4239
    %v4341 = vadd.f32 %v4296, %v4242
    %v4342 = vadd.f32 %v4297, %v4239
    %v4343 = vadd.f32 %v4297, %v4242
    %v4344 = vadd.f32 %v4298, %v4239
    %v4345 = vadd.f32 %v4298, %v4242
    %v4346 = vadd.f32 %v4299, %v4239
    %v4347 = vadd.f32 %v4299, %v4242
    %v4348 = vmul.f32 %v4316, 0.2
    %v4349 = vmul.f32 %v4317, 0.2
    %v4350 = vmul.f32 %v4318, 0.2
    %v4351 = vmul.f32 %v4319, 0.2
    %v4352 = vmul.f32 %v4320, 0.2
    %v4353 = vmul.f32 %v4321, 0.2
    %v4354 = vmul.f32 %v4322, 0.2
    %v4355 = vmul.f32 %v4323, 0.2
    %v4356 = vmul.f32 %v4324, 0.2
    %v4357 = vmul.f32 %v4325, 0.2
    %v4358 = vmul.f32 %v4326, 0.2
    %v4359 = vmul.f32 %v4327, 0.2
    %v4360 = vmul.f32 %v4328, 0.2
    %v4361 = vmul.f32 %v4329, 0.2
    %v4362 = vmul.f32 %v4330, 0.2
    %v4363 = vmul.f32 %v4331, 0.2
    %v4364 = vmul.f32 %v4332, 0.2
    %v4365 = vmul.f32 %v4333, 0.2
    %v4366 = vmul.f32 %v4334, 0.2
    %v4367 = vmul.f32 %v4335, 0.2
    %v4368 = vmul.f32 %v4336, 0.2
    %v4369 = vmul.f32 %v4337, 0.2
    %v4370 = vmul.f32 %v4338, 0.2
    %v4371 = vmul.f32 %v4339, 0.2
    %v4372 = vmul.f32 %v4340, 0.2
    %v4373 = vmul.f32 %v4341, 0.2
    %v4374 = vmul.f32 %v4342, 0.2
    %v4375 = vmul.f32 %v4343, 0.2
    %v4376 = vmul.f32 %v4344, 0.2
    %v4377 = vmul.f32 %v4345, 0.2
    %v4378 = vmul.f32 %v4346, 0.2
    %v4379 = vmul.f32 %v4347, 0.2
    %v4380 = vmax.f32 %v4316, %v4348
    %v4381 = vmax.f32 %v4317, %v4349
    %v4382 = vmax.f32 %v4318, %v4350
    %v4383 = vmax.f32 %v4319, %v4351
    %v4384 = vmax.f32 %v4320, %v4352
    %v4385 = vmax.f32 %v4321, %v4353
    %v4386 = vmax.f32 %v4322, %v4354
    %v4387 = vmax.f32 %v4323, %v4355
    %v4388 = vmax.f32 %v4324, %v4356
    %v4389 = vmax.f32 %v4325, %v4357
    %v4390 = vmax.f32 %v4326, %v4358
    %v4391 = vmax.f32 %v4327, %v4359
    %v4392 = vmax.f32 %v4328, %v4360
    %v4393 = vmax.f32 %v4329, %v4361
    %v4394 = vmax.f32 %v4330, %v4362
    %v4395 = vmax.f32 %v4331, %v4363
    %v4396 = vmax.f32 %v4332, %v4364
    %v4397 = vmax.f32 %v4333, %v4365
    %v4398 = vmax.f32 %v4334, %v4366
    %v4399 = vmax.f32 %v4335, %v4367
    %v4400 = vmax.f32 %v4336, %v4368
    %v4401 = vmax.f32 %v4337, %v4369
    %v4402 = vmax.f32 %v4338, %v4370
    %v4403 = vmax.f32 %v4339, %v4371
    %v4404 = vmax.f32 %v4340, %v4372
    %v4405 = vmax.f32 %v4341, %v4373
    %v4406 = vmax.f32 %v4342, %v4374
    %v4407 = vmax.f32 %v4343, %v4375
    %v4408 = vmax.f32 %v4344, %v4376
    %v4409 = vmax.f32 %v4345, %v4377
    %v4410 = vmax.f32 %v4346, %v4378
    %v4411 = vmax.f32 %v4347, %v4379
    %v4413 = vperm.slane %v4267, 0
    %v4415 = vmul.f32 %v4380, %v4413
    %v4416 = vmul.f32 %v4381, %v4413
    %v4417 = vmul.f32 %v4382, %v4413
    %v4418 = vmul.f32 %v4383, %v4413
    %v4419 = vmul.f32 %v4384, %v4413
    %v4420 = vmul.f32 %v4385, %v4413
    %v4421 = vmul.f32 %v4386, %v4413
    %v4422 = vmul.f32 %v4387, %v4413
    %v4423 = vmul.f32 %v4388, %v4413
    %v4424 = vmul.f32 %v4389, %v4413
    %v4425 = vmul.f32 %v4390, %v4413
    %v4426 = vmul.f32 %v4391, %v4413
    %v4427 = vmul.f32 %v4392, %v4413
    %v4428 = vmul.f32 %v4393, %v4413
    %v4429 = vmul.f32 %v4394, %v4413
    %v4430 = vmul.f32 %v4395, %v4413
    %v4431 = vmul.f32 %v4396, %v4413
    %v4432 = vmul.f32 %v4397, %v4413
    %v4433 = vmul.f32 %v4398, %v4413
    %v4434 = vmul.f32 %v4399, %v4413
    %v4435 = vmul.f32 %v4400, %v4413
    %v4436 = vmul.f32 %v4401, %v4413
    %v4437 = vmul.f32 %v4402, %v4413
    %v4438 = vmul.f32 %v4403, %v4413
    %v4439 = vmul.f32 %v4404, %v4413
    %v4440 = vmul.f32 %v4405, %v4413
    %v4441 = vmul.f32 %v4406, %v4413
    %v4442 = vmul.f32 %v4407, %v4413
    %v4443 = vmul.f32 %v4408, %v4413
    %v4444 = vmul.f32 %v4409, %v4413
    %v4445 = vmul.f32 %v4410, %v4413
    %v4446 = vmul.f32 %v4411, %v4413
    %v4447 = vsel %vm254, %v4415, 0.0
    %4448 = vadd.xlane.f32.xlu0 %v4447
    %v4449 = vpop.xlane.xlu0 %4448
    %v4450 = vsel %vm254, %v4416, 0.0
    %4451 = vadd.xlane.f32.xlu0 %v4450
    %v4452 = vpop.xlane.xlu0 %4451
    %v4453 = vsel %vm254, %v4417, 0.0
    %4454 = vadd.xlane.f32.xlu0 %v4453
    %v4455 = vpop.xlane.xlu0 %4454
    %v4456 = vsel %vm254, %v4418, 0.0
    %4457 = vadd.xlane.f32.xlu0 %v4456
    %v4458 = vpop.xlane.xlu0 %4457
    %v4459 = vsel %vm254, %v4419, 0.0
    %4460 = vadd.xlane.f32.xlu0 %v4459
    %v4461 = vpop.xlane.xlu0 %4460
    %v4462 = vsel %vm254, %v4420, 0.0
    %4463 = vadd.xlane.f32.xlu0 %v4462
    %v4464 = vpop.xlane.xlu0 %4463
    %v4465 = vsel %vm254, %v4421, 0.0
    %4466 = vadd.xlane.f32.xlu0 %v4465
    %v4467 = vpop.xlane.xlu0 %4466
    %v4468 = vsel %vm254, %v4422, 0.0
    %4469 = vadd.xlane.f32.xlu0 %v4468
    %v4470 = vpop.xlane.xlu0 %4469
    %v4471 = vsel %vm254, %v4423, 0.0
    %4472 = vadd.xlane.f32.xlu0 %v4471
    %v4473 = vpop.xlane.xlu0 %4472
    %v4474 = vsel %vm254, %v4424, 0.0
    %4475 = vadd.xlane.f32.xlu0 %v4474
    %v4476 = vpop.xlane.xlu0 %4475
    %v4477 = vsel %vm254, %v4425, 0.0
    %4478 = vadd.xlane.f32.xlu0 %v4477
    %v4479 = vpop.xlane.xlu0 %4478
    %v4480 = vsel %vm254, %v4426, 0.0
    %4481 = vadd.xlane.f32.xlu0 %v4480
    %v4482 = vpop.xlane.xlu0 %4481
    %v4483 = vsel %vm254, %v4427, 0.0
    %4484 = vadd.xlane.f32.xlu0 %v4483
    %v4485 = vpop.xlane.xlu0 %4484
    %v4486 = vsel %vm254, %v4428, 0.0
    %4487 = vadd.xlane.f32.xlu0 %v4486
    %v4488 = vpop.xlane.xlu0 %4487
    %v4489 = vsel %vm254, %v4429, 0.0
    %4490 = vadd.xlane.f32.xlu0 %v4489
    %v4491 = vpop.xlane.xlu0 %4490
    %v4492 = vsel %vm254, %v4430, 0.0
    %4493 = vadd.xlane.f32.xlu0 %v4492
    %v4494 = vpop.xlane.xlu0 %4493
    %v4495 = vsel %vm254, %v4431, 0.0
    %4496 = vadd.xlane.f32.xlu0 %v4495
    %v4497 = vpop.xlane.xlu0 %4496
    %v4498 = vsel %vm254, %v4432, 0.0
    %4499 = vadd.xlane.f32.xlu0 %v4498
    %v4500 = vpop.xlane.xlu0 %4499
    %v4501 = vsel %vm254, %v4433, 0.0
    %4502 = vadd.xlane.f32.xlu0 %v4501
    %v4503 = vpop.xlane.xlu0 %4502
    %v4504 = vsel %vm254, %v4434, 0.0
    %4505 = vadd.xlane.f32.xlu0 %v4504
    %v4506 = vpop.xlane.xlu0 %4505
    %v4507 = vsel %vm254, %v4435, 0.0
    %4508 = vadd.xlane.f32.xlu0 %v4507
    %v4509 = vpop.xlane.xlu0 %4508
    %v4510 = vsel %vm254, %v4436, 0.0
    %4511 = vadd.xlane.f32.xlu0 %v4510
    %v4512 = vpop.xlane.xlu0 %4511
    %v4513 = vsel %vm254, %v4437, 0.0
    %4514 = vadd.xlane.f32.xlu0 %v4513
    %v4515 = vpop.xlane.xlu0 %4514
    %v4516 = vsel %vm254, %v4438, 0.0
    %4517 = vadd.xlane.f32.xlu0 %v4516
    %v4518 = vpop.xlane.xlu0 %4517
    %v4519 = vsel %vm254, %v4439, 0.0
    %4520 = vadd.xlane.f32.xlu0 %v4519
    %v4521 = vpop.xlane.xlu0 %4520
    %v4522 = vsel %vm254, %v4440, 0.0
    %4523 = vadd.xlane.f32.xlu0 %v4522
    %v4524 = vpop.xlane.xlu0 %4523
    %v4525 = vsel %vm254, %v4441, 0.0
    %4526 = vadd.xlane.f32.xlu0 %v4525
    %v4527 = vpop.xlane.xlu0 %4526
    %v4528 = vsel %vm254, %v4442, 0.0
    %4529 = vadd.xlane.f32.xlu0 %v4528
    %v4530 = vpop.xlane.xlu0 %4529
    %v4531 = vsel %vm254, %v4443, 0.0
    %4532 = vadd.xlane.f32.xlu0 %v4531
    %v4533 = vpop.xlane.xlu0 %4532
    %v4534 = vsel %vm254, %v4444, 0.0
    %4535 = vadd.xlane.f32.xlu0 %v4534
    %v4536 = vpop.xlane.xlu0 %4535
    %v4537 = vsel %vm254, %v4445, 0.0
    %4538 = vadd.xlane.f32.xlu0 %v4537
    %v4539 = vpop.xlane.xlu0 %4538
    %v4540 = vsel %vm254, %v4446, 0.0
    %4541 = vadd.xlane.f32.xlu0 %v4540
    %v4542 = vpop.xlane.xlu0 %4541
    %v4543 = vadd.f32 %v4449, %v636
    %v4544 = vadd.f32 %v4452, %v642
    %v4545 = vadd.f32 %v4455, %v649
    %v4546 = vadd.f32 %v4458, %v655
    %v4547 = vadd.f32 %v4461, %v662
    %v4548 = vadd.f32 %v4464, %v668
    %v4549 = vadd.f32 %v4467, %v675
    %v4550 = vadd.f32 %v4470, %v681
    %v4551 = vadd.f32 %v4473, %v688
    %v4552 = vadd.f32 %v4476, %v694
    %v4553 = vadd.f32 %v4479, %v701
    %v4554 = vadd.f32 %v4482, %v707
    %v4555 = vadd.f32 %v4485, %v714
    %v4556 = vadd.f32 %v4488, %v720
    %v4557 = vadd.f32 %v4491, %v727
    %v4558 = vadd.f32 %v4494, %v733
    %v4559 = vadd.f32 %v4497, %v740
    %v4560 = vadd.f32 %v4500, %v746
    %v4561 = vadd.f32 %v4503, %v753
    %v4562 = vadd.f32 %v4506, %v759
    %v4563 = vadd.f32 %v4509, %v766
    %v4564 = vadd.f32 %v4512, %v772
    %v4565 = vadd.f32 %v4515, %v779
    %v4566 = vadd.f32 %v4518, %v785
    %v4567 = vadd.f32 %v4521, %v792
    %v4568 = vadd.f32 %v4524, %v798
    %v4569 = vadd.f32 %v4527, %v805
    %v4570 = vadd.f32 %v4530, %v811
    %v4571 = vadd.f32 %v4533, %v818
    %v4572 = vadd.f32 %v4536, %v824
    %v4573 = vadd.f32 %v4539, %v831
    %v4574 = vadd.f32 %v4542, %v837
    %4607 = vset.pattern.permute.xlu0 0
    %4608 = vperm.xlu0 %4607, %v4543
    %v4609 = vpop.permute.xlu0 %4608
    %4610 = vset.pattern.permute.xlu0 0
    %4611 = vperm.xlu0 %4610, %v4544
    %v4612 = vpop.permute.xlu0 %4611
    %4613 = vset.pattern.permute.xlu0 0
    %4614 = vperm.xlu0 %4613, %v4545
    %v4615 = vpop.permute.xlu0 %4614
    %4616 = vset.pattern.permute.xlu0 0
    %4617 = vperm.xlu0 %4616, %v4546
    %v4618 = vpop.permute.xlu0 %4617
    %4619 = vset.pattern.permute.xlu0 0
    %4620 = vperm.xlu0 %4619, %v4547
    %v4621 = vpop.permute.xlu0 %4620
    %4622 = vset.pattern.permute.xlu0 0
    %4623 = vperm.xlu0 %4622, %v4548
    %v4624 = vpop.permute.xlu0 %4623
    %4625 = vset.pattern.permute.xlu0 0
    %4626 = vperm.xlu0 %4625, %v4549
    %v4627 = vpop.permute.xlu0 %4626
    %4628 = vset.pattern.permute.xlu0 0
    %4629 = vperm.xlu0 %4628, %v4550
    %v4630 = vpop.permute.xlu0 %4629
    %4631 = vset.pattern.permute.xlu0 0
    %4632 = vperm.xlu0 %4631, %v4551
    %v4633 = vpop.permute.xlu0 %4632
    %4634 = vset.pattern.permute.xlu0 0
    %4635 = vperm.xlu0 %4634, %v4552
    %v4636 = vpop.permute.xlu0 %4635
    %4637 = vset.pattern.permute.xlu0 0
    %4638 = vperm.xlu0 %4637, %v4553
    %v4639 = vpop.permute.xlu0 %4638
    %4640 = vset.pattern.permute.xlu0 0
    %4641 = vperm.xlu0 %4640, %v4554
    %v4642 = vpop.permute.xlu0 %4641
    %4643 = vset.pattern.permute.xlu0 0
    %4644 = vperm.xlu0 %4643, %v4555
    %v4645 = vpop.permute.xlu0 %4644
    %4646 = vset.pattern.permute.xlu0 0
    %4647 = vperm.xlu0 %4646, %v4556
    %v4648 = vpop.permute.xlu0 %4647
    %4649 = vset.pattern.permute.xlu0 0
    %4650 = vperm.xlu0 %4649, %v4557
    %v4651 = vpop.permute.xlu0 %4650
    %4652 = vset.pattern.permute.xlu0 0
    %4653 = vperm.xlu0 %4652, %v4558
    %v4654 = vpop.permute.xlu0 %4653
    %4655 = vset.pattern.permute.xlu0 0
    %4656 = vperm.xlu0 %4655, %v4559
    %v4657 = vpop.permute.xlu0 %4656
    %4658 = vset.pattern.permute.xlu0 0
    %4659 = vperm.xlu0 %4658, %v4560
    %v4660 = vpop.permute.xlu0 %4659
    %4661 = vset.pattern.permute.xlu0 0
    %4662 = vperm.xlu0 %4661, %v4561
    %v4663 = vpop.permute.xlu0 %4662
    %4664 = vset.pattern.permute.xlu0 0
    %4665 = vperm.xlu0 %4664, %v4562
    %v4666 = vpop.permute.xlu0 %4665
    %4667 = vset.pattern.permute.xlu0 0
    %4668 = vperm.xlu0 %4667, %v4563
    %v4669 = vpop.permute.xlu0 %4668
    %4670 = vset.pattern.permute.xlu0 0
    %4671 = vperm.xlu0 %4670, %v4564
    %v4672 = vpop.permute.xlu0 %4671
    %4673 = vset.pattern.permute.xlu0 0
    %4674 = vperm.xlu0 %4673, %v4565
    %v4675 = vpop.permute.xlu0 %4674
    %4676 = vset.pattern.permute.xlu0 0
    %4677 = vperm.xlu0 %4676, %v4566
    %v4678 = vpop.permute.xlu0 %4677
    %4679 = vset.pattern.permute.xlu0 0
    %4680 = vperm.xlu0 %4679, %v4567
    %v4681 = vpop.permute.xlu0 %4680
    %4682 = vset.pattern.permute.xlu0 0
    %4683 = vperm.xlu0 %4682, %v4568
    %v4684 = vpop.permute.xlu0 %4683
    %4685 = vset.pattern.permute.xlu0 0
    %4686 = vperm.xlu0 %4685, %v4569
    %v4687 = vpop.permute.xlu0 %4686
    %4688 = vset.pattern.permute.xlu0 0
    %4689 = vperm.xlu0 %4688, %v4570
    %v4690 = vpop.permute.xlu0 %4689
    %4691 = vset.pattern.permute.xlu0 0
    %4692 = vperm.xlu0 %4691, %v4571
    %v4693 = vpop.permute.xlu0 %4692
    %4694 = vset.pattern.permute.xlu0 0
    %4695 = vperm.xlu0 %4694, %v4572
    %v4696 = vpop.permute.xlu0 %4695
    %4697 = vset.pattern.permute.xlu0 0
    %4698 = vperm.xlu0 %4697, %v4573
    %v4699 = vpop.permute.xlu0 %4698
    %4700 = vset.pattern.permute.xlu0 0
    %4701 = vperm.xlu0 %4700, %v4574
    %v4702 = vpop.permute.xlu0 %4701
    %v4703 = vperm.slane %v4609, %v1031
    %v4704 = vperm.slane %v4612, %v1033
    %v4705 = vsel %vm1035, %v4704, %v4703
    %v4706 = vperm.slane %v4615, %v1031
    %v4707 = vperm.slane %v4618, %v1033
    %v4708 = vsel %vm1035, %v4707, %v4706
    %v4709 = vperm.slane %v4621, %v1031
    %v4710 = vperm.slane %v4624, %v1033
    %v4711 = vsel %vm1035, %v4710, %v4709
    %v4712 = vperm.slane %v4627, %v1031
    %v4713 = vperm.slane %v4630, %v1033
    %v4714 = vsel %vm1035, %v4713, %v4712
    %v4715 = vperm.slane %v4633, %v1031
    %v4716 = vperm.slane %v4636, %v1033
    %v4717 = vsel %vm1035, %v4716, %v4715
    %v4718 = vperm.slane %v4639, %v1031
    %v4719 = vperm.slane %v4642, %v1033
    %v4720 = vsel %vm1035, %v4719, %v4718
    %v4721 = vperm.slane %v4645, %v1031
    %v4722 = vperm.slane %v4648, %v1033
    %v4723 = vsel %vm1035, %v4722, %v4721
    %v4724 = vperm.slane %v4651, %v1031
    %v4725 = vperm.slane %v4654, %v1033
    %v4726 = vsel %vm1035, %v4725, %v4724
    %v4727 = vperm.slane %v4657, %v1031
    %v4728 = vperm.slane %v4660, %v1033
    %v4729 = vsel %vm1035, %v4728, %v4727
    %v4730 = vperm.slane %v4663, %v1031
    %v4731 = vperm.slane %v4666, %v1033
    %v4732 = vsel %vm1035, %v4731, %v4730
    %v4733 = vperm.slane %v4669, %v1031
    %v4734 = vperm.slane %v4672, %v1033
    %v4735 = vsel %vm1035, %v4734, %v4733
    %v4736 = vperm.slane %v4675, %v1031
    %v4737 = vperm.slane %v4678, %v1033
    %v4738 = vsel %vm1035, %v4737, %v4736
    %v4739 = vperm.slane %v4681, %v1031
    %v4740 = vperm.slane %v4684, %v1033
    %v4741 = vsel %vm1035, %v4740, %v4739
    %v4742 = vperm.slane %v4687, %v1031
    %v4743 = vperm.slane %v4690, %v1033
    %v4744 = vsel %vm1035, %v4743, %v4742
    %v4745 = vperm.slane %v4693, %v1031
    %v4746 = vperm.slane %v4696, %v1033
    %v4747 = vsel %vm1035, %v4746, %v4745
    %v4748 = vperm.slane %v4699, %v1031
    %v4749 = vperm.slane %v4702, %v1033
    %v4750 = vsel %vm1035, %v4749, %v4748
    %v4751 = vsel %vm1082, %v4708, %v4705
    %v4752 = vsel %vm1084, %v4711, %v4751
    %v4753 = vsel %vm1086, %v4714, %v4752
    %v4754 = vsel %vm1088, %v4717, %v4753
    %v4755 = vsel %vm1090, %v4720, %v4754
    %v4756 = vsel %vm1092, %v4723, %v4755
    %v4757 = vsel %vm1094, %v4726, %v4756
    %v4758 = vsel %vm1082, %v4732, %v4729
    %v4759 = vsel %vm1084, %v4735, %v4758
    %v4760 = vsel %vm1086, %v4738, %v4759
    %v4761 = vsel %vm1088, %v4741, %v4760
    %v4762 = vsel %vm1090, %v4744, %v4761
    %v4763 = vsel %vm1092, %v4747, %v4762
    %v4764 = vsel %vm1094, %v4750, %v4763
    %v4767 = vsel %vm1105, %v4757, -inf
    %4768 = vmax.xlane.f32.xlu0 %v4767
    %v4769 = vpop.xlane.xlu0 %4768
    %v4770 = vsel %vm1105, %v4764, -inf
    %4771 = vmax.xlane.f32.xlu0 %v4770
    %v4772 = vpop.xlane.xlu0 %4771
    %v4775 = vperm.slane %v4769, 0
    %v4776 = vperm.slane %v4769, 1
    %v4777 = vperm.slane %v4769, 2
    %v4778 = vperm.slane %v4769, 3
    %v4779 = vperm.slane %v4769, 4
    %v4780 = vperm.slane %v4769, 5
    %v4781 = vperm.slane %v4769, 6
    %v4782 = vperm.slane %v4769, 7
    %v4783 = vperm.slane %v4772, 0
    %v4784 = vperm.slane %v4772, 1
    %v4785 = vperm.slane %v4772, 2
    %v4786 = vperm.slane %v4772, 3
    %v4787 = vperm.slane %v4772, 4
    %v4788 = vperm.slane %v4772, 5
    %v4789 = vperm.slane %v4772, 6
    %v4790 = vperm.slane %v4772, 7
    %v4807 = vsub.f32 %v4543, %v4775
    %v4808 = vsub.f32 %v4544, %v4775
    %v4809 = vsub.f32 %v4545, %v4776
    %v4810 = vsub.f32 %v4546, %v4776
    %v4811 = vsub.f32 %v4547, %v4777
    %v4812 = vsub.f32 %v4548, %v4777
    %v4813 = vsub.f32 %v4549, %v4778
    %v4814 = vsub.f32 %v4550, %v4778
    %v4815 = vsub.f32 %v4551, %v4779
    %v4816 = vsub.f32 %v4552, %v4779
    %v4817 = vsub.f32 %v4553, %v4780
    %v4818 = vsub.f32 %v4554, %v4780
    %v4819 = vsub.f32 %v4555, %v4781
    %v4820 = vsub.f32 %v4556, %v4781
    %v4821 = vsub.f32 %v4557, %v4782
    %v4822 = vsub.f32 %v4558, %v4782
    %v4823 = vsub.f32 %v4559, %v4783
    %v4824 = vsub.f32 %v4560, %v4783
    %v4825 = vsub.f32 %v4561, %v4784
    %v4826 = vsub.f32 %v4562, %v4784
    %v4827 = vsub.f32 %v4563, %v4785
    %v4828 = vsub.f32 %v4564, %v4785
    %v4829 = vsub.f32 %v4565, %v4786
    %v4830 = vsub.f32 %v4566, %v4786
    %v4831 = vsub.f32 %v4567, %v4787
    %v4832 = vsub.f32 %v4568, %v4787
    %v4833 = vsub.f32 %v4569, %v4788
    %v4834 = vsub.f32 %v4570, %v4788
    %v4835 = vsub.f32 %v4571, %v4789
    %v4836 = vsub.f32 %v4572, %v4789
    %v4837 = vsub.f32 %v4573, %v4790
    %v4838 = vsub.f32 %v4574, %v4790
    %v4839 = vmul.f32 %v4807, 1.442695
    %v4840 = vpow.pop %v4839
    %v4841 = vmul.f32 %v4808, 1.442695
    %v4842 = vpow.pop %v4841
    %v4843 = vmul.f32 %v4809, 1.442695
    %v4844 = vpow.pop %v4843
    %v4845 = vmul.f32 %v4810, 1.442695
    %v4846 = vpow.pop %v4845
    %v4847 = vmul.f32 %v4811, 1.442695
    %v4848 = vpow.pop %v4847
    %v4849 = vmul.f32 %v4812, 1.442695
    %v4850 = vpow.pop %v4849
    %v4851 = vmul.f32 %v4813, 1.442695
    %v4852 = vpow.pop %v4851
    %v4853 = vmul.f32 %v4814, 1.442695
    %v4854 = vpow.pop %v4853
    %v4855 = vmul.f32 %v4815, 1.442695
    %v4856 = vpow.pop %v4855
    %v4857 = vmul.f32 %v4816, 1.442695
    %v4858 = vpow.pop %v4857
    %v4859 = vmul.f32 %v4817, 1.442695
    %v4860 = vpow.pop %v4859
    %v4861 = vmul.f32 %v4818, 1.442695
    %v4862 = vpow.pop %v4861
    %v4863 = vmul.f32 %v4819, 1.442695
    %v4864 = vpow.pop %v4863
    %v4865 = vmul.f32 %v4820, 1.442695
    %v4866 = vpow.pop %v4865
    %v4867 = vmul.f32 %v4821, 1.442695
    %v4868 = vpow.pop %v4867
    %v4869 = vmul.f32 %v4822, 1.442695
    %v4870 = vpow.pop %v4869
    %v4871 = vmul.f32 %v4823, 1.442695
    %v4872 = vpow.pop %v4871
    %v4873 = vmul.f32 %v4824, 1.442695
    %v4874 = vpow.pop %v4873
    %v4875 = vmul.f32 %v4825, 1.442695
    %v4876 = vpow.pop %v4875
    %v4877 = vmul.f32 %v4826, 1.442695
    %v4878 = vpow.pop %v4877
    %v4879 = vmul.f32 %v4827, 1.442695
    %v4880 = vpow.pop %v4879
    %v4881 = vmul.f32 %v4828, 1.442695
    %v4882 = vpow.pop %v4881
    %v4883 = vmul.f32 %v4829, 1.442695
    %v4884 = vpow.pop %v4883
    %v4885 = vmul.f32 %v4830, 1.442695
    %v4886 = vpow.pop %v4885
    %v4887 = vmul.f32 %v4831, 1.442695
    %v4888 = vpow.pop %v4887
    %v4889 = vmul.f32 %v4832, 1.442695
    %v4890 = vpow.pop %v4889
    %v4891 = vmul.f32 %v4833, 1.442695
    %v4892 = vpow.pop %v4891
    %v4893 = vmul.f32 %v4834, 1.442695
    %v4894 = vpow.pop %v4893
    %v4895 = vmul.f32 %v4835, 1.442695
    %v4896 = vpow.pop %v4895
    %v4897 = vmul.f32 %v4836, 1.442695
    %v4898 = vpow.pop %v4897
    %v4899 = vmul.f32 %v4837, 1.442695
    %v4900 = vpow.pop %v4899
    %v4901 = vmul.f32 %v4838, 1.442695
    %v4902 = vpow.pop %v4901
    %v4903 = vmul.f32 %v4840, %v1250
    %v4904 = vmul.f32 %v4842, %v1256
    %v4905 = vmul.f32 %v4844, %v1263
    %v4906 = vmul.f32 %v4846, %v1269
    %v4907 = vmul.f32 %v4848, %v1276
    %v4908 = vmul.f32 %v4850, %v1282
    %v4909 = vmul.f32 %v4852, %v1289
    %v4910 = vmul.f32 %v4854, %v1295
    %v4911 = vmul.f32 %v4856, %v1302
    %v4912 = vmul.f32 %v4858, %v1308
    %v4913 = vmul.f32 %v4860, %v1315
    %v4914 = vmul.f32 %v4862, %v1321
    %v4915 = vmul.f32 %v4864, %v1328
    %v4916 = vmul.f32 %v4866, %v1334
    %v4917 = vmul.f32 %v4868, %v1341
    %v4918 = vmul.f32 %v4870, %v1347
    %v4919 = vmul.f32 %v4872, %v1354
    %v4920 = vmul.f32 %v4874, %v1360
    %v4921 = vmul.f32 %v4876, %v1367
    %v4922 = vmul.f32 %v4878, %v1373
    %v4923 = vmul.f32 %v4880, %v1380
    %v4924 = vmul.f32 %v4882, %v1386
    %v4925 = vmul.f32 %v4884, %v1393
    %v4926 = vmul.f32 %v4886, %v1399
    %v4927 = vmul.f32 %v4888, %v1406
    %v4928 = vmul.f32 %v4890, %v1412
    %v4929 = vmul.f32 %v4892, %v1419
    %v4930 = vmul.f32 %v4894, %v1425
    %v4931 = vmul.f32 %v4896, %v1432
    %v4932 = vmul.f32 %v4898, %v1438
    %v4933 = vmul.f32 %v4900, %v1445
    %v4934 = vmul.f32 %v4902, %v1451
    %4967 = vset.pattern.permute.xlu0 0
    %4968 = vperm.xlu0 %4967, %v4903
    %v4969 = vpop.permute.xlu0 %4968
    %4970 = vset.pattern.permute.xlu0 0
    %4971 = vperm.xlu0 %4970, %v4904
    %v4972 = vpop.permute.xlu0 %4971
    %4973 = vset.pattern.permute.xlu0 0
    %4974 = vperm.xlu0 %4973, %v4905
    %v4975 = vpop.permute.xlu0 %4974
    %4976 = vset.pattern.permute.xlu0 0
    %4977 = vperm.xlu0 %4976, %v4906
    %v4978 = vpop.permute.xlu0 %4977
    %4979 = vset.pattern.permute.xlu0 0
    %4980 = vperm.xlu0 %4979, %v4907
    %v4981 = vpop.permute.xlu0 %4980
    %4982 = vset.pattern.permute.xlu0 0
    %4983 = vperm.xlu0 %4982, %v4908
    %v4984 = vpop.permute.xlu0 %4983
    %4985 = vset.pattern.permute.xlu0 0
    %4986 = vperm.xlu0 %4985, %v4909
    %v4987 = vpop.permute.xlu0 %4986
    %4988 = vset.pattern.permute.xlu0 0
    %4989 = vperm.xlu0 %4988, %v4910
    %v4990 = vpop.permute.xlu0 %4989
    %4991 = vset.pattern.permute.xlu0 0
    %4992 = vperm.xlu0 %4991, %v4911
    %v4993 = vpop.permute.xlu0 %4992
    %4994 = vset.pattern.permute.xlu0 0
    %4995 = vperm.xlu0 %4994, %v4912
    %v4996 = vpop.permute.xlu0 %4995
    %4997 = vset.pattern.permute.xlu0 0
    %4998 = vperm.xlu0 %4997, %v4913
    %v4999 = vpop.permute.xlu0 %4998
    %5000 = vset.pattern.permute.xlu0 0
    %5001 = vperm.xlu0 %5000, %v4914
    %v5002 = vpop.permute.xlu0 %5001
    %5003 = vset.pattern.permute.xlu0 0
    %5004 = vperm.xlu0 %5003, %v4915
    %v5005 = vpop.permute.xlu0 %5004
    %5006 = vset.pattern.permute.xlu0 0
    %5007 = vperm.xlu0 %5006, %v4916
    %v5008 = vpop.permute.xlu0 %5007
    %5009 = vset.pattern.permute.xlu0 0
    %5010 = vperm.xlu0 %5009, %v4917
    %v5011 = vpop.permute.xlu0 %5010
    %5012 = vset.pattern.permute.xlu0 0
    %5013 = vperm.xlu0 %5012, %v4918
    %v5014 = vpop.permute.xlu0 %5013
    %5015 = vset.pattern.permute.xlu0 0
    %5016 = vperm.xlu0 %5015, %v4919
    %v5017 = vpop.permute.xlu0 %5016
    %5018 = vset.pattern.permute.xlu0 0
    %5019 = vperm.xlu0 %5018, %v4920
    %v5020 = vpop.permute.xlu0 %5019
    %5021 = vset.pattern.permute.xlu0 0
    %5022 = vperm.xlu0 %5021, %v4921
    %v5023 = vpop.permute.xlu0 %5022
    %5024 = vset.pattern.permute.xlu0 0
    %5025 = vperm.xlu0 %5024, %v4922
    %v5026 = vpop.permute.xlu0 %5025
    %5027 = vset.pattern.permute.xlu0 0
    %5028 = vperm.xlu0 %5027, %v4923
    %v5029 = vpop.permute.xlu0 %5028
    %5030 = vset.pattern.permute.xlu0 0
    %5031 = vperm.xlu0 %5030, %v4924
    %v5032 = vpop.permute.xlu0 %5031
    %5033 = vset.pattern.permute.xlu0 0
    %5034 = vperm.xlu0 %5033, %v4925
    %v5035 = vpop.permute.xlu0 %5034
    %5036 = vset.pattern.permute.xlu0 0
    %5037 = vperm.xlu0 %5036, %v4926
    %v5038 = vpop.permute.xlu0 %5037
    %5039 = vset.pattern.permute.xlu0 0
    %5040 = vperm.xlu0 %5039, %v4927
    %v5041 = vpop.permute.xlu0 %5040
    %5042 = vset.pattern.permute.xlu0 0
    %5043 = vperm.xlu0 %5042, %v4928
    %v5044 = vpop.permute.xlu0 %5043
    %5045 = vset.pattern.permute.xlu0 0
    %5046 = vperm.xlu0 %5045, %v4929
    %v5047 = vpop.permute.xlu0 %5046
    %5048 = vset.pattern.permute.xlu0 0
    %5049 = vperm.xlu0 %5048, %v4930
    %v5050 = vpop.permute.xlu0 %5049
    %5051 = vset.pattern.permute.xlu0 0
    %5052 = vperm.xlu0 %5051, %v4931
    %v5053 = vpop.permute.xlu0 %5052
    %5054 = vset.pattern.permute.xlu0 0
    %5055 = vperm.xlu0 %5054, %v4932
    %v5056 = vpop.permute.xlu0 %5055
    %5057 = vset.pattern.permute.xlu0 0
    %5058 = vperm.xlu0 %5057, %v4933
    %v5059 = vpop.permute.xlu0 %5058
    %5060 = vset.pattern.permute.xlu0 0
    %5061 = vperm.xlu0 %5060, %v4934
    %v5062 = vpop.permute.xlu0 %5061
    %v5063 = vperm.slane %v4969, %v1031
    %v5064 = vperm.slane %v4972, %v1033
    %v5065 = vsel %vm1035, %v5064, %v5063
    %v5066 = vperm.slane %v4975, %v1031
    %v5067 = vperm.slane %v4978, %v1033
    %v5068 = vsel %vm1035, %v5067, %v5066
    %v5069 = vperm.slane %v4981, %v1031
    %v5070 = vperm.slane %v4984, %v1033
    %v5071 = vsel %vm1035, %v5070, %v5069
    %v5072 = vperm.slane %v4987, %v1031
    %v5073 = vperm.slane %v4990, %v1033
    %v5074 = vsel %vm1035, %v5073, %v5072
    %v5075 = vperm.slane %v4993, %v1031
    %v5076 = vperm.slane %v4996, %v1033
    %v5077 = vsel %vm1035, %v5076, %v5075
    %v5078 = vperm.slane %v4999, %v1031
    %v5079 = vperm.slane %v5002, %v1033
    %v5080 = vsel %vm1035, %v5079, %v5078
    %v5081 = vperm.slane %v5005, %v1031
    %v5082 = vperm.slane %v5008, %v1033
    %v5083 = vsel %vm1035, %v5082, %v5081
    %v5084 = vperm.slane %v5011, %v1031
    %v5085 = vperm.slane %v5014, %v1033
    %v5086 = vsel %vm1035, %v5085, %v5084
    %v5087 = vperm.slane %v5017, %v1031
    %v5088 = vperm.slane %v5020, %v1033
    %v5089 = vsel %vm1035, %v5088, %v5087
    %v5090 = vperm.slane %v5023, %v1031
    %v5091 = vperm.slane %v5026, %v1033
    %v5092 = vsel %vm1035, %v5091, %v5090
    %v5093 = vperm.slane %v5029, %v1031
    %v5094 = vperm.slane %v5032, %v1033
    %v5095 = vsel %vm1035, %v5094, %v5093
    %v5096 = vperm.slane %v5035, %v1031
    %v5097 = vperm.slane %v5038, %v1033
    %v5098 = vsel %vm1035, %v5097, %v5096
    %v5099 = vperm.slane %v5041, %v1031
    %v5100 = vperm.slane %v5044, %v1033
    %v5101 = vsel %vm1035, %v5100, %v5099
    %v5102 = vperm.slane %v5047, %v1031
    %v5103 = vperm.slane %v5050, %v1033
    %v5104 = vsel %vm1035, %v5103, %v5102
    %v5105 = vperm.slane %v5053, %v1031
    %v5106 = vperm.slane %v5056, %v1033
    %v5107 = vsel %vm1035, %v5106, %v5105
    %v5108 = vperm.slane %v5059, %v1031
    %v5109 = vperm.slane %v5062, %v1033
    %v5110 = vsel %vm1035, %v5109, %v5108
    %v5111 = vsel %vm1082, %v5068, %v5065
    %v5112 = vsel %vm1084, %v5071, %v5111
    %v5113 = vsel %vm1086, %v5074, %v5112
    %v5114 = vsel %vm1088, %v5077, %v5113
    %v5115 = vsel %vm1090, %v5080, %v5114
    %v5116 = vsel %vm1092, %v5083, %v5115
    %v5117 = vsel %vm1094, %v5086, %v5116
    %v5118 = vsel %vm1082, %v5092, %v5089
    %v5119 = vsel %vm1084, %v5095, %v5118
    %v5120 = vsel %vm1086, %v5098, %v5119
    %v5121 = vsel %vm1088, %v5101, %v5120
    %v5122 = vsel %vm1090, %v5104, %v5121
    %v5123 = vsel %vm1092, %v5107, %v5122
    %v5124 = vsel %vm1094, %v5110, %v5123
    %v5127 = vsel %vm1105, %v5117, 0.0
    %5128 = vadd.xlane.f32.xlu0 %v5127
    %v5129 = vpop.xlane.xlu0 %5128
    %v5130 = vsel %vm1105, %v5124, 0.0
    %5131 = vadd.xlane.f32.xlu0 %v5130
    %v5132 = vpop.xlane.xlu0 %5131
    %v5133 = vmul.f32 %v5129, 3.0
    %v5134 = vmul.f32 %v5132, 3.0
    %v5135 = vmax.f32 %v5133, 1e-30
    %v5136 = vmax.f32 %v5134, 1e-30
    %v5137 = vrcp.pop %v5135
    %v5138 = vrcp.pop %v5136
    %v5141 = vperm.slane %v5137, 0
    %v5142 = vperm.slane %v5137, 1
    %v5143 = vperm.slane %v5137, 2
    %v5144 = vperm.slane %v5137, 3
    %v5145 = vperm.slane %v5137, 4
    %v5146 = vperm.slane %v5137, 5
    %v5147 = vperm.slane %v5137, 6
    %v5148 = vperm.slane %v5137, 7
    %v5149 = vperm.slane %v5138, 0
    %v5150 = vperm.slane %v5138, 1
    %v5151 = vperm.slane %v5138, 2
    %v5152 = vperm.slane %v5138, 3
    %v5153 = vperm.slane %v5138, 4
    %v5154 = vperm.slane %v5138, 5
    %v5155 = vperm.slane %v5138, 6
    %v5156 = vperm.slane %v5138, 7
    %v5173 = vmul.f32 %v4903, %v5141
    %v5174 = vmul.f32 %v4904, %v5141
    %v5175 = vmul.f32 %v4905, %v5142
    %v5176 = vmul.f32 %v4906, %v5142
    %v5177 = vmul.f32 %v4907, %v5143
    %v5178 = vmul.f32 %v4908, %v5143
    %v5179 = vmul.f32 %v4909, %v5144
    %v5180 = vmul.f32 %v4910, %v5144
    %v5181 = vmul.f32 %v4911, %v5145
    %v5182 = vmul.f32 %v4912, %v5145
    %v5183 = vmul.f32 %v4913, %v5146
    %v5184 = vmul.f32 %v4914, %v5146
    %v5185 = vmul.f32 %v4915, %v5147
    %v5186 = vmul.f32 %v4916, %v5147
    %v5187 = vmul.f32 %v4917, %v5148
    %v5188 = vmul.f32 %v4918, %v5148
    %v5189 = vmul.f32 %v4919, %v5149
    %v5190 = vmul.f32 %v4920, %v5149
    %v5191 = vmul.f32 %v4921, %v5150
    %v5192 = vmul.f32 %v4922, %v5150
    %v5193 = vmul.f32 %v4923, %v5151
    %v5194 = vmul.f32 %v4924, %v5151
    %v5195 = vmul.f32 %v4925, %v5152
    %v5196 = vmul.f32 %v4926, %v5152
    %v5197 = vmul.f32 %v4927, %v5153
    %v5198 = vmul.f32 %v4928, %v5153
    %v5199 = vmul.f32 %v4929, %v5154
    %v5200 = vmul.f32 %v4930, %v5154
    %v5201 = vmul.f32 %v4931, %v5155
    %v5202 = vmul.f32 %v4932, %v5155
    %v5203 = vmul.f32 %v4933, %v5156
    %v5204 = vmul.f32 %v4934, %v5156
    %5237 = vrot.lane.b32.xlu0 %v4415, 96
    %v5238 = vpop.permute.xlu0 %5237
    %5239 = vrot.lane.b32.xlu0 %v4416, 96
    %v5240 = vpop.permute.xlu0 %5239
    %5241 = vrot.lane.b32.xlu0 %v4417, 96
    %v5242 = vpop.permute.xlu0 %5241
    %5243 = vrot.lane.b32.xlu0 %v4418, 96
    %v5244 = vpop.permute.xlu0 %5243
    %5245 = vrot.lane.b32.xlu0 %v4419, 96
    %v5246 = vpop.permute.xlu0 %5245
    %5247 = vrot.lane.b32.xlu0 %v4420, 96
    %v5248 = vpop.permute.xlu0 %5247
    %5249 = vrot.lane.b32.xlu0 %v4421, 96
    %v5250 = vpop.permute.xlu0 %5249
    %5251 = vrot.lane.b32.xlu0 %v4422, 96
    %v5252 = vpop.permute.xlu0 %5251
    %5253 = vrot.lane.b32.xlu0 %v4423, 96
    %v5254 = vpop.permute.xlu0 %5253
    %5255 = vrot.lane.b32.xlu0 %v4424, 96
    %v5256 = vpop.permute.xlu0 %5255
    %5257 = vrot.lane.b32.xlu0 %v4425, 96
    %v5258 = vpop.permute.xlu0 %5257
    %5259 = vrot.lane.b32.xlu0 %v4426, 96
    %v5260 = vpop.permute.xlu0 %5259
    %5261 = vrot.lane.b32.xlu0 %v4427, 96
    %v5262 = vpop.permute.xlu0 %5261
    %5263 = vrot.lane.b32.xlu0 %v4428, 96
    %v5264 = vpop.permute.xlu0 %5263
    %5265 = vrot.lane.b32.xlu0 %v4429, 96
    %v5266 = vpop.permute.xlu0 %5265
    %5267 = vrot.lane.b32.xlu0 %v4430, 96
    %v5268 = vpop.permute.xlu0 %5267
    %5269 = vrot.lane.b32.xlu0 %v4431, 96
    %v5270 = vpop.permute.xlu0 %5269
    %5271 = vrot.lane.b32.xlu0 %v4432, 96
    %v5272 = vpop.permute.xlu0 %5271
    %5273 = vrot.lane.b32.xlu0 %v4433, 96
    %v5274 = vpop.permute.xlu0 %5273
    %5275 = vrot.lane.b32.xlu0 %v4434, 96
    %v5276 = vpop.permute.xlu0 %5275
    %5277 = vrot.lane.b32.xlu0 %v4435, 96
    %v5278 = vpop.permute.xlu0 %5277
    %5279 = vrot.lane.b32.xlu0 %v4436, 96
    %v5280 = vpop.permute.xlu0 %5279
    %5281 = vrot.lane.b32.xlu0 %v4437, 96
    %v5282 = vpop.permute.xlu0 %5281
    %5283 = vrot.lane.b32.xlu0 %v4438, 96
    %v5284 = vpop.permute.xlu0 %5283
    %5285 = vrot.lane.b32.xlu0 %v4439, 96
    %v5286 = vpop.permute.xlu0 %5285
    %5287 = vrot.lane.b32.xlu0 %v4440, 96
    %v5288 = vpop.permute.xlu0 %5287
    %5289 = vrot.lane.b32.xlu0 %v4441, 96
    %v5290 = vpop.permute.xlu0 %5289
    %5291 = vrot.lane.b32.xlu0 %v4442, 96
    %v5292 = vpop.permute.xlu0 %5291
    %5293 = vrot.lane.b32.xlu0 %v4443, 96
    %v5294 = vpop.permute.xlu0 %5293
    %5295 = vrot.lane.b32.xlu0 %v4444, 96
    %v5296 = vpop.permute.xlu0 %5295
    %5297 = vrot.lane.b32.xlu0 %v4445, 96
    %v5298 = vpop.permute.xlu0 %5297
    %5299 = vrot.lane.b32.xlu0 %v4446, 96
    %v5300 = vpop.permute.xlu0 %5299
    %v5333 = vsel %vm254, %v5238, 0.0
    %5334 = vadd.xlane.f32.xlu0 %v5333
    %v5335 = vpop.xlane.xlu0 %5334
    %v5336 = vsel %vm254, %v5240, 0.0
    %5337 = vadd.xlane.f32.xlu0 %v5336
    %v5338 = vpop.xlane.xlu0 %5337
    %v5339 = vsel %vm254, %v5242, 0.0
    %5340 = vadd.xlane.f32.xlu0 %v5339
    %v5341 = vpop.xlane.xlu0 %5340
    %v5342 = vsel %vm254, %v5244, 0.0
    %5343 = vadd.xlane.f32.xlu0 %v5342
    %v5344 = vpop.xlane.xlu0 %5343
    %v5345 = vsel %vm254, %v5246, 0.0
    %5346 = vadd.xlane.f32.xlu0 %v5345
    %v5347 = vpop.xlane.xlu0 %5346
    %v5348 = vsel %vm254, %v5248, 0.0
    %5349 = vadd.xlane.f32.xlu0 %v5348
    %v5350 = vpop.xlane.xlu0 %5349
    %v5351 = vsel %vm254, %v5250, 0.0
    %5352 = vadd.xlane.f32.xlu0 %v5351
    %v5353 = vpop.xlane.xlu0 %5352
    %v5354 = vsel %vm254, %v5252, 0.0
    %5355 = vadd.xlane.f32.xlu0 %v5354
    %v5356 = vpop.xlane.xlu0 %5355
    %v5357 = vsel %vm254, %v5254, 0.0
    %5358 = vadd.xlane.f32.xlu0 %v5357
    %v5359 = vpop.xlane.xlu0 %5358
    %v5360 = vsel %vm254, %v5256, 0.0
    %5361 = vadd.xlane.f32.xlu0 %v5360
    %v5362 = vpop.xlane.xlu0 %5361
    %v5363 = vsel %vm254, %v5258, 0.0
    %5364 = vadd.xlane.f32.xlu0 %v5363
    %v5365 = vpop.xlane.xlu0 %5364
    %v5366 = vsel %vm254, %v5260, 0.0
    %5367 = vadd.xlane.f32.xlu0 %v5366
    %v5368 = vpop.xlane.xlu0 %5367
    %v5369 = vsel %vm254, %v5262, 0.0
    %5370 = vadd.xlane.f32.xlu0 %v5369
    %v5371 = vpop.xlane.xlu0 %5370
    %v5372 = vsel %vm254, %v5264, 0.0
    %5373 = vadd.xlane.f32.xlu0 %v5372
    %v5374 = vpop.xlane.xlu0 %5373
    %v5375 = vsel %vm254, %v5266, 0.0
    %5376 = vadd.xlane.f32.xlu0 %v5375
    %v5377 = vpop.xlane.xlu0 %5376
    %v5378 = vsel %vm254, %v5268, 0.0
    %5379 = vadd.xlane.f32.xlu0 %v5378
    %v5380 = vpop.xlane.xlu0 %5379
    %v5381 = vsel %vm254, %v5270, 0.0
    %5382 = vadd.xlane.f32.xlu0 %v5381
    %v5383 = vpop.xlane.xlu0 %5382
    %v5384 = vsel %vm254, %v5272, 0.0
    %5385 = vadd.xlane.f32.xlu0 %v5384
    %v5386 = vpop.xlane.xlu0 %5385
    %v5387 = vsel %vm254, %v5274, 0.0
    %5388 = vadd.xlane.f32.xlu0 %v5387
    %v5389 = vpop.xlane.xlu0 %5388
    %v5390 = vsel %vm254, %v5276, 0.0
    %5391 = vadd.xlane.f32.xlu0 %v5390
    %v5392 = vpop.xlane.xlu0 %5391
    %v5393 = vsel %vm254, %v5278, 0.0
    %5394 = vadd.xlane.f32.xlu0 %v5393
    %v5395 = vpop.xlane.xlu0 %5394
    %v5396 = vsel %vm254, %v5280, 0.0
    %5397 = vadd.xlane.f32.xlu0 %v5396
    %v5398 = vpop.xlane.xlu0 %5397
    %v5399 = vsel %vm254, %v5282, 0.0
    %5400 = vadd.xlane.f32.xlu0 %v5399
    %v5401 = vpop.xlane.xlu0 %5400
    %v5402 = vsel %vm254, %v5284, 0.0
    %5403 = vadd.xlane.f32.xlu0 %v5402
    %v5404 = vpop.xlane.xlu0 %5403
    %v5405 = vsel %vm254, %v5286, 0.0
    %5406 = vadd.xlane.f32.xlu0 %v5405
    %v5407 = vpop.xlane.xlu0 %5406
    %v5408 = vsel %vm254, %v5288, 0.0
    %5409 = vadd.xlane.f32.xlu0 %v5408
    %v5410 = vpop.xlane.xlu0 %5409
    %v5411 = vsel %vm254, %v5290, 0.0
    %5412 = vadd.xlane.f32.xlu0 %v5411
    %v5413 = vpop.xlane.xlu0 %5412
    %v5414 = vsel %vm254, %v5292, 0.0
    %5415 = vadd.xlane.f32.xlu0 %v5414
    %v5416 = vpop.xlane.xlu0 %5415
    %v5417 = vsel %vm254, %v5294, 0.0
    %5418 = vadd.xlane.f32.xlu0 %v5417
    %v5419 = vpop.xlane.xlu0 %5418
    %v5420 = vsel %vm254, %v5296, 0.0
    %5421 = vadd.xlane.f32.xlu0 %v5420
    %v5422 = vpop.xlane.xlu0 %5421
    %v5423 = vsel %vm254, %v5298, 0.0
    %5424 = vadd.xlane.f32.xlu0 %v5423
    %v5425 = vpop.xlane.xlu0 %5424
    %v5426 = vsel %vm254, %v5300, 0.0
    %5427 = vadd.xlane.f32.xlu0 %v5426
    %v5428 = vpop.xlane.xlu0 %5427
    %v5429 = vadd.f32 %v5335, %v636
    %v5430 = vadd.f32 %v5338, %v642
    %v5431 = vadd.f32 %v5341, %v649
    %v5432 = vadd.f32 %v5344, %v655
    %v5433 = vadd.f32 %v5347, %v662
    %v5434 = vadd.f32 %v5350, %v668
    %v5435 = vadd.f32 %v5353, %v675
    %v5436 = vadd.f32 %v5356, %v681
    %v5437 = vadd.f32 %v5359, %v688
    %v5438 = vadd.f32 %v5362, %v694
    %v5439 = vadd.f32 %v5365, %v701
    %v5440 = vadd.f32 %v5368, %v707
    %v5441 = vadd.f32 %v5371, %v714
    %v5442 = vadd.f32 %v5374, %v720
    %v5443 = vadd.f32 %v5377, %v727
    %v5444 = vadd.f32 %v5380, %v733
    %v5445 = vadd.f32 %v5383, %v740
    %v5446 = vadd.f32 %v5386, %v746
    %v5447 = vadd.f32 %v5389, %v753
    %v5448 = vadd.f32 %v5392, %v759
    %v5449 = vadd.f32 %v5395, %v766
    %v5450 = vadd.f32 %v5398, %v772
    %v5451 = vadd.f32 %v5401, %v779
    %v5452 = vadd.f32 %v5404, %v785
    %v5453 = vadd.f32 %v5407, %v792
    %v5454 = vadd.f32 %v5410, %v798
    %v5455 = vadd.f32 %v5413, %v805
    %v5456 = vadd.f32 %v5416, %v811
    %v5457 = vadd.f32 %v5419, %v818
    %v5458 = vadd.f32 %v5422, %v824
    %v5459 = vadd.f32 %v5425, %v831
    %v5460 = vadd.f32 %v5428, %v837
    %5493 = vset.pattern.permute.xlu0 0
    %5494 = vperm.xlu0 %5493, %v5429
    %v5495 = vpop.permute.xlu0 %5494
    %5496 = vset.pattern.permute.xlu0 0
    %5497 = vperm.xlu0 %5496, %v5430
    %v5498 = vpop.permute.xlu0 %5497
    %5499 = vset.pattern.permute.xlu0 0
    %5500 = vperm.xlu0 %5499, %v5431
    %v5501 = vpop.permute.xlu0 %5500
    %5502 = vset.pattern.permute.xlu0 0
    %5503 = vperm.xlu0 %5502, %v5432
    %v5504 = vpop.permute.xlu0 %5503
    %5505 = vset.pattern.permute.xlu0 0
    %5506 = vperm.xlu0 %5505, %v5433
    %v5507 = vpop.permute.xlu0 %5506
    %5508 = vset.pattern.permute.xlu0 0
    %5509 = vperm.xlu0 %5508, %v5434
    %v5510 = vpop.permute.xlu0 %5509
    %5511 = vset.pattern.permute.xlu0 0
    %5512 = vperm.xlu0 %5511, %v5435
    %v5513 = vpop.permute.xlu0 %5512
    %5514 = vset.pattern.permute.xlu0 0
    %5515 = vperm.xlu0 %5514, %v5436
    %v5516 = vpop.permute.xlu0 %5515
    %5517 = vset.pattern.permute.xlu0 0
    %5518 = vperm.xlu0 %5517, %v5437
    %v5519 = vpop.permute.xlu0 %5518
    %5520 = vset.pattern.permute.xlu0 0
    %5521 = vperm.xlu0 %5520, %v5438
    %v5522 = vpop.permute.xlu0 %5521
    %5523 = vset.pattern.permute.xlu0 0
    %5524 = vperm.xlu0 %5523, %v5439
    %v5525 = vpop.permute.xlu0 %5524
    %5526 = vset.pattern.permute.xlu0 0
    %5527 = vperm.xlu0 %5526, %v5440
    %v5528 = vpop.permute.xlu0 %5527
    %5529 = vset.pattern.permute.xlu0 0
    %5530 = vperm.xlu0 %5529, %v5441
    %v5531 = vpop.permute.xlu0 %5530
    %5532 = vset.pattern.permute.xlu0 0
    %5533 = vperm.xlu0 %5532, %v5442
    %v5534 = vpop.permute.xlu0 %5533
    %5535 = vset.pattern.permute.xlu0 0
    %5536 = vperm.xlu0 %5535, %v5443
    %v5537 = vpop.permute.xlu0 %5536
    %5538 = vset.pattern.permute.xlu0 0
    %5539 = vperm.xlu0 %5538, %v5444
    %v5540 = vpop.permute.xlu0 %5539
    %5541 = vset.pattern.permute.xlu0 0
    %5542 = vperm.xlu0 %5541, %v5445
    %v5543 = vpop.permute.xlu0 %5542
    %5544 = vset.pattern.permute.xlu0 0
    %5545 = vperm.xlu0 %5544, %v5446
    %v5546 = vpop.permute.xlu0 %5545
    %5547 = vset.pattern.permute.xlu0 0
    %5548 = vperm.xlu0 %5547, %v5447
    %v5549 = vpop.permute.xlu0 %5548
    %5550 = vset.pattern.permute.xlu0 0
    %5551 = vperm.xlu0 %5550, %v5448
    %v5552 = vpop.permute.xlu0 %5551
    %5553 = vset.pattern.permute.xlu0 0
    %5554 = vperm.xlu0 %5553, %v5449
    %v5555 = vpop.permute.xlu0 %5554
    %5556 = vset.pattern.permute.xlu0 0
    %5557 = vperm.xlu0 %5556, %v5450
    %v5558 = vpop.permute.xlu0 %5557
    %5559 = vset.pattern.permute.xlu0 0
    %5560 = vperm.xlu0 %5559, %v5451
    %v5561 = vpop.permute.xlu0 %5560
    %5562 = vset.pattern.permute.xlu0 0
    %5563 = vperm.xlu0 %5562, %v5452
    %v5564 = vpop.permute.xlu0 %5563
    %5565 = vset.pattern.permute.xlu0 0
    %5566 = vperm.xlu0 %5565, %v5453
    %v5567 = vpop.permute.xlu0 %5566
    %5568 = vset.pattern.permute.xlu0 0
    %5569 = vperm.xlu0 %5568, %v5454
    %v5570 = vpop.permute.xlu0 %5569
    %5571 = vset.pattern.permute.xlu0 0
    %5572 = vperm.xlu0 %5571, %v5455
    %v5573 = vpop.permute.xlu0 %5572
    %5574 = vset.pattern.permute.xlu0 0
    %5575 = vperm.xlu0 %5574, %v5456
    %v5576 = vpop.permute.xlu0 %5575
    %5577 = vset.pattern.permute.xlu0 0
    %5578 = vperm.xlu0 %5577, %v5457
    %v5579 = vpop.permute.xlu0 %5578
    %5580 = vset.pattern.permute.xlu0 0
    %5581 = vperm.xlu0 %5580, %v5458
    %v5582 = vpop.permute.xlu0 %5581
    %5583 = vset.pattern.permute.xlu0 0
    %5584 = vperm.xlu0 %5583, %v5459
    %v5585 = vpop.permute.xlu0 %5584
    %5586 = vset.pattern.permute.xlu0 0
    %5587 = vperm.xlu0 %5586, %v5460
    %v5588 = vpop.permute.xlu0 %5587
    %v5589 = vperm.slane %v5495, %v1031
    %v5590 = vperm.slane %v5498, %v1033
    %v5591 = vsel %vm1035, %v5590, %v5589
    %v5592 = vperm.slane %v5501, %v1031
    %v5593 = vperm.slane %v5504, %v1033
    %v5594 = vsel %vm1035, %v5593, %v5592
    %v5595 = vperm.slane %v5507, %v1031
    %v5596 = vperm.slane %v5510, %v1033
    %v5597 = vsel %vm1035, %v5596, %v5595
    %v5598 = vperm.slane %v5513, %v1031
    %v5599 = vperm.slane %v5516, %v1033
    %v5600 = vsel %vm1035, %v5599, %v5598
    %v5601 = vperm.slane %v5519, %v1031
    %v5602 = vperm.slane %v5522, %v1033
    %v5603 = vsel %vm1035, %v5602, %v5601
    %v5604 = vperm.slane %v5525, %v1031
    %v5605 = vperm.slane %v5528, %v1033
    %v5606 = vsel %vm1035, %v5605, %v5604
    %v5607 = vperm.slane %v5531, %v1031
    %v5608 = vperm.slane %v5534, %v1033
    %v5609 = vsel %vm1035, %v5608, %v5607
    %v5610 = vperm.slane %v5537, %v1031
    %v5611 = vperm.slane %v5540, %v1033
    %v5612 = vsel %vm1035, %v5611, %v5610
    %v5613 = vperm.slane %v5543, %v1031
    %v5614 = vperm.slane %v5546, %v1033
    %v5615 = vsel %vm1035, %v5614, %v5613
    %v5616 = vperm.slane %v5549, %v1031
    %v5617 = vperm.slane %v5552, %v1033
    %v5618 = vsel %vm1035, %v5617, %v5616
    %v5619 = vperm.slane %v5555, %v1031
    %v5620 = vperm.slane %v5558, %v1033
    %v5621 = vsel %vm1035, %v5620, %v5619
    %v5622 = vperm.slane %v5561, %v1031
    %v5623 = vperm.slane %v5564, %v1033
    %v5624 = vsel %vm1035, %v5623, %v5622
    %v5625 = vperm.slane %v5567, %v1031
    %v5626 = vperm.slane %v5570, %v1033
    %v5627 = vsel %vm1035, %v5626, %v5625
    %v5628 = vperm.slane %v5573, %v1031
    %v5629 = vperm.slane %v5576, %v1033
    %v5630 = vsel %vm1035, %v5629, %v5628
    %v5631 = vperm.slane %v5579, %v1031
    %v5632 = vperm.slane %v5582, %v1033
    %v5633 = vsel %vm1035, %v5632, %v5631
    %v5634 = vperm.slane %v5585, %v1031
    %v5635 = vperm.slane %v5588, %v1033
    %v5636 = vsel %vm1035, %v5635, %v5634
    %v5637 = vsel %vm1082, %v5594, %v5591
    %v5638 = vsel %vm1084, %v5597, %v5637
    %v5639 = vsel %vm1086, %v5600, %v5638
    %v5640 = vsel %vm1088, %v5603, %v5639
    %v5641 = vsel %vm1090, %v5606, %v5640
    %v5642 = vsel %vm1092, %v5609, %v5641
    %v5643 = vsel %vm1094, %v5612, %v5642
    %v5644 = vsel %vm1082, %v5618, %v5615
    %v5645 = vsel %vm1084, %v5621, %v5644
    %v5646 = vsel %vm1086, %v5624, %v5645
    %v5647 = vsel %vm1088, %v5627, %v5646
    %v5648 = vsel %vm1090, %v5630, %v5647
    %v5649 = vsel %vm1092, %v5633, %v5648
    %v5650 = vsel %vm1094, %v5636, %v5649
    %v5653 = vsel %vm1105, %v5643, -inf
    %5654 = vmax.xlane.f32.xlu0 %v5653
    %v5655 = vpop.xlane.xlu0 %5654
    %v5656 = vsel %vm1105, %v5650, -inf
    %5657 = vmax.xlane.f32.xlu0 %v5656
    %v5658 = vpop.xlane.xlu0 %5657
    %v5661 = vperm.slane %v5655, 0
    %v5662 = vperm.slane %v5655, 1
    %v5663 = vperm.slane %v5655, 2
    %v5664 = vperm.slane %v5655, 3
    %v5665 = vperm.slane %v5655, 4
    %v5666 = vperm.slane %v5655, 5
    %v5667 = vperm.slane %v5655, 6
    %v5668 = vperm.slane %v5655, 7
    %v5669 = vperm.slane %v5658, 0
    %v5670 = vperm.slane %v5658, 1
    %v5671 = vperm.slane %v5658, 2
    %v5672 = vperm.slane %v5658, 3
    %v5673 = vperm.slane %v5658, 4
    %v5674 = vperm.slane %v5658, 5
    %v5675 = vperm.slane %v5658, 6
    %v5676 = vperm.slane %v5658, 7
    %v5693 = vsub.f32 %v5429, %v5661
    %v5694 = vsub.f32 %v5430, %v5661
    %v5695 = vsub.f32 %v5431, %v5662
    %v5696 = vsub.f32 %v5432, %v5662
    %v5697 = vsub.f32 %v5433, %v5663
    %v5698 = vsub.f32 %v5434, %v5663
    %v5699 = vsub.f32 %v5435, %v5664
    %v5700 = vsub.f32 %v5436, %v5664
    %v5701 = vsub.f32 %v5437, %v5665
    %v5702 = vsub.f32 %v5438, %v5665
    %v5703 = vsub.f32 %v5439, %v5666
    %v5704 = vsub.f32 %v5440, %v5666
    %v5705 = vsub.f32 %v5441, %v5667
    %v5706 = vsub.f32 %v5442, %v5667
    %v5707 = vsub.f32 %v5443, %v5668
    %v5708 = vsub.f32 %v5444, %v5668
    %v5709 = vsub.f32 %v5445, %v5669
    %v5710 = vsub.f32 %v5446, %v5669
    %v5711 = vsub.f32 %v5447, %v5670
    %v5712 = vsub.f32 %v5448, %v5670
    %v5713 = vsub.f32 %v5449, %v5671
    %v5714 = vsub.f32 %v5450, %v5671
    %v5715 = vsub.f32 %v5451, %v5672
    %v5716 = vsub.f32 %v5452, %v5672
    %v5717 = vsub.f32 %v5453, %v5673
    %v5718 = vsub.f32 %v5454, %v5673
    %v5719 = vsub.f32 %v5455, %v5674
    %v5720 = vsub.f32 %v5456, %v5674
    %v5721 = vsub.f32 %v5457, %v5675
    %v5722 = vsub.f32 %v5458, %v5675
    %v5723 = vsub.f32 %v5459, %v5676
    %v5724 = vsub.f32 %v5460, %v5676
    %v5725 = vmul.f32 %v5693, 1.442695
    %v5726 = vpow.pop %v5725
    %v5727 = vmul.f32 %v5694, 1.442695
    %v5728 = vpow.pop %v5727
    %v5729 = vmul.f32 %v5695, 1.442695
    %v5730 = vpow.pop %v5729
    %v5731 = vmul.f32 %v5696, 1.442695
    %v5732 = vpow.pop %v5731
    %v5733 = vmul.f32 %v5697, 1.442695
    %v5734 = vpow.pop %v5733
    %v5735 = vmul.f32 %v5698, 1.442695
    %v5736 = vpow.pop %v5735
    %v5737 = vmul.f32 %v5699, 1.442695
    %v5738 = vpow.pop %v5737
    %v5739 = vmul.f32 %v5700, 1.442695
    %v5740 = vpow.pop %v5739
    %v5741 = vmul.f32 %v5701, 1.442695
    %v5742 = vpow.pop %v5741
    %v5743 = vmul.f32 %v5702, 1.442695
    %v5744 = vpow.pop %v5743
    %v5745 = vmul.f32 %v5703, 1.442695
    %v5746 = vpow.pop %v5745
    %v5747 = vmul.f32 %v5704, 1.442695
    %v5748 = vpow.pop %v5747
    %v5749 = vmul.f32 %v5705, 1.442695
    %v5750 = vpow.pop %v5749
    %v5751 = vmul.f32 %v5706, 1.442695
    %v5752 = vpow.pop %v5751
    %v5753 = vmul.f32 %v5707, 1.442695
    %v5754 = vpow.pop %v5753
    %v5755 = vmul.f32 %v5708, 1.442695
    %v5756 = vpow.pop %v5755
    %v5757 = vmul.f32 %v5709, 1.442695
    %v5758 = vpow.pop %v5757
    %v5759 = vmul.f32 %v5710, 1.442695
    %v5760 = vpow.pop %v5759
    %v5761 = vmul.f32 %v5711, 1.442695
    %v5762 = vpow.pop %v5761
    %v5763 = vmul.f32 %v5712, 1.442695
    %v5764 = vpow.pop %v5763
    %v5765 = vmul.f32 %v5713, 1.442695
    %v5766 = vpow.pop %v5765
    %v5767 = vmul.f32 %v5714, 1.442695
    %v5768 = vpow.pop %v5767
    %v5769 = vmul.f32 %v5715, 1.442695
    %v5770 = vpow.pop %v5769
    %v5771 = vmul.f32 %v5716, 1.442695
    %v5772 = vpow.pop %v5771
    %v5773 = vmul.f32 %v5717, 1.442695
    %v5774 = vpow.pop %v5773
    %v5775 = vmul.f32 %v5718, 1.442695
    %v5776 = vpow.pop %v5775
    %v5777 = vmul.f32 %v5719, 1.442695
    %v5778 = vpow.pop %v5777
    %v5779 = vmul.f32 %v5720, 1.442695
    %v5780 = vpow.pop %v5779
    %v5781 = vmul.f32 %v5721, 1.442695
    %v5782 = vpow.pop %v5781
    %v5783 = vmul.f32 %v5722, 1.442695
    %v5784 = vpow.pop %v5783
    %v5785 = vmul.f32 %v5723, 1.442695
    %v5786 = vpow.pop %v5785
    %v5787 = vmul.f32 %v5724, 1.442695
    %v5788 = vpow.pop %v5787
    %v5789 = vmul.f32 %v5726, %v1250
    %v5790 = vmul.f32 %v5728, %v1256
    %v5791 = vmul.f32 %v5730, %v1263
    %v5792 = vmul.f32 %v5732, %v1269
    %v5793 = vmul.f32 %v5734, %v1276
    %v5794 = vmul.f32 %v5736, %v1282
    %v5795 = vmul.f32 %v5738, %v1289
    %v5796 = vmul.f32 %v5740, %v1295
    %v5797 = vmul.f32 %v5742, %v1302
    %v5798 = vmul.f32 %v5744, %v1308
    %v5799 = vmul.f32 %v5746, %v1315
    %v5800 = vmul.f32 %v5748, %v1321
    %v5801 = vmul.f32 %v5750, %v1328
    %v5802 = vmul.f32 %v5752, %v1334
    %v5803 = vmul.f32 %v5754, %v1341
    %v5804 = vmul.f32 %v5756, %v1347
    %v5805 = vmul.f32 %v5758, %v1354
    %v5806 = vmul.f32 %v5760, %v1360
    %v5807 = vmul.f32 %v5762, %v1367
    %v5808 = vmul.f32 %v5764, %v1373
    %v5809 = vmul.f32 %v5766, %v1380
    %v5810 = vmul.f32 %v5768, %v1386
    %v5811 = vmul.f32 %v5770, %v1393
    %v5812 = vmul.f32 %v5772, %v1399
    %v5813 = vmul.f32 %v5774, %v1406
    %v5814 = vmul.f32 %v5776, %v1412
    %v5815 = vmul.f32 %v5778, %v1419
    %v5816 = vmul.f32 %v5780, %v1425
    %v5817 = vmul.f32 %v5782, %v1432
    %v5818 = vmul.f32 %v5784, %v1438
    %v5819 = vmul.f32 %v5786, %v1445
    %v5820 = vmul.f32 %v5788, %v1451
    %5853 = vset.pattern.permute.xlu0 0
    %5854 = vperm.xlu0 %5853, %v5789
    %v5855 = vpop.permute.xlu0 %5854
    %5856 = vset.pattern.permute.xlu0 0
    %5857 = vperm.xlu0 %5856, %v5790
    %v5858 = vpop.permute.xlu0 %5857
    %5859 = vset.pattern.permute.xlu0 0
    %5860 = vperm.xlu0 %5859, %v5791
    %v5861 = vpop.permute.xlu0 %5860
    %5862 = vset.pattern.permute.xlu0 0
    %5863 = vperm.xlu0 %5862, %v5792
    %v5864 = vpop.permute.xlu0 %5863
    %5865 = vset.pattern.permute.xlu0 0
    %5866 = vperm.xlu0 %5865, %v5793
    %v5867 = vpop.permute.xlu0 %5866
    %5868 = vset.pattern.permute.xlu0 0
    %5869 = vperm.xlu0 %5868, %v5794
    %v5870 = vpop.permute.xlu0 %5869
    %5871 = vset.pattern.permute.xlu0 0
    %5872 = vperm.xlu0 %5871, %v5795
    %v5873 = vpop.permute.xlu0 %5872
    %5874 = vset.pattern.permute.xlu0 0
    %5875 = vperm.xlu0 %5874, %v5796
    %v5876 = vpop.permute.xlu0 %5875
    %5877 = vset.pattern.permute.xlu0 0
    %5878 = vperm.xlu0 %5877, %v5797
    %v5879 = vpop.permute.xlu0 %5878
    %5880 = vset.pattern.permute.xlu0 0
    %5881 = vperm.xlu0 %5880, %v5798
    %v5882 = vpop.permute.xlu0 %5881
    %5883 = vset.pattern.permute.xlu0 0
    %5884 = vperm.xlu0 %5883, %v5799
    %v5885 = vpop.permute.xlu0 %5884
    %5886 = vset.pattern.permute.xlu0 0
    %5887 = vperm.xlu0 %5886, %v5800
    %v5888 = vpop.permute.xlu0 %5887
    %5889 = vset.pattern.permute.xlu0 0
    %5890 = vperm.xlu0 %5889, %v5801
    %v5891 = vpop.permute.xlu0 %5890
    %5892 = vset.pattern.permute.xlu0 0
    %5893 = vperm.xlu0 %5892, %v5802
    %v5894 = vpop.permute.xlu0 %5893
    %5895 = vset.pattern.permute.xlu0 0
    %5896 = vperm.xlu0 %5895, %v5803
    %v5897 = vpop.permute.xlu0 %5896
    %5898 = vset.pattern.permute.xlu0 0
    %5899 = vperm.xlu0 %5898, %v5804
    %v5900 = vpop.permute.xlu0 %5899
    %5901 = vset.pattern.permute.xlu0 0
    %5902 = vperm.xlu0 %5901, %v5805
    %v5903 = vpop.permute.xlu0 %5902
    %5904 = vset.pattern.permute.xlu0 0
    %5905 = vperm.xlu0 %5904, %v5806
    %v5906 = vpop.permute.xlu0 %5905
    %5907 = vset.pattern.permute.xlu0 0
    %5908 = vperm.xlu0 %5907, %v5807
    %v5909 = vpop.permute.xlu0 %5908
    %5910 = vset.pattern.permute.xlu0 0
    %5911 = vperm.xlu0 %5910, %v5808
    %v5912 = vpop.permute.xlu0 %5911
    %5913 = vset.pattern.permute.xlu0 0
    %5914 = vperm.xlu0 %5913, %v5809
    %v5915 = vpop.permute.xlu0 %5914
    %5916 = vset.pattern.permute.xlu0 0
    %5917 = vperm.xlu0 %5916, %v5810
    %v5918 = vpop.permute.xlu0 %5917
    %5919 = vset.pattern.permute.xlu0 0
    %5920 = vperm.xlu0 %5919, %v5811
    %v5921 = vpop.permute.xlu0 %5920
    %5922 = vset.pattern.permute.xlu0 0
    %5923 = vperm.xlu0 %5922, %v5812
    %v5924 = vpop.permute.xlu0 %5923
    %5925 = vset.pattern.permute.xlu0 0
    %5926 = vperm.xlu0 %5925, %v5813
    %v5927 = vpop.permute.xlu0 %5926
    %5928 = vset.pattern.permute.xlu0 0
    %5929 = vperm.xlu0 %5928, %v5814
    %v5930 = vpop.permute.xlu0 %5929
    %5931 = vset.pattern.permute.xlu0 0
    %5932 = vperm.xlu0 %5931, %v5815
    %v5933 = vpop.permute.xlu0 %5932
    %5934 = vset.pattern.permute.xlu0 0
    %5935 = vperm.xlu0 %5934, %v5816
    %v5936 = vpop.permute.xlu0 %5935
    %5937 = vset.pattern.permute.xlu0 0
    %5938 = vperm.xlu0 %5937, %v5817
    %v5939 = vpop.permute.xlu0 %5938
    %5940 = vset.pattern.permute.xlu0 0
    %5941 = vperm.xlu0 %5940, %v5818
    %v5942 = vpop.permute.xlu0 %5941
    %5943 = vset.pattern.permute.xlu0 0
    %5944 = vperm.xlu0 %5943, %v5819
    %v5945 = vpop.permute.xlu0 %5944
    %5946 = vset.pattern.permute.xlu0 0
    %5947 = vperm.xlu0 %5946, %v5820
    %v5948 = vpop.permute.xlu0 %5947
    %v5949 = vperm.slane %v5855, %v1031
    %v5950 = vperm.slane %v5858, %v1033
    %v5951 = vsel %vm1035, %v5950, %v5949
    %v5952 = vperm.slane %v5861, %v1031
    %v5953 = vperm.slane %v5864, %v1033
    %v5954 = vsel %vm1035, %v5953, %v5952
    %v5955 = vperm.slane %v5867, %v1031
    %v5956 = vperm.slane %v5870, %v1033
    %v5957 = vsel %vm1035, %v5956, %v5955
    %v5958 = vperm.slane %v5873, %v1031
    %v5959 = vperm.slane %v5876, %v1033
    %v5960 = vsel %vm1035, %v5959, %v5958
    %v5961 = vperm.slane %v5879, %v1031
    %v5962 = vperm.slane %v5882, %v1033
    %v5963 = vsel %vm1035, %v5962, %v5961
    %v5964 = vperm.slane %v5885, %v1031
    %v5965 = vperm.slane %v5888, %v1033
    %v5966 = vsel %vm1035, %v5965, %v5964
    %v5967 = vperm.slane %v5891, %v1031
    %v5968 = vperm.slane %v5894, %v1033
    %v5969 = vsel %vm1035, %v5968, %v5967
    %v5970 = vperm.slane %v5897, %v1031
    %v5971 = vperm.slane %v5900, %v1033
    %v5972 = vsel %vm1035, %v5971, %v5970
    %v5973 = vperm.slane %v5903, %v1031
    %v5974 = vperm.slane %v5906, %v1033
    %v5975 = vsel %vm1035, %v5974, %v5973
    %v5976 = vperm.slane %v5909, %v1031
    %v5977 = vperm.slane %v5912, %v1033
    %v5978 = vsel %vm1035, %v5977, %v5976
    %v5979 = vperm.slane %v5915, %v1031
    %v5980 = vperm.slane %v5918, %v1033
    %v5981 = vsel %vm1035, %v5980, %v5979
    %v5982 = vperm.slane %v5921, %v1031
    %v5983 = vperm.slane %v5924, %v1033
    %v5984 = vsel %vm1035, %v5983, %v5982
    %v5985 = vperm.slane %v5927, %v1031
    %v5986 = vperm.slane %v5930, %v1033
    %v5987 = vsel %vm1035, %v5986, %v5985
    %v5988 = vperm.slane %v5933, %v1031
    %v5989 = vperm.slane %v5936, %v1033
    %v5990 = vsel %vm1035, %v5989, %v5988
    %v5991 = vperm.slane %v5939, %v1031
    %v5992 = vperm.slane %v5942, %v1033
    %v5993 = vsel %vm1035, %v5992, %v5991
    %v5994 = vperm.slane %v5945, %v1031
    %v5995 = vperm.slane %v5948, %v1033
    %v5996 = vsel %vm1035, %v5995, %v5994
    %v5997 = vsel %vm1082, %v5954, %v5951
    %v5998 = vsel %vm1084, %v5957, %v5997
    %v5999 = vsel %vm1086, %v5960, %v5998
    %v6000 = vsel %vm1088, %v5963, %v5999
    %v6001 = vsel %vm1090, %v5966, %v6000
    %v6002 = vsel %vm1092, %v5969, %v6001
    %v6003 = vsel %vm1094, %v5972, %v6002
    %v6004 = vsel %vm1082, %v5978, %v5975
    %v6005 = vsel %vm1084, %v5981, %v6004
    %v6006 = vsel %vm1086, %v5984, %v6005
    %v6007 = vsel %vm1088, %v5987, %v6006
    %v6008 = vsel %vm1090, %v5990, %v6007
    %v6009 = vsel %vm1092, %v5993, %v6008
    %v6010 = vsel %vm1094, %v5996, %v6009
    %v6013 = vsel %vm1105, %v6003, 0.0
    %6014 = vadd.xlane.f32.xlu0 %v6013
    %v6015 = vpop.xlane.xlu0 %6014
    %v6016 = vsel %vm1105, %v6010, 0.0
    %6017 = vadd.xlane.f32.xlu0 %v6016
    %v6018 = vpop.xlane.xlu0 %6017
    %v6019 = vmul.f32 %v6015, 3.0
    %v6020 = vmul.f32 %v6018, 3.0
    %v6021 = vmax.f32 %v6019, 1e-30
    %v6022 = vmax.f32 %v6020, 1e-30
    %v6023 = vrcp.pop %v6021
    %v6024 = vrcp.pop %v6022
    %v6027 = vperm.slane %v6023, 0
    %v6028 = vperm.slane %v6023, 1
    %v6029 = vperm.slane %v6023, 2
    %v6030 = vperm.slane %v6023, 3
    %v6031 = vperm.slane %v6023, 4
    %v6032 = vperm.slane %v6023, 5
    %v6033 = vperm.slane %v6023, 6
    %v6034 = vperm.slane %v6023, 7
    %v6035 = vperm.slane %v6024, 0
    %v6036 = vperm.slane %v6024, 1
    %v6037 = vperm.slane %v6024, 2
    %v6038 = vperm.slane %v6024, 3
    %v6039 = vperm.slane %v6024, 4
    %v6040 = vperm.slane %v6024, 5
    %v6041 = vperm.slane %v6024, 6
    %v6042 = vperm.slane %v6024, 7
    %v6059 = vmul.f32 %v5789, %v6027
    %v6060 = vmul.f32 %v5790, %v6027
    %v6061 = vmul.f32 %v5791, %v6028
    %v6062 = vmul.f32 %v5792, %v6028
    %v6063 = vmul.f32 %v5793, %v6029
    %v6064 = vmul.f32 %v5794, %v6029
    %v6065 = vmul.f32 %v5795, %v6030
    %v6066 = vmul.f32 %v5796, %v6030
    %v6067 = vmul.f32 %v5797, %v6031
    %v6068 = vmul.f32 %v5798, %v6031
    %v6069 = vmul.f32 %v5799, %v6032
    %v6070 = vmul.f32 %v5800, %v6032
    %v6071 = vmul.f32 %v5801, %v6033
    %v6072 = vmul.f32 %v5802, %v6033
    %v6073 = vmul.f32 %v5803, %v6034
    %v6074 = vmul.f32 %v5804, %v6034
    %v6075 = vmul.f32 %v5805, %v6035
    %v6076 = vmul.f32 %v5806, %v6035
    %v6077 = vmul.f32 %v5807, %v6036
    %v6078 = vmul.f32 %v5808, %v6036
    %v6079 = vmul.f32 %v5809, %v6037
    %v6080 = vmul.f32 %v5810, %v6037
    %v6081 = vmul.f32 %v5811, %v6038
    %v6082 = vmul.f32 %v5812, %v6038
    %v6083 = vmul.f32 %v5813, %v6039
    %v6084 = vmul.f32 %v5814, %v6039
    %v6085 = vmul.f32 %v5815, %v6040
    %v6086 = vmul.f32 %v5816, %v6040
    %v6087 = vmul.f32 %v5817, %v6041
    %v6088 = vmul.f32 %v5818, %v6041
    %v6089 = vmul.f32 %v5819, %v6042
    %v6090 = vmul.f32 %v5820, %v6042
    %6123 = vset.pattern.permute.xlu0 0
    %6124 = vperm.xlu0 %6123, %v6059
    %v6125 = vpop.permute.xlu0 %6124
    %6126 = vset.pattern.permute.xlu0 0
    %6127 = vperm.xlu0 %6126, %v6060
    %v6128 = vpop.permute.xlu0 %6127
    %6129 = vset.pattern.permute.xlu0 0
    %6130 = vperm.xlu0 %6129, %v6061
    %v6131 = vpop.permute.xlu0 %6130
    %6132 = vset.pattern.permute.xlu0 0
    %6133 = vperm.xlu0 %6132, %v6062
    %v6134 = vpop.permute.xlu0 %6133
    %6135 = vset.pattern.permute.xlu0 0
    %6136 = vperm.xlu0 %6135, %v6063
    %v6137 = vpop.permute.xlu0 %6136
    %6138 = vset.pattern.permute.xlu0 0
    %6139 = vperm.xlu0 %6138, %v6064
    %v6140 = vpop.permute.xlu0 %6139
    %6141 = vset.pattern.permute.xlu0 0
    %6142 = vperm.xlu0 %6141, %v6065
    %v6143 = vpop.permute.xlu0 %6142
    %6144 = vset.pattern.permute.xlu0 0
    %6145 = vperm.xlu0 %6144, %v6066
    %v6146 = vpop.permute.xlu0 %6145
    %6147 = vset.pattern.permute.xlu0 0
    %6148 = vperm.xlu0 %6147, %v6067
    %v6149 = vpop.permute.xlu0 %6148
    %6150 = vset.pattern.permute.xlu0 0
    %6151 = vperm.xlu0 %6150, %v6068
    %v6152 = vpop.permute.xlu0 %6151
    %6153 = vset.pattern.permute.xlu0 0
    %6154 = vperm.xlu0 %6153, %v6069
    %v6155 = vpop.permute.xlu0 %6154
    %6156 = vset.pattern.permute.xlu0 0
    %6157 = vperm.xlu0 %6156, %v6070
    %v6158 = vpop.permute.xlu0 %6157
    %6159 = vset.pattern.permute.xlu0 0
    %6160 = vperm.xlu0 %6159, %v6071
    %v6161 = vpop.permute.xlu0 %6160
    %6162 = vset.pattern.permute.xlu0 0
    %6163 = vperm.xlu0 %6162, %v6072
    %v6164 = vpop.permute.xlu0 %6163
    %6165 = vset.pattern.permute.xlu0 0
    %6166 = vperm.xlu0 %6165, %v6073
    %v6167 = vpop.permute.xlu0 %6166
    %6168 = vset.pattern.permute.xlu0 0
    %6169 = vperm.xlu0 %6168, %v6074
    %v6170 = vpop.permute.xlu0 %6169
    %6171 = vset.pattern.permute.xlu0 0
    %6172 = vperm.xlu0 %6171, %v6075
    %v6173 = vpop.permute.xlu0 %6172
    %6174 = vset.pattern.permute.xlu0 0
    %6175 = vperm.xlu0 %6174, %v6076
    %v6176 = vpop.permute.xlu0 %6175
    %6177 = vset.pattern.permute.xlu0 0
    %6178 = vperm.xlu0 %6177, %v6077
    %v6179 = vpop.permute.xlu0 %6178
    %6180 = vset.pattern.permute.xlu0 0
    %6181 = vperm.xlu0 %6180, %v6078
    %v6182 = vpop.permute.xlu0 %6181
    %6183 = vset.pattern.permute.xlu0 0
    %6184 = vperm.xlu0 %6183, %v6079
    %v6185 = vpop.permute.xlu0 %6184
    %6186 = vset.pattern.permute.xlu0 0
    %6187 = vperm.xlu0 %6186, %v6080
    %v6188 = vpop.permute.xlu0 %6187
    %6189 = vset.pattern.permute.xlu0 0
    %6190 = vperm.xlu0 %6189, %v6081
    %v6191 = vpop.permute.xlu0 %6190
    %6192 = vset.pattern.permute.xlu0 0
    %6193 = vperm.xlu0 %6192, %v6082
    %v6194 = vpop.permute.xlu0 %6193
    %6195 = vset.pattern.permute.xlu0 0
    %6196 = vperm.xlu0 %6195, %v6083
    %v6197 = vpop.permute.xlu0 %6196
    %6198 = vset.pattern.permute.xlu0 0
    %6199 = vperm.xlu0 %6198, %v6084
    %v6200 = vpop.permute.xlu0 %6199
    %6201 = vset.pattern.permute.xlu0 0
    %6202 = vperm.xlu0 %6201, %v6085
    %v6203 = vpop.permute.xlu0 %6202
    %6204 = vset.pattern.permute.xlu0 0
    %6205 = vperm.xlu0 %6204, %v6086
    %v6206 = vpop.permute.xlu0 %6205
    %6207 = vset.pattern.permute.xlu0 0
    %6208 = vperm.xlu0 %6207, %v6087
    %v6209 = vpop.permute.xlu0 %6208
    %6210 = vset.pattern.permute.xlu0 0
    %6211 = vperm.xlu0 %6210, %v6088
    %v6212 = vpop.permute.xlu0 %6211
    %6213 = vset.pattern.permute.xlu0 0
    %6214 = vperm.xlu0 %6213, %v6089
    %v6215 = vpop.permute.xlu0 %6214
    %6216 = vset.pattern.permute.xlu0 0
    %6217 = vperm.xlu0 %6216, %v6090
    %v6218 = vpop.permute.xlu0 %6217
    %v6219 = vperm.slane %v6125, %v1031
    %v6220 = vperm.slane %v6128, %v1033
    %v6221 = vsel %vm1035, %v6220, %v6219
    %v6222 = vperm.slane %v6131, %v1031
    %v6223 = vperm.slane %v6134, %v1033
    %v6224 = vsel %vm1035, %v6223, %v6222
    %v6225 = vperm.slane %v6137, %v1031
    %v6226 = vperm.slane %v6140, %v1033
    %v6227 = vsel %vm1035, %v6226, %v6225
    %v6228 = vperm.slane %v6143, %v1031
    %v6229 = vperm.slane %v6146, %v1033
    %v6230 = vsel %vm1035, %v6229, %v6228
    %v6231 = vperm.slane %v6149, %v1031
    %v6232 = vperm.slane %v6152, %v1033
    %v6233 = vsel %vm1035, %v6232, %v6231
    %v6234 = vperm.slane %v6155, %v1031
    %v6235 = vperm.slane %v6158, %v1033
    %v6236 = vsel %vm1035, %v6235, %v6234
    %v6237 = vperm.slane %v6161, %v1031
    %v6238 = vperm.slane %v6164, %v1033
    %v6239 = vsel %vm1035, %v6238, %v6237
    %v6240 = vperm.slane %v6167, %v1031
    %v6241 = vperm.slane %v6170, %v1033
    %v6242 = vsel %vm1035, %v6241, %v6240
    %v6243 = vperm.slane %v6173, %v1031
    %v6244 = vperm.slane %v6176, %v1033
    %v6245 = vsel %vm1035, %v6244, %v6243
    %v6246 = vperm.slane %v6179, %v1031
    %v6247 = vperm.slane %v6182, %v1033
    %v6248 = vsel %vm1035, %v6247, %v6246
    %v6249 = vperm.slane %v6185, %v1031
    %v6250 = vperm.slane %v6188, %v1033
    %v6251 = vsel %vm1035, %v6250, %v6249
    %v6252 = vperm.slane %v6191, %v1031
    %v6253 = vperm.slane %v6194, %v1033
    %v6254 = vsel %vm1035, %v6253, %v6252
    %v6255 = vperm.slane %v6197, %v1031
    %v6256 = vperm.slane %v6200, %v1033
    %v6257 = vsel %vm1035, %v6256, %v6255
    %v6258 = vperm.slane %v6203, %v1031
    %v6259 = vperm.slane %v6206, %v1033
    %v6260 = vsel %vm1035, %v6259, %v6258
    %v6261 = vperm.slane %v6209, %v1031
    %v6262 = vperm.slane %v6212, %v1033
    %v6263 = vsel %vm1035, %v6262, %v6261
    %v6264 = vperm.slane %v6215, %v1031
    %v6265 = vperm.slane %v6218, %v1033
    %v6266 = vsel %vm1035, %v6265, %v6264
    %v6267 = vsel %vm1082, %v6224, %v6221
    %v6268 = vsel %vm1084, %v6227, %v6267
    %v6269 = vsel %vm1086, %v6230, %v6268
    %v6270 = vsel %vm1088, %v6233, %v6269
    %v6271 = vsel %vm1090, %v6236, %v6270
    %v6272 = vsel %vm1092, %v6239, %v6271
    %v6273 = vsel %vm1094, %v6242, %v6272
    %v6274 = vsel %vm1082, %v6248, %v6245
    %v6275 = vsel %vm1084, %v6251, %v6274
    %v6276 = vsel %vm1086, %v6254, %v6275
    %v6277 = vsel %vm1088, %v6257, %v6276
    %v6278 = vsel %vm1090, %v6260, %v6277
    %v6279 = vsel %vm1092, %v6263, %v6278
    %v6280 = vsel %vm1094, %v6266, %v6279
    %6283 = vrot.lane.b32.xlu0 %v4239, 96
    %v6284 = vpop.permute.xlu0 %6283
    %6285 = vrot.lane.b32.xlu0 %v4242, 96
    %v6286 = vpop.permute.xlu0 %6285
    %v6289 = vsel %vm1105, %v6273, 0
    %v6291 = vsel %vm1105, %v6280, 0
    %6293 = vmatpush.msra.mxu0 0.0
    %6294 = vmatpush.msra.mxu0 0.0
    %6295 = vmatpush.msra.mxu0 0.0
    %6296 = vmatpush.msra.mxu0 0.0
    %6297 = vmatpush.msra.mxu0 0.0
    %6298 = vmatpush.msra.mxu0 0.0
    %6299 = vmatpush.msra.mxu0 0.0
    %6300 = vmatpush.msra.mxu0 0.0
    %6301 = vmatpush.msra.mxu0 0.0
    %6302 = vmatpush.msra.mxu0 0.0
    %6303 = vmatpush.msra.mxu0 0.0
    %6304 = vmatpush.msra.mxu0 0.0
    %6305 = vmatpush.msra.mxu0 0.0
    %6306 = vmatpush.msra.mxu0 0.0
    %6307 = vmatpush.msra.mxu0 %v6286
    %6308 = vmatpush.msra.mxu0 %v6284
    %6309 = vmatmul.f32.gmra.mxu0 %v6289
    %v6310 = vpop.f32.mrf.mxu0
    %v6311 = vadd.f32 0.0, %v6310
    %6312 = vmatmul.f32.gmra.mxu0 %v6291
    %v6313 = vpop.f32.mrf.mxu0
    %v6314 = vadd.f32 0.0, %v6313
    %6315 = vdwg.mxu0
    %6348 = vset.pattern.permute.xlu0 0
    %6349 = vperm.xlu0 %6348, %v5173
    %v6350 = vpop.permute.xlu0 %6349
    %6351 = vset.pattern.permute.xlu0 0
    %6352 = vperm.xlu0 %6351, %v5174
    %v6353 = vpop.permute.xlu0 %6352
    %6354 = vset.pattern.permute.xlu0 0
    %6355 = vperm.xlu0 %6354, %v5175
    %v6356 = vpop.permute.xlu0 %6355
    %6357 = vset.pattern.permute.xlu0 0
    %6358 = vperm.xlu0 %6357, %v5176
    %v6359 = vpop.permute.xlu0 %6358
    %6360 = vset.pattern.permute.xlu0 0
    %6361 = vperm.xlu0 %6360, %v5177
    %v6362 = vpop.permute.xlu0 %6361
    %6363 = vset.pattern.permute.xlu0 0
    %6364 = vperm.xlu0 %6363, %v5178
    %v6365 = vpop.permute.xlu0 %6364
    %6366 = vset.pattern.permute.xlu0 0
    %6367 = vperm.xlu0 %6366, %v5179
    %v6368 = vpop.permute.xlu0 %6367
    %6369 = vset.pattern.permute.xlu0 0
    %6370 = vperm.xlu0 %6369, %v5180
    %v6371 = vpop.permute.xlu0 %6370
    %6372 = vset.pattern.permute.xlu0 0
    %6373 = vperm.xlu0 %6372, %v5181
    %v6374 = vpop.permute.xlu0 %6373
    %6375 = vset.pattern.permute.xlu0 0
    %6376 = vperm.xlu0 %6375, %v5182
    %v6377 = vpop.permute.xlu0 %6376
    %6378 = vset.pattern.permute.xlu0 0
    %6379 = vperm.xlu0 %6378, %v5183
    %v6380 = vpop.permute.xlu0 %6379
    %6381 = vset.pattern.permute.xlu0 0
    %6382 = vperm.xlu0 %6381, %v5184
    %v6383 = vpop.permute.xlu0 %6382
    %6384 = vset.pattern.permute.xlu0 0
    %6385 = vperm.xlu0 %6384, %v5185
    %v6386 = vpop.permute.xlu0 %6385
    %6387 = vset.pattern.permute.xlu0 0
    %6388 = vperm.xlu0 %6387, %v5186
    %v6389 = vpop.permute.xlu0 %6388
    %6390 = vset.pattern.permute.xlu0 0
    %6391 = vperm.xlu0 %6390, %v5187
    %v6392 = vpop.permute.xlu0 %6391
    %6393 = vset.pattern.permute.xlu0 0
    %6394 = vperm.xlu0 %6393, %v5188
    %v6395 = vpop.permute.xlu0 %6394
    %6396 = vset.pattern.permute.xlu0 0
    %6397 = vperm.xlu0 %6396, %v5189
    %v6398 = vpop.permute.xlu0 %6397
    %6399 = vset.pattern.permute.xlu0 0
    %6400 = vperm.xlu0 %6399, %v5190
    %v6401 = vpop.permute.xlu0 %6400
    %6402 = vset.pattern.permute.xlu0 0
    %6403 = vperm.xlu0 %6402, %v5191
    %v6404 = vpop.permute.xlu0 %6403
    %6405 = vset.pattern.permute.xlu0 0
    %6406 = vperm.xlu0 %6405, %v5192
    %v6407 = vpop.permute.xlu0 %6406
    %6408 = vset.pattern.permute.xlu0 0
    %6409 = vperm.xlu0 %6408, %v5193
    %v6410 = vpop.permute.xlu0 %6409
    %6411 = vset.pattern.permute.xlu0 0
    %6412 = vperm.xlu0 %6411, %v5194
    %v6413 = vpop.permute.xlu0 %6412
    %6414 = vset.pattern.permute.xlu0 0
    %6415 = vperm.xlu0 %6414, %v5195
    %v6416 = vpop.permute.xlu0 %6415
    %6417 = vset.pattern.permute.xlu0 0
    %6418 = vperm.xlu0 %6417, %v5196
    %v6419 = vpop.permute.xlu0 %6418
    %6420 = vset.pattern.permute.xlu0 0
    %6421 = vperm.xlu0 %6420, %v5197
    %v6422 = vpop.permute.xlu0 %6421
    %6423 = vset.pattern.permute.xlu0 0
    %6424 = vperm.xlu0 %6423, %v5198
    %v6425 = vpop.permute.xlu0 %6424
    %6426 = vset.pattern.permute.xlu0 0
    %6427 = vperm.xlu0 %6426, %v5199
    %v6428 = vpop.permute.xlu0 %6427
    %6429 = vset.pattern.permute.xlu0 0
    %6430 = vperm.xlu0 %6429, %v5200
    %v6431 = vpop.permute.xlu0 %6430
    %6432 = vset.pattern.permute.xlu0 0
    %6433 = vperm.xlu0 %6432, %v5201
    %v6434 = vpop.permute.xlu0 %6433
    %6435 = vset.pattern.permute.xlu0 0
    %6436 = vperm.xlu0 %6435, %v5202
    %v6437 = vpop.permute.xlu0 %6436
    %6438 = vset.pattern.permute.xlu0 0
    %6439 = vperm.xlu0 %6438, %v5203
    %v6440 = vpop.permute.xlu0 %6439
    %6441 = vset.pattern.permute.xlu0 0
    %6442 = vperm.xlu0 %6441, %v5204
    %v6443 = vpop.permute.xlu0 %6442
    %v6444 = vperm.slane %v6350, %v1031
    %v6445 = vperm.slane %v6353, %v1033
    %v6446 = vsel %vm1035, %v6445, %v6444
    %v6447 = vperm.slane %v6356, %v1031
    %v6448 = vperm.slane %v6359, %v1033
    %v6449 = vsel %vm1035, %v6448, %v6447
    %v6450 = vperm.slane %v6362, %v1031
    %v6451 = vperm.slane %v6365, %v1033
    %v6452 = vsel %vm1035, %v6451, %v6450
    %v6453 = vperm.slane %v6368, %v1031
    %v6454 = vperm.slane %v6371, %v1033
    %v6455 = vsel %vm1035, %v6454, %v6453
    %v6456 = vperm.slane %v6374, %v1031
    %v6457 = vperm.slane %v6377, %v1033
    %v6458 = vsel %vm1035, %v6457, %v6456
    %v6459 = vperm.slane %v6380, %v1031
    %v6460 = vperm.slane %v6383, %v1033
    %v6461 = vsel %vm1035, %v6460, %v6459
    %v6462 = vperm.slane %v6386, %v1031
    %v6463 = vperm.slane %v6389, %v1033
    %v6464 = vsel %vm1035, %v6463, %v6462
    %v6465 = vperm.slane %v6392, %v1031
    %v6466 = vperm.slane %v6395, %v1033
    %v6467 = vsel %vm1035, %v6466, %v6465
    %v6468 = vperm.slane %v6398, %v1031
    %v6469 = vperm.slane %v6401, %v1033
    %v6470 = vsel %vm1035, %v6469, %v6468
    %v6471 = vperm.slane %v6404, %v1031
    %v6472 = vperm.slane %v6407, %v1033
    %v6473 = vsel %vm1035, %v6472, %v6471
    %v6474 = vperm.slane %v6410, %v1031
    %v6475 = vperm.slane %v6413, %v1033
    %v6476 = vsel %vm1035, %v6475, %v6474
    %v6477 = vperm.slane %v6416, %v1031
    %v6478 = vperm.slane %v6419, %v1033
    %v6479 = vsel %vm1035, %v6478, %v6477
    %v6480 = vperm.slane %v6422, %v1031
    %v6481 = vperm.slane %v6425, %v1033
    %v6482 = vsel %vm1035, %v6481, %v6480
    %v6483 = vperm.slane %v6428, %v1031
    %v6484 = vperm.slane %v6431, %v1033
    %v6485 = vsel %vm1035, %v6484, %v6483
    %v6486 = vperm.slane %v6434, %v1031
    %v6487 = vperm.slane %v6437, %v1033
    %v6488 = vsel %vm1035, %v6487, %v6486
    %v6489 = vperm.slane %v6440, %v1031
    %v6490 = vperm.slane %v6443, %v1033
    %v6491 = vsel %vm1035, %v6490, %v6489
    %v6492 = vsel %vm1082, %v6449, %v6446
    %v6493 = vsel %vm1084, %v6452, %v6492
    %v6494 = vsel %vm1086, %v6455, %v6493
    %v6495 = vsel %vm1088, %v6458, %v6494
    %v6496 = vsel %vm1090, %v6461, %v6495
    %v6497 = vsel %vm1092, %v6464, %v6496
    %v6498 = vsel %vm1094, %v6467, %v6497
    %v6499 = vsel %vm1082, %v6473, %v6470
    %v6500 = vsel %vm1084, %v6476, %v6499
    %v6501 = vsel %vm1086, %v6479, %v6500
    %v6502 = vsel %vm1088, %v6482, %v6501
    %v6503 = vsel %vm1090, %v6485, %v6502
    %v6504 = vsel %vm1092, %v6488, %v6503
    %v6505 = vsel %vm1094, %v6491, %v6504
    %v6506 = vsel %vm1105, %v6498, 0
    %v6508 = vsel %vm1105, %v6505, 0
    %6510 = vmatpush.msra.mxu0 0.0
    %6511 = vmatpush.msra.mxu0 0.0
    %6512 = vmatpush.msra.mxu0 0.0
    %6513 = vmatpush.msra.mxu0 0.0
    %6514 = vmatpush.msra.mxu0 0.0
    %6515 = vmatpush.msra.mxu0 0.0
    %6516 = vmatpush.msra.mxu0 0.0
    %6517 = vmatpush.msra.mxu0 0.0
    %6518 = vmatpush.msra.mxu0 0.0
    %6519 = vmatpush.msra.mxu0 0.0
    %6520 = vmatpush.msra.mxu0 0.0
    %6521 = vmatpush.msra.mxu0 0.0
    %6522 = vmatpush.msra.mxu0 0.0
    %6523 = vmatpush.msra.mxu0 0.0
    %6524 = vmatpush.msra.mxu0 %v4242
    %6525 = vmatpush.msra.mxu0 %v4239
    %6526 = vmatmul.f32.gmra.mxu0 %v6506
    %v6527 = vpop.f32.mrf.mxu0
    %v6528 = vadd.f32 %v6311, %v6527
    %6529 = vmatmul.f32.gmra.mxu0 %v6508
    %v6530 = vpop.f32.mrf.mxu0
    %v6531 = vadd.f32 %v6314, %v6530
    %6532 = vdwg.mxu0
    %6533 = vrot.lane.b32.xlu0 %v4415, 64
    %v6534 = vpop.permute.xlu0 %6533
    %6535 = vrot.lane.b32.xlu0 %v4416, 64
    %v6536 = vpop.permute.xlu0 %6535
    %6537 = vrot.lane.b32.xlu0 %v4417, 64
    %v6538 = vpop.permute.xlu0 %6537
    %6539 = vrot.lane.b32.xlu0 %v4418, 64
    %v6540 = vpop.permute.xlu0 %6539
    %6541 = vrot.lane.b32.xlu0 %v4419, 64
    %v6542 = vpop.permute.xlu0 %6541
    %6543 = vrot.lane.b32.xlu0 %v4420, 64
    %v6544 = vpop.permute.xlu0 %6543
    %6545 = vrot.lane.b32.xlu0 %v4421, 64
    %v6546 = vpop.permute.xlu0 %6545
    %6547 = vrot.lane.b32.xlu0 %v4422, 64
    %v6548 = vpop.permute.xlu0 %6547
    %6549 = vrot.lane.b32.xlu0 %v4423, 64
    %v6550 = vpop.permute.xlu0 %6549
    %6551 = vrot.lane.b32.xlu0 %v4424, 64
    %v6552 = vpop.permute.xlu0 %6551
    %6553 = vrot.lane.b32.xlu0 %v4425, 64
    %v6554 = vpop.permute.xlu0 %6553
    %6555 = vrot.lane.b32.xlu0 %v4426, 64
    %v6556 = vpop.permute.xlu0 %6555
    %6557 = vrot.lane.b32.xlu0 %v4427, 64
    %v6558 = vpop.permute.xlu0 %6557
    %6559 = vrot.lane.b32.xlu0 %v4428, 64
    %v6560 = vpop.permute.xlu0 %6559
    %6561 = vrot.lane.b32.xlu0 %v4429, 64
    %v6562 = vpop.permute.xlu0 %6561
    %6563 = vrot.lane.b32.xlu0 %v4430, 64
    %v6564 = vpop.permute.xlu0 %6563
    %6565 = vrot.lane.b32.xlu0 %v4431, 64
    %v6566 = vpop.permute.xlu0 %6565
    %6567 = vrot.lane.b32.xlu0 %v4432, 64
    %v6568 = vpop.permute.xlu0 %6567
    %6569 = vrot.lane.b32.xlu0 %v4433, 64
    %v6570 = vpop.permute.xlu0 %6569
    %6571 = vrot.lane.b32.xlu0 %v4434, 64
    %v6572 = vpop.permute.xlu0 %6571
    %6573 = vrot.lane.b32.xlu0 %v4435, 64
    %v6574 = vpop.permute.xlu0 %6573
    %6575 = vrot.lane.b32.xlu0 %v4436, 64
    %v6576 = vpop.permute.xlu0 %6575
    %6577 = vrot.lane.b32.xlu0 %v4437, 64
    %v6578 = vpop.permute.xlu0 %6577
    %6579 = vrot.lane.b32.xlu0 %v4438, 64
    %v6580 = vpop.permute.xlu0 %6579
    %6581 = vrot.lane.b32.xlu0 %v4439, 64
    %v6582 = vpop.permute.xlu0 %6581
    %6583 = vrot.lane.b32.xlu0 %v4440, 64
    %v6584 = vpop.permute.xlu0 %6583
    %6585 = vrot.lane.b32.xlu0 %v4441, 64
    %v6586 = vpop.permute.xlu0 %6585
    %6587 = vrot.lane.b32.xlu0 %v4442, 64
    %v6588 = vpop.permute.xlu0 %6587
    %6589 = vrot.lane.b32.xlu0 %v4443, 64
    %v6590 = vpop.permute.xlu0 %6589
    %6591 = vrot.lane.b32.xlu0 %v4444, 64
    %v6592 = vpop.permute.xlu0 %6591
    %6593 = vrot.lane.b32.xlu0 %v4445, 64
    %v6594 = vpop.permute.xlu0 %6593
    %6595 = vrot.lane.b32.xlu0 %v4446, 64
    %v6596 = vpop.permute.xlu0 %6595
    %v6629 = vsel %vm254, %v6534, 0.0
    %6630 = vadd.xlane.f32.xlu0 %v6629
    %v6631 = vpop.xlane.xlu0 %6630
    %v6632 = vsel %vm254, %v6536, 0.0
    %6633 = vadd.xlane.f32.xlu0 %v6632
    %v6634 = vpop.xlane.xlu0 %6633
    %v6635 = vsel %vm254, %v6538, 0.0
    %6636 = vadd.xlane.f32.xlu0 %v6635
    %v6637 = vpop.xlane.xlu0 %6636
    %v6638 = vsel %vm254, %v6540, 0.0
    %6639 = vadd.xlane.f32.xlu0 %v6638
    %v6640 = vpop.xlane.xlu0 %6639
    %v6641 = vsel %vm254, %v6542, 0.0
    %6642 = vadd.xlane.f32.xlu0 %v6641
    %v6643 = vpop.xlane.xlu0 %6642
    %v6644 = vsel %vm254, %v6544, 0.0
    %6645 = vadd.xlane.f32.xlu0 %v6644
    %v6646 = vpop.xlane.xlu0 %6645
    %v6647 = vsel %vm254, %v6546, 0.0
    %6648 = vadd.xlane.f32.xlu0 %v6647
    %v6649 = vpop.xlane.xlu0 %6648
    %v6650 = vsel %vm254, %v6548, 0.0
    %6651 = vadd.xlane.f32.xlu0 %v6650
    %v6652 = vpop.xlane.xlu0 %6651
    %v6653 = vsel %vm254, %v6550, 0.0
    %6654 = vadd.xlane.f32.xlu0 %v6653
    %v6655 = vpop.xlane.xlu0 %6654
    %v6656 = vsel %vm254, %v6552, 0.0
    %6657 = vadd.xlane.f32.xlu0 %v6656
    %v6658 = vpop.xlane.xlu0 %6657
    %v6659 = vsel %vm254, %v6554, 0.0
    %6660 = vadd.xlane.f32.xlu0 %v6659
    %v6661 = vpop.xlane.xlu0 %6660
    %v6662 = vsel %vm254, %v6556, 0.0
    %6663 = vadd.xlane.f32.xlu0 %v6662
    %v6664 = vpop.xlane.xlu0 %6663
    %v6665 = vsel %vm254, %v6558, 0.0
    %6666 = vadd.xlane.f32.xlu0 %v6665
    %v6667 = vpop.xlane.xlu0 %6666
    %v6668 = vsel %vm254, %v6560, 0.0
    %6669 = vadd.xlane.f32.xlu0 %v6668
    %v6670 = vpop.xlane.xlu0 %6669
    %v6671 = vsel %vm254, %v6562, 0.0
    %6672 = vadd.xlane.f32.xlu0 %v6671
    %v6673 = vpop.xlane.xlu0 %6672
    %v6674 = vsel %vm254, %v6564, 0.0
    %6675 = vadd.xlane.f32.xlu0 %v6674
    %v6676 = vpop.xlane.xlu0 %6675
    %v6677 = vsel %vm254, %v6566, 0.0
    %6678 = vadd.xlane.f32.xlu0 %v6677
    %v6679 = vpop.xlane.xlu0 %6678
    %v6680 = vsel %vm254, %v6568, 0.0
    %6681 = vadd.xlane.f32.xlu0 %v6680
    %v6682 = vpop.xlane.xlu0 %6681
    %v6683 = vsel %vm254, %v6570, 0.0
    %6684 = vadd.xlane.f32.xlu0 %v6683
    %v6685 = vpop.xlane.xlu0 %6684
    %v6686 = vsel %vm254, %v6572, 0.0
    %6687 = vadd.xlane.f32.xlu0 %v6686
    %v6688 = vpop.xlane.xlu0 %6687
    %v6689 = vsel %vm254, %v6574, 0.0
    %6690 = vadd.xlane.f32.xlu0 %v6689
    %v6691 = vpop.xlane.xlu0 %6690
    %v6692 = vsel %vm254, %v6576, 0.0
    %6693 = vadd.xlane.f32.xlu0 %v6692
    %v6694 = vpop.xlane.xlu0 %6693
    %v6695 = vsel %vm254, %v6578, 0.0
    %6696 = vadd.xlane.f32.xlu0 %v6695
    %v6697 = vpop.xlane.xlu0 %6696
    %v6698 = vsel %vm254, %v6580, 0.0
    %6699 = vadd.xlane.f32.xlu0 %v6698
    %v6700 = vpop.xlane.xlu0 %6699
    %v6701 = vsel %vm254, %v6582, 0.0
    %6702 = vadd.xlane.f32.xlu0 %v6701
    %v6703 = vpop.xlane.xlu0 %6702
    %v6704 = vsel %vm254, %v6584, 0.0
    %6705 = vadd.xlane.f32.xlu0 %v6704
    %v6706 = vpop.xlane.xlu0 %6705
    %v6707 = vsel %vm254, %v6586, 0.0
    %6708 = vadd.xlane.f32.xlu0 %v6707
    %v6709 = vpop.xlane.xlu0 %6708
    %v6710 = vsel %vm254, %v6588, 0.0
    %6711 = vadd.xlane.f32.xlu0 %v6710
    %v6712 = vpop.xlane.xlu0 %6711
    %v6713 = vsel %vm254, %v6590, 0.0
    %6714 = vadd.xlane.f32.xlu0 %v6713
    %v6715 = vpop.xlane.xlu0 %6714
    %v6716 = vsel %vm254, %v6592, 0.0
    %6717 = vadd.xlane.f32.xlu0 %v6716
    %v6718 = vpop.xlane.xlu0 %6717
    %v6719 = vsel %vm254, %v6594, 0.0
    %6720 = vadd.xlane.f32.xlu0 %v6719
    %v6721 = vpop.xlane.xlu0 %6720
    %v6722 = vsel %vm254, %v6596, 0.0
    %6723 = vadd.xlane.f32.xlu0 %v6722
    %v6724 = vpop.xlane.xlu0 %6723
    %v6725 = vadd.f32 %v6631, %v636
    %v6726 = vadd.f32 %v6634, %v642
    %v6727 = vadd.f32 %v6637, %v649
    %v6728 = vadd.f32 %v6640, %v655
    %v6729 = vadd.f32 %v6643, %v662
    %v6730 = vadd.f32 %v6646, %v668
    %v6731 = vadd.f32 %v6649, %v675
    %v6732 = vadd.f32 %v6652, %v681
    %v6733 = vadd.f32 %v6655, %v688
    %v6734 = vadd.f32 %v6658, %v694
    %v6735 = vadd.f32 %v6661, %v701
    %v6736 = vadd.f32 %v6664, %v707
    %v6737 = vadd.f32 %v6667, %v714
    %v6738 = vadd.f32 %v6670, %v720
    %v6739 = vadd.f32 %v6673, %v727
    %v6740 = vadd.f32 %v6676, %v733
    %v6741 = vadd.f32 %v6679, %v740
    %v6742 = vadd.f32 %v6682, %v746
    %v6743 = vadd.f32 %v6685, %v753
    %v6744 = vadd.f32 %v6688, %v759
    %v6745 = vadd.f32 %v6691, %v766
    %v6746 = vadd.f32 %v6694, %v772
    %v6747 = vadd.f32 %v6697, %v779
    %v6748 = vadd.f32 %v6700, %v785
    %v6749 = vadd.f32 %v6703, %v792
    %v6750 = vadd.f32 %v6706, %v798
    %v6751 = vadd.f32 %v6709, %v805
    %v6752 = vadd.f32 %v6712, %v811
    %v6753 = vadd.f32 %v6715, %v818
    %v6754 = vadd.f32 %v6718, %v824
    %v6755 = vadd.f32 %v6721, %v831
    %v6756 = vadd.f32 %v6724, %v837
    %6789 = vset.pattern.permute.xlu0 0
    %6790 = vperm.xlu0 %6789, %v6725
    %v6791 = vpop.permute.xlu0 %6790
    %6792 = vset.pattern.permute.xlu0 0
    %6793 = vperm.xlu0 %6792, %v6726
    %v6794 = vpop.permute.xlu0 %6793
    %6795 = vset.pattern.permute.xlu0 0
    %6796 = vperm.xlu0 %6795, %v6727
    %v6797 = vpop.permute.xlu0 %6796
    %6798 = vset.pattern.permute.xlu0 0
    %6799 = vperm.xlu0 %6798, %v6728
    %v6800 = vpop.permute.xlu0 %6799
    %6801 = vset.pattern.permute.xlu0 0
    %6802 = vperm.xlu0 %6801, %v6729
    %v6803 = vpop.permute.xlu0 %6802
    %6804 = vset.pattern.permute.xlu0 0
    %6805 = vperm.xlu0 %6804, %v6730
    %v6806 = vpop.permute.xlu0 %6805
    %6807 = vset.pattern.permute.xlu0 0
    %6808 = vperm.xlu0 %6807, %v6731
    %v6809 = vpop.permute.xlu0 %6808
    %6810 = vset.pattern.permute.xlu0 0
    %6811 = vperm.xlu0 %6810, %v6732
    %v6812 = vpop.permute.xlu0 %6811
    %6813 = vset.pattern.permute.xlu0 0
    %6814 = vperm.xlu0 %6813, %v6733
    %v6815 = vpop.permute.xlu0 %6814
    %6816 = vset.pattern.permute.xlu0 0
    %6817 = vperm.xlu0 %6816, %v6734
    %v6818 = vpop.permute.xlu0 %6817
    %6819 = vset.pattern.permute.xlu0 0
    %6820 = vperm.xlu0 %6819, %v6735
    %v6821 = vpop.permute.xlu0 %6820
    %6822 = vset.pattern.permute.xlu0 0
    %6823 = vperm.xlu0 %6822, %v6736
    %v6824 = vpop.permute.xlu0 %6823
    %6825 = vset.pattern.permute.xlu0 0
    %6826 = vperm.xlu0 %6825, %v6737
    %v6827 = vpop.permute.xlu0 %6826
    %6828 = vset.pattern.permute.xlu0 0
    %6829 = vperm.xlu0 %6828, %v6738
    %v6830 = vpop.permute.xlu0 %6829
    %6831 = vset.pattern.permute.xlu0 0
    %6832 = vperm.xlu0 %6831, %v6739
    %v6833 = vpop.permute.xlu0 %6832
    %6834 = vset.pattern.permute.xlu0 0
    %6835 = vperm.xlu0 %6834, %v6740
    %v6836 = vpop.permute.xlu0 %6835
    %6837 = vset.pattern.permute.xlu0 0
    %6838 = vperm.xlu0 %6837, %v6741
    %v6839 = vpop.permute.xlu0 %6838
    %6840 = vset.pattern.permute.xlu0 0
    %6841 = vperm.xlu0 %6840, %v6742
    %v6842 = vpop.permute.xlu0 %6841
    %6843 = vset.pattern.permute.xlu0 0
    %6844 = vperm.xlu0 %6843, %v6743
    %v6845 = vpop.permute.xlu0 %6844
    %6846 = vset.pattern.permute.xlu0 0
    %6847 = vperm.xlu0 %6846, %v6744
    %v6848 = vpop.permute.xlu0 %6847
    %6849 = vset.pattern.permute.xlu0 0
    %6850 = vperm.xlu0 %6849, %v6745
    %v6851 = vpop.permute.xlu0 %6850
    %6852 = vset.pattern.permute.xlu0 0
    %6853 = vperm.xlu0 %6852, %v6746
    %v6854 = vpop.permute.xlu0 %6853
    %6855 = vset.pattern.permute.xlu0 0
    %6856 = vperm.xlu0 %6855, %v6747
    %v6857 = vpop.permute.xlu0 %6856
    %6858 = vset.pattern.permute.xlu0 0
    %6859 = vperm.xlu0 %6858, %v6748
    %v6860 = vpop.permute.xlu0 %6859
    %6861 = vset.pattern.permute.xlu0 0
    %6862 = vperm.xlu0 %6861, %v6749
    %v6863 = vpop.permute.xlu0 %6862
    %6864 = vset.pattern.permute.xlu0 0
    %6865 = vperm.xlu0 %6864, %v6750
    %v6866 = vpop.permute.xlu0 %6865
    %6867 = vset.pattern.permute.xlu0 0
    %6868 = vperm.xlu0 %6867, %v6751
    %v6869 = vpop.permute.xlu0 %6868
    %6870 = vset.pattern.permute.xlu0 0
    %6871 = vperm.xlu0 %6870, %v6752
    %v6872 = vpop.permute.xlu0 %6871
    %6873 = vset.pattern.permute.xlu0 0
    %6874 = vperm.xlu0 %6873, %v6753
    %v6875 = vpop.permute.xlu0 %6874
    %6876 = vset.pattern.permute.xlu0 0
    %6877 = vperm.xlu0 %6876, %v6754
    %v6878 = vpop.permute.xlu0 %6877
    %6879 = vset.pattern.permute.xlu0 0
    %6880 = vperm.xlu0 %6879, %v6755
    %v6881 = vpop.permute.xlu0 %6880
    %6882 = vset.pattern.permute.xlu0 0
    %6883 = vperm.xlu0 %6882, %v6756
    %v6884 = vpop.permute.xlu0 %6883
    %v6885 = vperm.slane %v6791, %v1031
    %v6886 = vperm.slane %v6794, %v1033
    %v6887 = vsel %vm1035, %v6886, %v6885
    %v6888 = vperm.slane %v6797, %v1031
    %v6889 = vperm.slane %v6800, %v1033
    %v6890 = vsel %vm1035, %v6889, %v6888
    %v6891 = vperm.slane %v6803, %v1031
    %v6892 = vperm.slane %v6806, %v1033
    %v6893 = vsel %vm1035, %v6892, %v6891
    %v6894 = vperm.slane %v6809, %v1031
    %v6895 = vperm.slane %v6812, %v1033
    %v6896 = vsel %vm1035, %v6895, %v6894
    %v6897 = vperm.slane %v6815, %v1031
    %v6898 = vperm.slane %v6818, %v1033
    %v6899 = vsel %vm1035, %v6898, %v6897
    %v6900 = vperm.slane %v6821, %v1031
    %v6901 = vperm.slane %v6824, %v1033
    %v6902 = vsel %vm1035, %v6901, %v6900
    %v6903 = vperm.slane %v6827, %v1031
    %v6904 = vperm.slane %v6830, %v1033
    %v6905 = vsel %vm1035, %v6904, %v6903
    %v6906 = vperm.slane %v6833, %v1031
    %v6907 = vperm.slane %v6836, %v1033
    %v6908 = vsel %vm1035, %v6907, %v6906
    %v6909 = vperm.slane %v6839, %v1031
    %v6910 = vperm.slane %v6842, %v1033
    %v6911 = vsel %vm1035, %v6910, %v6909
    %v6912 = vperm.slane %v6845, %v1031
    %v6913 = vperm.slane %v6848, %v1033
    %v6914 = vsel %vm1035, %v6913, %v6912
    %v6915 = vperm.slane %v6851, %v1031
    %v6916 = vperm.slane %v6854, %v1033
    %v6917 = vsel %vm1035, %v6916, %v6915
    %v6918 = vperm.slane %v6857, %v1031
    %v6919 = vperm.slane %v6860, %v1033
    %v6920 = vsel %vm1035, %v6919, %v6918
    %v6921 = vperm.slane %v6863, %v1031
    %v6922 = vperm.slane %v6866, %v1033
    %v6923 = vsel %vm1035, %v6922, %v6921
    %v6924 = vperm.slane %v6869, %v1031
    %v6925 = vperm.slane %v6872, %v1033
    %v6926 = vsel %vm1035, %v6925, %v6924
    %v6927 = vperm.slane %v6875, %v1031
    %v6928 = vperm.slane %v6878, %v1033
    %v6929 = vsel %vm1035, %v6928, %v6927
    %v6930 = vperm.slane %v6881, %v1031
    %v6931 = vperm.slane %v6884, %v1033
    %v6932 = vsel %vm1035, %v6931, %v6930
    %v6933 = vsel %vm1082, %v6890, %v6887
    %v6934 = vsel %vm1084, %v6893, %v6933
    %v6935 = vsel %vm1086, %v6896, %v6934
    %v6936 = vsel %vm1088, %v6899, %v6935
    %v6937 = vsel %vm1090, %v6902, %v6936
    %v6938 = vsel %vm1092, %v6905, %v6937
    %v6939 = vsel %vm1094, %v6908, %v6938
    %v6940 = vsel %vm1082, %v6914, %v6911
    %v6941 = vsel %vm1084, %v6917, %v6940
    %v6942 = vsel %vm1086, %v6920, %v6941
    %v6943 = vsel %vm1088, %v6923, %v6942
    %v6944 = vsel %vm1090, %v6926, %v6943
    %v6945 = vsel %vm1092, %v6929, %v6944
    %v6946 = vsel %vm1094, %v6932, %v6945
    %v6949 = vsel %vm1105, %v6939, -inf
    %6950 = vmax.xlane.f32.xlu0 %v6949
    %v6951 = vpop.xlane.xlu0 %6950
    %v6952 = vsel %vm1105, %v6946, -inf
    %6953 = vmax.xlane.f32.xlu0 %v6952
    %v6954 = vpop.xlane.xlu0 %6953
    %v6957 = vperm.slane %v6951, 0
    %v6958 = vperm.slane %v6951, 1
    %v6959 = vperm.slane %v6951, 2
    %v6960 = vperm.slane %v6951, 3
    %v6961 = vperm.slane %v6951, 4
    %v6962 = vperm.slane %v6951, 5
    %v6963 = vperm.slane %v6951, 6
    %v6964 = vperm.slane %v6951, 7
    %v6965 = vperm.slane %v6954, 0
    %v6966 = vperm.slane %v6954, 1
    %v6967 = vperm.slane %v6954, 2
    %v6968 = vperm.slane %v6954, 3
    %v6969 = vperm.slane %v6954, 4
    %v6970 = vperm.slane %v6954, 5
    %v6971 = vperm.slane %v6954, 6
    %v6972 = vperm.slane %v6954, 7
    %v6989 = vsub.f32 %v6725, %v6957
    %v6990 = vsub.f32 %v6726, %v6957
    %v6991 = vsub.f32 %v6727, %v6958
    %v6992 = vsub.f32 %v6728, %v6958
    %v6993 = vsub.f32 %v6729, %v6959
    %v6994 = vsub.f32 %v6730, %v6959
    %v6995 = vsub.f32 %v6731, %v6960
    %v6996 = vsub.f32 %v6732, %v6960
    %v6997 = vsub.f32 %v6733, %v6961
    %v6998 = vsub.f32 %v6734, %v6961
    %v6999 = vsub.f32 %v6735, %v6962
    %v7000 = vsub.f32 %v6736, %v6962
    %v7001 = vsub.f32 %v6737, %v6963
    %v7002 = vsub.f32 %v6738, %v6963
    %v7003 = vsub.f32 %v6739, %v6964
    %v7004 = vsub.f32 %v6740, %v6964
    %v7005 = vsub.f32 %v6741, %v6965
    %v7006 = vsub.f32 %v6742, %v6965
    %v7007 = vsub.f32 %v6743, %v6966
    %v7008 = vsub.f32 %v6744, %v6966
    %v7009 = vsub.f32 %v6745, %v6967
    %v7010 = vsub.f32 %v6746, %v6967
    %v7011 = vsub.f32 %v6747, %v6968
    %v7012 = vsub.f32 %v6748, %v6968
    %v7013 = vsub.f32 %v6749, %v6969
    %v7014 = vsub.f32 %v6750, %v6969
    %v7015 = vsub.f32 %v6751, %v6970
    %v7016 = vsub.f32 %v6752, %v6970
    %v7017 = vsub.f32 %v6753, %v6971
    %v7018 = vsub.f32 %v6754, %v6971
    %v7019 = vsub.f32 %v6755, %v6972
    %v7020 = vsub.f32 %v6756, %v6972
    %v7021 = vmul.f32 %v6989, 1.442695
    %v7022 = vpow.pop %v7021
    %v7023 = vmul.f32 %v6990, 1.442695
    %v7024 = vpow.pop %v7023
    %v7025 = vmul.f32 %v6991, 1.442695
    %v7026 = vpow.pop %v7025
    %v7027 = vmul.f32 %v6992, 1.442695
    %v7028 = vpow.pop %v7027
    %v7029 = vmul.f32 %v6993, 1.442695
    %v7030 = vpow.pop %v7029
    %v7031 = vmul.f32 %v6994, 1.442695
    %v7032 = vpow.pop %v7031
    %v7033 = vmul.f32 %v6995, 1.442695
    %v7034 = vpow.pop %v7033
    %v7035 = vmul.f32 %v6996, 1.442695
    %v7036 = vpow.pop %v7035
    %v7037 = vmul.f32 %v6997, 1.442695
    %v7038 = vpow.pop %v7037
    %v7039 = vmul.f32 %v6998, 1.442695
    %v7040 = vpow.pop %v7039
    %v7041 = vmul.f32 %v6999, 1.442695
    %v7042 = vpow.pop %v7041
    %v7043 = vmul.f32 %v7000, 1.442695
    %v7044 = vpow.pop %v7043
    %v7045 = vmul.f32 %v7001, 1.442695
    %v7046 = vpow.pop %v7045
    %v7047 = vmul.f32 %v7002, 1.442695
    %v7048 = vpow.pop %v7047
    %v7049 = vmul.f32 %v7003, 1.442695
    %v7050 = vpow.pop %v7049
    %v7051 = vmul.f32 %v7004, 1.442695
    %v7052 = vpow.pop %v7051
    %v7053 = vmul.f32 %v7005, 1.442695
    %v7054 = vpow.pop %v7053
    %v7055 = vmul.f32 %v7006, 1.442695
    %v7056 = vpow.pop %v7055
    %v7057 = vmul.f32 %v7007, 1.442695
    %v7058 = vpow.pop %v7057
    %v7059 = vmul.f32 %v7008, 1.442695
    %v7060 = vpow.pop %v7059
    %v7061 = vmul.f32 %v7009, 1.442695
    %v7062 = vpow.pop %v7061
    %v7063 = vmul.f32 %v7010, 1.442695
    %v7064 = vpow.pop %v7063
    %v7065 = vmul.f32 %v7011, 1.442695
    %v7066 = vpow.pop %v7065
    %v7067 = vmul.f32 %v7012, 1.442695
    %v7068 = vpow.pop %v7067
    %v7069 = vmul.f32 %v7013, 1.442695
    %v7070 = vpow.pop %v7069
    %v7071 = vmul.f32 %v7014, 1.442695
    %v7072 = vpow.pop %v7071
    %v7073 = vmul.f32 %v7015, 1.442695
    %v7074 = vpow.pop %v7073
    %v7075 = vmul.f32 %v7016, 1.442695
    %v7076 = vpow.pop %v7075
    %v7077 = vmul.f32 %v7017, 1.442695
    %v7078 = vpow.pop %v7077
    %v7079 = vmul.f32 %v7018, 1.442695
    %v7080 = vpow.pop %v7079
    %v7081 = vmul.f32 %v7019, 1.442695
    %v7082 = vpow.pop %v7081
    %v7083 = vmul.f32 %v7020, 1.442695
    %v7084 = vpow.pop %v7083
    %v7085 = vmul.f32 %v7022, %v1250
    %v7086 = vmul.f32 %v7024, %v1256
    %v7087 = vmul.f32 %v7026, %v1263
    %v7088 = vmul.f32 %v7028, %v1269
    %v7089 = vmul.f32 %v7030, %v1276
    %v7090 = vmul.f32 %v7032, %v1282
    %v7091 = vmul.f32 %v7034, %v1289
    %v7092 = vmul.f32 %v7036, %v1295
    %v7093 = vmul.f32 %v7038, %v1302
    %v7094 = vmul.f32 %v7040, %v1308
    %v7095 = vmul.f32 %v7042, %v1315
    %v7096 = vmul.f32 %v7044, %v1321
    %v7097 = vmul.f32 %v7046, %v1328
    %v7098 = vmul.f32 %v7048, %v1334
    %v7099 = vmul.f32 %v7050, %v1341
    %v7100 = vmul.f32 %v7052, %v1347
    %v7101 = vmul.f32 %v7054, %v1354
    %v7102 = vmul.f32 %v7056, %v1360
    %v7103 = vmul.f32 %v7058, %v1367
    %v7104 = vmul.f32 %v7060, %v1373
    %v7105 = vmul.f32 %v7062, %v1380
    %v7106 = vmul.f32 %v7064, %v1386
    %v7107 = vmul.f32 %v7066, %v1393
    %v7108 = vmul.f32 %v7068, %v1399
    %v7109 = vmul.f32 %v7070, %v1406
    %v7110 = vmul.f32 %v7072, %v1412
    %v7111 = vmul.f32 %v7074, %v1419
    %v7112 = vmul.f32 %v7076, %v1425
    %v7113 = vmul.f32 %v7078, %v1432
    %v7114 = vmul.f32 %v7080, %v1438
    %v7115 = vmul.f32 %v7082, %v1445
    %v7116 = vmul.f32 %v7084, %v1451
    %7149 = vset.pattern.permute.xlu0 0
    %7150 = vperm.xlu0 %7149, %v7085
    %v7151 = vpop.permute.xlu0 %7150
    %7152 = vset.pattern.permute.xlu0 0
    %7153 = vperm.xlu0 %7152, %v7086
    %v7154 = vpop.permute.xlu0 %7153
    %7155 = vset.pattern.permute.xlu0 0
    %7156 = vperm.xlu0 %7155, %v7087
    %v7157 = vpop.permute.xlu0 %7156
    %7158 = vset.pattern.permute.xlu0 0
    %7159 = vperm.xlu0 %7158, %v7088
    %v7160 = vpop.permute.xlu0 %7159
    %7161 = vset.pattern.permute.xlu0 0
    %7162 = vperm.xlu0 %7161, %v7089
    %v7163 = vpop.permute.xlu0 %7162
    %7164 = vset.pattern.permute.xlu0 0
    %7165 = vperm.xlu0 %7164, %v7090
    %v7166 = vpop.permute.xlu0 %7165
    %7167 = vset.pattern.permute.xlu0 0
    %7168 = vperm.xlu0 %7167, %v7091
    %v7169 = vpop.permute.xlu0 %7168
    %7170 = vset.pattern.permute.xlu0 0
    %7171 = vperm.xlu0 %7170, %v7092
    %v7172 = vpop.permute.xlu0 %7171
    %7173 = vset.pattern.permute.xlu0 0
    %7174 = vperm.xlu0 %7173, %v7093
    %v7175 = vpop.permute.xlu0 %7174
    %7176 = vset.pattern.permute.xlu0 0
    %7177 = vperm.xlu0 %7176, %v7094
    %v7178 = vpop.permute.xlu0 %7177
    %7179 = vset.pattern.permute.xlu0 0
    %7180 = vperm.xlu0 %7179, %v7095
    %v7181 = vpop.permute.xlu0 %7180
    %7182 = vset.pattern.permute.xlu0 0
    %7183 = vperm.xlu0 %7182, %v7096
    %v7184 = vpop.permute.xlu0 %7183
    %7185 = vset.pattern.permute.xlu0 0
    %7186 = vperm.xlu0 %7185, %v7097
    %v7187 = vpop.permute.xlu0 %7186
    %7188 = vset.pattern.permute.xlu0 0
    %7189 = vperm.xlu0 %7188, %v7098
    %v7190 = vpop.permute.xlu0 %7189
    %7191 = vset.pattern.permute.xlu0 0
    %7192 = vperm.xlu0 %7191, %v7099
    %v7193 = vpop.permute.xlu0 %7192
    %7194 = vset.pattern.permute.xlu0 0
    %7195 = vperm.xlu0 %7194, %v7100
    %v7196 = vpop.permute.xlu0 %7195
    %7197 = vset.pattern.permute.xlu0 0
    %7198 = vperm.xlu0 %7197, %v7101
    %v7199 = vpop.permute.xlu0 %7198
    %7200 = vset.pattern.permute.xlu0 0
    %7201 = vperm.xlu0 %7200, %v7102
    %v7202 = vpop.permute.xlu0 %7201
    %7203 = vset.pattern.permute.xlu0 0
    %7204 = vperm.xlu0 %7203, %v7103
    %v7205 = vpop.permute.xlu0 %7204
    %7206 = vset.pattern.permute.xlu0 0
    %7207 = vperm.xlu0 %7206, %v7104
    %v7208 = vpop.permute.xlu0 %7207
    %7209 = vset.pattern.permute.xlu0 0
    %7210 = vperm.xlu0 %7209, %v7105
    %v7211 = vpop.permute.xlu0 %7210
    %7212 = vset.pattern.permute.xlu0 0
    %7213 = vperm.xlu0 %7212, %v7106
    %v7214 = vpop.permute.xlu0 %7213
    %7215 = vset.pattern.permute.xlu0 0
    %7216 = vperm.xlu0 %7215, %v7107
    %v7217 = vpop.permute.xlu0 %7216
    %7218 = vset.pattern.permute.xlu0 0
    %7219 = vperm.xlu0 %7218, %v7108
    %v7220 = vpop.permute.xlu0 %7219
    %7221 = vset.pattern.permute.xlu0 0
    %7222 = vperm.xlu0 %7221, %v7109
    %v7223 = vpop.permute.xlu0 %7222
    %7224 = vset.pattern.permute.xlu0 0
    %7225 = vperm.xlu0 %7224, %v7110
    %v7226 = vpop.permute.xlu0 %7225
    %7227 = vset.pattern.permute.xlu0 0
    %7228 = vperm.xlu0 %7227, %v7111
    %v7229 = vpop.permute.xlu0 %7228
    %7230 = vset.pattern.permute.xlu0 0
    %7231 = vperm.xlu0 %7230, %v7112
    %v7232 = vpop.permute.xlu0 %7231
    %7233 = vset.pattern.permute.xlu0 0
    %7234 = vperm.xlu0 %7233, %v7113
    %v7235 = vpop.permute.xlu0 %7234
    %7236 = vset.pattern.permute.xlu0 0
    %7237 = vperm.xlu0 %7236, %v7114
    %v7238 = vpop.permute.xlu0 %7237
    %7239 = vset.pattern.permute.xlu0 0
    %7240 = vperm.xlu0 %7239, %v7115
    %v7241 = vpop.permute.xlu0 %7240
    %7242 = vset.pattern.permute.xlu0 0
    %7243 = vperm.xlu0 %7242, %v7116
    %v7244 = vpop.permute.xlu0 %7243
    %v7245 = vperm.slane %v7151, %v1031
    %v7246 = vperm.slane %v7154, %v1033
    %v7247 = vsel %vm1035, %v7246, %v7245
    %v7248 = vperm.slane %v7157, %v1031
    %v7249 = vperm.slane %v7160, %v1033
    %v7250 = vsel %vm1035, %v7249, %v7248
    %v7251 = vperm.slane %v7163, %v1031
    %v7252 = vperm.slane %v7166, %v1033
    %v7253 = vsel %vm1035, %v7252, %v7251
    %v7254 = vperm.slane %v7169, %v1031
    %v7255 = vperm.slane %v7172, %v1033
    %v7256 = vsel %vm1035, %v7255, %v7254
    %v7257 = vperm.slane %v7175, %v1031
    %v7258 = vperm.slane %v7178, %v1033
    %v7259 = vsel %vm1035, %v7258, %v7257
    %v7260 = vperm.slane %v7181, %v1031
    %v7261 = vperm.slane %v7184, %v1033
    %v7262 = vsel %vm1035, %v7261, %v7260
    %v7263 = vperm.slane %v7187, %v1031
    %v7264 = vperm.slane %v7190, %v1033
    %v7265 = vsel %vm1035, %v7264, %v7263
    %v7266 = vperm.slane %v7193, %v1031
    %v7267 = vperm.slane %v7196, %v1033
    %v7268 = vsel %vm1035, %v7267, %v7266
    %v7269 = vperm.slane %v7199, %v1031
    %v7270 = vperm.slane %v7202, %v1033
    %v7271 = vsel %vm1035, %v7270, %v7269
    %v7272 = vperm.slane %v7205, %v1031
    %v7273 = vperm.slane %v7208, %v1033
    %v7274 = vsel %vm1035, %v7273, %v7272
    %v7275 = vperm.slane %v7211, %v1031
    %v7276 = vperm.slane %v7214, %v1033
    %v7277 = vsel %vm1035, %v7276, %v7275
    %v7278 = vperm.slane %v7217, %v1031
    %v7279 = vperm.slane %v7220, %v1033
    %v7280 = vsel %vm1035, %v7279, %v7278
    %v7281 = vperm.slane %v7223, %v1031
    %v7282 = vperm.slane %v7226, %v1033
    %v7283 = vsel %vm1035, %v7282, %v7281
    %v7284 = vperm.slane %v7229, %v1031
    %v7285 = vperm.slane %v7232, %v1033
    %v7286 = vsel %vm1035, %v7285, %v7284
    %v7287 = vperm.slane %v7235, %v1031
    %v7288 = vperm.slane %v7238, %v1033
    %v7289 = vsel %vm1035, %v7288, %v7287
    %v7290 = vperm.slane %v7241, %v1031
    %v7291 = vperm.slane %v7244, %v1033
    %v7292 = vsel %vm1035, %v7291, %v7290
    %v7293 = vsel %vm1082, %v7250, %v7247
    %v7294 = vsel %vm1084, %v7253, %v7293
    %v7295 = vsel %vm1086, %v7256, %v7294
    %v7296 = vsel %vm1088, %v7259, %v7295
    %v7297 = vsel %vm1090, %v7262, %v7296
    %v7298 = vsel %vm1092, %v7265, %v7297
    %v7299 = vsel %vm1094, %v7268, %v7298
    %v7300 = vsel %vm1082, %v7274, %v7271
    %v7301 = vsel %vm1084, %v7277, %v7300
    %v7302 = vsel %vm1086, %v7280, %v7301
    %v7303 = vsel %vm1088, %v7283, %v7302
    %v7304 = vsel %vm1090, %v7286, %v7303
    %v7305 = vsel %vm1092, %v7289, %v7304
    %v7306 = vsel %vm1094, %v7292, %v7305
    %v7309 = vsel %vm1105, %v7299, 0.0
    %7310 = vadd.xlane.f32.xlu0 %v7309
    %v7311 = vpop.xlane.xlu0 %7310
    %v7312 = vsel %vm1105, %v7306, 0.0
    %7313 = vadd.xlane.f32.xlu0 %v7312
    %v7314 = vpop.xlane.xlu0 %7313
    %v7315 = vmul.f32 %v7311, 3.0
    %v7316 = vmul.f32 %v7314, 3.0
    %v7317 = vmax.f32 %v7315, 1e-30
    %v7318 = vmax.f32 %v7316, 1e-30
    %v7319 = vrcp.pop %v7317
    %v7320 = vrcp.pop %v7318
    %v7323 = vperm.slane %v7319, 0
    %v7324 = vperm.slane %v7319, 1
    %v7325 = vperm.slane %v7319, 2
    %v7326 = vperm.slane %v7319, 3
    %v7327 = vperm.slane %v7319, 4
    %v7328 = vperm.slane %v7319, 5
    %v7329 = vperm.slane %v7319, 6
    %v7330 = vperm.slane %v7319, 7
    %v7331 = vperm.slane %v7320, 0
    %v7332 = vperm.slane %v7320, 1
    %v7333 = vperm.slane %v7320, 2
    %v7334 = vperm.slane %v7320, 3
    %v7335 = vperm.slane %v7320, 4
    %v7336 = vperm.slane %v7320, 5
    %v7337 = vperm.slane %v7320, 6
    %v7338 = vperm.slane %v7320, 7
    %v7355 = vmul.f32 %v7085, %v7323
    %v7356 = vmul.f32 %v7086, %v7323
    %v7357 = vmul.f32 %v7087, %v7324
    %v7358 = vmul.f32 %v7088, %v7324
    %v7359 = vmul.f32 %v7089, %v7325
    %v7360 = vmul.f32 %v7090, %v7325
    %v7361 = vmul.f32 %v7091, %v7326
    %v7362 = vmul.f32 %v7092, %v7326
    %v7363 = vmul.f32 %v7093, %v7327
    %v7364 = vmul.f32 %v7094, %v7327
    %v7365 = vmul.f32 %v7095, %v7328
    %v7366 = vmul.f32 %v7096, %v7328
    %v7367 = vmul.f32 %v7097, %v7329
    %v7368 = vmul.f32 %v7098, %v7329
    %v7369 = vmul.f32 %v7099, %v7330
    %v7370 = vmul.f32 %v7100, %v7330
    %v7371 = vmul.f32 %v7101, %v7331
    %v7372 = vmul.f32 %v7102, %v7331
    %v7373 = vmul.f32 %v7103, %v7332
    %v7374 = vmul.f32 %v7104, %v7332
    %v7375 = vmul.f32 %v7105, %v7333
    %v7376 = vmul.f32 %v7106, %v7333
    %v7377 = vmul.f32 %v7107, %v7334
    %v7378 = vmul.f32 %v7108, %v7334
    %v7379 = vmul.f32 %v7109, %v7335
    %v7380 = vmul.f32 %v7110, %v7335
    %v7381 = vmul.f32 %v7111, %v7336
    %v7382 = vmul.f32 %v7112, %v7336
    %v7383 = vmul.f32 %v7113, %v7337
    %v7384 = vmul.f32 %v7114, %v7337
    %v7385 = vmul.f32 %v7115, %v7338
    %v7386 = vmul.f32 %v7116, %v7338
    %7419 = vset.pattern.permute.xlu0 0
    %7420 = vperm.xlu0 %7419, %v7355
    %v7421 = vpop.permute.xlu0 %7420
    %7422 = vset.pattern.permute.xlu0 0
    %7423 = vperm.xlu0 %7422, %v7356
    %v7424 = vpop.permute.xlu0 %7423
    %7425 = vset.pattern.permute.xlu0 0
    %7426 = vperm.xlu0 %7425, %v7357
    %v7427 = vpop.permute.xlu0 %7426
    %7428 = vset.pattern.permute.xlu0 0
    %7429 = vperm.xlu0 %7428, %v7358
    %v7430 = vpop.permute.xlu0 %7429
    %7431 = vset.pattern.permute.xlu0 0
    %7432 = vperm.xlu0 %7431, %v7359
    %v7433 = vpop.permute.xlu0 %7432
    %7434 = vset.pattern.permute.xlu0 0
    %7435 = vperm.xlu0 %7434, %v7360
    %v7436 = vpop.permute.xlu0 %7435
    %7437 = vset.pattern.permute.xlu0 0
    %7438 = vperm.xlu0 %7437, %v7361
    %v7439 = vpop.permute.xlu0 %7438
    %7440 = vset.pattern.permute.xlu0 0
    %7441 = vperm.xlu0 %7440, %v7362
    %v7442 = vpop.permute.xlu0 %7441
    %7443 = vset.pattern.permute.xlu0 0
    %7444 = vperm.xlu0 %7443, %v7363
    %v7445 = vpop.permute.xlu0 %7444
    %7446 = vset.pattern.permute.xlu0 0
    %7447 = vperm.xlu0 %7446, %v7364
    %v7448 = vpop.permute.xlu0 %7447
    %7449 = vset.pattern.permute.xlu0 0
    %7450 = vperm.xlu0 %7449, %v7365
    %v7451 = vpop.permute.xlu0 %7450
    %7452 = vset.pattern.permute.xlu0 0
    %7453 = vperm.xlu0 %7452, %v7366
    %v7454 = vpop.permute.xlu0 %7453
    %7455 = vset.pattern.permute.xlu0 0
    %7456 = vperm.xlu0 %7455, %v7367
    %v7457 = vpop.permute.xlu0 %7456
    %7458 = vset.pattern.permute.xlu0 0
    %7459 = vperm.xlu0 %7458, %v7368
    %v7460 = vpop.permute.xlu0 %7459
    %7461 = vset.pattern.permute.xlu0 0
    %7462 = vperm.xlu0 %7461, %v7369
    %v7463 = vpop.permute.xlu0 %7462
    %7464 = vset.pattern.permute.xlu0 0
    %7465 = vperm.xlu0 %7464, %v7370
    %v7466 = vpop.permute.xlu0 %7465
    %7467 = vset.pattern.permute.xlu0 0
    %7468 = vperm.xlu0 %7467, %v7371
    %v7469 = vpop.permute.xlu0 %7468
    %7470 = vset.pattern.permute.xlu0 0
    %7471 = vperm.xlu0 %7470, %v7372
    %v7472 = vpop.permute.xlu0 %7471
    %7473 = vset.pattern.permute.xlu0 0
    %7474 = vperm.xlu0 %7473, %v7373
    %v7475 = vpop.permute.xlu0 %7474
    %7476 = vset.pattern.permute.xlu0 0
    %7477 = vperm.xlu0 %7476, %v7374
    %v7478 = vpop.permute.xlu0 %7477
    %7479 = vset.pattern.permute.xlu0 0
    %7480 = vperm.xlu0 %7479, %v7375
    %v7481 = vpop.permute.xlu0 %7480
    %7482 = vset.pattern.permute.xlu0 0
    %7483 = vperm.xlu0 %7482, %v7376
    %v7484 = vpop.permute.xlu0 %7483
    %7485 = vset.pattern.permute.xlu0 0
    %7486 = vperm.xlu0 %7485, %v7377
    %v7487 = vpop.permute.xlu0 %7486
    %7488 = vset.pattern.permute.xlu0 0
    %7489 = vperm.xlu0 %7488, %v7378
    %v7490 = vpop.permute.xlu0 %7489
    %7491 = vset.pattern.permute.xlu0 0
    %7492 = vperm.xlu0 %7491, %v7379
    %v7493 = vpop.permute.xlu0 %7492
    %7494 = vset.pattern.permute.xlu0 0
    %7495 = vperm.xlu0 %7494, %v7380
    %v7496 = vpop.permute.xlu0 %7495
    %7497 = vset.pattern.permute.xlu0 0
    %7498 = vperm.xlu0 %7497, %v7381
    %v7499 = vpop.permute.xlu0 %7498
    %7500 = vset.pattern.permute.xlu0 0
    %7501 = vperm.xlu0 %7500, %v7382
    %v7502 = vpop.permute.xlu0 %7501
    %7503 = vset.pattern.permute.xlu0 0
    %7504 = vperm.xlu0 %7503, %v7383
    %v7505 = vpop.permute.xlu0 %7504
    %7506 = vset.pattern.permute.xlu0 0
    %7507 = vperm.xlu0 %7506, %v7384
    %v7508 = vpop.permute.xlu0 %7507
    %7509 = vset.pattern.permute.xlu0 0
    %7510 = vperm.xlu0 %7509, %v7385
    %v7511 = vpop.permute.xlu0 %7510
    %7512 = vset.pattern.permute.xlu0 0
    %7513 = vperm.xlu0 %7512, %v7386
    %v7514 = vpop.permute.xlu0 %7513
    %v7515 = vperm.slane %v7421, %v1031
    %v7516 = vperm.slane %v7424, %v1033
    %v7517 = vsel %vm1035, %v7516, %v7515
    %v7518 = vperm.slane %v7427, %v1031
    %v7519 = vperm.slane %v7430, %v1033
    %v7520 = vsel %vm1035, %v7519, %v7518
    %v7521 = vperm.slane %v7433, %v1031
    %v7522 = vperm.slane %v7436, %v1033
    %v7523 = vsel %vm1035, %v7522, %v7521
    %v7524 = vperm.slane %v7439, %v1031
    %v7525 = vperm.slane %v7442, %v1033
    %v7526 = vsel %vm1035, %v7525, %v7524
    %v7527 = vperm.slane %v7445, %v1031
    %v7528 = vperm.slane %v7448, %v1033
    %v7529 = vsel %vm1035, %v7528, %v7527
    %v7530 = vperm.slane %v7451, %v1031
    %v7531 = vperm.slane %v7454, %v1033
    %v7532 = vsel %vm1035, %v7531, %v7530
    %v7533 = vperm.slane %v7457, %v1031
    %v7534 = vperm.slane %v7460, %v1033
    %v7535 = vsel %vm1035, %v7534, %v7533
    %v7536 = vperm.slane %v7463, %v1031
    %v7537 = vperm.slane %v7466, %v1033
    %v7538 = vsel %vm1035, %v7537, %v7536
    %v7539 = vperm.slane %v7469, %v1031
    %v7540 = vperm.slane %v7472, %v1033
    %v7541 = vsel %vm1035, %v7540, %v7539
    %v7542 = vperm.slane %v7475, %v1031
    %v7543 = vperm.slane %v7478, %v1033
    %v7544 = vsel %vm1035, %v7543, %v7542
    %v7545 = vperm.slane %v7481, %v1031
    %v7546 = vperm.slane %v7484, %v1033
    %v7547 = vsel %vm1035, %v7546, %v7545
    %v7548 = vperm.slane %v7487, %v1031
    %v7549 = vperm.slane %v7490, %v1033
    %v7550 = vsel %vm1035, %v7549, %v7548
    %v7551 = vperm.slane %v7493, %v1031
    %v7552 = vperm.slane %v7496, %v1033
    %v7553 = vsel %vm1035, %v7552, %v7551
    %v7554 = vperm.slane %v7499, %v1031
    %v7555 = vperm.slane %v7502, %v1033
    %v7556 = vsel %vm1035, %v7555, %v7554
    %v7557 = vperm.slane %v7505, %v1031
    %v7558 = vperm.slane %v7508, %v1033
    %v7559 = vsel %vm1035, %v7558, %v7557
    %v7560 = vperm.slane %v7511, %v1031
    %v7561 = vperm.slane %v7514, %v1033
    %v7562 = vsel %vm1035, %v7561, %v7560
    %v7563 = vsel %vm1082, %v7520, %v7517
    %v7564 = vsel %vm1084, %v7523, %v7563
    %v7565 = vsel %vm1086, %v7526, %v7564
    %v7566 = vsel %vm1088, %v7529, %v7565
    %v7567 = vsel %vm1090, %v7532, %v7566
    %v7568 = vsel %vm1092, %v7535, %v7567
    %v7569 = vsel %vm1094, %v7538, %v7568
    %v7570 = vsel %vm1082, %v7544, %v7541
    %v7571 = vsel %vm1084, %v7547, %v7570
    %v7572 = vsel %vm1086, %v7550, %v7571
    %v7573 = vsel %vm1088, %v7553, %v7572
    %v7574 = vsel %vm1090, %v7556, %v7573
    %v7575 = vsel %vm1092, %v7559, %v7574
    %v7576 = vsel %vm1094, %v7562, %v7575
    %7577 = vrot.lane.b32.xlu0 %v4239, 64
    %v7578 = vpop.permute.xlu0 %7577
    %7579 = vrot.lane.b32.xlu0 %v4242, 64
    %v7580 = vpop.permute.xlu0 %7579
    %v7583 = vsel %vm1105, %v7569, 0
    %v7585 = vsel %vm1105, %v7576, 0
    %7587 = vmatpush.msra.mxu0 0.0
    %7588 = vmatpush.msra.mxu0 0.0
    %7589 = vmatpush.msra.mxu0 0.0
    %7590 = vmatpush.msra.mxu0 0.0
    %7591 = vmatpush.msra.mxu0 0.0
    %7592 = vmatpush.msra.mxu0 0.0
    %7593 = vmatpush.msra.mxu0 0.0
    %7594 = vmatpush.msra.mxu0 0.0
    %7595 = vmatpush.msra.mxu0 0.0
    %7596 = vmatpush.msra.mxu0 0.0
    %7597 = vmatpush.msra.mxu0 0.0
    %7598 = vmatpush.msra.mxu0 0.0
    %7599 = vmatpush.msra.mxu0 0.0
    %7600 = vmatpush.msra.mxu0 0.0
    %7601 = vmatpush.msra.mxu0 %v7580
    %7602 = vmatpush.msra.mxu0 %v7578
    %7603 = vmatmul.f32.gmra.mxu0 %v7583
    %v7604 = vpop.f32.mrf.mxu0
    %v7605 = vadd.f32 0.0, %v7604
    %7606 = vmatmul.f32.gmra.mxu0 %v7585
    %v7607 = vpop.f32.mrf.mxu0
    %v7608 = vadd.f32 0.0, %v7607
    %7609 = vdwg.mxu0
    %v7610 = vadd.f32 %v6528, %v7605
    %v7611 = vadd.f32 %v6531, %v7608
    %v7612 = vld [vmem:[#allocation16] sm:$0x1]
    %v7614 = vperm.slane %v7612, 0
    %v7616 = vadd.f32 %v7610, %v7614
    %v7617 = vadd.f32 %v7611, %v7614
    %v7618 = vmax.f32 %v7616, 0.0
    %v7619 = vmax.f32 %v7617, 0.0
    %v7620 = vld [vmem:[%s14] sm:$0xff]
    %v7621 = vld [vmem:[%s14 + $0x8] sm:$0xff]
    %v7622 = vld [vmem:[%s14 + $0x10] sm:$0xff]
    %v7623 = vld [vmem:[%s14 + $0x18] sm:$0xff]
    %v7624 = vld [vmem:[%s15] sm:$0x1]
    %v7626 = vperm.slane %v7624, 0
    %v7629 = vsel %vm254, %v7618, 0
    %v7632 = vsel %vm254, %v7619, 0
    %7634 = vmatpush.msra.mxu0 0.0
    %7635 = vmatpush.msra.mxu0 0.0
    %7636 = vmatpush.msra.mxu0 0.0
    %7637 = vmatpush.msra.mxu0 0.0
    %7638 = vmatpush.msra.mxu0 0.0
    %7639 = vmatpush.msra.mxu0 0.0
    %7640 = vmatpush.msra.mxu0 0.0
    %7641 = vmatpush.msra.mxu0 0.0
    %7642 = vmatpush.msra.mxu0 0.0
    %7643 = vmatpush.msra.mxu0 0.0
    %7644 = vmatpush.msra.mxu0 0.0
    %7645 = vmatpush.msra.mxu0 0.0
    %7646 = vmatpush.msra.mxu0 %v7623
    %7647 = vmatpush.msra.mxu0 %v7622
    %7648 = vmatpush.msra.mxu0 %v7621
    %7649 = vmatpush.msra.mxu0 %v7620
    %7650 = vmatmul.f32.gmra.mxu0 %v7629
    %v7651 = vpop.f32.mrf.mxu0
    %v7652 = vadd.f32 %v7626, %v7651
    %7653 = vmatmul.f32.gmra.mxu0 %v7632
    %v7654 = vpop.f32.mrf.mxu0
    %v7655 = vadd.f32 %v7626, %v7654
    %7656 = vdwg.mxu0
    %v7657 = vmax.f32 %v7652, 0.0
    %v7658 = vmax.f32 %v7655, 0.0
    %v7659 = vld [vmem:[%s16] sm:$0xff]
    %v7660 = vld [vmem:[%s16 + $0x8] sm:$0xff]
    %v7661 = vld [vmem:[%s16 + $0x10] sm:$0xff]
    %v7662 = vld [vmem:[%s16 + $0x18] sm:$0xff]
    %v7663 = vld [vmem:[%s17] sm:$0x1]
    %v7665 = vperm.slane %v7663, 0
    %v7668 = vsel %vm254, %v7657, 0
    %v7671 = vsel %vm254, %v7658, 0
    %7673 = vmatpush.msra.mxu0 0.0
    %7674 = vmatpush.msra.mxu0 0.0
    %7675 = vmatpush.msra.mxu0 0.0
    %7676 = vmatpush.msra.mxu0 0.0
    %7677 = vmatpush.msra.mxu0 0.0
    %7678 = vmatpush.msra.mxu0 0.0
    %7679 = vmatpush.msra.mxu0 0.0
    %7680 = vmatpush.msra.mxu0 0.0
    %7681 = vmatpush.msra.mxu0 0.0
    %7682 = vmatpush.msra.mxu0 0.0
    %7683 = vmatpush.msra.mxu0 0.0
    %7684 = vmatpush.msra.mxu0 0.0
    %7685 = vmatpush.msra.mxu0 %v7662
    %7686 = vmatpush.msra.mxu0 %v7661
    %7687 = vmatpush.msra.mxu0 %v7660
    %7688 = vmatpush.msra.mxu0 %v7659
    %7689 = vmatmul.f32.gmra.mxu0 %v7668
    %v7690 = vpop.f32.mrf.mxu0
    %v7691 = vadd.f32 %v7665, %v7690
    %7692 = vmatmul.f32.gmra.mxu0 %v7671
    %v7693 = vpop.f32.mrf.mxu0
    %v7694 = vadd.f32 %v7665, %v7693
    %7695 = vdwg.mxu0
    %v7696 = vmax.f32 %v7691, 0.0
    %v7697 = vmax.f32 %v7694, 0.0
    %vm7698 = vcmask 31744
    %7699 = vst.msk [vmem:[%s18] sm:$0xff] %vm7698, %v7696
    %7700 = vst.msk [vmem:[%s18 + $0x8] sm:$0xff] %vm7698, %v7697
    // Predicated region
    $region114: #{tpu_custom_call.1} parent=1 // pred_check
      _
    $region115: #{tpu_custom_call.1} parent=1 // pred_check_branch
      %7702 = sbr.rel (0) target = $region117
    $region116: #{tpu_custom_call.1} parent=1 // pred_region
      _
    $region117: #{tpu_custom_call.1} parent=1 // pred_fallthru
      _
    // Predicated region
    $region118: #{tpu_custom_call.1} parent=1 // pred_check
      _
    $region119: #{tpu_custom_call.1} parent=1 // pred_check_branch
      %7704 = sbr.rel (0) target = $region121
    $region120: #{tpu_custom_call.1} parent=1 // pred_region
      _
    $region121: #{tpu_custom_call.1} parent=1 // pred_fallthru
      _
    %7705 = vsyncpa [#allocation3], 1
    %7706 = vsyncpa [#allocation5], 1
    %7707 = vsyncpa [#allocation8], 1
    %7708 = vsyncpa [#allocation11], 1
    %7709 = vsyncpa [#allocation14], 1
    %7710 = vsyncpa [#allocation17], 1

</llo_original>
